<compile_context>
chip_gen: v5e
topology: v5e:2x2
jax: 0.10.0
libtpu: 0.0.40
codegen_flags: <defaults>
</compile_context>

<pallas_src>
import numpy as np
import jax
import jax.numpy as jnp
from jax.experimental import pallas as pl
from jax.experimental.pallas import tpu as pltpu

VMEM = pl.BlockSpec(memory_space=pltpu.MemorySpace.VMEM)
BN_EPS = 1e-5


# ------------------------------ static geometry ------------------------------

def stage_dims(S, in_ch, C):
    """(k, H, W, Cin, Cout, pooled) per conv stage of GP_LeNet_Deeper."""
    stages, h, cin = [], S, in_ch
    for i, cout in enumerate([C, 2 * C, 4 * C, 8 * C, 16 * C]):
        k = 5 if i == 0 else 3
        pooled = i < 4                 # gp5 reads out5 *before* its max-pool
        stages.append((k, h, h, cin, cout, pooled))
        if pooled:
            h //= 2
        cin = cout
    return stages


# ------------------------- host-side weight packing ---------------------------

def conv_toeplitz(K_eff, W_in, pool):
    """Per-dy banded conv matrices for the width-major interleaved layout.

    Returns M (k, (W_in+2p)*Cin, W_in*Cout) with
        conv_pre[h, :] = sum_dy padded_row[h + dy, :] @ M[dy].
    If `pool`, output columns are reordered to [even-w block | odd-w block] so a
    2x horizontal max-pool is a max of the two contiguous column halves.
    """
    k, _, Cin, Cout = K_eff.shape
    p = (k - 1) // 2
    Wp = W_in + 2 * p
    M = np.zeros((k, Wp * Cin, W_in * Cout), np.float32)
    for dy in range(k):
        for w in range(W_in):
            for dx in range(k):
                wp = w + dx
                M[dy, wp * Cin:(wp + 1) * Cin, w * Cout:(w + 1) * Cout] = K_eff[dy, dx]
    if pool:
        M4 = M.reshape(k, Wp * Cin, W_in, Cout)
        half = (W_in // 2) * Cout
        M = np.concatenate([M4[:, :, 0::2, :].reshape(k, Wp * Cin, half),
                            M4[:, :, 1::2, :].reshape(k, Wp * Cin, half)], axis=-1)
    return M


def eo_matrix(H):
    """Row permutation [even rows; odd rows] used for the vertical 2x max-pool."""
    m = np.zeros((H, H), np.float32)
    for h in range(H // 2):
        m[h, 2 * h] = 1.0
        m[H // 2 + h, 2 * h + 1] = 1.0
    return m


def stack_maxout(W, b, m, k):
    """(D, m*k) torch-layout maxout weight -> (D, k*m) stacked so group j of output
    i sits at column j*m + i (one matmul + max over k contiguous column blocks)."""
    d = W.shape[0]
    Ws = W.reshape(d, m, k).transpose(0, 2, 1).reshape(d, k * m)
    bs = b.reshape(m, k).T.reshape(1, k * m)
    return jnp.asarray(Ws, jnp.bfloat16), jnp.asarray(bs, jnp.float32)


def pack_params(P, *, S, in_ch, C, fh):
    """Build the kernel operands from the natural-form parameters."""
    KP = {}
    for i, (k, H, W, Cin, Cout, pooled) in enumerate(stage_dims(S, in_ch, C), start=1):
        g = np.asarray(P[f"bn{i}_g"]); be = np.asarray(P[f"bn{i}_b"])
        rm = np.asarray(P[f"bn{i}_m"]); rv = np.asarray(P[f"bn{i}_v"])
        s = g / np.sqrt(rv + BN_EPS)
        bias = be - rm * s
        K_eff = np.asarray(P[f"K{i}"]) * s[None, None, None, :]   # fold BN scale
        KP[f"w{i}"] = jnp.asarray(conv_toeplitz(K_eff, W, pooled), jnp.bfloat16)
        reps = W // 2 if pooled else W
        KP[f"b{i}"] = jnp.asarray(np.tile(bias, reps)[None, :], jnp.float32)
        if pooled:
            KP[f"eo{i}"] = jnp.asarray(eo_matrix(H), jnp.float32)

    # text branch: BatchNorm1d(eval) + Dropout(id) folded into the second maxout
    s1 = np.asarray(P["bn1d_g"]) / np.sqrt(np.asarray(P["bn1d_v"]) + BN_EPS)
    t1 = np.asarray(P["bn1d_b"]) - np.asarray(P["bn1d_m"]) * s1
    W1, b1 = np.asarray(P["W1"]), np.asarray(P["b1"])
    W2, b2 = np.asarray(P["W2"]), np.asarray(P["b2"])
    KP["mo1_w"], KP["mo1_b"] = stack_maxout(W1, b1, fh, 5)
    KP["mo2_w"], KP["mo2_b"] = stack_maxout(s1[:, None] * W2, b2 + t1 @ W2, 2 * fh, 5)

    # fusion classifier, split so no concat is needed in-kernel
    Wc, bc = np.asarray(P["Wc"]), np.asarray(P["bc"])
    KP["cls_w_t"] = jnp.asarray(Wc[:2 * fh], jnp.float32)
    KP["cls_w_im"] = jnp.asarray(Wc[2 * fh:], jnp.float32)
    KP["cls_b"] = jnp.asarray(bc[None, :], jnp.float32)
    return KP


# ------------------------------- fused kernel ---------------------------------

def build_forward(*, B, S, in_ch, C, fh, text_feats, nout):
    stages = stage_dims(S, in_ch, C)
    n_stage = len(stages)
    pads = []
    for (k, H, W, Cin, Cout, pooled) in stages:
        p = (k - 1) // 2
        pads.append((p, H + 2 * p, (W + 2 * p) * Cin))

    def kernel(*refs):
        it = iter(refs)
        text_ref, img_ref = next(it), next(it)
        w_refs = [next(it) for _ in range(n_stage)]
        b_refs = [next(it) for _ in range(n_stage)]
        eo_refs = [next(it) for _ in range(n_stage - 1)]
        mo1_w, mo1_b = next(it), next(it)
        mo2_w, mo2_b = next(it), next(it)
        cls_w_t, cls_w_im, cls_b = next(it), next(it), next(it)
        out_ref = next(it)
        p_refs = [next(it) for _ in range(n_stage)]
        gp5_ref = next(it)

        # zero the padded-activation scratches (borders must stay zero)
        for pr in p_refs:
            pr[...] = jnp.zeros(pr.shape, pr.dtype)

        # ----------------------------- image branch -------------------------
        for b in range(B):
            p0, _, _ = pads[0]
            _, H0, W0, C0, _, _ = stages[0]
            p_refs[0][b, p0:p0 + H0, p0 * C0:(p0 + W0) * C0] = img_ref[b]

            for i, (k, H, W, Cin, Cout, pooled) in enumerate(stages):
                # conv (+ folded BN scale) as k banded matmuls
                acc = None
                for dy in range(k):
                    slab = p_refs[i][b, dy:dy + H, :].astype(jnp.bfloat16)
                    part = jnp.dot(slab, w_refs[i][dy],
                                   preferred_element_type=jnp.float32)
                    acc = part if acc is None else acc + part      # (H, W*Cout) f32

                if pooled:
                    # horizontal 2x max-pool: columns are [even-w | odd-w] blocks
                    nh = (W // 2) * Cout
                    hp = jnp.maximum(acc[:, :nh], acc[:, nh:])     # (H, nh)
                    # vertical 2x max-pool: row permutation then max of halves
                    r = jnp.dot(eo_refs[i][...], hp,
                                preferred_element_type=jnp.float32)
                    vp = jnp.maximum(r[:H // 2], r[H // 2:])       # (H/2, nh)
                    # BN bias + ReLU (commute with max-pool); feed next stage
                    act = jnp.maximum(vp + b_refs[i][...], 0.0)
                    pn, _, _ = pads[i + 1]
                    _, Hn, Wn, Cn, _, _ = stages[i + 1]
                    p_refs[i + 1][b, pn:pn + Hn, pn * Cn:(pn + Wn) * Cn] = (
                        act.astype(p_refs[i + 1].dtype))
                else:
                    # out5 (no pool) -> gp5 = mean over the HxW spatial grid
                    out5 = jnp.maximum(acc + b_refs[i][...], 0.0)  # (H, W*Cout)
                    g = None
                    for hh in range(H):
                        for ww in range(W):
                            piece = out5[hh:hh + 1, ww * Cout:(ww + 1) * Cout]
                            g = piece if g is None else g + piece
                    gp5_ref[b:b + 1, :] = g * (1.0 / (H * W))

        # ----------------------------- text branch --------------------------
        t = text_ref[...].astype(jnp.bfloat16)
        r1 = jnp.dot(t, mo1_w[...], preferred_element_type=jnp.float32) + mo1_b[...]
        o1 = r1[:, :fh]
        for j in range(1, 5):
            o1 = jnp.maximum(o1, r1[:, j * fh:(j + 1) * fh])
        r2 = jnp.dot(o1.astype(jnp.bfloat16), mo2_w[...],
                     preferred_element_type=jnp.float32) + mo2_b[...]
        m2 = 2 * fh
        o3 = r2[:, :m2]
        for j in range(1, 5):
            o3 = jnp.maximum(o3, r2[:, j * m2:(j + 1) * m2])

        # ----------------------------- fusion head --------------------------
        out = (jnp.dot(o3, cls_w_t[...], preferred_element_type=jnp.float32)
               + jnp.dot(gp5_ref[...], cls_w_im[...],
                         preferred_element_type=jnp.float32)
               + cls_b[...])
        out_ref[...] = out

    n_in = 2 + 2 * n_stage + (n_stage - 1) + 4 + 3
    scratch = ([pltpu.VMEM((B, hp, wc), jnp.float32) for (_, hp, wc) in pads]
               + [pltpu.VMEM((B, 16 * C), jnp.float32)])

    call = pl.pallas_call(
        kernel,
        out_shape=jax.ShapeDtypeStruct((B, nout), jnp.float32),
        in_specs=[VMEM] * n_in,
        out_specs=VMEM,
        scratch_shapes=scratch,
    )

    def forward(text, image_nhwc, kp):
        img2d = image_nhwc.reshape(B, S, S * in_ch).astype(jnp.float32)
        args = ([text.astype(jnp.float32), img2d]
                + [kp[f"w{i}"] for i in range(1, n_stage + 1)]
                + [kp[f"b{i}"] for i in range(1, n_stage + 1)]
                + [kp[f"eo{i}"] for i in range(1, n_stage)]
                + [kp["mo1_w"], kp["mo1_b"], kp["mo2_w"], kp["mo2_b"],
                   kp["cls_w_t"], kp["cls_w_im"], kp["cls_b"]])
        return call(*args)

    return jax.jit(forward)


# ----------------------------- parameter setup --------------------------------

def make_params(key, *, C, in_ch, text_feats, fh, nout):
    """Random parameters in their natural (PyTorch-like) layout."""
    keys = iter(jax.random.split(key, 40))
    P = {}
    couts = [C, 2 * C, 4 * C, 8 * C, 16 * C]
    cins = [in_ch] + couts[:-1]
    for i, (ci, co) in enumerate(zip(cins, couts), start=1):
        k = 5 if i == 1 else 3
        P[f"K{i}"] = (jax.random.normal(next(keys), (k, k, ci, co), jnp.float32)
                      * np.sqrt(2.0 / (k * k * ci)))
        P[f"bn{i}_g"] = 1.0 + 0.1 * jax.random.normal(next(keys), (co,), jnp.float32)
        P[f"bn{i}_b"] = 0.1 * jax.random.normal(next(keys), (co,), jnp.float32)
        P[f"bn{i}_m"] = 0.1 * jax.random.normal(next(keys), (co,), jnp.float32)
        P[f"bn{i}_v"] = jax.random.uniform(next(keys), (co,), jnp.float32,
                                           minval=0.5, maxval=1.5)
    P["W1"] = (jax.random.normal(next(keys), (text_feats, fh * 5), jnp.float32)
               * np.sqrt(2.0 / text_feats))
    P["b1"] = 0.1 * jax.random.normal(next(keys), (fh * 5,), jnp.float32)
    P["bn1d_g"] = 1.0 + 0.1 * jax.random.normal(next(keys), (fh,), jnp.float32)
    P["bn1d_b"] = 0.1 * jax.random.normal(next(keys), (fh,), jnp.float32)
    P["bn1d_m"] = 0.1 * jax.random.normal(next(keys), (fh,), jnp.float32)
    P["bn1d_v"] = jax.random.uniform(next(keys), (fh,), jnp.float32,
                                     minval=0.5, maxval=1.5)
    P["W2"] = (jax.random.normal(next(keys), (fh, 2 * fh * 5), jnp.float32)
               * np.sqrt(2.0 / fh))
    P["b2"] = 0.1 * jax.random.normal(next(keys), (2 * fh * 5,), jnp.float32)
    d_cls = 2 * fh + 16 * C
    P["Wc"] = (jax.random.normal(next(keys), (d_cls, nout), jnp.float32)
               * np.sqrt(2.0 / d_cls))
    P["bc"] = 0.1 * jax.random.normal(next(keys), (nout,), jnp.float32)
    return P


# ------------------------------ numpy reference --------------------------------

def np_reference(text, image_nhwc, P, *, fh):
    x = np.asarray(image_nhwc, np.float32)
    out5 = None
    for i in range(1, 6):
        K = np.asarray(P[f"K{i}"]); k = K.shape[0]; p = (k - 1) // 2
        B, H, W, Cin = x.shape; Co = K.shape[3]
        xp = np.pad(x, ((0, 0), (p, p), (p, p), (0, 0)))
        conv = np.zeros((B, H, W, Co), np.float32)
        for dy in range(k):
            for dx in range(k):
                conv += xp[:, dy:dy + H, dx:dx + W, :] @ K[dy, dx]
        g = np.asarray(P[f"bn{i}_g"]); be = np.asarray(P[f"bn{i}_b"])
        rm = np.asarray(P[f"bn{i}_m"]); rv = np.asarray(P[f"bn{i}_v"])
        y = np.maximum((conv - rm) / np.sqrt(rv + BN_EPS) * g + be, 0.0)
        if i < 5:
            x = y.reshape(B, H // 2, 2, W // 2, 2, Co).max(axis=(2, 4))
        else:
            out5 = y
    gp5 = out5.mean(axis=(1, 2))

    def maxout(xx, W, b, m, k):
        r = xx @ W + b
        return r.reshape(xx.shape[0], m, k).max(axis=-1)

    t = np.asarray(text, np.float32)
    o1 = maxout(t, np.asarray(P["W1"]), np.asarray(P["b1"]), fh, 5)
    o2 = ((o1 - np.asarray(P["bn1d_m"])) / np.sqrt(np.asarray(P["bn1d_v"]) + BN_EPS)
          * np.asarray(P["bn1d_g"]) + np.asarray(P["bn1d_b"]))
    o3 = maxout(o2, np.asarray(P["W2"]), np.asarray(P["b2"]), 2 * fh, 5)
    feat = np.concatenate([o3, gp5], axis=1)
    return feat @ np.asarray(P["Wc"]) + np.asarray(P["bc"])


# ------------------------------------ main -------------------------------------

if __name__ == "__main__":
    C, in_ch, fh, nout, text_feats = 8, 3, 32, 16, 300
    B, S = 2, 32

    key = jax.random.PRNGKey(0)
    kparam, ktext, kimg = jax.random.split(key, 3)
    P = make_params(kparam, C=C, in_ch=in_ch, text_feats=text_feats, fh=fh, nout=nout)
    KP = pack_params(P, S=S, in_ch=in_ch, C=C, fh=fh)

    text = jax.random.normal(ktext, (B, text_feats), jnp.float32)
    image_nchw = jax.random.normal(kimg, (B, in_ch, S, S), jnp.float32)  # PyTorch NCHW
    image_nhwc = jnp.transpose(image_nchw, (0, 2, 3, 1))                 # kernel layout

    forward = build_forward(B=B, S=S, in_ch=in_ch, C=C, fh=fh,
                            text_feats=text_feats, nout=nout)
    out = jax.block_until_ready(forward(text, image_nhwc, KP))

    ref = np_reference(np.asarray(text), np.asarray(image_nhwc), P, fh=fh)
    np.testing.assert_allclose(np.asarray(out), ref, rtol=5e-2, atol=5e-2)
    print("KERNEL_OK")
</pallas_src>

<mosaic_0001>
module attributes {stable_mosaic.version = 11 : i64} {
  func.func @kernel(%arg0: memref<2x300xf32, #tpu.memory_space<vmem>>, %arg1: memref<2x32x96xf32, #tpu.memory_space<vmem>>, %arg2: memref<5x108x256xbf16, #tpu.memory_space<vmem>>, %arg3: memref<3x144x256xbf16, #tpu.memory_space<vmem>>, %arg4: memref<3x160x256xbf16, #tpu.memory_space<vmem>>, %arg5: memref<3x192x256xbf16, #tpu.memory_space<vmem>>, %arg6: memref<3x256x256xbf16, #tpu.memory_space<vmem>>, %arg7: memref<1x128xf32, #tpu.memory_space<vmem>>, %arg8: memref<1x128xf32, #tpu.memory_space<vmem>>, %arg9: memref<1x128xf32, #tpu.memory_space<vmem>>, %arg10: memref<1x128xf32, #tpu.memory_space<vmem>>, %arg11: memref<1x256xf32, #tpu.memory_space<vmem>>, %arg12: memref<32x32xf32, #tpu.memory_space<vmem>>, %arg13: memref<16x16xf32, #tpu.memory_space<vmem>>, %arg14: memref<8x8xf32, #tpu.memory_space<vmem>>, %arg15: memref<4x4xf32, #tpu.memory_space<vmem>>, %arg16: memref<300x160xbf16, #tpu.memory_space<vmem>>, %arg17: memref<1x160xf32, #tpu.memory_space<vmem>>, %arg18: memref<32x320xbf16, #tpu.memory_space<vmem>>, %arg19: memref<1x320xf32, #tpu.memory_space<vmem>>, %arg20: memref<64x16xf32, #tpu.memory_space<vmem>>, %arg21: memref<128x16xf32, #tpu.memory_space<vmem>>, %arg22: memref<1x16xf32, #tpu.memory_space<vmem>>, %arg23: memref<2x16xf32, #tpu.memory_space<vmem>>, %arg24: memref<2x36x108xf32, #tpu.memory_space<vmem>>, %arg25: memref<2x18x144xf32, #tpu.memory_space<vmem>>, %arg26: memref<2x10x160xf32, #tpu.memory_space<vmem>>, %arg27: memref<2x6x192xf32, #tpu.memory_space<vmem>>, %arg28: memref<2x4x256xf32, #tpu.memory_space<vmem>>, %arg29: memref<2x128xf32, #tpu.memory_space<vmem>>) attributes {dimension_semantics = [], scalar_prefetch = 0 : i64, scratch_operands = 6 : i64, tpu.core_type = #tpu.core_type<tc>} {
    %cst = arith.constant 0.000000e+00 : f32
    %0 = vector.broadcast %cst : f32 to vector<2x36x108xf32>
    %c0 = arith.constant 0 : index
    %c0_0 = arith.constant 0 : index
    %c0_1 = arith.constant 0 : index
    %1 = vector.load %arg24[%c0, %c0_0, %c0_1] : memref<2x36x108xf32, #tpu.memory_space<vmem>>, vector<2x36x108xf32>
    tpu.vector_store %arg24[%c0, %c0_0, %c0_1], %0 {strides = array<i32>} : memref<2x36x108xf32, #tpu.memory_space<vmem>>, vector<2x36x108xf32>,
    %cst_2 = arith.constant 0.000000e+00 : f32
    %2 = vector.broadcast %cst_2 : f32 to vector<2x18x144xf32>
    %c0_3 = arith.constant 0 : index
    %c0_4 = arith.constant 0 : index
    %c0_5 = arith.constant 0 : index
    %3 = vector.load %arg25[%c0_3, %c0_4, %c0_5] : memref<2x18x144xf32, #tpu.memory_space<vmem>>, vector<2x18x144xf32>
    tpu.vector_store %arg25[%c0_3, %c0_4, %c0_5], %2 {strides = array<i32>} : memref<2x18x144xf32, #tpu.memory_space<vmem>>, vector<2x18x144xf32>,
    %cst_6 = arith.constant 0.000000e+00 : f32
    %4 = vector.broadcast %cst_6 : f32 to vector<2x10x160xf32>
    %c0_7 = arith.constant 0 : index
    %c0_8 = arith.constant 0 : index
    %c0_9 = arith.constant 0 : index
    %5 = vector.load %arg26[%c0_7, %c0_8, %c0_9] : memref<2x10x160xf32, #tpu.memory_space<vmem>>, vector<2x10x160xf32>
    tpu.vector_store %arg26[%c0_7, %c0_8, %c0_9], %4 {strides = array<i32>} : memref<2x10x160xf32, #tpu.memory_space<vmem>>, vector<2x10x160xf32>,
    %cst_10 = arith.constant 0.000000e+00 : f32
    %6 = vector.broadcast %cst_10 : f32 to vector<2x6x192xf32>
    %c0_11 = arith.constant 0 : index
    %c0_12 = arith.constant 0 : index
    %c0_13 = arith.constant 0 : index
    %7 = vector.load %arg27[%c0_11, %c0_12, %c0_13] : memref<2x6x192xf32, #tpu.memory_space<vmem>>, vector<2x6x192xf32>
    tpu.vector_store %arg27[%c0_11, %c0_12, %c0_13], %6 {strides = array<i32>} : memref<2x6x192xf32, #tpu.memory_space<vmem>>, vector<2x6x192xf32>,
    %cst_14 = arith.constant 0.000000e+00 : f32
    %8 = vector.broadcast %cst_14 : f32 to vector<2x4x256xf32>
    %c0_15 = arith.constant 0 : index
    %c0_16 = arith.constant 0 : index
    %c0_17 = arith.constant 0 : index
    %9 = vector.load %arg28[%c0_15, %c0_16, %c0_17] : memref<2x4x256xf32, #tpu.memory_space<vmem>>, vector<2x4x256xf32>
    tpu.vector_store %arg28[%c0_15, %c0_16, %c0_17], %8 {strides = array<i32>} : memref<2x4x256xf32, #tpu.memory_space<vmem>>, vector<2x4x256xf32>,
    %c0_18 = arith.constant 0 : index
    %c0_19 = arith.constant 0 : index
    %c0_20 = arith.constant 0 : index
    %10 = vector.load %arg1[%c0_18, %c0_19, %c0_20] : memref<2x32x96xf32, #tpu.memory_space<vmem>>, vector<1x32x96xf32>
    %11 = vector.shape_cast %10 : vector<1x32x96xf32> to vector<32x96xf32>
    %c0_21 = arith.constant 0 : index
    %c2 = arith.constant 2 : index
    %c6 = arith.constant 6 : index
    %12 = vector.load %arg24[%c0_21, %c2, %c6] : memref<2x36x108xf32, #tpu.memory_space<vmem>>, vector<1x32x96xf32>
    %13 = vector.shape_cast %12 : vector<1x32x96xf32> to vector<32x96xf32>
    %14 = vector.shape_cast %11 : vector<32x96xf32> to vector<1x32x96xf32>
    tpu.vector_store %arg24[%c0_21, %c2, %c6], %14 {strides = array<i32>} : memref<2x36x108xf32, #tpu.memory_space<vmem>>, vector<1x32x96xf32>,
    %c0_22 = arith.constant 0 : index
    %c0_23 = arith.constant 0 : index
    %c0_24 = arith.constant 0 : index
    %15 = vector.load %arg24[%c0_22, %c0_23, %c0_24] : memref<2x36x108xf32, #tpu.memory_space<vmem>>, vector<1x32x108xf32>
    %16 = vector.shape_cast %15 : vector<1x32x108xf32> to vector<32x108xf32>
    %17 = arith.truncf %16 : vector<32x108xf32> to vector<32x108xbf16>
    %c0_25 = arith.constant 0 : index
    %c0_26 = arith.constant 0 : index
    %c0_27 = arith.constant 0 : index
    %18 = vector.load %arg2[%c0_25, %c0_26, %c0_27] : memref<5x108x256xbf16, #tpu.memory_space<vmem>>, vector<1x108x256xbf16>
    %19 = vector.shape_cast %18 : vector<1x108x256xbf16> to vector<108x256xbf16>
    %cst_28 = arith.constant dense<0.000000e+00> : vector<32x256xf32>
    %20 = tpu.matmul %17, %19, %cst_28 {dimension_numbers = #tpu.dot_dimension_numbers<[1], [0], [0], [1], [0, 0, 1, 1], [], []>} : vector<32x108xbf16>, vector<108x256xbf16>, vector<32x256xf32> -> vector<32x256xf32>
    %c0_29 = arith.constant 0 : index
    %c1 = arith.constant 1 : index
    %c0_30 = arith.constant 0 : index
    %21 = vector.load %arg24[%c0_29, %c1, %c0_30] : memref<2x36x108xf32, #tpu.memory_space<vmem>>, vector<1x32x108xf32>
    %22 = vector.shape_cast %21 : vector<1x32x108xf32> to vector<32x108xf32>
    %23 = arith.truncf %22 : vector<32x108xf32> to vector<32x108xbf16>
    %c1_31 = arith.constant 1 : index
    %c0_32 = arith.constant 0 : index
    %c0_33 = arith.constant 0 : index
    %24 = vector.load %arg2[%c1_31, %c0_32, %c0_33] : memref<5x108x256xbf16, #tpu.memory_space<vmem>>, vector<1x108x256xbf16>
    %25 = vector.shape_cast %24 : vector<1x108x256xbf16> to vector<108x256xbf16>
    %cst_34 = arith.constant dense<0.000000e+00> : vector<32x256xf32>
    %26 = tpu.matmul %23, %25, %cst_34 {dimension_numbers = #tpu.dot_dimension_numbers<[1], [0], [0], [1], [0, 0, 1, 1], [], []>} : vector<32x108xbf16>, vector<108x256xbf16>, vector<32x256xf32> -> vector<32x256xf32>
    %27 = arith.addf %20, %26 : vector<32x256xf32>
    %c0_35 = arith.constant 0 : index
    %c2_36 = arith.constant 2 : index
    %c0_37 = arith.constant 0 : index
    %28 = vector.load %arg24[%c0_35, %c2_36, %c0_37] : memref<2x36x108xf32, #tpu.memory_space<vmem>>, vector<1x32x108xf32>
    %29 = vector.shape_cast %28 : vector<1x32x108xf32> to vector<32x108xf32>
    %30 = arith.truncf %29 : vector<32x108xf32> to vector<32x108xbf16>
    %c2_38 = arith.constant 2 : index
    %c0_39 = arith.constant 0 : index
    %c0_40 = arith.constant 0 : index
    %31 = vector.load %arg2[%c2_38, %c0_39, %c0_40] : memref<5x108x256xbf16, #tpu.memory_space<vmem>>, vector<1x108x256xbf16>
    %32 = vector.shape_cast %31 : vector<1x108x256xbf16> to vector<108x256xbf16>
    %cst_41 = arith.constant dense<0.000000e+00> : vector<32x256xf32>
    %33 = tpu.matmul %30, %32, %cst_41 {dimension_numbers = #tpu.dot_dimension_numbers<[1], [0], [0], [1], [0, 0, 1, 1], [], []>} : vector<32x108xbf16>, vector<108x256xbf16>, vector<32x256xf32> -> vector<32x256xf32>
    %34 = arith.addf %27, %33 : vector<32x256xf32>
    %c0_42 = arith.constant 0 : index
    %c3 = arith.constant 3 : index
    %c0_43 = arith.constant 0 : index
    %35 = vector.load %arg24[%c0_42, %c3, %c0_43] : memref<2x36x108xf32, #tpu.memory_space<vmem>>, vector<1x32x108xf32>
    %36 = vector.shape_cast %35 : vector<1x32x108xf32> to vector<32x108xf32>
    %37 = arith.truncf %36 : vector<32x108xf32> to vector<32x108xbf16>
    %c3_44 = arith.constant 3 : index
    %c0_45 = arith.constant 0 : index
    %c0_46 = arith.constant 0 : index
    %38 = vector.load %arg2[%c3_44, %c0_45, %c0_46] : memref<5x108x256xbf16, #tpu.memory_space<vmem>>, vector<1x108x256xbf16>
    %39 = vector.shape_cast %38 : vector<1x108x256xbf16> to vector<108x256xbf16>
    %cst_47 = arith.constant dense<0.000000e+00> : vector<32x256xf32>
    %40 = tpu.matmul %37, %39, %cst_47 {dimension_numbers = #tpu.dot_dimension_numbers<[1], [0], [0], [1], [0, 0, 1, 1], [], []>} : vector<32x108xbf16>, vector<108x256xbf16>, vector<32x256xf32> -> vector<32x256xf32>
    %41 = arith.addf %34, %40 : vector<32x256xf32>
    %c0_48 = arith.constant 0 : index
    %c4 = arith.constant 4 : index
    %c0_49 = arith.constant 0 : index
    %42 = vector.load %arg24[%c0_48, %c4, %c0_49] : memref<2x36x108xf32, #tpu.memory_space<vmem>>, vector<1x32x108xf32>
    %43 = vector.shape_cast %42 : vector<1x32x108xf32> to vector<32x108xf32>
    %44 = arith.truncf %43 : vector<32x108xf32> to vector<32x108xbf16>
    %c4_50 = arith.constant 4 : index
    %c0_51 = arith.constant 0 : index
    %c0_52 = arith.constant 0 : index
    %45 = vector.load %arg2[%c4_50, %c0_51, %c0_52] : memref<5x108x256xbf16, #tpu.memory_space<vmem>>, vector<1x108x256xbf16>
    %46 = vector.shape_cast %45 : vector<1x108x256xbf16> to vector<108x256xbf16>
    %cst_53 = arith.constant dense<0.000000e+00> : vector<32x256xf32>
    %47 = tpu.matmul %44, %46, %cst_53 {dimension_numbers = #tpu.dot_dimension_numbers<[1], [0], [0], [1], [0, 0, 1, 1], [], []>} : vector<32x108xbf16>, vector<108x256xbf16>, vector<32x256xf32> -> vector<32x256xf32>
    %48 = arith.addf %41, %47 : vector<32x256xf32>
    %49 = vector.extract_strided_slice %48 {offsets = [0, 0], sizes = [32, 128], strides = [1, 1]} : vector<32x256xf32> to vector<32x128xf32>
    %50 = vector.extract_strided_slice %48 {offsets = [0, 128], sizes = [32, 128], strides = [1, 1]} : vector<32x256xf32> to vector<32x128xf32>
    %51 = arith.maximumf %49, %50 : vector<32x128xf32>
    %c0_54 = arith.constant 0 : index
    %c0_55 = arith.constant 0 : index
    %52 = vector.load %arg12[%c0_54, %c0_55] : memref<32x32xf32, #tpu.memory_space<vmem>>, vector<32x32xf32>
    %cst_56 = arith.constant dense<0.000000e+00> : vector<32x128xf32>
    %53 = tpu.matmul %52, %51, %cst_56 {dimension_numbers = #tpu.dot_dimension_numbers<[1], [0], [0], [1], [0, 0, 1, 1], [], []>} : vector<32x32xf32>, vector<32x128xf32>, vector<32x128xf32> -> vector<32x128xf32>
    %54 = vector.extract_strided_slice %53 {offsets = [0, 0], sizes = [16, 128], strides = [1, 1]} : vector<32x128xf32> to vector<16x128xf32>
    %55 = vector.extract_strided_slice %53 {offsets = [16, 0], sizes = [16, 128], strides = [1, 1]} : vector<32x128xf32> to vector<16x128xf32>
    %56 = arith.maximumf %54, %55 : vector<16x128xf32>
    %c0_57 = arith.constant 0 : index
    %c0_58 = arith.constant 0 : index
    %57 = vector.load %arg7[%c0_57, %c0_58] : memref<1x128xf32, #tpu.memory_space<vmem>>, vector<1x128xf32>
    %58 = vector.broadcast %57 : vector<1x128xf32> to vector<16x128xf32>
    %59 = arith.addf %56, %58 : vector<16x128xf32>
    %cst_59 = arith.constant 0.000000e+00 : f32
    %60 = vector.broadcast %cst_59 : f32 to vector<16x128xf32>
    %61 = arith.maximumf %59, %60 : vector<16x128xf32>
    %c0_60 = arith.constant 0 : index
    %c1_61 = arith.constant 1 : index
    %c8 = arith.constant 8 : index
    %62 = vector.load %arg25[%c0_60, %c1_61, %c8] : memref<2x18x144xf32, #tpu.memory_space<vmem>>, vector<1x16x128xf32>
    %63 = vector.shape_cast %62 : vector<1x16x128xf32> to vector<16x128xf32>
    %64 = vector.shape_cast %61 : vector<16x128xf32> to vector<1x16x128xf32>
    tpu.vector_store %arg25[%c0_60, %c1_61, %c8], %64 {strides = array<i32>} : memref<2x18x144xf32, #tpu.memory_space<vmem>>, vector<1x16x128xf32>,
    %c0_62 = arith.constant 0 : index
    %c0_63 = arith.constant 0 : index
    %c0_64 = arith.constant 0 : index
    %65 = vector.load %arg25[%c0_62, %c0_63, %c0_64] : memref<2x18x144xf32, #tpu.memory_space<vmem>>, vector<1x16x144xf32>
    %66 = vector.shape_cast %65 : vector<1x16x144xf32> to vector<16x144xf32>
    %67 = arith.truncf %66 : vector<16x144xf32> to vector<16x144xbf16>
    %c0_65 = arith.constant 0 : index
    %c0_66 = arith.constant 0 : index
    %c0_67 = arith.constant 0 : index
    %68 = vector.load %arg3[%c0_65, %c0_66, %c0_67] : memref<3x144x256xbf16, #tpu.memory_space<vmem>>, vector<1x144x256xbf16>
    %69 = vector.shape_cast %68 : vector<1x144x256xbf16> to vector<144x256xbf16>
    %cst_68 = arith.constant dense<0.000000e+00> : vector<16x256xf32>
    %70 = tpu.matmul %67, %69, %cst_68 {dimension_numbers = #tpu.dot_dimension_numbers<[1], [0], [0], [1], [0, 0, 1, 1], [], []>} : vector<16x144xbf16>, vector<144x256xbf16>, vector<16x256xf32> -> vector<16x256xf32>
    %c0_69 = arith.constant 0 : index
    %c1_70 = arith.constant 1 : index
    %c0_71 = arith.constant 0 : index
    %71 = vector.load %arg25[%c0_69, %c1_70, %c0_71] : memref<2x18x144xf32, #tpu.memory_space<vmem>>, vector<1x16x144xf32>
    %72 = vector.shape_cast %71 : vector<1x16x144xf32> to vector<16x144xf32>
    %73 = arith.truncf %72 : vector<16x144xf32> to vector<16x144xbf16>
    %c1_72 = arith.constant 1 : index
    %c0_73 = arith.constant 0 : index
    %c0_74 = arith.constant 0 : index
    %74 = vector.load %arg3[%c1_72, %c0_73, %c0_74] : memref<3x144x256xbf16, #tpu.memory_space<vmem>>, vector<1x144x256xbf16>
    %75 = vector.shape_cast %74 : vector<1x144x256xbf16> to vector<144x256xbf16>
    %cst_75 = arith.constant dense<0.000000e+00> : vector<16x256xf32>
    %76 = tpu.matmul %73, %75, %cst_75 {dimension_numbers = #tpu.dot_dimension_numbers<[1], [0], [0], [1], [0, 0, 1, 1], [], []>} : vector<16x144xbf16>, vector<144x256xbf16>, vector<16x256xf32> -> vector<16x256xf32>
    %77 = arith.addf %70, %76 : vector<16x256xf32>
    %c0_76 = arith.constant 0 : index
    %c2_77 = arith.constant 2 : index
    %c0_78 = arith.constant 0 : index
    %78 = vector.load %arg25[%c0_76, %c2_77, %c0_78] : memref<2x18x144xf32, #tpu.memory_space<vmem>>, vector<1x16x144xf32>
    %79 = vector.shape_cast %78 : vector<1x16x144xf32> to vector<16x144xf32>
    %80 = arith.truncf %79 : vector<16x144xf32> to vector<16x144xbf16>
    %c2_79 = arith.constant 2 : index
    %c0_80 = arith.constant 0 : index
    %c0_81 = arith.constant 0 : index
    %81 = vector.load %arg3[%c2_79, %c0_80, %c0_81] : memref<3x144x256xbf16, #tpu.memory_space<vmem>>, vector<1x144x256xbf16>
    %82 = vector.shape_cast %81 : vector<1x144x256xbf16> to vector<144x256xbf16>
    %cst_82 = arith.constant dense<0.000000e+00> : vector<16x256xf32>
    %83 = tpu.matmul %80, %82, %cst_82 {dimension_numbers = #tpu.dot_dimension_numbers<[1], [0], [0], [1], [0, 0, 1, 1], [], []>} : vector<16x144xbf16>, vector<144x256xbf16>, vector<16x256xf32> -> vector<16x256xf32>
    %84 = arith.addf %77, %83 : vector<16x256xf32>
    %85 = vector.extract_strided_slice %84 {offsets = [0, 0], sizes = [16, 128], strides = [1, 1]} : vector<16x256xf32> to vector<16x128xf32>
    %86 = vector.extract_strided_slice %84 {offsets = [0, 128], sizes = [16, 128], strides = [1, 1]} : vector<16x256xf32> to vector<16x128xf32>
    %87 = arith.maximumf %85, %86 : vector<16x128xf32>
    %c0_83 = arith.constant 0 : index
    %c0_84 = arith.constant 0 : index
    %88 = vector.load %arg13[%c0_83, %c0_84] : memref<16x16xf32, #tpu.memory_space<vmem>>, vector<16x16xf32>
    %cst_85 = arith.constant dense<0.000000e+00> : vector<16x128xf32>
    %89 = tpu.matmul %88, %87, %cst_85 {dimension_numbers = #tpu.dot_dimension_numbers<[1], [0], [0], [1], [0, 0, 1, 1], [], []>} : vector<16x16xf32>, vector<16x128xf32>, vector<16x128xf32> -> vector<16x128xf32>
    %90 = vector.extract_strided_slice %89 {offsets = [0, 0], sizes = [8, 128], strides = [1, 1]} : vector<16x128xf32> to vector<8x128xf32>
    %91 = vector.extract_strided_slice %89 {offsets = [8, 0], sizes = [8, 128], strides = [1, 1]} : vector<16x128xf32> to vector<8x128xf32>
    %92 = arith.maximumf %90, %91 : vector<8x128xf32>
    %c0_86 = arith.constant 0 : index
    %c0_87 = arith.constant 0 : index
    %93 = vector.load %arg8[%c0_86, %c0_87] : memref<1x128xf32, #tpu.memory_space<vmem>>, vector<1x128xf32>
    %94 = vector.broadcast %93 : vector<1x128xf32> to vector<8x128xf32>
    %95 = arith.addf %92, %94 : vector<8x128xf32>
    %cst_88 = arith.constant 0.000000e+00 : f32
    %96 = vector.broadcast %cst_88 : f32 to vector<8x128xf32>
    %97 = arith.maximumf %95, %96 : vector<8x128xf32>
    %c0_89 = arith.constant 0 : index
    %c1_90 = arith.constant 1 : index
    %c16 = arith.constant 16 : index
    %98 = vector.load %arg26[%c0_89, %c1_90, %c16] : memref<2x10x160xf32, #tpu.memory_space<vmem>>, vector<1x8x128xf32>
    %99 = vector.shape_cast %98 : vector<1x8x128xf32> to vector<8x128xf32>
    %100 = vector.shape_cast %97 : vector<8x128xf32> to vector<1x8x128xf32>
    tpu.vector_store %arg26[%c0_89, %c1_90, %c16], %100 {strides = array<i32>} : memref<2x10x160xf32, #tpu.memory_space<vmem>>, vector<1x8x128xf32>,
    %c0_91 = arith.constant 0 : index
    %c0_92 = arith.constant 0 : index
    %c0_93 = arith.constant 0 : index
    %101 = vector.load %arg26[%c0_91, %c0_92, %c0_93] : memref<2x10x160xf32, #tpu.memory_space<vmem>>, vector<1x8x160xf32>
    %102 = vector.shape_cast %101 : vector<1x8x160xf32> to vector<8x160xf32>
    %103 = arith.truncf %102 : vector<8x160xf32> to vector<8x160xbf16>
    %c0_94 = arith.constant 0 : index
    %c0_95 = arith.constant 0 : index
    %c0_96 = arith.constant 0 : index
    %104 = vector.load %arg4[%c0_94, %c0_95, %c0_96] : memref<3x160x256xbf16, #tpu.memory_space<vmem>>, vector<1x160x256xbf16>
    %105 = vector.shape_cast %104 : vector<1x160x256xbf16> to vector<160x256xbf16>
    %cst_97 = arith.constant dense<0.000000e+00> : vector<8x256xf32>
    %106 = tpu.matmul %103, %105, %cst_97 {dimension_numbers = #tpu.dot_dimension_numbers<[1], [0], [0], [1], [0, 0, 1, 1], [], []>} : vector<8x160xbf16>, vector<160x256xbf16>, vector<8x256xf32> -> vector<8x256xf32>
    %c0_98 = arith.constant 0 : index
    %c1_99 = arith.constant 1 : index
    %c0_100 = arith.constant 0 : index
    %107 = vector.load %arg26[%c0_98, %c1_99, %c0_100] : memref<2x10x160xf32, #tpu.memory_space<vmem>>, vector<1x8x160xf32>
    %108 = vector.shape_cast %107 : vector<1x8x160xf32> to vector<8x160xf32>
    %109 = arith.truncf %108 : vector<8x160xf32> to vector<8x160xbf16>
    %c1_101 = arith.constant 1 : index
    %c0_102 = arith.constant 0 : index
    %c0_103 = arith.constant 0 : index
    %110 = vector.load %arg4[%c1_101, %c0_102, %c0_103] : memref<3x160x256xbf16, #tpu.memory_space<vmem>>, vector<1x160x256xbf16>
    %111 = vector.shape_cast %110 : vector<1x160x256xbf16> to vector<160x256xbf16>
    %cst_104 = arith.constant dense<0.000000e+00> : vector<8x256xf32>
    %112 = tpu.matmul %109, %111, %cst_104 {dimension_numbers = #tpu.dot_dimension_numbers<[1], [0], [0], [1], [0, 0, 1, 1], [], []>} : vector<8x160xbf16>, vector<160x256xbf16>, vector<8x256xf32> -> vector<8x256xf32>
    %113 = arith.addf %106, %112 : vector<8x256xf32>
    %c0_105 = arith.constant 0 : index
    %c2_106 = arith.constant 2 : index
    %c0_107 = arith.constant 0 : index
    %114 = vector.load %arg26[%c0_105, %c2_106, %c0_107] : memref<2x10x160xf32, #tpu.memory_space<vmem>>, vector<1x8x160xf32>
    %115 = vector.shape_cast %114 : vector<1x8x160xf32> to vector<8x160xf32>
    %116 = arith.truncf %115 : vector<8x160xf32> to vector<8x160xbf16>
    %c2_108 = arith.constant 2 : index
    %c0_109 = arith.constant 0 : index
    %c0_110 = arith.constant 0 : index
    %117 = vector.load %arg4[%c2_108, %c0_109, %c0_110] : memref<3x160x256xbf16, #tpu.memory_space<vmem>>, vector<1x160x256xbf16>
    %118 = vector.shape_cast %117 : vector<1x160x256xbf16> to vector<160x256xbf16>
    %cst_111 = arith.constant dense<0.000000e+00> : vector<8x256xf32>
    %119 = tpu.matmul %116, %118, %cst_111 {dimension_numbers = #tpu.dot_dimension_numbers<[1], [0], [0], [1], [0, 0, 1, 1], [], []>} : vector<8x160xbf16>, vector<160x256xbf16>, vector<8x256xf32> -> vector<8x256xf32>
    %120 = arith.addf %113, %119 : vector<8x256xf32>
    %121 = vector.extract_strided_slice %120 {offsets = [0, 0], sizes = [8, 128], strides = [1, 1]} : vector<8x256xf32> to vector<8x128xf32>
    %122 = vector.extract_strided_slice %120 {offsets = [0, 128], sizes = [8, 128], strides = [1, 1]} : vector<8x256xf32> to vector<8x128xf32>
    %123 = arith.maximumf %121, %122 : vector<8x128xf32>
    %c0_112 = arith.constant 0 : index
    %c0_113 = arith.constant 0 : index
    %124 = vector.load %arg14[%c0_112, %c0_113] : memref<8x8xf32, #tpu.memory_space<vmem>>, vector<8x8xf32>
    %cst_114 = arith.constant dense<0.000000e+00> : vector<8x128xf32>
    %125 = tpu.matmul %124, %123, %cst_114 {dimension_numbers = #tpu.dot_dimension_numbers<[1], [0], [0], [1], [0, 0, 1, 1], [], []>} : vector<8x8xf32>, vector<8x128xf32>, vector<8x128xf32> -> vector<8x128xf32>
    %126 = vector.extract_strided_slice %125 {offsets = [0, 0], sizes = [4, 128], strides = [1, 1]} : vector<8x128xf32> to vector<4x128xf32>
    %127 = vector.extract_strided_slice %125 {offsets = [4, 0], sizes = [4, 128], strides = [1, 1]} : vector<8x128xf32> to vector<4x128xf32>
    %128 = arith.maximumf %126, %127 : vector<4x128xf32>
    %c0_115 = arith.constant 0 : index
    %c0_116 = arith.constant 0 : index
    %129 = vector.load %arg9[%c0_115, %c0_116] : memref<1x128xf32, #tpu.memory_space<vmem>>, vector<1x128xf32>
    %130 = vector.broadcast %129 : vector<1x128xf32> to vector<4x128xf32>
    %131 = arith.addf %128, %130 : vector<4x128xf32>
    %cst_117 = arith.constant 0.000000e+00 : f32
    %132 = vector.broadcast %cst_117 : f32 to vector<4x128xf32>
    %133 = arith.maximumf %131, %132 : vector<4x128xf32>
    %c0_118 = arith.constant 0 : index
    %c1_119 = arith.constant 1 : index
    %c32 = arith.constant 32 : index
    %134 = vector.load %arg27[%c0_118, %c1_119, %c32] : memref<2x6x192xf32, #tpu.memory_space<vmem>>, vector<1x4x128xf32>
    %135 = vector.shape_cast %134 : vector<1x4x128xf32> to vector<4x128xf32>
    %136 = vector.shape_cast %133 : vector<4x128xf32> to vector<1x4x128xf32>
    tpu.vector_store %arg27[%c0_118, %c1_119, %c32], %136 {strides = array<i32>} : memref<2x6x192xf32, #tpu.memory_space<vmem>>, vector<1x4x128xf32>,
    %c0_120 = arith.constant 0 : index
    %c0_121 = arith.constant 0 : index
    %c0_122 = arith.constant 0 : index
    %137 = vector.load %arg27[%c0_120, %c0_121, %c0_122] : memref<2x6x192xf32, #tpu.memory_space<vmem>>, vector<1x4x192xf32>
    %138 = vector.shape_cast %137 : vector<1x4x192xf32> to vector<4x192xf32>
    %139 = arith.truncf %138 : vector<4x192xf32> to vector<4x192xbf16>
    %c0_123 = arith.constant 0 : index
    %c0_124 = arith.constant 0 : index
    %c0_125 = arith.constant 0 : index
    %140 = vector.load %arg5[%c0_123, %c0_124, %c0_125] : memref<3x192x256xbf16, #tpu.memory_space<vmem>>, vector<1x192x256xbf16>
    %141 = vector.shape_cast %140 : vector<1x192x256xbf16> to vector<192x256xbf16>
    %cst_126 = arith.constant dense<0.000000e+00> : vector<4x256xf32>
    %142 = tpu.matmul %139, %141, %cst_126 {dimension_numbers = #tpu.dot_dimension_numbers<[1], [0], [0], [1], [0, 0, 1, 1], [], []>} : vector<4x192xbf16>, vector<192x256xbf16>, vector<4x256xf32> -> vector<4x256xf32>
    %c0_127 = arith.constant 0 : index
    %c1_128 = arith.constant 1 : index
    %c0_129 = arith.constant 0 : index
    %143 = vector.load %arg27[%c0_127, %c1_128, %c0_129] : memref<2x6x192xf32, #tpu.memory_space<vmem>>, vector<1x4x192xf32>
    %144 = vector.shape_cast %143 : vector<1x4x192xf32> to vector<4x192xf32>
    %145 = arith.truncf %144 : vector<4x192xf32> to vector<4x192xbf16>
    %c1_130 = arith.constant 1 : index
    %c0_131 = arith.constant 0 : index
    %c0_132 = arith.constant 0 : index
    %146 = vector.load %arg5[%c1_130, %c0_131, %c0_132] : memref<3x192x256xbf16, #tpu.memory_space<vmem>>, vector<1x192x256xbf16>
    %147 = vector.shape_cast %146 : vector<1x192x256xbf16> to vector<192x256xbf16>
    %cst_133 = arith.constant dense<0.000000e+00> : vector<4x256xf32>
    %148 = tpu.matmul %145, %147, %cst_133 {dimension_numbers = #tpu.dot_dimension_numbers<[1], [0], [0], [1], [0, 0, 1, 1], [], []>} : vector<4x192xbf16>, vector<192x256xbf16>, vector<4x256xf32> -> vector<4x256xf32>
    %149 = arith.addf %142, %148 : vector<4x256xf32>
    %c0_134 = arith.constant 0 : index
    %c2_135 = arith.constant 2 : index
    %c0_136 = arith.constant 0 : index
    %150 = vector.load %arg27[%c0_134, %c2_135, %c0_136] : memref<2x6x192xf32, #tpu.memory_space<vmem>>, vector<1x4x192xf32>
    %151 = vector.shape_cast %150 : vector<1x4x192xf32> to vector<4x192xf32>
    %152 = arith.truncf %151 : vector<4x192xf32> to vector<4x192xbf16>
    %c2_137 = arith.constant 2 : index
    %c0_138 = arith.constant 0 : index
    %c0_139 = arith.constant 0 : index
    %153 = vector.load %arg5[%c2_137, %c0_138, %c0_139] : memref<3x192x256xbf16, #tpu.memory_space<vmem>>, vector<1x192x256xbf16>
    %154 = vector.shape_cast %153 : vector<1x192x256xbf16> to vector<192x256xbf16>
    %cst_140 = arith.constant dense<0.000000e+00> : vector<4x256xf32>
    %155 = tpu.matmul %152, %154, %cst_140 {dimension_numbers = #tpu.dot_dimension_numbers<[1], [0], [0], [1], [0, 0, 1, 1], [], []>} : vector<4x192xbf16>, vector<192x256xbf16>, vector<4x256xf32> -> vector<4x256xf32>
    %156 = arith.addf %149, %155 : vector<4x256xf32>
    %157 = vector.extract_strided_slice %156 {offsets = [0, 0], sizes = [4, 128], strides = [1, 1]} : vector<4x256xf32> to vector<4x128xf32>
    %158 = vector.extract_strided_slice %156 {offsets = [0, 128], sizes = [4, 128], strides = [1, 1]} : vector<4x256xf32> to vector<4x128xf32>
    %159 = arith.maximumf %157, %158 : vector<4x128xf32>
    %c0_141 = arith.constant 0 : index
    %c0_142 = arith.constant 0 : index
    %160 = vector.load %arg15[%c0_141, %c0_142] : memref<4x4xf32, #tpu.memory_space<vmem>>, vector<4x4xf32>
    %cst_143 = arith.constant dense<0.000000e+00> : vector<4x128xf32>
    %161 = tpu.matmul %160, %159, %cst_143 {dimension_numbers = #tpu.dot_dimension_numbers<[1], [0], [0], [1], [0, 0, 1, 1], [], []>} : vector<4x4xf32>, vector<4x128xf32>, vector<4x128xf32> -> vector<4x128xf32>
    %162 = vector.extract_strided_slice %161 {offsets = [0, 0], sizes = [2, 128], strides = [1, 1]} : vector<4x128xf32> to vector<2x128xf32>
    %163 = vector.extract_strided_slice %161 {offsets = [2, 0], sizes = [2, 128], strides = [1, 1]} : vector<4x128xf32> to vector<2x128xf32>
    %164 = arith.maximumf %162, %163 : vector<2x128xf32>
    %c0_144 = arith.constant 0 : index
    %c0_145 = arith.constant 0 : index
    %165 = vector.load %arg10[%c0_144, %c0_145] : memref<1x128xf32, #tpu.memory_space<vmem>>, vector<1x128xf32>
    %166 = vector.broadcast %165 : vector<1x128xf32> to vector<2x128xf32>
    %167 = arith.addf %164, %166 : vector<2x128xf32>
    %cst_146 = arith.constant 0.000000e+00 : f32
    %168 = vector.broadcast %cst_146 : f32 to vector<2x128xf32>
    %169 = arith.maximumf %167, %168 : vector<2x128xf32>
    %c0_147 = arith.constant 0 : index
    %c1_148 = arith.constant 1 : index
    %c64 = arith.constant 64 : index
    %170 = vector.load %arg28[%c0_147, %c1_148, %c64] : memref<2x4x256xf32, #tpu.memory_space<vmem>>, vector<1x2x128xf32>
    %171 = vector.shape_cast %170 : vector<1x2x128xf32> to vector<2x128xf32>
    %172 = vector.shape_cast %169 : vector<2x128xf32> to vector<1x2x128xf32>
    tpu.vector_store %arg28[%c0_147, %c1_148, %c64], %172 {strides = array<i32>} : memref<2x4x256xf32, #tpu.memory_space<vmem>>, vector<1x2x128xf32>,
    %c0_149 = arith.constant 0 : index
    %c0_150 = arith.constant 0 : index
    %c0_151 = arith.constant 0 : index
    %173 = vector.load %arg28[%c0_149, %c0_150, %c0_151] : memref<2x4x256xf32, #tpu.memory_space<vmem>>, vector<1x2x256xf32>
    %174 = vector.shape_cast %173 : vector<1x2x256xf32> to vector<2x256xf32>
    %175 = arith.truncf %174 : vector<2x256xf32> to vector<2x256xbf16>
    %c0_152 = arith.constant 0 : index
    %c0_153 = arith.constant 0 : index
    %c0_154 = arith.constant 0 : index
    %176 = vector.load %arg6[%c0_152, %c0_153, %c0_154] : memref<3x256x256xbf16, #tpu.memory_space<vmem>>, vector<1x256x256xbf16>
    %177 = vector.shape_cast %176 : vector<1x256x256xbf16> to vector<256x256xbf16>
    %cst_155 = arith.constant dense<0.000000e+00> : vector<2x256xf32>
    %178 = tpu.matmul %175, %177, %cst_155 {dimension_numbers = #tpu.dot_dimension_numbers<[1], [0], [0], [1], [0, 0, 1, 1], [], []>} : vector<2x256xbf16>, vector<256x256xbf16>, vector<2x256xf32> -> vector<2x256xf32>
    %c0_156 = arith.constant 0 : index
    %c1_157 = arith.constant 1 : index
    %c0_158 = arith.constant 0 : index
    %179 = vector.load %arg28[%c0_156, %c1_157, %c0_158] : memref<2x4x256xf32, #tpu.memory_space<vmem>>, vector<1x2x256xf32>
    %180 = vector.shape_cast %179 : vector<1x2x256xf32> to vector<2x256xf32>
    %181 = arith.truncf %180 : vector<2x256xf32> to vector<2x256xbf16>
    %c1_159 = arith.constant 1 : index
    %c0_160 = arith.constant 0 : index
    %c0_161 = arith.constant 0 : index
    %182 = vector.load %arg6[%c1_159, %c0_160, %c0_161] : memref<3x256x256xbf16, #tpu.memory_space<vmem>>, vector<1x256x256xbf16>
    %183 = vector.shape_cast %182 : vector<1x256x256xbf16> to vector<256x256xbf16>
    %cst_162 = arith.constant dense<0.000000e+00> : vector<2x256xf32>
    %184 = tpu.matmul %181, %183, %cst_162 {dimension_numbers = #tpu.dot_dimension_numbers<[1], [0], [0], [1], [0, 0, 1, 1], [], []>} : vector<2x256xbf16>, vector<256x256xbf16>, vector<2x256xf32> -> vector<2x256xf32>
    %185 = arith.addf %178, %184 : vector<2x256xf32>
    %c0_163 = arith.constant 0 : index
    %c2_164 = arith.constant 2 : index
    %c0_165 = arith.constant 0 : index
    %186 = vector.load %arg28[%c0_163, %c2_164, %c0_165] : memref<2x4x256xf32, #tpu.memory_space<vmem>>, vector<1x2x256xf32>
    %187 = vector.shape_cast %186 : vector<1x2x256xf32> to vector<2x256xf32>
    %188 = arith.truncf %187 : vector<2x256xf32> to vector<2x256xbf16>
    %c2_166 = arith.constant 2 : index
    %c0_167 = arith.constant 0 : index
    %c0_168 = arith.constant 0 : index
    %189 = vector.load %arg6[%c2_166, %c0_167, %c0_168] : memref<3x256x256xbf16, #tpu.memory_space<vmem>>, vector<1x256x256xbf16>
    %190 = vector.shape_cast %189 : vector<1x256x256xbf16> to vector<256x256xbf16>
    %cst_169 = arith.constant dense<0.000000e+00> : vector<2x256xf32>
    %191 = tpu.matmul %188, %190, %cst_169 {dimension_numbers = #tpu.dot_dimension_numbers<[1], [0], [0], [1], [0, 0, 1, 1], [], []>} : vector<2x256xbf16>, vector<256x256xbf16>, vector<2x256xf32> -> vector<2x256xf32>
    %192 = arith.addf %185, %191 : vector<2x256xf32>
    %c0_170 = arith.constant 0 : index
    %c0_171 = arith.constant 0 : index
    %193 = vector.load %arg11[%c0_170, %c0_171] : memref<1x256xf32, #tpu.memory_space<vmem>>, vector<1x256xf32>
    %194 = vector.broadcast %193 : vector<1x256xf32> to vector<2x256xf32>
    %195 = arith.addf %192, %194 : vector<2x256xf32>
    %cst_172 = arith.constant 0.000000e+00 : f32
    %196 = vector.broadcast %cst_172 : f32 to vector<2x256xf32>
    %197 = arith.maximumf %195, %196 : vector<2x256xf32>
    %198 = vector.extract_strided_slice %197 {offsets = [0, 0], sizes = [1, 128], strides = [1, 1]} : vector<2x256xf32> to vector<1x128xf32>
    %199 = vector.extract_strided_slice %197 {offsets = [0, 128], sizes = [1, 128], strides = [1, 1]} : vector<2x256xf32> to vector<1x128xf32>
    %200 = arith.addf %198, %199 : vector<1x128xf32>
    %201 = vector.extract_strided_slice %197 {offsets = [1, 0], sizes = [1, 128], strides = [1, 1]} : vector<2x256xf32> to vector<1x128xf32>
    %202 = arith.addf %200, %201 : vector<1x128xf32>
    %203 = vector.extract_strided_slice %197 {offsets = [1, 128], sizes = [1, 128], strides = [1, 1]} : vector<2x256xf32> to vector<1x128xf32>
    %204 = arith.addf %202, %203 : vector<1x128xf32>
    %cst_173 = arith.constant 2.500000e-01 : f32
    %205 = vector.broadcast %cst_173 : f32 to vector<1x128xf32>
    %206 = arith.mulf %204, %205 : vector<1x128xf32>
    %c0_174 = arith.constant 0 : index
    %c0_175 = arith.constant 0 : index
    %207 = vector.load %arg29[%c0_174, %c0_175] : memref<2x128xf32, #tpu.memory_space<vmem>>, vector<1x128xf32>
    tpu.vector_store %arg29[%c0_174, %c0_175], %206 {strides = array<i32>} : memref<2x128xf32, #tpu.memory_space<vmem>>, vector<1x128xf32>,
    %c1_176 = arith.constant 1 : index
    %c0_177 = arith.constant 0 : index
    %c0_178 = arith.constant 0 : index
    %208 = vector.load %arg1[%c1_176, %c0_177, %c0_178] : memref<2x32x96xf32, #tpu.memory_space<vmem>>, vector<1x32x96xf32>
    %209 = vector.shape_cast %208 : vector<1x32x96xf32> to vector<32x96xf32>
    %c1_179 = arith.constant 1 : index
    %c2_180 = arith.constant 2 : index
    %c6_181 = arith.constant 6 : index
    %210 = vector.load %arg24[%c1_179, %c2_180, %c6_181] : memref<2x36x108xf32, #tpu.memory_space<vmem>>, vector<1x32x96xf32>
    %211 = vector.shape_cast %210 : vector<1x32x96xf32> to vector<32x96xf32>
    %212 = vector.shape_cast %209 : vector<32x96xf32> to vector<1x32x96xf32>
    tpu.vector_store %arg24[%c1_179, %c2_180, %c6_181], %212 {strides = array<i32>} : memref<2x36x108xf32, #tpu.memory_space<vmem>>, vector<1x32x96xf32>,
    %c1_182 = arith.constant 1 : index
    %c0_183 = arith.constant 0 : index
    %c0_184 = arith.constant 0 : index
    %213 = vector.load %arg24[%c1_182, %c0_183, %c0_184] : memref<2x36x108xf32, #tpu.memory_space<vmem>>, vector<1x32x108xf32>
    %214 = vector.shape_cast %213 : vector<1x32x108xf32> to vector<32x108xf32>
    %215 = arith.truncf %214 : vector<32x108xf32> to vector<32x108xbf16>
    %c0_185 = arith.constant 0 : index
    %c0_186 = arith.constant 0 : index
    %c0_187 = arith.constant 0 : index
    %216 = vector.load %arg2[%c0_185, %c0_186, %c0_187] : memref<5x108x256xbf16, #tpu.memory_space<vmem>>, vector<1x108x256xbf16>
    %217 = vector.shape_cast %216 : vector<1x108x256xbf16> to vector<108x256xbf16>
    %cst_188 = arith.constant dense<0.000000e+00> : vector<32x256xf32>
    %218 = tpu.matmul %215, %217, %cst_188 {dimension_numbers = #tpu.dot_dimension_numbers<[1], [0], [0], [1], [0, 0, 1, 1], [], []>} : vector<32x108xbf16>, vector<108x256xbf16>, vector<32x256xf32> -> vector<32x256xf32>
    %c1_189 = arith.constant 1 : index
    %c1_190 = arith.constant 1 : index
    %c0_191 = arith.constant 0 : index
    %219 = vector.load %arg24[%c1_189, %c1_190, %c0_191] : memref<2x36x108xf32, #tpu.memory_space<vmem>>, vector<1x32x108xf32>
    %220 = vector.shape_cast %219 : vector<1x32x108xf32> to vector<32x108xf32>
    %221 = arith.truncf %220 : vector<32x108xf32> to vector<32x108xbf16>
    %c1_192 = arith.constant 1 : index
    %c0_193 = arith.constant 0 : index
    %c0_194 = arith.constant 0 : index
    %222 = vector.load %arg2[%c1_192, %c0_193, %c0_194] : memref<5x108x256xbf16, #tpu.memory_space<vmem>>, vector<1x108x256xbf16>
    %223 = vector.shape_cast %222 : vector<1x108x256xbf16> to vector<108x256xbf16>
    %cst_195 = arith.constant dense<0.000000e+00> : vector<32x256xf32>
    %224 = tpu.matmul %221, %223, %cst_195 {dimension_numbers = #tpu.dot_dimension_numbers<[1], [0], [0], [1], [0, 0, 1, 1], [], []>} : vector<32x108xbf16>, vector<108x256xbf16>, vector<32x256xf32> -> vector<32x256xf32>
    %225 = arith.addf %218, %224 : vector<32x256xf32>
    %c1_196 = arith.constant 1 : index
    %c2_197 = arith.constant 2 : index
    %c0_198 = arith.constant 0 : index
    %226 = vector.load %arg24[%c1_196, %c2_197, %c0_198] : memref<2x36x108xf32, #tpu.memory_space<vmem>>, vector<1x32x108xf32>
    %227 = vector.shape_cast %226 : vector<1x32x108xf32> to vector<32x108xf32>
    %228 = arith.truncf %227 : vector<32x108xf32> to vector<32x108xbf16>
    %c2_199 = arith.constant 2 : index
    %c0_200 = arith.constant 0 : index
    %c0_201 = arith.constant 0 : index
    %229 = vector.load %arg2[%c2_199, %c0_200, %c0_201] : memref<5x108x256xbf16, #tpu.memory_space<vmem>>, vector<1x108x256xbf16>
    %230 = vector.shape_cast %229 : vector<1x108x256xbf16> to vector<108x256xbf16>
    %cst_202 = arith.constant dense<0.000000e+00> : vector<32x256xf32>
    %231 = tpu.matmul %228, %230, %cst_202 {dimension_numbers = #tpu.dot_dimension_numbers<[1], [0], [0], [1], [0, 0, 1, 1], [], []>} : vector<32x108xbf16>, vector<108x256xbf16>, vector<32x256xf32> -> vector<32x256xf32>
    %232 = arith.addf %225, %231 : vector<32x256xf32>
    %c1_203 = arith.constant 1 : index
    %c3_204 = arith.constant 3 : index
    %c0_205 = arith.constant 0 : index
    %233 = vector.load %arg24[%c1_203, %c3_204, %c0_205] : memref<2x36x108xf32, #tpu.memory_space<vmem>>, vector<1x32x108xf32>
    %234 = vector.shape_cast %233 : vector<1x32x108xf32> to vector<32x108xf32>
    %235 = arith.truncf %234 : vector<32x108xf32> to vector<32x108xbf16>
    %c3_206 = arith.constant 3 : index
    %c0_207 = arith.constant 0 : index
    %c0_208 = arith.constant 0 : index
    %236 = vector.load %arg2[%c3_206, %c0_207, %c0_208] : memref<5x108x256xbf16, #tpu.memory_space<vmem>>, vector<1x108x256xbf16>
    %237 = vector.shape_cast %236 : vector<1x108x256xbf16> to vector<108x256xbf16>
    %cst_209 = arith.constant dense<0.000000e+00> : vector<32x256xf32>
    %238 = tpu.matmul %235, %237, %cst_209 {dimension_numbers = #tpu.dot_dimension_numbers<[1], [0], [0], [1], [0, 0, 1, 1], [], []>} : vector<32x108xbf16>, vector<108x256xbf16>, vector<32x256xf32> -> vector<32x256xf32>
    %239 = arith.addf %232, %238 : vector<32x256xf32>
    %c1_210 = arith.constant 1 : index
    %c4_211 = arith.constant 4 : index
    %c0_212 = arith.constant 0 : index
    %240 = vector.load %arg24[%c1_210, %c4_211, %c0_212] : memref<2x36x108xf32, #tpu.memory_space<vmem>>, vector<1x32x108xf32>
    %241 = vector.shape_cast %240 : vector<1x32x108xf32> to vector<32x108xf32>
    %242 = arith.truncf %241 : vector<32x108xf32> to vector<32x108xbf16>
    %c4_213 = arith.constant 4 : index
    %c0_214 = arith.constant 0 : index
    %c0_215 = arith.constant 0 : index
    %243 = vector.load %arg2[%c4_213, %c0_214, %c0_215] : memref<5x108x256xbf16, #tpu.memory_space<vmem>>, vector<1x108x256xbf16>
    %244 = vector.shape_cast %243 : vector<1x108x256xbf16> to vector<108x256xbf16>
    %cst_216 = arith.constant dense<0.000000e+00> : vector<32x256xf32>
    %245 = tpu.matmul %242, %244, %cst_216 {dimension_numbers = #tpu.dot_dimension_numbers<[1], [0], [0], [1], [0, 0, 1, 1], [], []>} : vector<32x108xbf16>, vector<108x256xbf16>, vector<32x256xf32> -> vector<32x256xf32>
    %246 = arith.addf %239, %245 : vector<32x256xf32>
    %247 = vector.extract_strided_slice %246 {offsets = [0, 0], sizes = [32, 128], strides = [1, 1]} : vector<32x256xf32> to vector<32x128xf32>
    %248 = vector.extract_strided_slice %246 {offsets = [0, 128], sizes = [32, 128], strides = [1, 1]} : vector<32x256xf32> to vector<32x128xf32>
    %249 = arith.maximumf %247, %248 : vector<32x128xf32>
    %c0_217 = arith.constant 0 : index
    %c0_218 = arith.constant 0 : index
    %250 = vector.load %arg12[%c0_217, %c0_218] : memref<32x32xf32, #tpu.memory_space<vmem>>, vector<32x32xf32>
    %cst_219 = arith.constant dense<0.000000e+00> : vector<32x128xf32>
    %251 = tpu.matmul %250, %249, %cst_219 {dimension_numbers = #tpu.dot_dimension_numbers<[1], [0], [0], [1], [0, 0, 1, 1], [], []>} : vector<32x32xf32>, vector<32x128xf32>, vector<32x128xf32> -> vector<32x128xf32>
    %252 = vector.extract_strided_slice %251 {offsets = [0, 0], sizes = [16, 128], strides = [1, 1]} : vector<32x128xf32> to vector<16x128xf32>
    %253 = vector.extract_strided_slice %251 {offsets = [16, 0], sizes = [16, 128], strides = [1, 1]} : vector<32x128xf32> to vector<16x128xf32>
    %254 = arith.maximumf %252, %253 : vector<16x128xf32>
    %c0_220 = arith.constant 0 : index
    %c0_221 = arith.constant 0 : index
    %255 = vector.load %arg7[%c0_220, %c0_221] : memref<1x128xf32, #tpu.memory_space<vmem>>, vector<1x128xf32>
    %256 = vector.broadcast %255 : vector<1x128xf32> to vector<16x128xf32>
    %257 = arith.addf %254, %256 : vector<16x128xf32>
    %cst_222 = arith.constant 0.000000e+00 : f32
    %258 = vector.broadcast %cst_222 : f32 to vector<16x128xf32>
    %259 = arith.maximumf %257, %258 : vector<16x128xf32>
    %c1_223 = arith.constant 1 : index
    %c1_224 = arith.constant 1 : index
    %c8_225 = arith.constant 8 : index
    %260 = vector.load %arg25[%c1_223, %c1_224, %c8_225] : memref<2x18x144xf32, #tpu.memory_space<vmem>>, vector<1x16x128xf32>
    %261 = vector.shape_cast %260 : vector<1x16x128xf32> to vector<16x128xf32>
    %262 = vector.shape_cast %259 : vector<16x128xf32> to vector<1x16x128xf32>
    tpu.vector_store %arg25[%c1_223, %c1_224, %c8_225], %262 {strides = array<i32>} : memref<2x18x144xf32, #tpu.memory_space<vmem>>, vector<1x16x128xf32>,
    %c1_226 = arith.constant 1 : index
    %c0_227 = arith.constant 0 : index
    %c0_228 = arith.constant 0 : index
    %263 = vector.load %arg25[%c1_226, %c0_227, %c0_228] : memref<2x18x144xf32, #tpu.memory_space<vmem>>, vector<1x16x144xf32>
    %264 = vector.shape_cast %263 : vector<1x16x144xf32> to vector<16x144xf32>
    %265 = arith.truncf %264 : vector<16x144xf32> to vector<16x144xbf16>
    %c0_229 = arith.constant 0 : index
    %c0_230 = arith.constant 0 : index
    %c0_231 = arith.constant 0 : index
    %266 = vector.load %arg3[%c0_229, %c0_230, %c0_231] : memref<3x144x256xbf16, #tpu.memory_space<vmem>>, vector<1x144x256xbf16>
    %267 = vector.shape_cast %266 : vector<1x144x256xbf16> to vector<144x256xbf16>
    %cst_232 = arith.constant dense<0.000000e+00> : vector<16x256xf32>
    %268 = tpu.matmul %265, %267, %cst_232 {dimension_numbers = #tpu.dot_dimension_numbers<[1], [0], [0], [1], [0, 0, 1, 1], [], []>} : vector<16x144xbf16>, vector<144x256xbf16>, vector<16x256xf32> -> vector<16x256xf32>
    %c1_233 = arith.constant 1 : index
    %c1_234 = arith.constant 1 : index
    %c0_235 = arith.constant 0 : index
    %269 = vector.load %arg25[%c1_233, %c1_234, %c0_235] : memref<2x18x144xf32, #tpu.memory_space<vmem>>, vector<1x16x144xf32>
    %270 = vector.shape_cast %269 : vector<1x16x144xf32> to vector<16x144xf32>
    %271 = arith.truncf %270 : vector<16x144xf32> to vector<16x144xbf16>
    %c1_236 = arith.constant 1 : index
    %c0_237 = arith.constant 0 : index
    %c0_238 = arith.constant 0 : index
    %272 = vector.load %arg3[%c1_236, %c0_237, %c0_238] : memref<3x144x256xbf16, #tpu.memory_space<vmem>>, vector<1x144x256xbf16>
    %273 = vector.shape_cast %272 : vector<1x144x256xbf16> to vector<144x256xbf16>
    %cst_239 = arith.constant dense<0.000000e+00> : vector<16x256xf32>
    %274 = tpu.matmul %271, %273, %cst_239 {dimension_numbers = #tpu.dot_dimension_numbers<[1], [0], [0], [1], [0, 0, 1, 1], [], []>} : vector<16x144xbf16>, vector<144x256xbf16>, vector<16x256xf32> -> vector<16x256xf32>
    %275 = arith.addf %268, %274 : vector<16x256xf32>
    %c1_240 = arith.constant 1 : index
    %c2_241 = arith.constant 2 : index
    %c0_242 = arith.constant 0 : index
    %276 = vector.load %arg25[%c1_240, %c2_241, %c0_242] : memref<2x18x144xf32, #tpu.memory_space<vmem>>, vector<1x16x144xf32>
    %277 = vector.shape_cast %276 : vector<1x16x144xf32> to vector<16x144xf32>
    %278 = arith.truncf %277 : vector<16x144xf32> to vector<16x144xbf16>
    %c2_243 = arith.constant 2 : index
    %c0_244 = arith.constant 0 : index
    %c0_245 = arith.constant 0 : index
    %279 = vector.load %arg3[%c2_243, %c0_244, %c0_245] : memref<3x144x256xbf16, #tpu.memory_space<vmem>>, vector<1x144x256xbf16>
    %280 = vector.shape_cast %279 : vector<1x144x256xbf16> to vector<144x256xbf16>
    %cst_246 = arith.constant dense<0.000000e+00> : vector<16x256xf32>
    %281 = tpu.matmul %278, %280, %cst_246 {dimension_numbers = #tpu.dot_dimension_numbers<[1], [0], [0], [1], [0, 0, 1, 1], [], []>} : vector<16x144xbf16>, vector<144x256xbf16>, vector<16x256xf32> -> vector<16x256xf32>
    %282 = arith.addf %275, %281 : vector<16x256xf32>
    %283 = vector.extract_strided_slice %282 {offsets = [0, 0], sizes = [16, 128], strides = [1, 1]} : vector<16x256xf32> to vector<16x128xf32>
    %284 = vector.extract_strided_slice %282 {offsets = [0, 128], sizes = [16, 128], strides = [1, 1]} : vector<16x256xf32> to vector<16x128xf32>
    %285 = arith.maximumf %283, %284 : vector<16x128xf32>
    %c0_247 = arith.constant 0 : index
    %c0_248 = arith.constant 0 : index
    %286 = vector.load %arg13[%c0_247, %c0_248] : memref<16x16xf32, #tpu.memory_space<vmem>>, vector<16x16xf32>
    %cst_249 = arith.constant dense<0.000000e+00> : vector<16x128xf32>
    %287 = tpu.matmul %286, %285, %cst_249 {dimension_numbers = #tpu.dot_dimension_numbers<[1], [0], [0], [1], [0, 0, 1, 1], [], []>} : vector<16x16xf32>, vector<16x128xf32>, vector<16x128xf32> -> vector<16x128xf32>
    %288 = vector.extract_strided_slice %287 {offsets = [0, 0], sizes = [8, 128], strides = [1, 1]} : vector<16x128xf32> to vector<8x128xf32>
    %289 = vector.extract_strided_slice %287 {offsets = [8, 0], sizes = [8, 128], strides = [1, 1]} : vector<16x128xf32> to vector<8x128xf32>
    %290 = arith.maximumf %288, %289 : vector<8x128xf32>
    %c0_250 = arith.constant 0 : index
    %c0_251 = arith.constant 0 : index
    %291 = vector.load %arg8[%c0_250, %c0_251] : memref<1x128xf32, #tpu.memory_space<vmem>>, vector<1x128xf32>
    %292 = vector.broadcast %291 : vector<1x128xf32> to vector<8x128xf32>
    %293 = arith.addf %290, %292 : vector<8x128xf32>
    %cst_252 = arith.constant 0.000000e+00 : f32
    %294 = vector.broadcast %cst_252 : f32 to vector<8x128xf32>
    %295 = arith.maximumf %293, %294 : vector<8x128xf32>
    %c1_253 = arith.constant 1 : index
    %c1_254 = arith.constant 1 : index
    %c16_255 = arith.constant 16 : index
    %296 = vector.load %arg26[%c1_253, %c1_254, %c16_255] : memref<2x10x160xf32, #tpu.memory_space<vmem>>, vector<1x8x128xf32>
    %297 = vector.shape_cast %296 : vector<1x8x128xf32> to vector<8x128xf32>
    %298 = vector.shape_cast %295 : vector<8x128xf32> to vector<1x8x128xf32>
    tpu.vector_store %arg26[%c1_253, %c1_254, %c16_255], %298 {strides = array<i32>} : memref<2x10x160xf32, #tpu.memory_space<vmem>>, vector<1x8x128xf32>,
    %c1_256 = arith.constant 1 : index
    %c0_257 = arith.constant 0 : index
    %c0_258 = arith.constant 0 : index
    %299 = vector.load %arg26[%c1_256, %c0_257, %c0_258] : memref<2x10x160xf32, #tpu.memory_space<vmem>>, vector<1x8x160xf32>
    %300 = vector.shape_cast %299 : vector<1x8x160xf32> to vector<8x160xf32>
    %301 = arith.truncf %300 : vector<8x160xf32> to vector<8x160xbf16>
    %c0_259 = arith.constant 0 : index
    %c0_260 = arith.constant 0 : index
    %c0_261 = arith.constant 0 : index
    %302 = vector.load %arg4[%c0_259, %c0_260, %c0_261] : memref<3x160x256xbf16, #tpu.memory_space<vmem>>, vector<1x160x256xbf16>
    %303 = vector.shape_cast %302 : vector<1x160x256xbf16> to vector<160x256xbf16>
    %cst_262 = arith.constant dense<0.000000e+00> : vector<8x256xf32>
    %304 = tpu.matmul %301, %303, %cst_262 {dimension_numbers = #tpu.dot_dimension_numbers<[1], [0], [0], [1], [0, 0, 1, 1], [], []>} : vector<8x160xbf16>, vector<160x256xbf16>, vector<8x256xf32> -> vector<8x256xf32>
    %c1_263 = arith.constant 1 : index
    %c1_264 = arith.constant 1 : index
    %c0_265 = arith.constant 0 : index
    %305 = vector.load %arg26[%c1_263, %c1_264, %c0_265] : memref<2x10x160xf32, #tpu.memory_space<vmem>>, vector<1x8x160xf32>
    %306 = vector.shape_cast %305 : vector<1x8x160xf32> to vector<8x160xf32>
    %307 = arith.truncf %306 : vector<8x160xf32> to vector<8x160xbf16>
    %c1_266 = arith.constant 1 : index
    %c0_267 = arith.constant 0 : index
    %c0_268 = arith.constant 0 : index
    %308 = vector.load %arg4[%c1_266, %c0_267, %c0_268] : memref<3x160x256xbf16, #tpu.memory_space<vmem>>, vector<1x160x256xbf16>
    %309 = vector.shape_cast %308 : vector<1x160x256xbf16> to vector<160x256xbf16>
    %cst_269 = arith.constant dense<0.000000e+00> : vector<8x256xf32>
    %310 = tpu.matmul %307, %309, %cst_269 {dimension_numbers = #tpu.dot_dimension_numbers<[1], [0], [0], [1], [0, 0, 1, 1], [], []>} : vector<8x160xbf16>, vector<160x256xbf16>, vector<8x256xf32> -> vector<8x256xf32>
    %311 = arith.addf %304, %310 : vector<8x256xf32>
    %c1_270 = arith.constant 1 : index
    %c2_271 = arith.constant 2 : index
    %c0_272 = arith.constant 0 : index
    %312 = vector.load %arg26[%c1_270, %c2_271, %c0_272] : memref<2x10x160xf32, #tpu.memory_space<vmem>>, vector<1x8x160xf32>
    %313 = vector.shape_cast %312 : vector<1x8x160xf32> to vector<8x160xf32>
    %314 = arith.truncf %313 : vector<8x160xf32> to vector<8x160xbf16>
    %c2_273 = arith.constant 2 : index
    %c0_274 = arith.constant 0 : index
    %c0_275 = arith.constant 0 : index
    %315 = vector.load %arg4[%c2_273, %c0_274, %c0_275] : memref<3x160x256xbf16, #tpu.memory_space<vmem>>, vector<1x160x256xbf16>
    %316 = vector.shape_cast %315 : vector<1x160x256xbf16> to vector<160x256xbf16>
    %cst_276 = arith.constant dense<0.000000e+00> : vector<8x256xf32>
    %317 = tpu.matmul %314, %316, %cst_276 {dimension_numbers = #tpu.dot_dimension_numbers<[1], [0], [0], [1], [0, 0, 1, 1], [], []>} : vector<8x160xbf16>, vector<160x256xbf16>, vector<8x256xf32> -> vector<8x256xf32>
    %318 = arith.addf %311, %317 : vector<8x256xf32>
    %319 = vector.extract_strided_slice %318 {offsets = [0, 0], sizes = [8, 128], strides = [1, 1]} : vector<8x256xf32> to vector<8x128xf32>
    %320 = vector.extract_strided_slice %318 {offsets = [0, 128], sizes = [8, 128], strides = [1, 1]} : vector<8x256xf32> to vector<8x128xf32>
    %321 = arith.maximumf %319, %320 : vector<8x128xf32>
    %c0_277 = arith.constant 0 : index
    %c0_278 = arith.constant 0 : index
    %322 = vector.load %arg14[%c0_277, %c0_278] : memref<8x8xf32, #tpu.memory_space<vmem>>, vector<8x8xf32>
    %cst_279 = arith.constant dense<0.000000e+00> : vector<8x128xf32>
    %323 = tpu.matmul %322, %321, %cst_279 {dimension_numbers = #tpu.dot_dimension_numbers<[1], [0], [0], [1], [0, 0, 1, 1], [], []>} : vector<8x8xf32>, vector<8x128xf32>, vector<8x128xf32> -> vector<8x128xf32>
    %324 = vector.extract_strided_slice %323 {offsets = [0, 0], sizes = [4, 128], strides = [1, 1]} : vector<8x128xf32> to vector<4x128xf32>
    %325 = vector.extract_strided_slice %323 {offsets = [4, 0], sizes = [4, 128], strides = [1, 1]} : vector<8x128xf32> to vector<4x128xf32>
    %326 = arith.maximumf %324, %325 : vector<4x128xf32>
    %c0_280 = arith.constant 0 : index
    %c0_281 = arith.constant 0 : index
    %327 = vector.load %arg9[%c0_280, %c0_281] : memref<1x128xf32, #tpu.memory_space<vmem>>, vector<1x128xf32>
    %328 = vector.broadcast %327 : vector<1x128xf32> to vector<4x128xf32>
    %329 = arith.addf %326, %328 : vector<4x128xf32>
    %cst_282 = arith.constant 0.000000e+00 : f32
    %330 = vector.broadcast %cst_282 : f32 to vector<4x128xf32>
    %331 = arith.maximumf %329, %330 : vector<4x128xf32>
    %c1_283 = arith.constant 1 : index
    %c1_284 = arith.constant 1 : index
    %c32_285 = arith.constant 32 : index
    %332 = vector.load %arg27[%c1_283, %c1_284, %c32_285] : memref<2x6x192xf32, #tpu.memory_space<vmem>>, vector<1x4x128xf32>
    %333 = vector.shape_cast %332 : vector<1x4x128xf32> to vector<4x128xf32>
    %334 = vector.shape_cast %331 : vector<4x128xf32> to vector<1x4x128xf32>
    tpu.vector_store %arg27[%c1_283, %c1_284, %c32_285], %334 {strides = array<i32>} : memref<2x6x192xf32, #tpu.memory_space<vmem>>, vector<1x4x128xf32>,
    %c1_286 = arith.constant 1 : index
    %c0_287 = arith.constant 0 : index
    %c0_288 = arith.constant 0 : index
    %335 = vector.load %arg27[%c1_286, %c0_287, %c0_288] : memref<2x6x192xf32, #tpu.memory_space<vmem>>, vector<1x4x192xf32>
    %336 = vector.shape_cast %335 : vector<1x4x192xf32> to vector<4x192xf32>
    %337 = arith.truncf %336 : vector<4x192xf32> to vector<4x192xbf16>
    %c0_289 = arith.constant 0 : index
    %c0_290 = arith.constant 0 : index
    %c0_291 = arith.constant 0 : index
    %338 = vector.load %arg5[%c0_289, %c0_290, %c0_291] : memref<3x192x256xbf16, #tpu.memory_space<vmem>>, vector<1x192x256xbf16>
    %339 = vector.shape_cast %338 : vector<1x192x256xbf16> to vector<192x256xbf16>
    %cst_292 = arith.constant dense<0.000000e+00> : vector<4x256xf32>
    %340 = tpu.matmul %337, %339, %cst_292 {dimension_numbers = #tpu.dot_dimension_numbers<[1], [0], [0], [1], [0, 0, 1, 1], [], []>} : vector<4x192xbf16>, vector<192x256xbf16>, vector<4x256xf32> -> vector<4x256xf32>
    %c1_293 = arith.constant 1 : index
    %c1_294 = arith.constant 1 : index
    %c0_295 = arith.constant 0 : index
    %341 = vector.load %arg27[%c1_293, %c1_294, %c0_295] : memref<2x6x192xf32, #tpu.memory_space<vmem>>, vector<1x4x192xf32>
    %342 = vector.shape_cast %341 : vector<1x4x192xf32> to vector<4x192xf32>
    %343 = arith.truncf %342 : vector<4x192xf32> to vector<4x192xbf16>
    %c1_296 = arith.constant 1 : index
    %c0_297 = arith.constant 0 : index
    %c0_298 = arith.constant 0 : index
    %344 = vector.load %arg5[%c1_296, %c0_297, %c0_298] : memref<3x192x256xbf16, #tpu.memory_space<vmem>>, vector<1x192x256xbf16>
    %345 = vector.shape_cast %344 : vector<1x192x256xbf16> to vector<192x256xbf16>
    %cst_299 = arith.constant dense<0.000000e+00> : vector<4x256xf32>
    %346 = tpu.matmul %343, %345, %cst_299 {dimension_numbers = #tpu.dot_dimension_numbers<[1], [0], [0], [1], [0, 0, 1, 1], [], []>} : vector<4x192xbf16>, vector<192x256xbf16>, vector<4x256xf32> -> vector<4x256xf32>
    %347 = arith.addf %340, %346 : vector<4x256xf32>
    %c1_300 = arith.constant 1 : index
    %c2_301 = arith.constant 2 : index
    %c0_302 = arith.constant 0 : index
    %348 = vector.load %arg27[%c1_300, %c2_301, %c0_302] : memref<2x6x192xf32, #tpu.memory_space<vmem>>, vector<1x4x192xf32>
    %349 = vector.shape_cast %348 : vector<1x4x192xf32> to vector<4x192xf32>
    %350 = arith.truncf %349 : vector<4x192xf32> to vector<4x192xbf16>
    %c2_303 = arith.constant 2 : index
    %c0_304 = arith.constant 0 : index
    %c0_305 = arith.constant 0 : index
    %351 = vector.load %arg5[%c2_303, %c0_304, %c0_305] : memref<3x192x256xbf16, #tpu.memory_space<vmem>>, vector<1x192x256xbf16>
    %352 = vector.shape_cast %351 : vector<1x192x256xbf16> to vector<192x256xbf16>
    %cst_306 = arith.constant dense<0.000000e+00> : vector<4x256xf32>
    %353 = tpu.matmul %350, %352, %cst_306 {dimension_numbers = #tpu.dot_dimension_numbers<[1], [0], [0], [1], [0, 0, 1, 1], [], []>} : vector<4x192xbf16>, vector<192x256xbf16>, vector<4x256xf32> -> vector<4x256xf32>
    %354 = arith.addf %347, %353 : vector<4x256xf32>
    %355 = vector.extract_strided_slice %354 {offsets = [0, 0], sizes = [4, 128], strides = [1, 1]} : vector<4x256xf32> to vector<4x128xf32>
    %356 = vector.extract_strided_slice %354 {offsets = [0, 128], sizes = [4, 128], strides = [1, 1]} : vector<4x256xf32> to vector<4x128xf32>
    %357 = arith.maximumf %355, %356 : vector<4x128xf32>
    %c0_307 = arith.constant 0 : index
    %c0_308 = arith.constant 0 : index
    %358 = vector.load %arg15[%c0_307, %c0_308] : memref<4x4xf32, #tpu.memory_space<vmem>>, vector<4x4xf32>
    %cst_309 = arith.constant dense<0.000000e+00> : vector<4x128xf32>
    %359 = tpu.matmul %358, %357, %cst_309 {dimension_numbers = #tpu.dot_dimension_numbers<[1], [0], [0], [1], [0, 0, 1, 1], [], []>} : vector<4x4xf32>, vector<4x128xf32>, vector<4x128xf32> -> vector<4x128xf32>
    %360 = vector.extract_strided_slice %359 {offsets = [0, 0], sizes = [2, 128], strides = [1, 1]} : vector<4x128xf32> to vector<2x128xf32>
    %361 = vector.extract_strided_slice %359 {offsets = [2, 0], sizes = [2, 128], strides = [1, 1]} : vector<4x128xf32> to vector<2x128xf32>
    %362 = arith.maximumf %360, %361 : vector<2x128xf32>
    %c0_310 = arith.constant 0 : index
    %c0_311 = arith.constant 0 : index
    %363 = vector.load %arg10[%c0_310, %c0_311] : memref<1x128xf32, #tpu.memory_space<vmem>>, vector<1x128xf32>
    %364 = vector.broadcast %363 : vector<1x128xf32> to vector<2x128xf32>
    %365 = arith.addf %362, %364 : vector<2x128xf32>
    %cst_312 = arith.constant 0.000000e+00 : f32
    %366 = vector.broadcast %cst_312 : f32 to vector<2x128xf32>
    %367 = arith.maximumf %365, %366 : vector<2x128xf32>
    %c1_313 = arith.constant 1 : index
    %c1_314 = arith.constant 1 : index
    %c64_315 = arith.constant 64 : index
    %368 = vector.load %arg28[%c1_313, %c1_314, %c64_315] : memref<2x4x256xf32, #tpu.memory_space<vmem>>, vector<1x2x128xf32>
    %369 = vector.shape_cast %368 : vector<1x2x128xf32> to vector<2x128xf32>
    %370 = vector.shape_cast %367 : vector<2x128xf32> to vector<1x2x128xf32>
    tpu.vector_store %arg28[%c1_313, %c1_314, %c64_315], %370 {strides = array<i32>} : memref<2x4x256xf32, #tpu.memory_space<vmem>>, vector<1x2x128xf32>,
    %c1_316 = arith.constant 1 : index
    %c0_317 = arith.constant 0 : index
    %c0_318 = arith.constant 0 : index
    %371 = vector.load %arg28[%c1_316, %c0_317, %c0_318] : memref<2x4x256xf32, #tpu.memory_space<vmem>>, vector<1x2x256xf32>
    %372 = vector.shape_cast %371 : vector<1x2x256xf32> to vector<2x256xf32>
    %373 = arith.truncf %372 : vector<2x256xf32> to vector<2x256xbf16>
    %c0_319 = arith.constant 0 : index
    %c0_320 = arith.constant 0 : index
    %c0_321 = arith.constant 0 : index
    %374 = vector.load %arg6[%c0_319, %c0_320, %c0_321] : memref<3x256x256xbf16, #tpu.memory_space<vmem>>, vector<1x256x256xbf16>
    %375 = vector.shape_cast %374 : vector<1x256x256xbf16> to vector<256x256xbf16>
    %cst_322 = arith.constant dense<0.000000e+00> : vector<2x256xf32>
    %376 = tpu.matmul %373, %375, %cst_322 {dimension_numbers = #tpu.dot_dimension_numbers<[1], [0], [0], [1], [0, 0, 1, 1], [], []>} : vector<2x256xbf16>, vector<256x256xbf16>, vector<2x256xf32> -> vector<2x256xf32>
    %c1_323 = arith.constant 1 : index
    %c1_324 = arith.constant 1 : index
    %c0_325 = arith.constant 0 : index
    %377 = vector.load %arg28[%c1_323, %c1_324, %c0_325] : memref<2x4x256xf32, #tpu.memory_space<vmem>>, vector<1x2x256xf32>
    %378 = vector.shape_cast %377 : vector<1x2x256xf32> to vector<2x256xf32>
    %379 = arith.truncf %378 : vector<2x256xf32> to vector<2x256xbf16>
    %c1_326 = arith.constant 1 : index
    %c0_327 = arith.constant 0 : index
    %c0_328 = arith.constant 0 : index
    %380 = vector.load %arg6[%c1_326, %c0_327, %c0_328] : memref<3x256x256xbf16, #tpu.memory_space<vmem>>, vector<1x256x256xbf16>
    %381 = vector.shape_cast %380 : vector<1x256x256xbf16> to vector<256x256xbf16>
    %cst_329 = arith.constant dense<0.000000e+00> : vector<2x256xf32>
    %382 = tpu.matmul %379, %381, %cst_329 {dimension_numbers = #tpu.dot_dimension_numbers<[1], [0], [0], [1], [0, 0, 1, 1], [], []>} : vector<2x256xbf16>, vector<256x256xbf16>, vector<2x256xf32> -> vector<2x256xf32>
    %383 = arith.addf %376, %382 : vector<2x256xf32>
    %c1_330 = arith.constant 1 : index
    %c2_331 = arith.constant 2 : index
    %c0_332 = arith.constant 0 : index
    %384 = vector.load %arg28[%c1_330, %c2_331, %c0_332] : memref<2x4x256xf32, #tpu.memory_space<vmem>>, vector<1x2x256xf32>
    %385 = vector.shape_cast %384 : vector<1x2x256xf32> to vector<2x256xf32>
    %386 = arith.truncf %385 : vector<2x256xf32> to vector<2x256xbf16>
    %c2_333 = arith.constant 2 : index
    %c0_334 = arith.constant 0 : index
    %c0_335 = arith.constant 0 : index
    %387 = vector.load %arg6[%c2_333, %c0_334, %c0_335] : memref<3x256x256xbf16, #tpu.memory_space<vmem>>, vector<1x256x256xbf16>
    %388 = vector.shape_cast %387 : vector<1x256x256xbf16> to vector<256x256xbf16>
    %cst_336 = arith.constant dense<0.000000e+00> : vector<2x256xf32>
    %389 = tpu.matmul %386, %388, %cst_336 {dimension_numbers = #tpu.dot_dimension_numbers<[1], [0], [0], [1], [0, 0, 1, 1], [], []>} : vector<2x256xbf16>, vector<256x256xbf16>, vector<2x256xf32> -> vector<2x256xf32>
    %390 = arith.addf %383, %389 : vector<2x256xf32>
    %c0_337 = arith.constant 0 : index
    %c0_338 = arith.constant 0 : index
    %391 = vector.load %arg11[%c0_337, %c0_338] : memref<1x256xf32, #tpu.memory_space<vmem>>, vector<1x256xf32>
    %392 = vector.broadcast %391 : vector<1x256xf32> to vector<2x256xf32>
    %393 = arith.addf %390, %392 : vector<2x256xf32>
    %cst_339 = arith.constant 0.000000e+00 : f32
    %394 = vector.broadcast %cst_339 : f32 to vector<2x256xf32>
    %395 = arith.maximumf %393, %394 : vector<2x256xf32>
    %396 = vector.extract_strided_slice %395 {offsets = [0, 0], sizes = [1, 128], strides = [1, 1]} : vector<2x256xf32> to vector<1x128xf32>
    %397 = vector.extract_strided_slice %395 {offsets = [0, 128], sizes = [1, 128], strides = [1, 1]} : vector<2x256xf32> to vector<1x128xf32>
    %398 = arith.addf %396, %397 : vector<1x128xf32>
    %399 = vector.extract_strided_slice %395 {offsets = [1, 0], sizes = [1, 128], strides = [1, 1]} : vector<2x256xf32> to vector<1x128xf32>
    %400 = arith.addf %398, %399 : vector<1x128xf32>
    %401 = vector.extract_strided_slice %395 {offsets = [1, 128], sizes = [1, 128], strides = [1, 1]} : vector<2x256xf32> to vector<1x128xf32>
    %402 = arith.addf %400, %401 : vector<1x128xf32>
    %cst_340 = arith.constant 2.500000e-01 : f32
    %403 = vector.broadcast %cst_340 : f32 to vector<1x128xf32>
    %404 = arith.mulf %402, %403 : vector<1x128xf32>
    %c1_341 = arith.constant 1 : index
    %c0_342 = arith.constant 0 : index
    %405 = vector.load %arg29[%c1_341, %c0_342] : memref<2x128xf32, #tpu.memory_space<vmem>>, vector<1x128xf32>
    tpu.vector_store %arg29[%c1_341, %c0_342], %404 {strides = array<i32>} : memref<2x128xf32, #tpu.memory_space<vmem>>, vector<1x128xf32>,
    %c0_343 = arith.constant 0 : index
    %c0_344 = arith.constant 0 : index
    %406 = vector.load %arg0[%c0_343, %c0_344] : memref<2x300xf32, #tpu.memory_space<vmem>>, vector<2x300xf32>
    %407 = arith.truncf %406 : vector<2x300xf32> to vector<2x300xbf16>
    %c0_345 = arith.constant 0 : index
    %c0_346 = arith.constant 0 : index
    %408 = vector.load %arg16[%c0_345, %c0_346] : memref<300x160xbf16, #tpu.memory_space<vmem>>, vector<300x160xbf16>
    %cst_347 = arith.constant dense<0.000000e+00> : vector<2x160xf32>
    %409 = tpu.matmul %407, %408, %cst_347 {dimension_numbers = #tpu.dot_dimension_numbers<[1], [0], [0], [1], [0, 0, 1, 1], [], []>} : vector<2x300xbf16>, vector<300x160xbf16>, vector<2x160xf32> -> vector<2x160xf32>
    %c0_348 = arith.constant 0 : index
    %c0_349 = arith.constant 0 : index
    %410 = vector.load %arg17[%c0_348, %c0_349] : memref<1x160xf32, #tpu.memory_space<vmem>>, vector<1x160xf32>
    %411 = vector.broadcast %410 : vector<1x160xf32> to vector<2x160xf32>
    %412 = arith.addf %409, %411 : vector<2x160xf32>
    %413 = vector.extract_strided_slice %412 {offsets = [0, 0], sizes = [2, 32], strides = [1, 1]} : vector<2x160xf32> to vector<2x32xf32>
    %414 = vector.extract_strided_slice %412 {offsets = [0, 32], sizes = [2, 32], strides = [1, 1]} : vector<2x160xf32> to vector<2x32xf32>
    %415 = arith.maximumf %413, %414 : vector<2x32xf32>
    %416 = vector.extract_strided_slice %412 {offsets = [0, 64], sizes = [2, 32], strides = [1, 1]} : vector<2x160xf32> to vector<2x32xf32>
    %417 = arith.maximumf %415, %416 : vector<2x32xf32>
    %418 = vector.extract_strided_slice %412 {offsets = [0, 96], sizes = [2, 32], strides = [1, 1]} : vector<2x160xf32> to vector<2x32xf32>
    %419 = arith.maximumf %417, %418 : vector<2x32xf32>
    %420 = vector.extract_strided_slice %412 {offsets = [0, 128], sizes = [2, 32], strides = [1, 1]} : vector<2x160xf32> to vector<2x32xf32>
    %421 = arith.maximumf %419, %420 : vector<2x32xf32>
    %422 = arith.truncf %421 : vector<2x32xf32> to vector<2x32xbf16>
    %c0_350 = arith.constant 0 : index
    %c0_351 = arith.constant 0 : index
    %423 = vector.load %arg18[%c0_350, %c0_351] : memref<32x320xbf16, #tpu.memory_space<vmem>>, vector<32x320xbf16>
    %cst_352 = arith.constant dense<0.000000e+00> : vector<2x320xf32>
    %424 = tpu.matmul %422, %423, %cst_352 {dimension_numbers = #tpu.dot_dimension_numbers<[1], [0], [0], [1], [0, 0, 1, 1], [], []>} : vector<2x32xbf16>, vector<32x320xbf16>, vector<2x320xf32> -> vector<2x320xf32>
    %c0_353 = arith.constant 0 : index
    %c0_354 = arith.constant 0 : index
    %425 = vector.load %arg19[%c0_353, %c0_354] : memref<1x320xf32, #tpu.memory_space<vmem>>, vector<1x320xf32>
    %426 = vector.broadcast %425 : vector<1x320xf32> to vector<2x320xf32>
    %427 = arith.addf %424, %426 : vector<2x320xf32>
    %428 = vector.extract_strided_slice %427 {offsets = [0, 0], sizes = [2, 64], strides = [1, 1]} : vector<2x320xf32> to vector<2x64xf32>
    %429 = vector.extract_strided_slice %427 {offsets = [0, 64], sizes = [2, 64], strides = [1, 1]} : vector<2x320xf32> to vector<2x64xf32>
    %430 = arith.maximumf %428, %429 : vector<2x64xf32>
    %431 = vector.extract_strided_slice %427 {offsets = [0, 128], sizes = [2, 64], strides = [1, 1]} : vector<2x320xf32> to vector<2x64xf32>
    %432 = arith.maximumf %430, %431 : vector<2x64xf32>
    %433 = vector.extract_strided_slice %427 {offsets = [0, 192], sizes = [2, 64], strides = [1, 1]} : vector<2x320xf32> to vector<2x64xf32>
    %434 = arith.maximumf %432, %433 : vector<2x64xf32>
    %435 = vector.extract_strided_slice %427 {offsets = [0, 256], sizes = [2, 64], strides = [1, 1]} : vector<2x320xf32> to vector<2x64xf32>
    %436 = arith.maximumf %434, %435 : vector<2x64xf32>
    %c0_355 = arith.constant 0 : index
    %c0_356 = arith.constant 0 : index
    %437 = vector.load %arg20[%c0_355, %c0_356] : memref<64x16xf32, #tpu.memory_space<vmem>>, vector<64x16xf32>
    %cst_357 = arith.constant dense<0.000000e+00> : vector<2x16xf32>
    %438 = tpu.matmul %436, %437, %cst_357 {dimension_numbers = #tpu.dot_dimension_numbers<[1], [0], [0], [1], [0, 0, 1, 1], [], []>} : vector<2x64xf32>, vector<64x16xf32>, vector<2x16xf32> -> vector<2x16xf32>
    %c0_358 = arith.constant 0 : index
    %c0_359 = arith.constant 0 : index
    %439 = vector.load %arg29[%c0_358, %c0_359] : memref<2x128xf32, #tpu.memory_space<vmem>>, vector<2x128xf32>
    %c0_360 = arith.constant 0 : index
    %c0_361 = arith.constant 0 : index
    %440 = vector.load %arg21[%c0_360, %c0_361] : memref<128x16xf32, #tpu.memory_space<vmem>>, vector<128x16xf32>
    %cst_362 = arith.constant dense<0.000000e+00> : vector<2x16xf32>
    %441 = tpu.matmul %439, %440, %cst_362 {dimension_numbers = #tpu.dot_dimension_numbers<[1], [0], [0], [1], [0, 0, 1, 1], [], []>} : vector<2x128xf32>, vector<128x16xf32>, vector<2x16xf32> -> vector<2x16xf32>
    %442 = arith.addf %438, %441 : vector<2x16xf32>
    %c0_363 = arith.constant 0 : index
    %c0_364 = arith.constant 0 : index
    %443 = vector.load %arg22[%c0_363, %c0_364] : memref<1x16xf32, #tpu.memory_space<vmem>>, vector<1x16xf32>
    %444 = vector.broadcast %443 : vector<1x16xf32> to vector<2x16xf32>
    %445 = arith.addf %442, %444 : vector<2x16xf32>
    %c0_365 = arith.constant 0 : index
    %c0_366 = arith.constant 0 : index
    %446 = vector.load %arg23[%c0_365, %c0_366] : memref<2x16xf32, #tpu.memory_space<vmem>>, vector<2x16xf32>
    tpu.vector_store %arg23[%c0_365, %c0_366], %445 {strides = array<i32>} : memref<2x16xf32, #tpu.memory_space<vmem>>, vector<2x16xf32>,
    return
  }
}

</mosaic_0001>

<llo_original>
// kernel: forward.1
$region0: #{forward.1}
  #allocation0 [shape = 'u32[]', space=smem, size = 0x4, offset = 0x4, fixed_abs, tag = 'smem constant byte address 0x4 - core index']
  #allocation1 [shape = 'u32[72,128]{1,0:T(1,128)}', space=vmem, size = 0x9000, scoped, tag = 'internal scratch']
  #allocation2 [shape = 'f32[2,36,108]{2,1,0:T(8,128)}', space=vmem, size = 0xa000, scoped, tag = 'scratch operand']
  #allocation3 [shape = 'f32[2,18,144]{2,1,0:T(8,128)}', space=vmem, size = 0xc000, scoped, tag = 'scratch operand']
  #allocation4 [shape = 'f32[2,10,160]{2,1,0:T(8,128)}', space=vmem, size = 0x8000, scoped, tag = 'scratch operand']
  #allocation5 [shape = 'f32[2,6,192]{2,1,0:T(8,128)}', space=vmem, size = 0x4000, scoped, tag = 'scratch operand']
  #allocation6 [shape = 'f32[2,4,256]{2,1,0:T(4,128)}', space=vmem, size = 0x2000, scoped, tag = 'scratch operand']
  #allocation7 [shape = 'f32[2,128]{1,0:T(2,128)}', space=vmem, size = 0x400, scoped, tag = 'scratch operand']
  %s0 = inlined_call_operand.vmem [shape: f32[2,300], index: 0, kind: input, shape index: {}]
  %s1 = inlined_call_operand.vmem [shape: f32[2,32,96], index: 1, kind: input, shape index: {}]
  %s2 = inlined_call_operand.hbm [shape: bf16[5,108,256], index: 2, kind: input, shape index: {}]
  %s3 = inlined_call_operand.hbm [shape: bf16[3,144,256], index: 3, kind: input, shape index: {}]
  %s4 = inlined_call_operand.hbm [shape: bf16[3,160,256], index: 4, kind: input, shape index: {}]
  %s5 = inlined_call_operand.hbm [shape: bf16[3,192,256], index: 5, kind: input, shape index: {}]
  %s6 = inlined_call_operand.vmem [shape: bf16[3,256,256], index: 6, kind: input, shape index: {}]
  %s7 = inlined_call_operand.vmem [shape: f32[1,128], index: 7, kind: input, shape index: {}]
  %s8 = inlined_call_operand.vmem [shape: f32[1,128], index: 8, kind: input, shape index: {}]
  %s9 = inlined_call_operand.vmem [shape: f32[1,128], index: 9, kind: input, shape index: {}]
  %s10 = inlined_call_operand.vmem [shape: f32[1,128], index: 10, kind: input, shape index: {}]
  %s11 = inlined_call_operand.vmem [shape: f32[1,256], index: 11, kind: input, shape index: {}]
  %s12 = inlined_call_operand.vmem [shape: f32[32,32], index: 12, kind: input, shape index: {}]
  %s13 = inlined_call_operand.vmem [shape: f32[16,16], index: 13, kind: input, shape index: {}]
  %s14 = inlined_call_operand.vmem [shape: f32[8,8], index: 14, kind: input, shape index: {}]
  %s15 = inlined_call_operand.vmem [shape: f32[4,4], index: 15, kind: input, shape index: {}]
  %s16 = inlined_call_operand.vmem [shape: bf16[300,160], index: 16, kind: input, shape index: {}]
  %s17 = inlined_call_operand.vmem [shape: f32[1,160], index: 17, kind: input, shape index: {}]
  %s18 = inlined_call_operand.vmem [shape: bf16[32,320], index: 18, kind: input, shape index: {}]
  %s19 = inlined_call_operand.vmem [shape: f32[1,320], index: 19, kind: input, shape index: {}]
  %s20 = inlined_call_operand.vmem [shape: f32[64,16], index: 20, kind: input, shape index: {}]
  %s21 = inlined_call_operand.vmem [shape: f32[128,16], index: 21, kind: input, shape index: {}]
  %s22 = inlined_call_operand.vmem [shape: f32[1,16], index: 22, kind: input, shape index: {}]
  %s23 = inlined_call_operand.hbm [shape: f32[2,16], index: 23, kind: output, shape index: {}]
  %s24 = sld [smem:[#allocation0]]
  $region118: #{forward.1} parent=0
    _
  %s26 = ssub.s32 1, %s24
  %s27 = scalar_select 0, %s26, %s24
  $region1: #{forward.1} parent=0
    #allocation8 [shape = 'u8[286720]{0}', space=vmem, size = 0x46000, scoped, tag = 'input window, operand 2, single buffered']
    #allocation9 [shape = 's32[1]{0}', space=sflag, size = 0x4, scoped, tag = 'scoped memory for forward.1']
    #allocation10 [shape = 's32[1]{0}', space=sflag, size = 0x4, scoped, tag = 'scoped memory for forward.1']
    #allocation11 [shape = 'u8[221184]{0}', space=vmem, size = 0x36000, scoped, tag = 'input window, operand 3, single buffered']
    #allocation12 [shape = 's32[1]{0}', space=sflag, size = 0x4, scoped, tag = 'scoped memory for forward.1']
    #allocation13 [shape = 'u8[245760]{0}', space=vmem, size = 0x3c000, scoped, tag = 'input window, operand 4, single buffered']
    #allocation14 [shape = 'u8[294912]{0}', space=vmem, size = 0x48000, scoped, tag = 'input window, operand 5, single buffered']
    #allocation15 [shape = 's32[1]{0}', space=sflag, size = 0x4, scoped, tag = 'scoped memory for forward.1']
    #allocation16 [shape = 'u8[1024]{0}', space=vmem, size = 0x400, scoped, tag = 'output window, operand 0, single buffered']
    %28 = vsyncpa [#allocation9], 0
    %29 = vsyncpa [#allocation12], 0
    %30 = vsyncpa [#allocation15], 0
    %31 = vsyncpa [#allocation10], 0
    // Predicated region
    $region2: #{forward.1} parent=1 // pred_check
      _
    $region3: #{forward.1} parent=1 // pred_check_branch
      %33 = sbr.rel (0) target = $region5
    $region4: #{forward.1} parent=1 // pred_region
      _
    $region5: #{forward.1} parent=1 // pred_fallthru
      _
    // Predicated region
    $region6: #{forward.1} parent=1 // pred_check
      _
    $region7: #{forward.1} parent=1 // pred_check_branch
      %35 = sbr.rel (0) target = $region9
    $region8: #{forward.1} parent=1 // pred_region
      _
    $region9: #{forward.1} parent=1 // pred_fallthru
      _
    // Predicated region
    $region10: #{forward.1} parent=1 // pred_check
      _
    $region11: #{forward.1} parent=1 // pred_check_branch
      %37 = sbr.rel (0) target = $region13
    $region12: #{forward.1} parent=1 // pred_region
      %39 = vsyncadd [#allocation9], 0
      %s40 = sshll.u32 %s2, 4
      %s41 = int_to_ptr.hbm [resolvable:$true] %s40
      %s42 = sshll.u32 [#allocation8], 4
      %s43 = int_to_ptr.vmem [resolvable:$true] %s42
      %48 = dma.hbm_to_vmem [thread:$0]  %s41, 8960, %s43, [#allocation9], 128, 128, 8
    $region13: #{forward.1} parent=1 // pred_fallthru
      _
    // Predicated region
    $region14: #{forward.1} parent=1 // pred_check
      _
    $region15: #{forward.1} parent=1 // pred_check_branch
      %50 = sbr.rel (0) target = $region17
    $region16: #{forward.1} parent=1 // pred_region
      %52 = vsyncadd [#allocation12], 0
      %s53 = sshll.u32 %s3, 4
      %s54 = int_to_ptr.hbm [resolvable:$true] %s53
      %s55 = sshll.u32 [#allocation11], 4
      %s56 = int_to_ptr.vmem [resolvable:$true] %s55
      %61 = dma.hbm_to_vmem [thread:$0]  %s54, 6912, %s56, [#allocation12], 128, 128, 8
    $region17: #{forward.1} parent=1 // pred_fallthru
      _
    // Predicated region
    $region18: #{forward.1} parent=1 // pred_check
      _
    $region19: #{forward.1} parent=1 // pred_check_branch
      %63 = sbr.rel (0) target = $region21
    $region20: #{forward.1} parent=1 // pred_region
      %65 = vsyncadd [#allocation12], 0
      %s66 = sshll.u32 %s4, 4
      %s67 = int_to_ptr.hbm [resolvable:$true] %s66
      %s68 = sshll.u32 [#allocation13], 4
      %s69 = int_to_ptr.vmem [resolvable:$true] %s68
      %74 = dma.hbm_to_vmem [thread:$0]  %s67, 7680, %s69, [#allocation12], 128, 128, 8
    $region21: #{forward.1} parent=1 // pred_fallthru
      _
    // Predicated region
    $region22: #{forward.1} parent=1 // pred_check
      _
    $region23: #{forward.1} parent=1 // pred_check_branch
      %76 = sbr.rel (0) target = $region25
    $region24: #{forward.1} parent=1 // pred_region
      %78 = vsyncadd [#allocation15], 0
      %s79 = sshll.u32 %s5, 4
      %s80 = int_to_ptr.hbm [resolvable:$true] %s79
      %s81 = sshll.u32 [#allocation14], 4
      %s82 = int_to_ptr.vmem [resolvable:$true] %s81
      %87 = dma.hbm_to_vmem [thread:$0]  %s80, 9216, %s82, [#allocation15], 128, 128, 8
    $region25: #{forward.1} parent=1 // pred_fallthru
      _
    // Predicated region
    $region26: #{forward.1} parent=1 // pred_check
      _
    $region27: #{forward.1} parent=1 // pred_check_branch
      %89 = sbr.rel (0) target = $region29
    $region28: #{forward.1} parent=1 // pred_region
      _
    $region29: #{forward.1} parent=1 // pred_fallthru
      _
    // Predicated region
    $region30: #{forward.1} parent=1 // pred_check
      _
    $region31: #{forward.1} parent=1 // pred_check_branch
      %91 = sbr.rel (0) target = $region33
    $region32: #{forward.1} parent=1 // pred_region
      _
    $region33: #{forward.1} parent=1 // pred_fallthru
      _
    // Predicated region
    $region34: #{forward.1} parent=1 // pred_check
      _
    $region35: #{forward.1} parent=1 // pred_check_branch
      %93 = sbr.rel (0) target = $region37
    $region36: #{forward.1} parent=1 // pred_region
      _
    $region37: #{forward.1} parent=1 // pred_fallthru
      _
    // Predicated region
    $region38: #{forward.1} parent=1 // pred_check
      _
    $region39: #{forward.1} parent=1 // pred_check_branch
      %95 = sbr.rel (0) target = $region41
    $region40: #{forward.1} parent=1 // pred_region
      _
    $region41: #{forward.1} parent=1 // pred_fallthru
      _
    // Predicated region
    $region42: #{forward.1} parent=1 // pred_check
      _
    $region43: #{forward.1} parent=1 // pred_check_branch
      %97 = sbr.rel (0) target = $region45
    $region44: #{forward.1} parent=1 // pred_region
      _
    $region45: #{forward.1} parent=1 // pred_fallthru
      _
    // Predicated region
    $region46: #{forward.1} parent=1 // pred_check
      _
    $region47: #{forward.1} parent=1 // pred_check_branch
      %99 = sbr.rel (0) target = $region49
    $region48: #{forward.1} parent=1 // pred_region
      _
    $region49: #{forward.1} parent=1 // pred_fallthru
      _
    // Predicated region
    $region50: #{forward.1} parent=1 // pred_check
      _
    $region51: #{forward.1} parent=1 // pred_check_branch
      %101 = sbr.rel (0) target = $region53
    $region52: #{forward.1} parent=1 // pred_region
      _
    $region53: #{forward.1} parent=1 // pred_fallthru
      _
    // Predicated region
    $region54: #{forward.1} parent=1 // pred_check
      _
    $region55: #{forward.1} parent=1 // pred_check_branch
      %103 = sbr.rel (0) target = $region57
    $region56: #{forward.1} parent=1 // pred_region
      _
    $region57: #{forward.1} parent=1 // pred_fallthru
      _
    // Predicated region
    $region58: #{forward.1} parent=1 // pred_check
      _
    $region59: #{forward.1} parent=1 // pred_check_branch
      %105 = sbr.rel (0) target = $region61
    $region60: #{forward.1} parent=1 // pred_region
      _
    $region61: #{forward.1} parent=1 // pred_fallthru
      _
    // Predicated region
    $region62: #{forward.1} parent=1 // pred_check
      _
    $region63: #{forward.1} parent=1 // pred_check_branch
      %107 = sbr.rel (0) target = $region65
    $region64: #{forward.1} parent=1 // pred_region
      _
    $region65: #{forward.1} parent=1 // pred_fallthru
      _
    // Predicated region
    $region66: #{forward.1} parent=1 // pred_check
      _
    $region67: #{forward.1} parent=1 // pred_check_branch
      %109 = sbr.rel (0) target = $region69
    $region68: #{forward.1} parent=1 // pred_region
      _
    $region69: #{forward.1} parent=1 // pred_fallthru
      _
    // Predicated region
    $region70: #{forward.1} parent=1 // pred_check
      _
    $region71: #{forward.1} parent=1 // pred_check_branch
      %111 = sbr.rel (0) target = $region73
    $region72: #{forward.1} parent=1 // pred_region
      _
    $region73: #{forward.1} parent=1 // pred_fallthru
      _
    // Predicated region
    $region74: #{forward.1} parent=1 // pred_check
      _
    $region75: #{forward.1} parent=1 // pred_check_branch
      %113 = sbr.rel (0) target = $region77
    $region76: #{forward.1} parent=1 // pred_region
      _
    $region77: #{forward.1} parent=1 // pred_fallthru
      _
    // Predicated region
    $region78: #{forward.1} parent=1 // pred_check
      _
    $region79: #{forward.1} parent=1 // pred_check_branch
      %115 = sbr.rel (0) target = $region81
    $region80: #{forward.1} parent=1 // pred_region
      _
    $region81: #{forward.1} parent=1 // pred_fallthru
      _
    // Predicated region
    $region82: #{forward.1} parent=1 // pred_check
      _
    $region83: #{forward.1} parent=1 // pred_check_branch
      %117 = sbr.rel (0) target = $region85
    $region84: #{forward.1} parent=1 // pred_region
      _
    $region85: #{forward.1} parent=1 // pred_fallthru
      _
    // Predicated region
    $region86: #{forward.1} parent=1 // pred_check
      _
    $region87: #{forward.1} parent=1 // pred_check_branch
      %119 = sbr.rel (0) target = $region89
    $region88: #{forward.1} parent=1 // pred_region
      _
    $region89: #{forward.1} parent=1 // pred_fallthru
      _
    // Predicated region
    $region90: #{forward.1} parent=1 // pred_check
      _
    $region91: #{forward.1} parent=1 // pred_check_branch
      %121 = sbr.rel (0) target = $region93
    $region92: #{forward.1} parent=1 // pred_region
      _
    $region93: #{forward.1} parent=1 // pred_fallthru
      _
    // Predicated region
    $region94: #{forward.1} parent=1 // pred_check
      _
    $region95: #{forward.1} parent=1 // pred_check_branch
      %123 = sbr.rel (0) target = $region97
    $region96: #{forward.1} parent=1 // pred_region
      %125 = dma.done [#allocation9], 8960
    $region97: #{forward.1} parent=1 // pred_fallthru
      _
    // Predicated region
    $region98: #{forward.1} parent=1 // pred_check
      _
    $region99: #{forward.1} parent=1 // pred_check_branch
      %127 = sbr.rel (0) target = $region101
    $region100: #{forward.1} parent=1 // pred_region
      %129 = dma.done [#allocation12], 6912
    $region101: #{forward.1} parent=1 // pred_fallthru
      _
    // Predicated region
    $region102: #{forward.1} parent=1 // pred_check
      _
    $region103: #{forward.1} parent=1 // pred_check_branch
      %131 = sbr.rel (0) target = $region105
    $region104: #{forward.1} parent=1 // pred_region
      %133 = dma.done [#allocation12], 7680
    $region105: #{forward.1} parent=1 // pred_fallthru
      _
    // Predicated region
    $region106: #{forward.1} parent=1 // pred_check
      _
    $region107: #{forward.1} parent=1 // pred_check_branch
      %135 = sbr.rel (0) target = $region109
    $region108: #{forward.1} parent=1 // pred_region
      %137 = dma.done [#allocation15], 9216
    $region109: #{forward.1} parent=1 // pred_fallthru
      _
    %vm139 = vcmask 883712
    %140 = vst.msk [vmem:[#allocation2] sm:$0xff] %vm139, 0.0
    %141 = vst.msk [vmem:[#allocation2 + $0x8] sm:$0xff] %vm139, 0.0
    %142 = vst.msk [vmem:[#allocation2 + $0x10] sm:$0xff] %vm139, 0.0
    %143 = vst.msk [vmem:[#allocation2 + $0x18] sm:$0xff] %vm139, 0.0
    %vm144 = vcmask 879616
    %145 = vst.msk [vmem:[#allocation2 + $0x20] sm:$0xf] %vm144, 0.0
    %146 = vst.msk [vmem:[#allocation2 + $0x28] sm:$0xff] %vm139, 0.0
    %147 = vst.msk [vmem:[#allocation2 + $0x30] sm:$0xff] %vm139, 0.0
    %148 = vst.msk [vmem:[#allocation2 + $0x38] sm:$0xff] %vm139, 0.0
    %149 = vst.msk [vmem:[#allocation2 + $0x40] sm:$0xff] %vm139, 0.0
    %150 = vst.msk [vmem:[#allocation2 + $0x48] sm:$0xf] %vm144, 0.0
    %151 = vst [vmem:[#allocation3] sm:$0xff] 0.0
    %vm152 = vcmask 130048
    %153 = vst.msk [vmem:[#allocation3 + $0x8] sm:$0xff] %vm152, 0.0
    %154 = vst [vmem:[#allocation3 + $0x10] sm:$0xff] 0.0
    %155 = vst.msk [vmem:[#allocation3 + $0x18] sm:$0xff] %vm152, 0.0
    %156 = vst [vmem:[#allocation3 + $0x20] sm:$0x3] 0.0
    %vm157 = vcmask 123904
    %158 = vst.msk [vmem:[#allocation3 + $0x28] sm:$0x3] %vm157, 0.0
    %159 = vst [vmem:[#allocation3 + $0x30] sm:$0xff] 0.0
    %160 = vst.msk [vmem:[#allocation3 + $0x38] sm:$0xff] %vm152, 0.0
    %161 = vst [vmem:[#allocation3 + $0x40] sm:$0xff] 0.0
    %162 = vst.msk [vmem:[#allocation3 + $0x48] sm:$0xff] %vm152, 0.0
    %163 = vst [vmem:[#allocation3 + $0x50] sm:$0x3] 0.0
    %164 = vst.msk [vmem:[#allocation3 + $0x58] sm:$0x3] %vm157, 0.0
    %165 = vst [vmem:[#allocation4] sm:$0xff] 0.0
    %vm166 = vcmask 261120
    %167 = vst.msk [vmem:[#allocation4 + $0x8] sm:$0xff] %vm166, 0.0
    %168 = vst [vmem:[#allocation4 + $0x10] sm:$0x3] 0.0
    %vm169 = vcmask 254976
    %170 = vst.msk [vmem:[#allocation4 + $0x18] sm:$0x3] %vm169, 0.0
    %171 = vst [vmem:[#allocation4 + $0x20] sm:$0xff] 0.0
    %172 = vst.msk [vmem:[#allocation4 + $0x28] sm:$0xff] %vm166, 0.0
    %173 = vst [vmem:[#allocation4 + $0x30] sm:$0x3] 0.0
    %174 = vst.msk [vmem:[#allocation4 + $0x38] sm:$0x3] %vm169, 0.0
    %175 = vst [vmem:[#allocation5] sm:$0x3f] 0.0
    %vm176 = vcmask 521216
    %177 = vst.msk [vmem:[#allocation5 + $0x8] sm:$0x3f] %vm176, 0.0
    %178 = vst [vmem:[#allocation5 + $0x10] sm:$0x3f] 0.0
    %179 = vst.msk [vmem:[#allocation5 + $0x18] sm:$0x3f] %vm176, 0.0
    %180 = vst [vmem:[#allocation6] sm:$0xff] 0.0
    %181 = vst [vmem:[#allocation6 + $0x8] sm:$0xff] 0.0
    %v182 = vld [vmem:[%s1] sm:$0xff]
    %v183 = vld [vmem:[%s1 + $0x8] sm:$0xff]
    %v184 = vld [vmem:[%s1 + $0x10] sm:$0xff]
    %v185 = vld [vmem:[%s1 + $0x18] sm:$0xff]
    %190 = vrot.lane.b32.xlu0 %v182, 6
    %v191 = vpop.permute.xlu0 %190
    %192 = vrot.lane.b32.xlu0 %v183, 6
    %v193 = vpop.permute.xlu0 %192
    %194 = vrot.lane.b32.xlu0 %v184, 6
    %v195 = vpop.permute.xlu0 %194
    %196 = vrot.lane.b32.xlu0 %v185, 6
    %v197 = vpop.permute.xlu0 %196
    %vm202 = vcmask 834608
    %203 = vst.msk [vmem:[#allocation2 + $0x2] sm:$0xff] %vm202, %v191
    %204 = vst.msk [vmem:[#allocation2 + $0xa] sm:$0xff] %vm202, %v193
    %205 = vst.msk [vmem:[#allocation2 + $0x12] sm:$0xff] %vm202, %v195
    %206 = vst.msk [vmem:[#allocation2 + $0x1a] sm:$0xff] %vm202, %v197
    %v207 = vld [vmem:[#allocation2] sm:$0xff]
    %v208 = vld [vmem:[#allocation2 + $0x8] sm:$0xff]
    %v209 = vld [vmem:[#allocation2 + $0x10] sm:$0xff]
    %v210 = vld [vmem:[#allocation2 + $0x18] sm:$0xff]
    %v211 = vpack.c.bf16 %v208, %v207
    %v212 = vpack.c.bf16 %v210, %v209
    %v213 = vld [vmem:[#allocation8] sm:$0xff]
    %v214 = vld [vmem:[#allocation8 + $0x8] sm:$0xff]
    %v215 = vld [vmem:[#allocation8 + $0x10] sm:$0xff]
    %v216 = vld [vmem:[#allocation8 + $0x18] sm:$0xff]
    %v217 = vld [vmem:[#allocation8 + $0x20] sm:$0xff]
    %v218 = vld [vmem:[#allocation8 + $0x28] sm:$0xff]
    %v219 = vld [vmem:[#allocation8 + $0x30] sm:$0xff]
    %v220 = vld [vmem:[#allocation8 + $0x38] sm:$0xff]
    %v221 = vld [vmem:[#allocation8 + $0x40] sm:$0xff]
    %v222 = vld [vmem:[#allocation8 + $0x48] sm:$0xff]
    %v223 = vld [vmem:[#allocation8 + $0x50] sm:$0xff]
    %v224 = vld [vmem:[#allocation8 + $0x58] sm:$0xff]
    %v225 = vld [vmem:[#allocation8 + $0x60] sm:$0xff]
    %v226 = vld [vmem:[#allocation8 + $0x68] sm:$0x33]
    %v227 = vld [vmem:[#allocation2 + $0x1] sm:$0xff]
    %v228 = vld [vmem:[#allocation2 + $0x9] sm:$0xff]
    %v229 = vld [vmem:[#allocation2 + $0x11] sm:$0xff]
    %v230 = vld [vmem:[#allocation2 + $0x19] sm:$0xff]
    %v231 = vpack.c.bf16 %v228, %v227
    %v232 = vpack.c.bf16 %v230, %v229
    %s233 = scalar_lea.vmem [#allocation8], 112
    %v234 = vld [vmem:[%s233] sm:$0xff]
    %v235 = vld [vmem:[%s233 + $0x8] sm:$0xff]
    %v236 = vld [vmem:[%s233 + $0x10] sm:$0xff]
    %v237 = vld [vmem:[%s233 + $0x18] sm:$0xff]
    %v238 = vld [vmem:[%s233 + $0x20] sm:$0xff]
    %v239 = vld [vmem:[%s233 + $0x28] sm:$0xff]
    %v240 = vld [vmem:[%s233 + $0x30] sm:$0xff]
    %v241 = vld [vmem:[%s233 + $0x38] sm:$0xff]
    %v242 = vld [vmem:[%s233 + $0x40] sm:$0xff]
    %v243 = vld [vmem:[%s233 + $0x48] sm:$0xff]
    %v244 = vld [vmem:[%s233 + $0x50] sm:$0xff]
    %v245 = vld [vmem:[%s233 + $0x58] sm:$0xff]
    %v246 = vld [vmem:[%s233 + $0x60] sm:$0xff]
    %v247 = vld [vmem:[%s233 + $0x68] sm:$0x33]
    %v262 = vunpack.c.l.b16 %v234
    %v263 = vunpack.c.h.b16 %v234
    %v264 = vunpack.c.l.b16 %v235
    %v265 = vunpack.c.h.b16 %v235
    %v266 = vunpack.c.l.b16 %v236
    %v267 = vunpack.c.h.b16 %v236
    %v268 = vunpack.c.l.b16 %v237
    %v269 = vunpack.c.h.b16 %v237
    %v270 = vunpack.c.l.b16 %v238
    %v271 = vunpack.c.h.b16 %v238
    %v272 = vunpack.c.l.b16 %v239
    %v273 = vunpack.c.h.b16 %v239
    %v274 = vunpack.c.l.b16 %v240
    %v275 = vunpack.c.h.b16 %v240
    %v276 = vunpack.c.l.b16 %v241
    %v277 = vunpack.c.h.b16 %v241
    %v278 = vunpack.c.l.b16 %v242
    %v279 = vunpack.c.h.b16 %v242
    %v280 = vunpack.c.l.b16 %v243
    %v281 = vunpack.c.h.b16 %v243
    %v282 = vunpack.c.l.b16 %v244
    %v283 = vunpack.c.h.b16 %v244
    %v284 = vunpack.c.l.b16 %v245
    %v285 = vunpack.c.h.b16 %v245
    %v286 = vunpack.c.l.b16 %v246
    %v287 = vunpack.c.h.b16 %v246
    %v288 = vunpack.c.l.b16 %v247
    %v289 = vunpack.c.h.b16 %v247
    %v290 = vpack.c.b16 %v264, %v262
    %v291 = vpack.c.b16 %v265, %v263
    %v292 = vpack.c.b16 %v268, %v266
    %v293 = vpack.c.b16 %v269, %v267
    %v294 = vpack.c.b16 %v272, %v270
    %v295 = vpack.c.b16 %v273, %v271
    %v296 = vpack.c.b16 %v276, %v274
    %v297 = vpack.c.b16 %v277, %v275
    %v298 = vpack.c.b16 %v280, %v278
    %v299 = vpack.c.b16 %v281, %v279
    %v300 = vpack.c.b16 %v284, %v282
    %v301 = vpack.c.b16 %v285, %v283
    %v302 = vpack.c.b16 %v288, %v286
    %v303 = vpack.c.b16 %v289, %v287
    %v317 = vsel %vm139, %v231, 0
    %v320 = vsel %vm139, %v232, 0
    %vm322 = vcmask 1045504
    %v324 = vsel %vm322, %v302, 0
    %v327 = vsel %vm322, %v303, 0
    %329 = vmatpush.bf16.msra.mxu0 0
    %330 = vmatpush.bf16.msra.mxu0 %v324
    %331 = vmatpush.bf16.msra.mxu0 %v300
    %332 = vmatpush.bf16.msra.mxu0 %v298
    %333 = vmatpush.bf16.msra.mxu0 %v296
    %334 = vmatpush.bf16.msra.mxu0 %v294
    %335 = vmatpush.bf16.msra.mxu0 %v292
    %336 = vmatpush.bf16.msra.mxu0 %v290
    %337 = vmatmul.bf16.gmra.mxu0 %v317
    %v338 = vpop.f32.mrf.mxu0
    %v339 = vadd.f32 0.0, %v338
    %v340 = vpop.f32.mrf.mxu0
    %v341 = vadd.f32 0.0, %v340
    %342 = vmatmul.bf16.gmra.mxu0 %v320
    %v343 = vpop.f32.mrf.mxu0
    %v344 = vadd.f32 0.0, %v343
    %v345 = vpop.f32.mrf.mxu0
    %v346 = vadd.f32 0.0, %v345
    %347 = vdwg.mxu0
    %348 = vmatpush.bf16.msra.mxu0 0
    %349 = vmatpush.bf16.msra.mxu0 %v327
    %350 = vmatpush.bf16.msra.mxu0 %v301
    %351 = vmatpush.bf16.msra.mxu0 %v299
    %352 = vmatpush.bf16.msra.mxu0 %v297
    %353 = vmatpush.bf16.msra.mxu0 %v295
    %354 = vmatpush.bf16.msra.mxu0 %v293
    %355 = vmatpush.bf16.msra.mxu0 %v291
    %356 = vmatmul.bf16.gmra.mxu0 %v317
    %v357 = vpop.f32.mrf.mxu0
    %v358 = vadd.f32 0.0, %v357
    %v359 = vpop.f32.mrf.mxu0
    %v360 = vadd.f32 0.0, %v359
    %361 = vmatmul.bf16.gmra.mxu0 %v320
    %v362 = vpop.f32.mrf.mxu0
    %v363 = vadd.f32 0.0, %v362
    %v364 = vpop.f32.mrf.mxu0
    %v365 = vadd.f32 0.0, %v364
    %366 = vdwg.mxu0
    %v381 = vunpack.c.l.b16 %v213
    %v382 = vunpack.c.h.b16 %v213
    %v383 = vunpack.c.l.b16 %v214
    %v384 = vunpack.c.h.b16 %v214
    %v385 = vunpack.c.l.b16 %v215
    %v386 = vunpack.c.h.b16 %v215
    %v387 = vunpack.c.l.b16 %v216
    %v388 = vunpack.c.h.b16 %v216
    %v389 = vunpack.c.l.b16 %v217
    %v390 = vunpack.c.h.b16 %v217
    %v391 = vunpack.c.l.b16 %v218
    %v392 = vunpack.c.h.b16 %v218
    %v393 = vunpack.c.l.b16 %v219
    %v394 = vunpack.c.h.b16 %v219
    %v395 = vunpack.c.l.b16 %v220
    %v396 = vunpack.c.h.b16 %v220
    %v397 = vunpack.c.l.b16 %v221
    %v398 = vunpack.c.h.b16 %v221
    %v399 = vunpack.c.l.b16 %v222
    %v400 = vunpack.c.h.b16 %v222
    %v401 = vunpack.c.l.b16 %v223
    %v402 = vunpack.c.h.b16 %v223
    %v403 = vunpack.c.l.b16 %v224
    %v404 = vunpack.c.h.b16 %v224
    %v405 = vunpack.c.l.b16 %v225
    %v406 = vunpack.c.h.b16 %v225
    %v407 = vunpack.c.l.b16 %v226
    %v408 = vunpack.c.h.b16 %v226
    %v409 = vpack.c.b16 %v383, %v381
    %v410 = vpack.c.b16 %v384, %v382
    %v411 = vpack.c.b16 %v387, %v385
    %v412 = vpack.c.b16 %v388, %v386
    %v413 = vpack.c.b16 %v391, %v389
    %v414 = vpack.c.b16 %v392, %v390
    %v415 = vpack.c.b16 %v395, %v393
    %v416 = vpack.c.b16 %v396, %v394
    %v417 = vpack.c.b16 %v399, %v397
    %v418 = vpack.c.b16 %v400, %v398
    %v419 = vpack.c.b16 %v403, %v401
    %v420 = vpack.c.b16 %v404, %v402
    %v421 = vpack.c.b16 %v407, %v405
    %v422 = vpack.c.b16 %v408, %v406
    %v436 = vsel %vm139, %v211, 0
    %v439 = vsel %vm139, %v212, 0
    %v442 = vsel %vm322, %v421, 0
    %v445 = vsel %vm322, %v422, 0
    %447 = vmatpush.bf16.msra.mxu0 0
    %448 = vmatpush.bf16.msra.mxu0 %v442
    %449 = vmatpush.bf16.msra.mxu0 %v419
    %450 = vmatpush.bf16.msra.mxu0 %v417
    %451 = vmatpush.bf16.msra.mxu0 %v415
    %452 = vmatpush.bf16.msra.mxu0 %v413
    %453 = vmatpush.bf16.msra.mxu0 %v411
    %454 = vmatpush.bf16.msra.mxu0 %v409
    %455 = vmatmul.bf16.gmra.mxu0 %v436
    %v456 = vpop.f32.mrf.mxu0
    %v457 = vadd.f32 %v339, %v456
    %v458 = vpop.f32.mrf.mxu0
    %v459 = vadd.f32 %v341, %v458
    %460 = vmatmul.bf16.gmra.mxu0 %v439
    %v461 = vpop.f32.mrf.mxu0
    %v462 = vadd.f32 %v344, %v461
    %v463 = vpop.f32.mrf.mxu0
    %v464 = vadd.f32 %v346, %v463
    %465 = vdwg.mxu0
    %466 = vmatpush.bf16.msra.mxu0 0
    %467 = vmatpush.bf16.msra.mxu0 %v445
    %468 = vmatpush.bf16.msra.mxu0 %v420
    %469 = vmatpush.bf16.msra.mxu0 %v418
    %470 = vmatpush.bf16.msra.mxu0 %v416
    %471 = vmatpush.bf16.msra.mxu0 %v414
    %472 = vmatpush.bf16.msra.mxu0 %v412
    %473 = vmatpush.bf16.msra.mxu0 %v410
    %474 = vmatmul.bf16.gmra.mxu0 %v436
    %v475 = vpop.f32.mrf.mxu0
    %v476 = vadd.f32 %v358, %v475
    %v477 = vpop.f32.mrf.mxu0
    %v478 = vadd.f32 %v360, %v477
    %479 = vmatmul.bf16.gmra.mxu0 %v439
    %v480 = vpop.f32.mrf.mxu0
    %v481 = vadd.f32 %v363, %v480
    %v482 = vpop.f32.mrf.mxu0
    %v483 = vadd.f32 %v365, %v482
    %484 = vdwg.mxu0
    %v485 = vld [vmem:[#allocation2 + $0x2] sm:$0xff]
    %v486 = vld [vmem:[#allocation2 + $0xa] sm:$0xff]
    %v487 = vld [vmem:[#allocation2 + $0x12] sm:$0xff]
    %v488 = vld [vmem:[#allocation2 + $0x1a] sm:$0xff]
    %v489 = vpack.c.bf16 %v486, %v485
    %v490 = vpack.c.bf16 %v488, %v487
    %s491 = scalar_lea.vmem [#allocation8], 224
    %v492 = vld [vmem:[%s491] sm:$0xff]
    %v493 = vld [vmem:[%s491 + $0x8] sm:$0xff]
    %v494 = vld [vmem:[%s491 + $0x10] sm:$0xff]
    %v495 = vld [vmem:[%s491 + $0x18] sm:$0xff]
    %v496 = vld [vmem:[%s491 + $0x20] sm:$0xff]
    %v497 = vld [vmem:[%s491 + $0x28] sm:$0xff]
    %v498 = vld [vmem:[%s491 + $0x30] sm:$0xff]
    %v499 = vld [vmem:[%s491 + $0x38] sm:$0xff]
    %v500 = vld [vmem:[%s491 + $0x40] sm:$0xff]
    %v501 = vld [vmem:[%s491 + $0x48] sm:$0xff]
    %v502 = vld [vmem:[%s491 + $0x50] sm:$0xff]
    %v503 = vld [vmem:[%s491 + $0x58] sm:$0xff]
    %v504 = vld [vmem:[%s491 + $0x60] sm:$0xff]
    %v505 = vld [vmem:[%s491 + $0x68] sm:$0x33]
    %v520 = vunpack.c.l.b16 %v492
    %v521 = vunpack.c.h.b16 %v492
    %v522 = vunpack.c.l.b16 %v493
    %v523 = vunpack.c.h.b16 %v493
    %v524 = vunpack.c.l.b16 %v494
    %v525 = vunpack.c.h.b16 %v494
    %v526 = vunpack.c.l.b16 %v495
    %v527 = vunpack.c.h.b16 %v495
    %v528 = vunpack.c.l.b16 %v496
    %v529 = vunpack.c.h.b16 %v496
    %v530 = vunpack.c.l.b16 %v497
    %v531 = vunpack.c.h.b16 %v497
    %v532 = vunpack.c.l.b16 %v498
    %v533 = vunpack.c.h.b16 %v498
    %v534 = vunpack.c.l.b16 %v499
    %v535 = vunpack.c.h.b16 %v499
    %v536 = vunpack.c.l.b16 %v500
    %v537 = vunpack.c.h.b16 %v500
    %v538 = vunpack.c.l.b16 %v501
    %v539 = vunpack.c.h.b16 %v501
    %v540 = vunpack.c.l.b16 %v502
    %v541 = vunpack.c.h.b16 %v502
    %v542 = vunpack.c.l.b16 %v503
    %v543 = vunpack.c.h.b16 %v503
    %v544 = vunpack.c.l.b16 %v504
    %v545 = vunpack.c.h.b16 %v504
    %v546 = vunpack.c.l.b16 %v505
    %v547 = vunpack.c.h.b16 %v505
    %v548 = vpack.c.b16 %v522, %v520
    %v549 = vpack.c.b16 %v523, %v521
    %v550 = vpack.c.b16 %v526, %v524
    %v551 = vpack.c.b16 %v527, %v525
    %v552 = vpack.c.b16 %v530, %v528
    %v553 = vpack.c.b16 %v531, %v529
    %v554 = vpack.c.b16 %v534, %v532
    %v555 = vpack.c.b16 %v535, %v533
    %v556 = vpack.c.b16 %v538, %v536
    %v557 = vpack.c.b16 %v539, %v537
    %v558 = vpack.c.b16 %v542, %v540
    %v559 = vpack.c.b16 %v543, %v541
    %v560 = vpack.c.b16 %v546, %v544
    %v561 = vpack.c.b16 %v547, %v545
    %v575 = vsel %vm139, %v489, 0
    %v578 = vsel %vm139, %v490, 0
    %v581 = vsel %vm322, %v560, 0
    %v584 = vsel %vm322, %v561, 0
    %586 = vmatpush.bf16.msra.mxu0 0
    %587 = vmatpush.bf16.msra.mxu0 %v581
    %588 = vmatpush.bf16.msra.mxu0 %v558
    %589 = vmatpush.bf16.msra.mxu0 %v556
    %590 = vmatpush.bf16.msra.mxu0 %v554
    %591 = vmatpush.bf16.msra.mxu0 %v552
    %592 = vmatpush.bf16.msra.mxu0 %v550
    %593 = vmatpush.bf16.msra.mxu0 %v548
    %594 = vmatmul.bf16.gmra.mxu0 %v575
    %v595 = vpop.f32.mrf.mxu0
    %v596 = vadd.f32 0.0, %v595
    %v597 = vpop.f32.mrf.mxu0
    %v598 = vadd.f32 0.0, %v597
    %599 = vmatmul.bf16.gmra.mxu0 %v578
    %v600 = vpop.f32.mrf.mxu0
    %v601 = vadd.f32 0.0, %v600
    %v602 = vpop.f32.mrf.mxu0
    %v603 = vadd.f32 0.0, %v602
    %604 = vdwg.mxu0
    %605 = vmatpush.bf16.msra.mxu0 0
    %606 = vmatpush.bf16.msra.mxu0 %v584
    %607 = vmatpush.bf16.msra.mxu0 %v559
    %608 = vmatpush.bf16.msra.mxu0 %v557
    %609 = vmatpush.bf16.msra.mxu0 %v555
    %610 = vmatpush.bf16.msra.mxu0 %v553
    %611 = vmatpush.bf16.msra.mxu0 %v551
    %612 = vmatpush.bf16.msra.mxu0 %v549
    %613 = vmatmul.bf16.gmra.mxu0 %v575
    %v614 = vpop.f32.mrf.mxu0
    %v615 = vadd.f32 0.0, %v614
    %v616 = vpop.f32.mrf.mxu0
    %v617 = vadd.f32 0.0, %v616
    %618 = vmatmul.bf16.gmra.mxu0 %v578
    %v619 = vpop.f32.mrf.mxu0
    %v620 = vadd.f32 0.0, %v619
    %v621 = vpop.f32.mrf.mxu0
    %v622 = vadd.f32 0.0, %v621
    %623 = vdwg.mxu0
    %v624 = vadd.f32 %v457, %v596
    %v625 = vadd.f32 %v476, %v615
    %v626 = vadd.f32 %v459, %v598
    %v627 = vadd.f32 %v478, %v617
    %v628 = vadd.f32 %v462, %v601
    %v629 = vadd.f32 %v481, %v620
    %v630 = vadd.f32 %v464, %v603
    %v631 = vadd.f32 %v483, %v622
    %v632 = vld [vmem:[#allocation2 + $0x3] sm:$0xff]
    %v633 = vld [vmem:[#allocation2 + $0xb] sm:$0xff]
    %v634 = vld [vmem:[#allocation2 + $0x13] sm:$0xff]
    %v635 = vld [vmem:[#allocation2 + $0x1b] sm:$0xff]
    %v636 = vpack.c.bf16 %v633, %v632
    %v637 = vpack.c.bf16 %v635, %v634
    %s638 = scalar_lea.vmem [#allocation8], 336
    %v639 = vld [vmem:[%s638] sm:$0xff]
    %v640 = vld [vmem:[%s638 + $0x8] sm:$0xff]
    %v641 = vld [vmem:[%s638 + $0x10] sm:$0xff]
    %v642 = vld [vmem:[%s638 + $0x18] sm:$0xff]
    %v643 = vld [vmem:[%s638 + $0x20] sm:$0xff]
    %v644 = vld [vmem:[%s638 + $0x28] sm:$0xff]
    %v645 = vld [vmem:[%s638 + $0x30] sm:$0xff]
    %v646 = vld [vmem:[%s638 + $0x38] sm:$0xff]
    %v647 = vld [vmem:[%s638 + $0x40] sm:$0xff]
    %v648 = vld [vmem:[%s638 + $0x48] sm:$0xff]
    %v649 = vld [vmem:[%s638 + $0x50] sm:$0xff]
    %v650 = vld [vmem:[%s638 + $0x58] sm:$0xff]
    %v651 = vld [vmem:[%s638 + $0x60] sm:$0xff]
    %v652 = vld [vmem:[%s638 + $0x68] sm:$0x33]
    %v667 = vunpack.c.l.b16 %v639
    %v668 = vunpack.c.h.b16 %v639
    %v669 = vunpack.c.l.b16 %v640
    %v670 = vunpack.c.h.b16 %v640
    %v671 = vunpack.c.l.b16 %v641
    %v672 = vunpack.c.h.b16 %v641
    %v673 = vunpack.c.l.b16 %v642
    %v674 = vunpack.c.h.b16 %v642
    %v675 = vunpack.c.l.b16 %v643
    %v676 = vunpack.c.h.b16 %v643
    %v677 = vunpack.c.l.b16 %v644
    %v678 = vunpack.c.h.b16 %v644
    %v679 = vunpack.c.l.b16 %v645
    %v680 = vunpack.c.h.b16 %v645
    %v681 = vunpack.c.l.b16 %v646
    %v682 = vunpack.c.h.b16 %v646
    %v683 = vunpack.c.l.b16 %v647
    %v684 = vunpack.c.h.b16 %v647
    %v685 = vunpack.c.l.b16 %v648
    %v686 = vunpack.c.h.b16 %v648
    %v687 = vunpack.c.l.b16 %v649
    %v688 = vunpack.c.h.b16 %v649
    %v689 = vunpack.c.l.b16 %v650
    %v690 = vunpack.c.h.b16 %v650
    %v691 = vunpack.c.l.b16 %v651
    %v692 = vunpack.c.h.b16 %v651
    %v693 = vunpack.c.l.b16 %v652
    %v694 = vunpack.c.h.b16 %v652
    %v695 = vpack.c.b16 %v669, %v667
    %v696 = vpack.c.b16 %v670, %v668
    %v697 = vpack.c.b16 %v673, %v671
    %v698 = vpack.c.b16 %v674, %v672
    %v699 = vpack.c.b16 %v677, %v675
    %v700 = vpack.c.b16 %v678, %v676
    %v701 = vpack.c.b16 %v681, %v679
    %v702 = vpack.c.b16 %v682, %v680
    %v703 = vpack.c.b16 %v685, %v683
    %v704 = vpack.c.b16 %v686, %v684
    %v705 = vpack.c.b16 %v689, %v687
    %v706 = vpack.c.b16 %v690, %v688
    %v707 = vpack.c.b16 %v693, %v691
    %v708 = vpack.c.b16 %v694, %v692
    %v722 = vsel %vm139, %v636, 0
    %v725 = vsel %vm139, %v637, 0
    %v728 = vsel %vm322, %v707, 0
    %v731 = vsel %vm322, %v708, 0
    %733 = vmatpush.bf16.msra.mxu0 0
    %734 = vmatpush.bf16.msra.mxu0 %v728
    %735 = vmatpush.bf16.msra.mxu0 %v705
    %736 = vmatpush.bf16.msra.mxu0 %v703
    %737 = vmatpush.bf16.msra.mxu0 %v701
    %738 = vmatpush.bf16.msra.mxu0 %v699
    %739 = vmatpush.bf16.msra.mxu0 %v697
    %740 = vmatpush.bf16.msra.mxu0 %v695
    %741 = vmatmul.bf16.gmra.mxu0 %v722
    %v742 = vpop.f32.mrf.mxu0
    %v743 = vadd.f32 0.0, %v742
    %v744 = vpop.f32.mrf.mxu0
    %v745 = vadd.f32 0.0, %v744
    %746 = vmatmul.bf16.gmra.mxu0 %v725
    %v747 = vpop.f32.mrf.mxu0
    %v748 = vadd.f32 0.0, %v747
    %v749 = vpop.f32.mrf.mxu0
    %v750 = vadd.f32 0.0, %v749
    %751 = vdwg.mxu0
    %752 = vmatpush.bf16.msra.mxu0 0
    %753 = vmatpush.bf16.msra.mxu0 %v731
    %754 = vmatpush.bf16.msra.mxu0 %v706
    %755 = vmatpush.bf16.msra.mxu0 %v704
    %756 = vmatpush.bf16.msra.mxu0 %v702
    %757 = vmatpush.bf16.msra.mxu0 %v700
    %758 = vmatpush.bf16.msra.mxu0 %v698
    %759 = vmatpush.bf16.msra.mxu0 %v696
    %760 = vmatmul.bf16.gmra.mxu0 %v722
    %v761 = vpop.f32.mrf.mxu0
    %v762 = vadd.f32 0.0, %v761
    %v763 = vpop.f32.mrf.mxu0
    %v764 = vadd.f32 0.0, %v763
    %765 = vmatmul.bf16.gmra.mxu0 %v725
    %v766 = vpop.f32.mrf.mxu0
    %v767 = vadd.f32 0.0, %v766
    %v768 = vpop.f32.mrf.mxu0
    %v769 = vadd.f32 0.0, %v768
    %770 = vdwg.mxu0
    %v771 = vadd.f32 %v624, %v743
    %v772 = vadd.f32 %v625, %v762
    %v773 = vadd.f32 %v626, %v745
    %v774 = vadd.f32 %v627, %v764
    %v775 = vadd.f32 %v628, %v748
    %v776 = vadd.f32 %v629, %v767
    %v777 = vadd.f32 %v630, %v750
    %v778 = vadd.f32 %v631, %v769
    %v779 = vld [vmem:[#allocation2 + $0x4] sm:$0xff]
    %v780 = vld [vmem:[#allocation2 + $0xc] sm:$0xff]
    %v781 = vld [vmem:[#allocation2 + $0x14] sm:$0xff]
    %v782 = vld [vmem:[#allocation2 + $0x1c] sm:$0xff]
    %v783 = vpack.c.bf16 %v780, %v779
    %v784 = vpack.c.bf16 %v782, %v781
    %s785 = scalar_lea.vmem [#allocation8], 448
    %v786 = vld [vmem:[%s785] sm:$0xff]
    %v787 = vld [vmem:[%s785 + $0x8] sm:$0xff]
    %v788 = vld [vmem:[%s785 + $0x10] sm:$0xff]
    %v789 = vld [vmem:[%s785 + $0x18] sm:$0xff]
    %v790 = vld [vmem:[%s785 + $0x20] sm:$0xff]
    %v791 = vld [vmem:[%s785 + $0x28] sm:$0xff]
    %v792 = vld [vmem:[%s785 + $0x30] sm:$0xff]
    %v793 = vld [vmem:[%s785 + $0x38] sm:$0xff]
    %v794 = vld [vmem:[%s785 + $0x40] sm:$0xff]
    %v795 = vld [vmem:[%s785 + $0x48] sm:$0xff]
    %v796 = vld [vmem:[%s785 + $0x50] sm:$0xff]
    %v797 = vld [vmem:[%s785 + $0x58] sm:$0xff]
    %v798 = vld [vmem:[%s785 + $0x60] sm:$0xff]
    %v799 = vld [vmem:[%s785 + $0x68] sm:$0x33]
    %v814 = vunpack.c.l.b16 %v786
    %v815 = vunpack.c.h.b16 %v786
    %v816 = vunpack.c.l.b16 %v787
    %v817 = vunpack.c.h.b16 %v787
    %v818 = vunpack.c.l.b16 %v788
    %v819 = vunpack.c.h.b16 %v788
    %v820 = vunpack.c.l.b16 %v789
    %v821 = vunpack.c.h.b16 %v789
    %v822 = vunpack.c.l.b16 %v790
    %v823 = vunpack.c.h.b16 %v790
    %v824 = vunpack.c.l.b16 %v791
    %v825 = vunpack.c.h.b16 %v791
    %v826 = vunpack.c.l.b16 %v792
    %v827 = vunpack.c.h.b16 %v792
    %v828 = vunpack.c.l.b16 %v793
    %v829 = vunpack.c.h.b16 %v793
    %v830 = vunpack.c.l.b16 %v794
    %v831 = vunpack.c.h.b16 %v794
    %v832 = vunpack.c.l.b16 %v795
    %v833 = vunpack.c.h.b16 %v795
    %v834 = vunpack.c.l.b16 %v796
    %v835 = vunpack.c.h.b16 %v796
    %v836 = vunpack.c.l.b16 %v797
    %v837 = vunpack.c.h.b16 %v797
    %v838 = vunpack.c.l.b16 %v798
    %v839 = vunpack.c.h.b16 %v798
    %v840 = vunpack.c.l.b16 %v799
    %v841 = vunpack.c.h.b16 %v799
    %v842 = vpack.c.b16 %v816, %v814
    %v843 = vpack.c.b16 %v817, %v815
    %v844 = vpack.c.b16 %v820, %v818
    %v845 = vpack.c.b16 %v821, %v819
    %v846 = vpack.c.b16 %v824, %v822
    %v847 = vpack.c.b16 %v825, %v823
    %v848 = vpack.c.b16 %v828, %v826
    %v849 = vpack.c.b16 %v829, %v827
    %v850 = vpack.c.b16 %v832, %v830
    %v851 = vpack.c.b16 %v833, %v831
    %v852 = vpack.c.b16 %v836, %v834
    %v853 = vpack.c.b16 %v837, %v835
    %v854 = vpack.c.b16 %v840, %v838
    %v855 = vpack.c.b16 %v841, %v839
    %v869 = vsel %vm139, %v783, 0
    %v872 = vsel %vm139, %v784, 0
    %v875 = vsel %vm322, %v854, 0
    %v878 = vsel %vm322, %v855, 0
    %880 = vmatpush.bf16.msra.mxu0 0
    %881 = vmatpush.bf16.msra.mxu0 %v875
    %882 = vmatpush.bf16.msra.mxu0 %v852
    %883 = vmatpush.bf16.msra.mxu0 %v850
    %884 = vmatpush.bf16.msra.mxu0 %v848
    %885 = vmatpush.bf16.msra.mxu0 %v846
    %886 = vmatpush.bf16.msra.mxu0 %v844
    %887 = vmatpush.bf16.msra.mxu0 %v842
    %888 = vmatmul.bf16.gmra.mxu0 %v869
    %v889 = vpop.f32.mrf.mxu0
    %v890 = vadd.f32 0.0, %v889
    %v891 = vpop.f32.mrf.mxu0
    %v892 = vadd.f32 0.0, %v891
    %893 = vmatmul.bf16.gmra.mxu0 %v872
    %v894 = vpop.f32.mrf.mxu0
    %v895 = vadd.f32 0.0, %v894
    %v896 = vpop.f32.mrf.mxu0
    %v897 = vadd.f32 0.0, %v896
    %898 = vdwg.mxu0
    %899 = vmatpush.bf16.msra.mxu0 0
    %900 = vmatpush.bf16.msra.mxu0 %v878
    %901 = vmatpush.bf16.msra.mxu0 %v853
    %902 = vmatpush.bf16.msra.mxu0 %v851
    %903 = vmatpush.bf16.msra.mxu0 %v849
    %904 = vmatpush.bf16.msra.mxu0 %v847
    %905 = vmatpush.bf16.msra.mxu0 %v845
    %906 = vmatpush.bf16.msra.mxu0 %v843
    %907 = vmatmul.bf16.gmra.mxu0 %v869
    %v908 = vpop.f32.mrf.mxu0
    %v909 = vadd.f32 0.0, %v908
    %v910 = vpop.f32.mrf.mxu0
    %v911 = vadd.f32 0.0, %v910
    %912 = vmatmul.bf16.gmra.mxu0 %v872
    %v913 = vpop.f32.mrf.mxu0
    %v914 = vadd.f32 0.0, %v913
    %v915 = vpop.f32.mrf.mxu0
    %v916 = vadd.f32 0.0, %v915
    %917 = vdwg.mxu0
    %v918 = vadd.f32 %v771, %v890
    %v919 = vadd.f32 %v772, %v909
    %v920 = vadd.f32 %v773, %v892
    %v921 = vadd.f32 %v774, %v911
    %v922 = vadd.f32 %v775, %v895
    %v923 = vadd.f32 %v776, %v914
    %v924 = vadd.f32 %v777, %v897
    %v925 = vadd.f32 %v778, %v916
    %v926 = vmax.f32 %v918, %v919
    %v927 = vmax.f32 %v920, %v921
    %v928 = vmax.f32 %v922, %v923
    %v929 = vmax.f32 %v924, %v925
    %v930 = vld [vmem:[%s12] sm:$0xff]
    %v931 = vld [vmem:[%s12 + $0x8] sm:$0xff]
    %v932 = vld [vmem:[%s12 + $0x10] sm:$0xff]
    %v933 = vld [vmem:[%s12 + $0x18] sm:$0xff]
    %v935 = vsel %vm166, %v930, 0
    %v938 = vsel %vm166, %v931, 0
    %v941 = vsel %vm166, %v932, 0
    %v944 = vsel %vm166, %v933, 0
    %946 = vmatpush.msra.mxu0 0.0
    %947 = vmatpush.msra.mxu0 0.0
    %948 = vmatpush.msra.mxu0 0.0
    %949 = vmatpush.msra.mxu0 0.0
    %950 = vmatpush.msra.mxu0 0.0
    %951 = vmatpush.msra.mxu0 0.0
    %952 = vmatpush.msra.mxu0 0.0
    %953 = vmatpush.msra.mxu0 0.0
    %954 = vmatpush.msra.mxu0 0.0
    %955 = vmatpush.msra.mxu0 0.0
    %956 = vmatpush.msra.mxu0 0.0
    %957 = vmatpush.msra.mxu0 0.0
    %958 = vmatpush.msra.mxu0 %v929
    %959 = vmatpush.msra.mxu0 %v928
    %960 = vmatpush.msra.mxu0 %v927
    %961 = vmatpush.msra.mxu0 %v926
    %962 = vmatmul.f32.gmra.mxu0 %v935
    %v963 = vpop.f32.mrf.mxu0
    %v964 = vadd.f32 0.0, %v963
    %965 = vmatmul.f32.gmra.mxu0 %v938
    %v966 = vpop.f32.mrf.mxu0
    %v967 = vadd.f32 0.0, %v966
    %968 = vmatmul.f32.gmra.mxu0 %v941
    %v969 = vpop.f32.mrf.mxu0
    %v970 = vadd.f32 0.0, %v969
    %971 = vmatmul.f32.gmra.mxu0 %v944
    %v972 = vpop.f32.mrf.mxu0
    %v973 = vadd.f32 0.0, %v972
    %974 = vdwg.mxu0
    %v975 = vmax.f32 %v964, %v970
    %v976 = vmax.f32 %v967, %v973
    %v977 = vld [vmem:[%s7] sm:$0x1]
    %v979 = vperm.slane %v977, 0
    %v981 = vadd.f32 %v975, %v979
    %v982 = vadd.f32 %v976, %v979
    %v983 = vmax.f32 %v981, 0.0
    %v984 = vmax.f32 %v982, 0.0
    %vm987 = vcmask 1040384
    %v988 = vrot.slane %v983, 7
    %v989 = vrot.slane %v984, 7
    %v990 = vsel %vm987, %v988, %v989
    %991 = vrot.lane.b32.xlu0 %v988, 8
    %v992 = vpop.permute.xlu0 %991
    %993 = vrot.lane.b32.xlu0 %v990, 8
    %v994 = vpop.permute.xlu0 %993
    %995 = vrot.lane.b32.xlu0 %v989, 8
    %v996 = vpop.permute.xlu0 %995
    %vm1000 = vcmask 1047617
    %1001 = vst.msk [vmem:[#allocation3] sm:$0xfe] %vm1000, %v992
    %vm1002 = vcmask 64513
    %1003 = vst.msk [vmem:[#allocation3 + $0x8] sm:$0xfe] %vm1002, %v992
    %vm1004 = vcmask 1047616
    %1005 = vst.msk [vmem:[#allocation3 + $0x10] sm:$0xff] %vm1004, %v994
    %vm1006 = vcmask 64512
    %1007 = vst.msk [vmem:[#allocation3 + $0x18] sm:$0xff] %vm1006, %v994
    %vm1008 = vcmask 1040448
    %1009 = vst.msk [vmem:[#allocation3 + $0x20] sm:$0x1] %vm1008, %v996
    %vm1010 = vcmask 57344
    %1011 = vst.msk [vmem:[#allocation3 + $0x28] sm:$0x1] %vm1010, %v996
    %v1012 = vld [vmem:[#allocation3] sm:$0xff]
    %v1013 = vld [vmem:[#allocation3 + $0x8] sm:$0xff]
    %v1014 = vld [vmem:[#allocation3 + $0x10] sm:$0xff]
    %v1015 = vld [vmem:[#allocation3 + $0x18] sm:$0xff]
    %v1016 = vpack.c.bf16 %v1014, %v1012
    %v1017 = vpack.c.bf16 %v1015, %v1013
    %v1018 = vld [vmem:[#allocation11] sm:$0xff]
    %v1019 = vld [vmem:[#allocation11 + $0x8] sm:$0xff]
    %v1020 = vld [vmem:[#allocation11 + $0x10] sm:$0xff]
    %v1021 = vld [vmem:[#allocation11 + $0x18] sm:$0xff]
    %v1022 = vld [vmem:[#allocation11 + $0x20] sm:$0xff]
    %v1023 = vld [vmem:[#allocation11 + $0x28] sm:$0xff]
    %v1024 = vld [vmem:[#allocation11 + $0x30] sm:$0xff]
    %v1025 = vld [vmem:[#allocation11 + $0x38] sm:$0xff]
    %v1026 = vld [vmem:[#allocation11 + $0x40] sm:$0xff]
    %v1027 = vld [vmem:[#allocation11 + $0x48] sm:$0xff]
    %v1028 = vld [vmem:[#allocation11 + $0x50] sm:$0xff]
    %v1029 = vld [vmem:[#allocation11 + $0x58] sm:$0xff]
    %v1030 = vld [vmem:[#allocation11 + $0x60] sm:$0xff]
    %v1031 = vld [vmem:[#allocation11 + $0x68] sm:$0xff]
    %v1032 = vld [vmem:[#allocation11 + $0x70] sm:$0xff]
    %v1033 = vld [vmem:[#allocation11 + $0x78] sm:$0xff]
    %v1034 = vld [vmem:[#allocation11 + $0x80] sm:$0xff]
    %v1035 = vld [vmem:[#allocation11 + $0x88] sm:$0xff]
    %v1036 = vld [vmem:[#allocation3] sm:$0xfe]
    %v1037 = vld [vmem:[#allocation3 + $0x8] sm:$0xfe]
    %v1038 = vld [vmem:[#allocation3 + $0x20] sm:$0x1]
    %v1039 = vld [vmem:[#allocation3 + $0x28] sm:$0x1]
    %v1040 = vpack.c.bf16 %v1014, %v1036
    %v1041 = vpack.c.bf16 %v1015, %v1037
    %v1042 = vpack.c.bf16 %v1038, %v1038
    %v1043 = vpack.c.bf16 %v1039, %v1039
    %s1044 = scalar_lea.vmem [#allocation11], 144
    %v1045 = vld [vmem:[%s1044] sm:$0xff]
    %v1046 = vld [vmem:[%s1044 + $0x8] sm:$0xff]
    %v1047 = vld [vmem:[%s1044 + $0x10] sm:$0xff]
    %v1048 = vld [vmem:[%s1044 + $0x18] sm:$0xff]
    %v1049 = vld [vmem:[%s1044 + $0x20] sm:$0xff]
    %v1050 = vld [vmem:[%s1044 + $0x28] sm:$0xff]
    %v1051 = vld [vmem:[%s1044 + $0x30] sm:$0xff]
    %v1052 = vld [vmem:[%s1044 + $0x38] sm:$0xff]
    %v1053 = vld [vmem:[%s1044 + $0x40] sm:$0xff]
    %v1054 = vld [vmem:[%s1044 + $0x48] sm:$0xff]
    %v1055 = vld [vmem:[%s1044 + $0x50] sm:$0xff]
    %v1056 = vld [vmem:[%s1044 + $0x58] sm:$0xff]
    %v1057 = vld [vmem:[%s1044 + $0x60] sm:$0xff]
    %v1058 = vld [vmem:[%s1044 + $0x68] sm:$0xff]
    %v1059 = vld [vmem:[%s1044 + $0x70] sm:$0xff]
    %v1060 = vld [vmem:[%s1044 + $0x78] sm:$0xff]
    %v1061 = vld [vmem:[%s1044 + $0x80] sm:$0xff]
    %v1062 = vld [vmem:[%s1044 + $0x88] sm:$0xff]
    %vm1063 = vsmask.f32 7424
    %v1065 = vshrl.u32 %v1040, 16
    %v1067 = vshll.u32 %v1040, 16
    %v1069 = vrot.slane %v1067, 1
    %v1070 = vor.u32 %v1065, %v1069
    %v1072 = vshll.u32 %v1042, 16
    %v1074 = vrot.slane %v1072, 1
    %v1075 = vsel %vm1063, %v1070, %v1074
    %v1077 = vshrl.u32 %v1041, 16
    %v1079 = vshll.u32 %v1041, 16
    %v1081 = vrot.slane %v1079, 1
    %v1082 = vor.u32 %v1077, %v1081
    %v1084 = vshll.u32 %v1043, 16
    %v1086 = vrot.slane %v1084, 1
    %v1087 = vsel %vm1063, %v1082, %v1086
    %v1107 = vunpack.c.l.b16 %v1045
    %v1108 = vunpack.c.h.b16 %v1045
    %v1109 = vunpack.c.l.b16 %v1046
    %v1110 = vunpack.c.h.b16 %v1046
    %v1111 = vunpack.c.l.b16 %v1047
    %v1112 = vunpack.c.h.b16 %v1047
    %v1113 = vunpack.c.l.b16 %v1048
    %v1114 = vunpack.c.h.b16 %v1048
    %v1115 = vunpack.c.l.b16 %v1049
    %v1116 = vunpack.c.h.b16 %v1049
    %v1117 = vunpack.c.l.b16 %v1050
    %v1118 = vunpack.c.h.b16 %v1050
    %v1119 = vunpack.c.l.b16 %v1051
    %v1120 = vunpack.c.h.b16 %v1051
    %v1121 = vunpack.c.l.b16 %v1052
    %v1122 = vunpack.c.h.b16 %v1052
    %v1123 = vunpack.c.l.b16 %v1053
    %v1124 = vunpack.c.h.b16 %v1053
    %v1125 = vunpack.c.l.b16 %v1054
    %v1126 = vunpack.c.h.b16 %v1054
    %v1127 = vunpack.c.l.b16 %v1055
    %v1128 = vunpack.c.h.b16 %v1055
    %v1129 = vunpack.c.l.b16 %v1056
    %v1130 = vunpack.c.h.b16 %v1056
    %v1131 = vunpack.c.l.b16 %v1057
    %v1132 = vunpack.c.h.b16 %v1057
    %v1133 = vunpack.c.l.b16 %v1058
    %v1134 = vunpack.c.h.b16 %v1058
    %v1135 = vunpack.c.l.b16 %v1059
    %v1136 = vunpack.c.h.b16 %v1059
    %v1137 = vunpack.c.l.b16 %v1060
    %v1138 = vunpack.c.h.b16 %v1060
    %v1139 = vunpack.c.l.b16 %v1061
    %v1140 = vunpack.c.h.b16 %v1061
    %v1141 = vunpack.c.l.b16 %v1062
    %v1142 = vunpack.c.h.b16 %v1062
    %v1143 = vpack.c.b16 %v1109, %v1107
    %v1144 = vpack.c.b16 %v1110, %v1108
    %v1145 = vpack.c.b16 %v1113, %v1111
    %v1146 = vpack.c.b16 %v1114, %v1112
    %v1147 = vpack.c.b16 %v1117, %v1115
    %v1148 = vpack.c.b16 %v1118, %v1116
    %v1149 = vpack.c.b16 %v1121, %v1119
    %v1150 = vpack.c.b16 %v1122, %v1120
    %v1151 = vpack.c.b16 %v1125, %v1123
    %v1152 = vpack.c.b16 %v1126, %v1124
    %v1153 = vpack.c.b16 %v1129, %v1127
    %v1154 = vpack.c.b16 %v1130, %v1128
    %v1155 = vpack.c.b16 %v1133, %v1131
    %v1156 = vpack.c.b16 %v1134, %v1132
    %v1157 = vpack.c.b16 %v1137, %v1135
    %v1158 = vpack.c.b16 %v1138, %v1136
    %v1159 = vpack.c.b16 %v1141, %v1139
    %v1160 = vpack.c.b16 %v1142, %v1140
    %v1180 = vsel %vm152, %v1087, 0
    %1182 = vmatpush.bf16.msra.mxu0 %v1157
    %1183 = vmatpush.bf16.msra.mxu0 %v1155
    %1184 = vmatpush.bf16.msra.mxu0 %v1153
    %1185 = vmatpush.bf16.msra.mxu0 %v1151
    %1186 = vmatpush.bf16.msra.mxu0 %v1149
    %1187 = vmatpush.bf16.msra.mxu0 %v1147
    %1188 = vmatpush.bf16.msra.mxu0 %v1145
    %1189 = vmatpush.bf16.msra.mxu0 %v1143
    %1190 = vmatmul.bf16.gmra.mxu0 %v1075
    %v1191 = vpop.f32.mrf.mxu0
    %v1192 = vadd.f32 0.0, %v1191
    %v1193 = vpop.f32.mrf.mxu0
    %v1194 = vadd.f32 0.0, %v1193
    %1195 = vdwg.mxu0
    %1196 = vmatpush.bf16.msra.mxu0 0
    %1197 = vmatpush.bf16.msra.mxu0 0
    %1198 = vmatpush.bf16.msra.mxu0 0
    %1199 = vmatpush.bf16.msra.mxu0 0
    %1200 = vmatpush.bf16.msra.mxu0 0
    %1201 = vmatpush.bf16.msra.mxu0 0
    %1202 = vmatpush.bf16.msra.mxu0 0
    %1203 = vmatpush.bf16.msra.mxu0 %v1159
    %1204 = vmatmul.bf16.gmra.mxu0 %v1180
    %v1205 = vpop.f32.mrf.mxu0
    %v1206 = vadd.f32 %v1192, %v1205
    %v1207 = vpop.f32.mrf.mxu0
    %v1208 = vadd.f32 %v1194, %v1207
    %1209 = vdwg.mxu0
    %1210 = vmatpush.bf16.msra.mxu0 %v1158
    %1211 = vmatpush.bf16.msra.mxu0 %v1156
    %1212 = vmatpush.bf16.msra.mxu0 %v1154
    %1213 = vmatpush.bf16.msra.mxu0 %v1152
    %1214 = vmatpush.bf16.msra.mxu0 %v1150
    %1215 = vmatpush.bf16.msra.mxu0 %v1148
    %1216 = vmatpush.bf16.msra.mxu0 %v1146
    %1217 = vmatpush.bf16.msra.mxu0 %v1144
    %1218 = vmatmul.bf16.gmra.mxu0 %v1075
    %v1219 = vpop.f32.mrf.mxu0
    %v1220 = vadd.f32 0.0, %v1219
    %v1221 = vpop.f32.mrf.mxu0
    %v1222 = vadd.f32 0.0, %v1221
    %1223 = vdwg.mxu0
    %1224 = vmatpush.bf16.msra.mxu0 0
    %1225 = vmatpush.bf16.msra.mxu0 0
    %1226 = vmatpush.bf16.msra.mxu0 0
    %1227 = vmatpush.bf16.msra.mxu0 0
    %1228 = vmatpush.bf16.msra.mxu0 0
    %1229 = vmatpush.bf16.msra.mxu0 0
    %1230 = vmatpush.bf16.msra.mxu0 0
    %1231 = vmatpush.bf16.msra.mxu0 %v1160
    %1232 = vmatmul.bf16.gmra.mxu0 %v1180
    %v1233 = vpop.f32.mrf.mxu0
    %v1234 = vadd.f32 %v1220, %v1233
    %v1235 = vpop.f32.mrf.mxu0
    %v1236 = vadd.f32 %v1222, %v1235
    %1237 = vdwg.mxu0
    %v1256 = vunpack.c.l.b16 %v1018
    %v1257 = vunpack.c.h.b16 %v1018
    %v1258 = vunpack.c.l.b16 %v1019
    %v1259 = vunpack.c.h.b16 %v1019
    %v1260 = vunpack.c.l.b16 %v1020
    %v1261 = vunpack.c.h.b16 %v1020
    %v1262 = vunpack.c.l.b16 %v1021
    %v1263 = vunpack.c.h.b16 %v1021
    %v1264 = vunpack.c.l.b16 %v1022
    %v1265 = vunpack.c.h.b16 %v1022
    %v1266 = vunpack.c.l.b16 %v1023
    %v1267 = vunpack.c.h.b16 %v1023
    %v1268 = vunpack.c.l.b16 %v1024
    %v1269 = vunpack.c.h.b16 %v1024
    %v1270 = vunpack.c.l.b16 %v1025
    %v1271 = vunpack.c.h.b16 %v1025
    %v1272 = vunpack.c.l.b16 %v1026
    %v1273 = vunpack.c.h.b16 %v1026
    %v1274 = vunpack.c.l.b16 %v1027
    %v1275 = vunpack.c.h.b16 %v1027
    %v1276 = vunpack.c.l.b16 %v1028
    %v1277 = vunpack.c.h.b16 %v1028
    %v1278 = vunpack.c.l.b16 %v1029
    %v1279 = vunpack.c.h.b16 %v1029
    %v1280 = vunpack.c.l.b16 %v1030
    %v1281 = vunpack.c.h.b16 %v1030
    %v1282 = vunpack.c.l.b16 %v1031
    %v1283 = vunpack.c.h.b16 %v1031
    %v1284 = vunpack.c.l.b16 %v1032
    %v1285 = vunpack.c.h.b16 %v1032
    %v1286 = vunpack.c.l.b16 %v1033
    %v1287 = vunpack.c.h.b16 %v1033
    %v1288 = vunpack.c.l.b16 %v1034
    %v1289 = vunpack.c.h.b16 %v1034
    %v1290 = vunpack.c.l.b16 %v1035
    %v1291 = vunpack.c.h.b16 %v1035
    %v1292 = vpack.c.b16 %v1258, %v1256
    %v1293 = vpack.c.b16 %v1259, %v1257
    %v1294 = vpack.c.b16 %v1262, %v1260
    %v1295 = vpack.c.b16 %v1263, %v1261
    %v1296 = vpack.c.b16 %v1266, %v1264
    %v1297 = vpack.c.b16 %v1267, %v1265
    %v1298 = vpack.c.b16 %v1270, %v1268
    %v1299 = vpack.c.b16 %v1271, %v1269
    %v1300 = vpack.c.b16 %v1274, %v1272
    %v1301 = vpack.c.b16 %v1275, %v1273
    %v1302 = vpack.c.b16 %v1278, %v1276
    %v1303 = vpack.c.b16 %v1279, %v1277
    %v1304 = vpack.c.b16 %v1282, %v1280
    %v1305 = vpack.c.b16 %v1283, %v1281
    %v1306 = vpack.c.b16 %v1286, %v1284
    %v1307 = vpack.c.b16 %v1287, %v1285
    %v1308 = vpack.c.b16 %v1290, %v1288
    %v1309 = vpack.c.b16 %v1291, %v1289
    %v1329 = vsel %vm152, %v1017, 0
    %1331 = vmatpush.bf16.msra.mxu0 %v1306
    %1332 = vmatpush.bf16.msra.mxu0 %v1304
    %1333 = vmatpush.bf16.msra.mxu0 %v1302
    %1334 = vmatpush.bf16.msra.mxu0 %v1300
    %1335 = vmatpush.bf16.msra.mxu0 %v1298
    %1336 = vmatpush.bf16.msra.mxu0 %v1296
    %1337 = vmatpush.bf16.msra.mxu0 %v1294
    %1338 = vmatpush.bf16.msra.mxu0 %v1292
    %1339 = vmatmul.bf16.gmra.mxu0 %v1016
    %v1340 = vpop.f32.mrf.mxu0
    %v1341 = vadd.f32 %v1206, %v1340
    %v1342 = vpop.f32.mrf.mxu0
    %v1343 = vadd.f32 %v1208, %v1342
    %1344 = vdwg.mxu0
    %1345 = vmatpush.bf16.msra.mxu0 0
    %1346 = vmatpush.bf16.msra.mxu0 0
    %1347 = vmatpush.bf16.msra.mxu0 0
    %1348 = vmatpush.bf16.msra.mxu0 0
    %1349 = vmatpush.bf16.msra.mxu0 0
    %1350 = vmatpush.bf16.msra.mxu0 0
    %1351 = vmatpush.bf16.msra.mxu0 0
    %1352 = vmatpush.bf16.msra.mxu0 %v1308
    %1353 = vmatmul.bf16.gmra.mxu0 %v1329
    %v1354 = vpop.f32.mrf.mxu0
    %v1355 = vadd.f32 %v1341, %v1354
    %v1356 = vpop.f32.mrf.mxu0
    %v1357 = vadd.f32 %v1343, %v1356
    %1358 = vdwg.mxu0
    %1359 = vmatpush.bf16.msra.mxu0 %v1307
    %1360 = vmatpush.bf16.msra.mxu0 %v1305
    %1361 = vmatpush.bf16.msra.mxu0 %v1303
    %1362 = vmatpush.bf16.msra.mxu0 %v1301
    %1363 = vmatpush.bf16.msra.mxu0 %v1299
    %1364 = vmatpush.bf16.msra.mxu0 %v1297
    %1365 = vmatpush.bf16.msra.mxu0 %v1295
    %1366 = vmatpush.bf16.msra.mxu0 %v1293
    %1367 = vmatmul.bf16.gmra.mxu0 %v1016
    %v1368 = vpop.f32.mrf.mxu0
    %v1369 = vadd.f32 %v1234, %v1368
    %v1370 = vpop.f32.mrf.mxu0
    %v1371 = vadd.f32 %v1236, %v1370
    %1372 = vdwg.mxu0
    %1373 = vmatpush.bf16.msra.mxu0 0
    %1374 = vmatpush.bf16.msra.mxu0 0
    %1375 = vmatpush.bf16.msra.mxu0 0
    %1376 = vmatpush.bf16.msra.mxu0 0
    %1377 = vmatpush.bf16.msra.mxu0 0
    %1378 = vmatpush.bf16.msra.mxu0 0
    %1379 = vmatpush.bf16.msra.mxu0 0
    %1380 = vmatpush.bf16.msra.mxu0 %v1309
    %1381 = vmatmul.bf16.gmra.mxu0 %v1329
    %v1382 = vpop.f32.mrf.mxu0
    %v1383 = vadd.f32 %v1369, %v1382
    %v1384 = vpop.f32.mrf.mxu0
    %v1385 = vadd.f32 %v1371, %v1384
    %1386 = vdwg.mxu0
    %v1387 = vld [vmem:[#allocation3] sm:$0xfc]
    %v1388 = vld [vmem:[#allocation3 + $0x8] sm:$0xfc]
    %v1389 = vld [vmem:[#allocation3 + $0x20] sm:$0x3]
    %v1390 = vld [vmem:[#allocation3 + $0x28] sm:$0x3]
    %v1391 = vpack.c.bf16 %v1014, %v1387
    %v1392 = vpack.c.bf16 %v1015, %v1388
    %v1393 = vpack.c.bf16 %v1389, %v1389
    %v1394 = vpack.c.bf16 %v1390, %v1390
    %s1395 = scalar_lea.vmem [#allocation11], 288
    %v1396 = vld [vmem:[%s1395] sm:$0xff]
    %v1397 = vld [vmem:[%s1395 + $0x8] sm:$0xff]
    %v1398 = vld [vmem:[%s1395 + $0x10] sm:$0xff]
    %v1399 = vld [vmem:[%s1395 + $0x18] sm:$0xff]
    %v1400 = vld [vmem:[%s1395 + $0x20] sm:$0xff]
    %v1401 = vld [vmem:[%s1395 + $0x28] sm:$0xff]
    %v1402 = vld [vmem:[%s1395 + $0x30] sm:$0xff]
    %v1403 = vld [vmem:[%s1395 + $0x38] sm:$0xff]
    %v1404 = vld [vmem:[%s1395 + $0x40] sm:$0xff]
    %v1405 = vld [vmem:[%s1395 + $0x48] sm:$0xff]
    %v1406 = vld [vmem:[%s1395 + $0x50] sm:$0xff]
    %v1407 = vld [vmem:[%s1395 + $0x58] sm:$0xff]
    %v1408 = vld [vmem:[%s1395 + $0x60] sm:$0xff]
    %v1409 = vld [vmem:[%s1395 + $0x68] sm:$0xff]
    %v1410 = vld [vmem:[%s1395 + $0x70] sm:$0xff]
    %v1411 = vld [vmem:[%s1395 + $0x78] sm:$0xff]
    %v1412 = vld [vmem:[%s1395 + $0x80] sm:$0xff]
    %v1413 = vld [vmem:[%s1395 + $0x88] sm:$0xff]
    %vm1418 = vcmask 1046528
    %v1419 = vrot.slane %v1391, 1
    %v1420 = vrot.slane %v1393, 1
    %v1421 = vsel %vm1418, %v1419, %v1420
    %v1422 = vrot.slane %v1392, 1
    %v1423 = vrot.slane %v1394, 1
    %v1424 = vsel %vm1418, %v1422, %v1423
    %v1444 = vunpack.c.l.b16 %v1396
    %v1445 = vunpack.c.h.b16 %v1396
    %v1446 = vunpack.c.l.b16 %v1397
    %v1447 = vunpack.c.h.b16 %v1397
    %v1448 = vunpack.c.l.b16 %v1398
    %v1449 = vunpack.c.h.b16 %v1398
    %v1450 = vunpack.c.l.b16 %v1399
    %v1451 = vunpack.c.h.b16 %v1399
    %v1452 = vunpack.c.l.b16 %v1400
    %v1453 = vunpack.c.h.b16 %v1400
    %v1454 = vunpack.c.l.b16 %v1401
    %v1455 = vunpack.c.h.b16 %v1401
    %v1456 = vunpack.c.l.b16 %v1402
    %v1457 = vunpack.c.h.b16 %v1402
    %v1458 = vunpack.c.l.b16 %v1403
    %v1459 = vunpack.c.h.b16 %v1403
    %v1460 = vunpack.c.l.b16 %v1404
    %v1461 = vunpack.c.h.b16 %v1404
    %v1462 = vunpack.c.l.b16 %v1405
    %v1463 = vunpack.c.h.b16 %v1405
    %v1464 = vunpack.c.l.b16 %v1406
    %v1465 = vunpack.c.h.b16 %v1406
    %v1466 = vunpack.c.l.b16 %v1407
    %v1467 = vunpack.c.h.b16 %v1407
    %v1468 = vunpack.c.l.b16 %v1408
    %v1469 = vunpack.c.h.b16 %v1408
    %v1470 = vunpack.c.l.b16 %v1409
    %v1471 = vunpack.c.h.b16 %v1409
    %v1472 = vunpack.c.l.b16 %v1410
    %v1473 = vunpack.c.h.b16 %v1410
    %v1474 = vunpack.c.l.b16 %v1411
    %v1475 = vunpack.c.h.b16 %v1411
    %v1476 = vunpack.c.l.b16 %v1412
    %v1477 = vunpack.c.h.b16 %v1412
    %v1478 = vunpack.c.l.b16 %v1413
    %v1479 = vunpack.c.h.b16 %v1413
    %v1480 = vpack.c.b16 %v1446, %v1444
    %v1481 = vpack.c.b16 %v1447, %v1445
    %v1482 = vpack.c.b16 %v1450, %v1448
    %v1483 = vpack.c.b16 %v1451, %v1449
    %v1484 = vpack.c.b16 %v1454, %v1452
    %v1485 = vpack.c.b16 %v1455, %v1453
    %v1486 = vpack.c.b16 %v1458, %v1456
    %v1487 = vpack.c.b16 %v1459, %v1457
    %v1488 = vpack.c.b16 %v1462, %v1460
    %v1489 = vpack.c.b16 %v1463, %v1461
    %v1490 = vpack.c.b16 %v1466, %v1464
    %v1491 = vpack.c.b16 %v1467, %v1465
    %v1492 = vpack.c.b16 %v1470, %v1468
    %v1493 = vpack.c.b16 %v1471, %v1469
    %v1494 = vpack.c.b16 %v1474, %v1472
    %v1495 = vpack.c.b16 %v1475, %v1473
    %v1496 = vpack.c.b16 %v1478, %v1476
    %v1497 = vpack.c.b16 %v1479, %v1477
    %v1517 = vsel %vm152, %v1424, 0
    %1519 = vmatpush.bf16.msra.mxu0 %v1494
    %1520 = vmatpush.bf16.msra.mxu0 %v1492
    %1521 = vmatpush.bf16.msra.mxu0 %v1490
    %1522 = vmatpush.bf16.msra.mxu0 %v1488
    %1523 = vmatpush.bf16.msra.mxu0 %v1486
    %1524 = vmatpush.bf16.msra.mxu0 %v1484
    %1525 = vmatpush.bf16.msra.mxu0 %v1482
    %1526 = vmatpush.bf16.msra.mxu0 %v1480
    %1527 = vmatmul.bf16.gmra.mxu0 %v1421
    %v1528 = vpop.f32.mrf.mxu0
    %v1529 = vadd.f32 0.0, %v1528
    %v1530 = vpop.f32.mrf.mxu0
    %v1531 = vadd.f32 0.0, %v1530
    %1532 = vdwg.mxu0
    %1533 = vmatpush.bf16.msra.mxu0 0
    %1534 = vmatpush.bf16.msra.mxu0 0
    %1535 = vmatpush.bf16.msra.mxu0 0
    %1536 = vmatpush.bf16.msra.mxu0 0
    %1537 = vmatpush.bf16.msra.mxu0 0
    %1538 = vmatpush.bf16.msra.mxu0 0
    %1539 = vmatpush.bf16.msra.mxu0 0
    %1540 = vmatpush.bf16.msra.mxu0 %v1496
    %1541 = vmatmul.bf16.gmra.mxu0 %v1517
    %v1542 = vpop.f32.mrf.mxu0
    %v1543 = vadd.f32 %v1529, %v1542
    %v1544 = vpop.f32.mrf.mxu0
    %v1545 = vadd.f32 %v1531, %v1544
    %1546 = vdwg.mxu0
    %1547 = vmatpush.bf16.msra.mxu0 %v1495
    %1548 = vmatpush.bf16.msra.mxu0 %v1493
    %1549 = vmatpush.bf16.msra.mxu0 %v1491
    %1550 = vmatpush.bf16.msra.mxu0 %v1489
    %1551 = vmatpush.bf16.msra.mxu0 %v1487
    %1552 = vmatpush.bf16.msra.mxu0 %v1485
    %1553 = vmatpush.bf16.msra.mxu0 %v1483
    %1554 = vmatpush.bf16.msra.mxu0 %v1481
    %1555 = vmatmul.bf16.gmra.mxu0 %v1421
    %v1556 = vpop.f32.mrf.mxu0
    %v1557 = vadd.f32 0.0, %v1556
    %v1558 = vpop.f32.mrf.mxu0
    %v1559 = vadd.f32 0.0, %v1558
    %1560 = vdwg.mxu0
    %1561 = vmatpush.bf16.msra.mxu0 0
    %1562 = vmatpush.bf16.msra.mxu0 0
    %1563 = vmatpush.bf16.msra.mxu0 0
    %1564 = vmatpush.bf16.msra.mxu0 0
    %1565 = vmatpush.bf16.msra.mxu0 0
    %1566 = vmatpush.bf16.msra.mxu0 0
    %1567 = vmatpush.bf16.msra.mxu0 0
    %1568 = vmatpush.bf16.msra.mxu0 %v1497
    %1569 = vmatmul.bf16.gmra.mxu0 %v1517
    %v1570 = vpop.f32.mrf.mxu0
    %v1571 = vadd.f32 %v1557, %v1570
    %v1572 = vpop.f32.mrf.mxu0
    %v1573 = vadd.f32 %v1559, %v1572
    %1574 = vdwg.mxu0
    %v1575 = vadd.f32 %v1355, %v1543
    %v1576 = vadd.f32 %v1383, %v1571
    %v1577 = vadd.f32 %v1357, %v1545
    %v1578 = vadd.f32 %v1385, %v1573
    %v1579 = vmax.f32 %v1575, %v1576
    %v1580 = vmax.f32 %v1577, %v1578
    %v1581 = vld [vmem:[%s13] sm:$0xff]
    %v1582 = vld [vmem:[%s13 + $0x8] sm:$0xff]
    %v1584 = vsel %vm152, %v1581, 0
    %v1587 = vsel %vm152, %v1582, 0
    %1589 = vmatpush.msra.mxu0 0.0
    %1590 = vmatpush.msra.mxu0 0.0
    %1591 = vmatpush.msra.mxu0 0.0
    %1592 = vmatpush.msra.mxu0 0.0
    %1593 = vmatpush.msra.mxu0 0.0
    %1594 = vmatpush.msra.mxu0 0.0
    %1595 = vmatpush.msra.mxu0 0.0
    %1596 = vmatpush.msra.mxu0 0.0
    %1597 = vmatpush.msra.mxu0 0.0
    %1598 = vmatpush.msra.mxu0 0.0
    %1599 = vmatpush.msra.mxu0 0.0
    %1600 = vmatpush.msra.mxu0 0.0
    %1601 = vmatpush.msra.mxu0 0.0
    %1602 = vmatpush.msra.mxu0 0.0
    %1603 = vmatpush.msra.mxu0 %v1580
    %1604 = vmatpush.msra.mxu0 %v1579
    %1605 = vmatmul.f32.gmra.mxu0 %v1584
    %v1606 = vpop.f32.mrf.mxu0
    %v1607 = vadd.f32 0.0, %v1606
    %1608 = vmatmul.f32.gmra.mxu0 %v1587
    %v1609 = vpop.f32.mrf.mxu0
    %v1610 = vadd.f32 0.0, %v1609
    %1611 = vdwg.mxu0
    %v1612 = vmax.f32 %v1607, %v1610
    %v1613 = vld [vmem:[%s8] sm:$0x1]
    %v1615 = vperm.slane %v1613, 0
    %v1617 = vadd.f32 %v1612, %v1615
    %v1618 = vmax.f32 %v1617, 0.0
    %v1620 = vrot.slane %v1618, 7
    %1621 = vrot.lane.b32.xlu0 %v1620, 16
    %v1622 = vpop.permute.xlu0 %1621
    %vm1624 = vcmask 1047681
    %1625 = vst.msk [vmem:[#allocation4] sm:$0xfe] %vm1624, %v1622
    %vm1626 = vcmask 130049
    %1627 = vst.msk [vmem:[#allocation4 + $0x8] sm:$0xfe] %vm1626, %v1622
    %vm1628 = vcmask 1040512
    %1629 = vst.msk [vmem:[#allocation4 + $0x10] sm:$0x1] %vm1628, %v1622
    %vm1630 = vcmask 122880
    %1631 = vst.msk [vmem:[#allocation4 + $0x18] sm:$0x1] %vm1630, %v1622
    %v1632 = vld [vmem:[#allocation4] sm:$0xff]
    %v1633 = vld [vmem:[#allocation4 + $0x8] sm:$0xff]
    %v1634 = vpack.c.bf16 %v1632, %v1632
    %v1635 = vpack.c.bf16 %v1633, %v1633
    %v1636 = vld [vmem:[#allocation13] sm:$0xff]
    %v1637 = vld [vmem:[#allocation13 + $0x8] sm:$0xff]
    %v1638 = vld [vmem:[#allocation13 + $0x10] sm:$0xff]
    %v1639 = vld [vmem:[#allocation13 + $0x18] sm:$0xff]
    %v1640 = vld [vmem:[#allocation13 + $0x20] sm:$0xff]
    %v1641 = vld [vmem:[#allocation13 + $0x28] sm:$0xff]
    %v1642 = vld [vmem:[#allocation13 + $0x30] sm:$0xff]
    %v1643 = vld [vmem:[#allocation13 + $0x38] sm:$0xff]
    %v1644 = vld [vmem:[#allocation13 + $0x40] sm:$0xff]
    %v1645 = vld [vmem:[#allocation13 + $0x48] sm:$0xff]
    %v1646 = vld [vmem:[#allocation13 + $0x50] sm:$0xff]
    %v1647 = vld [vmem:[#allocation13 + $0x58] sm:$0xff]
    %v1648 = vld [vmem:[#allocation13 + $0x60] sm:$0xff]
    %v1649 = vld [vmem:[#allocation13 + $0x68] sm:$0xff]
    %v1650 = vld [vmem:[#allocation13 + $0x70] sm:$0xff]
    %v1651 = vld [vmem:[#allocation13 + $0x78] sm:$0xff]
    %v1652 = vld [vmem:[#allocation13 + $0x80] sm:$0xff]
    %v1653 = vld [vmem:[#allocation13 + $0x88] sm:$0xff]
    %v1654 = vld [vmem:[#allocation13 + $0x90] sm:$0xff]
    %v1655 = vld [vmem:[#allocation13 + $0x98] sm:$0xff]
    %v1656 = vld [vmem:[#allocation4] sm:$0xfe]
    %v1657 = vld [vmem:[#allocation4 + $0x8] sm:$0xfe]
    %v1658 = vld [vmem:[#allocation4 + $0x10] sm:$0x1]
    %v1659 = vld [vmem:[#allocation4 + $0x18] sm:$0x1]
    %v1660 = vpack.c.bf16 %v1658, %v1656
    %v1661 = vpack.c.bf16 %v1659, %v1657
    %s1662 = scalar_lea.vmem [#allocation13], 160
    %v1663 = vld [vmem:[%s1662] sm:$0xff]
    %v1664 = vld [vmem:[%s1662 + $0x8] sm:$0xff]
    %v1665 = vld [vmem:[%s1662 + $0x10] sm:$0xff]
    %v1666 = vld [vmem:[%s1662 + $0x18] sm:$0xff]
    %v1667 = vld [vmem:[%s1662 + $0x20] sm:$0xff]
    %v1668 = vld [vmem:[%s1662 + $0x28] sm:$0xff]
    %v1669 = vld [vmem:[%s1662 + $0x30] sm:$0xff]
    %v1670 = vld [vmem:[%s1662 + $0x38] sm:$0xff]
    %v1671 = vld [vmem:[%s1662 + $0x40] sm:$0xff]
    %v1672 = vld [vmem:[%s1662 + $0x48] sm:$0xff]
    %v1673 = vld [vmem:[%s1662 + $0x50] sm:$0xff]
    %v1674 = vld [vmem:[%s1662 + $0x58] sm:$0xff]
    %v1675 = vld [vmem:[%s1662 + $0x60] sm:$0xff]
    %v1676 = vld [vmem:[%s1662 + $0x68] sm:$0xff]
    %v1677 = vld [vmem:[%s1662 + $0x70] sm:$0xff]
    %v1678 = vld [vmem:[%s1662 + $0x78] sm:$0xff]
    %v1679 = vld [vmem:[%s1662 + $0x80] sm:$0xff]
    %v1680 = vld [vmem:[%s1662 + $0x88] sm:$0xff]
    %v1681 = vld [vmem:[%s1662 + $0x90] sm:$0xff]
    %v1682 = vld [vmem:[%s1662 + $0x98] sm:$0xff]
    %v1684 = vshrl.u32 %v1660, 16
    %v1686 = vshll.u32 %v1660, 16
    %v1688 = vrot.slane %v1686, 1
    %v1689 = vor.u32 %v1684, %v1688
    %v1691 = vshrl.u32 %v1661, 16
    %v1693 = vshll.u32 %v1661, 16
    %v1695 = vrot.slane %v1693, 1
    %v1696 = vor.u32 %v1691, %v1695
    %v1718 = vunpack.c.l.b16 %v1663
    %v1719 = vunpack.c.h.b16 %v1663
    %v1720 = vunpack.c.l.b16 %v1664
    %v1721 = vunpack.c.h.b16 %v1664
    %v1722 = vunpack.c.l.b16 %v1665
    %v1723 = vunpack.c.h.b16 %v1665
    %v1724 = vunpack.c.l.b16 %v1666
    %v1725 = vunpack.c.h.b16 %v1666
    %v1726 = vunpack.c.l.b16 %v1667
    %v1727 = vunpack.c.h.b16 %v1667
    %v1728 = vunpack.c.l.b16 %v1668
    %v1729 = vunpack.c.h.b16 %v1668
    %v1730 = vunpack.c.l.b16 %v1669
    %v1731 = vunpack.c.h.b16 %v1669
    %v1732 = vunpack.c.l.b16 %v1670
    %v1733 = vunpack.c.h.b16 %v1670
    %v1734 = vunpack.c.l.b16 %v1671
    %v1735 = vunpack.c.h.b16 %v1671
    %v1736 = vunpack.c.l.b16 %v1672
    %v1737 = vunpack.c.h.b16 %v1672
    %v1738 = vunpack.c.l.b16 %v1673
    %v1739 = vunpack.c.h.b16 %v1673
    %v1740 = vunpack.c.l.b16 %v1674
    %v1741 = vunpack.c.h.b16 %v1674
    %v1742 = vunpack.c.l.b16 %v1675
    %v1743 = vunpack.c.h.b16 %v1675
    %v1744 = vunpack.c.l.b16 %v1676
    %v1745 = vunpack.c.h.b16 %v1676
    %v1746 = vunpack.c.l.b16 %v1677
    %v1747 = vunpack.c.h.b16 %v1677
    %v1748 = vunpack.c.l.b16 %v1678
    %v1749 = vunpack.c.h.b16 %v1678
    %v1750 = vunpack.c.l.b16 %v1679
    %v1751 = vunpack.c.h.b16 %v1679
    %v1752 = vunpack.c.l.b16 %v1680
    %v1753 = vunpack.c.h.b16 %v1680
    %v1754 = vunpack.c.l.b16 %v1681
    %v1755 = vunpack.c.h.b16 %v1681
    %v1756 = vunpack.c.l.b16 %v1682
    %v1757 = vunpack.c.h.b16 %v1682
    %v1758 = vpack.c.b16 %v1720, %v1718
    %v1759 = vpack.c.b16 %v1721, %v1719
    %v1760 = vpack.c.b16 %v1724, %v1722
    %v1761 = vpack.c.b16 %v1725, %v1723
    %v1762 = vpack.c.b16 %v1728, %v1726
    %v1763 = vpack.c.b16 %v1729, %v1727
    %v1764 = vpack.c.b16 %v1732, %v1730
    %v1765 = vpack.c.b16 %v1733, %v1731
    %v1766 = vpack.c.b16 %v1736, %v1734
    %v1767 = vpack.c.b16 %v1737, %v1735
    %v1768 = vpack.c.b16 %v1740, %v1738
    %v1769 = vpack.c.b16 %v1741, %v1739
    %v1770 = vpack.c.b16 %v1744, %v1742
    %v1771 = vpack.c.b16 %v1745, %v1743
    %v1772 = vpack.c.b16 %v1748, %v1746
    %v1773 = vpack.c.b16 %v1749, %v1747
    %v1774 = vpack.c.b16 %v1752, %v1750
    %v1775 = vpack.c.b16 %v1753, %v1751
    %v1776 = vpack.c.b16 %v1756, %v1754
    %v1777 = vpack.c.b16 %v1757, %v1755
    %v1799 = vsel %vm166, %v1696, 0
    %1801 = vmatpush.bf16.msra.mxu0 %v1772
    %1802 = vmatpush.bf16.msra.mxu0 %v1770
    %1803 = vmatpush.bf16.msra.mxu0 %v1768
    %1804 = vmatpush.bf16.msra.mxu0 %v1766
    %1805 = vmatpush.bf16.msra.mxu0 %v1764
    %1806 = vmatpush.bf16.msra.mxu0 %v1762
    %1807 = vmatpush.bf16.msra.mxu0 %v1760
    %1808 = vmatpush.bf16.msra.mxu0 %v1758
    %1809 = vmatmul.bf16.gmra.mxu0 %v1689
    %v1810 = vpop.f32.mrf.mxu0
    %v1811 = vadd.f32 0.0, %v1810
    %v1812 = vpop.f32.mrf.mxu0
    %1813 = vdwg.mxu0
    %1814 = vmatpush.bf16.msra.mxu0 0
    %1815 = vmatpush.bf16.msra.mxu0 0
    %1816 = vmatpush.bf16.msra.mxu0 0
    %1817 = vmatpush.bf16.msra.mxu0 0
    %1818 = vmatpush.bf16.msra.mxu0 0
    %1819 = vmatpush.bf16.msra.mxu0 0
    %1820 = vmatpush.bf16.msra.mxu0 %v1776
    %1821 = vmatpush.bf16.msra.mxu0 %v1774
    %1822 = vmatmul.bf16.gmra.mxu0 %v1799
    %v1823 = vpop.f32.mrf.mxu0
    %v1824 = vadd.f32 %v1811, %v1823
    %v1825 = vpop.f32.mrf.mxu0
    %1826 = vdwg.mxu0
    %1827 = vmatpush.bf16.msra.mxu0 %v1773
    %1828 = vmatpush.bf16.msra.mxu0 %v1771
    %1829 = vmatpush.bf16.msra.mxu0 %v1769
    %1830 = vmatpush.bf16.msra.mxu0 %v1767
    %1831 = vmatpush.bf16.msra.mxu0 %v1765
    %1832 = vmatpush.bf16.msra.mxu0 %v1763
    %1833 = vmatpush.bf16.msra.mxu0 %v1761
    %1834 = vmatpush.bf16.msra.mxu0 %v1759
    %1835 = vmatmul.bf16.gmra.mxu0 %v1689
    %v1836 = vpop.f32.mrf.mxu0
    %v1837 = vadd.f32 0.0, %v1836
    %v1838 = vpop.f32.mrf.mxu0
    %1839 = vdwg.mxu0
    %1840 = vmatpush.bf16.msra.mxu0 0
    %1841 = vmatpush.bf16.msra.mxu0 0
    %1842 = vmatpush.bf16.msra.mxu0 0
    %1843 = vmatpush.bf16.msra.mxu0 0
    %1844 = vmatpush.bf16.msra.mxu0 0
    %1845 = vmatpush.bf16.msra.mxu0 0
    %1846 = vmatpush.bf16.msra.mxu0 %v1777
    %1847 = vmatpush.bf16.msra.mxu0 %v1775
    %1848 = vmatmul.bf16.gmra.mxu0 %v1799
    %v1849 = vpop.f32.mrf.mxu0
    %v1850 = vadd.f32 %v1837, %v1849
    %v1851 = vpop.f32.mrf.mxu0
    %1852 = vdwg.mxu0
    %v1873 = vunpack.c.l.b16 %v1636
    %v1874 = vunpack.c.h.b16 %v1636
    %v1875 = vunpack.c.l.b16 %v1637
    %v1876 = vunpack.c.h.b16 %v1637
    %v1877 = vunpack.c.l.b16 %v1638
    %v1878 = vunpack.c.h.b16 %v1638
    %v1879 = vunpack.c.l.b16 %v1639
    %v1880 = vunpack.c.h.b16 %v1639
    %v1881 = vunpack.c.l.b16 %v1640
    %v1882 = vunpack.c.h.b16 %v1640
    %v1883 = vunpack.c.l.b16 %v1641
    %v1884 = vunpack.c.h.b16 %v1641
    %v1885 = vunpack.c.l.b16 %v1642
    %v1886 = vunpack.c.h.b16 %v1642
    %v1887 = vunpack.c.l.b16 %v1643
    %v1888 = vunpack.c.h.b16 %v1643
    %v1889 = vunpack.c.l.b16 %v1644
    %v1890 = vunpack.c.h.b16 %v1644
    %v1891 = vunpack.c.l.b16 %v1645
    %v1892 = vunpack.c.h.b16 %v1645
    %v1893 = vunpack.c.l.b16 %v1646
    %v1894 = vunpack.c.h.b16 %v1646
    %v1895 = vunpack.c.l.b16 %v1647
    %v1896 = vunpack.c.h.b16 %v1647
    %v1897 = vunpack.c.l.b16 %v1648
    %v1898 = vunpack.c.h.b16 %v1648
    %v1899 = vunpack.c.l.b16 %v1649
    %v1900 = vunpack.c.h.b16 %v1649
    %v1901 = vunpack.c.l.b16 %v1650
    %v1902 = vunpack.c.h.b16 %v1650
    %v1903 = vunpack.c.l.b16 %v1651
    %v1904 = vunpack.c.h.b16 %v1651
    %v1905 = vunpack.c.l.b16 %v1652
    %v1906 = vunpack.c.h.b16 %v1652
    %v1907 = vunpack.c.l.b16 %v1653
    %v1908 = vunpack.c.h.b16 %v1653
    %v1909 = vunpack.c.l.b16 %v1654
    %v1910 = vunpack.c.h.b16 %v1654
    %v1911 = vunpack.c.l.b16 %v1655
    %v1912 = vunpack.c.h.b16 %v1655
    %v1913 = vpack.c.b16 %v1875, %v1873
    %v1914 = vpack.c.b16 %v1876, %v1874
    %v1915 = vpack.c.b16 %v1879, %v1877
    %v1916 = vpack.c.b16 %v1880, %v1878
    %v1917 = vpack.c.b16 %v1883, %v1881
    %v1918 = vpack.c.b16 %v1884, %v1882
    %v1919 = vpack.c.b16 %v1887, %v1885
    %v1920 = vpack.c.b16 %v1888, %v1886
    %v1921 = vpack.c.b16 %v1891, %v1889
    %v1922 = vpack.c.b16 %v1892, %v1890
    %v1923 = vpack.c.b16 %v1895, %v1893
    %v1924 = vpack.c.b16 %v1896, %v1894
    %v1925 = vpack.c.b16 %v1899, %v1897
    %v1926 = vpack.c.b16 %v1900, %v1898
    %v1927 = vpack.c.b16 %v1903, %v1901
    %v1928 = vpack.c.b16 %v1904, %v1902
    %v1929 = vpack.c.b16 %v1907, %v1905
    %v1930 = vpack.c.b16 %v1908, %v1906
    %v1931 = vpack.c.b16 %v1911, %v1909
    %v1932 = vpack.c.b16 %v1912, %v1910
    %v1954 = vsel %vm166, %v1635, 0
    %1956 = vmatpush.bf16.msra.mxu0 %v1927
    %1957 = vmatpush.bf16.msra.mxu0 %v1925
    %1958 = vmatpush.bf16.msra.mxu0 %v1923
    %1959 = vmatpush.bf16.msra.mxu0 %v1921
    %1960 = vmatpush.bf16.msra.mxu0 %v1919
    %1961 = vmatpush.bf16.msra.mxu0 %v1917
    %1962 = vmatpush.bf16.msra.mxu0 %v1915
    %1963 = vmatpush.bf16.msra.mxu0 %v1913
    %1964 = vmatmul.bf16.gmra.mxu0 %v1634
    %v1965 = vpop.f32.mrf.mxu0
    %v1966 = vadd.f32 %v1824, %v1965
    %v1967 = vpop.f32.mrf.mxu0
    %1968 = vdwg.mxu0
    %1969 = vmatpush.bf16.msra.mxu0 0
    %1970 = vmatpush.bf16.msra.mxu0 0
    %1971 = vmatpush.bf16.msra.mxu0 0
    %1972 = vmatpush.bf16.msra.mxu0 0
    %1973 = vmatpush.bf16.msra.mxu0 0
    %1974 = vmatpush.bf16.msra.mxu0 0
    %1975 = vmatpush.bf16.msra.mxu0 %v1931
    %1976 = vmatpush.bf16.msra.mxu0 %v1929
    %1977 = vmatmul.bf16.gmra.mxu0 %v1954
    %v1978 = vpop.f32.mrf.mxu0
    %v1979 = vadd.f32 %v1966, %v1978
    %v1980 = vpop.f32.mrf.mxu0
    %1981 = vdwg.mxu0
    %1982 = vmatpush.bf16.msra.mxu0 %v1928
    %1983 = vmatpush.bf16.msra.mxu0 %v1926
    %1984 = vmatpush.bf16.msra.mxu0 %v1924
    %1985 = vmatpush.bf16.msra.mxu0 %v1922
    %1986 = vmatpush.bf16.msra.mxu0 %v1920
    %1987 = vmatpush.bf16.msra.mxu0 %v1918
    %1988 = vmatpush.bf16.msra.mxu0 %v1916
    %1989 = vmatpush.bf16.msra.mxu0 %v1914
    %1990 = vmatmul.bf16.gmra.mxu0 %v1634
    %v1991 = vpop.f32.mrf.mxu0
    %v1992 = vadd.f32 %v1850, %v1991
    %v1993 = vpop.f32.mrf.mxu0
    %1994 = vdwg.mxu0
    %1995 = vmatpush.bf16.msra.mxu0 0
    %1996 = vmatpush.bf16.msra.mxu0 0
    %1997 = vmatpush.bf16.msra.mxu0 0
    %1998 = vmatpush.bf16.msra.mxu0 0
    %1999 = vmatpush.bf16.msra.mxu0 0
    %2000 = vmatpush.bf16.msra.mxu0 0
    %2001 = vmatpush.bf16.msra.mxu0 %v1932
    %2002 = vmatpush.bf16.msra.mxu0 %v1930
    %2003 = vmatmul.bf16.gmra.mxu0 %v1954
    %v2004 = vpop.f32.mrf.mxu0
    %v2005 = vadd.f32 %v1992, %v2004
    %v2006 = vpop.f32.mrf.mxu0
    %2007 = vdwg.mxu0
    %v2008 = vld [vmem:[#allocation4] sm:$0xfc]
    %v2009 = vld [vmem:[#allocation4 + $0x8] sm:$0xfc]
    %v2010 = vld [vmem:[#allocation4 + $0x10] sm:$0x3]
    %v2011 = vld [vmem:[#allocation4 + $0x18] sm:$0x3]
    %v2012 = vpack.c.bf16 %v2010, %v2008
    %v2013 = vpack.c.bf16 %v2011, %v2009
    %s2014 = scalar_lea.vmem [#allocation13], 320
    %v2015 = vld [vmem:[%s2014] sm:$0xff]
    %v2016 = vld [vmem:[%s2014 + $0x8] sm:$0xff]
    %v2017 = vld [vmem:[%s2014 + $0x10] sm:$0xff]
    %v2018 = vld [vmem:[%s2014 + $0x18] sm:$0xff]
    %v2019 = vld [vmem:[%s2014 + $0x20] sm:$0xff]
    %v2020 = vld [vmem:[%s2014 + $0x28] sm:$0xff]
    %v2021 = vld [vmem:[%s2014 + $0x30] sm:$0xff]
    %v2022 = vld [vmem:[%s2014 + $0x38] sm:$0xff]
    %v2023 = vld [vmem:[%s2014 + $0x40] sm:$0xff]
    %v2024 = vld [vmem:[%s2014 + $0x48] sm:$0xff]
    %v2025 = vld [vmem:[%s2014 + $0x50] sm:$0xff]
    %v2026 = vld [vmem:[%s2014 + $0x58] sm:$0xff]
    %v2027 = vld [vmem:[%s2014 + $0x60] sm:$0xff]
    %v2028 = vld [vmem:[%s2014 + $0x68] sm:$0xff]
    %v2029 = vld [vmem:[%s2014 + $0x70] sm:$0xff]
    %v2030 = vld [vmem:[%s2014 + $0x78] sm:$0xff]
    %v2031 = vld [vmem:[%s2014 + $0x80] sm:$0xff]
    %v2032 = vld [vmem:[%s2014 + $0x88] sm:$0xff]
    %v2033 = vld [vmem:[%s2014 + $0x90] sm:$0xff]
    %v2034 = vld [vmem:[%s2014 + $0x98] sm:$0xff]
    %v2037 = vrot.slane %v2012, 1
    %v2038 = vrot.slane %v2013, 1
    %v2060 = vunpack.c.l.b16 %v2015
    %v2061 = vunpack.c.h.b16 %v2015
    %v2062 = vunpack.c.l.b16 %v2016
    %v2063 = vunpack.c.h.b16 %v2016
    %v2064 = vunpack.c.l.b16 %v2017
    %v2065 = vunpack.c.h.b16 %v2017
    %v2066 = vunpack.c.l.b16 %v2018
    %v2067 = vunpack.c.h.b16 %v2018
    %v2068 = vunpack.c.l.b16 %v2019
    %v2069 = vunpack.c.h.b16 %v2019
    %v2070 = vunpack.c.l.b16 %v2020
    %v2071 = vunpack.c.h.b16 %v2020
    %v2072 = vunpack.c.l.b16 %v2021
    %v2073 = vunpack.c.h.b16 %v2021
    %v2074 = vunpack.c.l.b16 %v2022
    %v2075 = vunpack.c.h.b16 %v2022
    %v2076 = vunpack.c.l.b16 %v2023
    %v2077 = vunpack.c.h.b16 %v2023
    %v2078 = vunpack.c.l.b16 %v2024
    %v2079 = vunpack.c.h.b16 %v2024
    %v2080 = vunpack.c.l.b16 %v2025
    %v2081 = vunpack.c.h.b16 %v2025
    %v2082 = vunpack.c.l.b16 %v2026
    %v2083 = vunpack.c.h.b16 %v2026
    %v2084 = vunpack.c.l.b16 %v2027
    %v2085 = vunpack.c.h.b16 %v2027
    %v2086 = vunpack.c.l.b16 %v2028
    %v2087 = vunpack.c.h.b16 %v2028
    %v2088 = vunpack.c.l.b16 %v2029
    %v2089 = vunpack.c.h.b16 %v2029
    %v2090 = vunpack.c.l.b16 %v2030
    %v2091 = vunpack.c.h.b16 %v2030
    %v2092 = vunpack.c.l.b16 %v2031
    %v2093 = vunpack.c.h.b16 %v2031
    %v2094 = vunpack.c.l.b16 %v2032
    %v2095 = vunpack.c.h.b16 %v2032
    %v2096 = vunpack.c.l.b16 %v2033
    %v2097 = vunpack.c.h.b16 %v2033
    %v2098 = vunpack.c.l.b16 %v2034
    %v2099 = vunpack.c.h.b16 %v2034
    %v2100 = vpack.c.b16 %v2062, %v2060
    %v2101 = vpack.c.b16 %v2063, %v2061
    %v2102 = vpack.c.b16 %v2066, %v2064
    %v2103 = vpack.c.b16 %v2067, %v2065
    %v2104 = vpack.c.b16 %v2070, %v2068
    %v2105 = vpack.c.b16 %v2071, %v2069
    %v2106 = vpack.c.b16 %v2074, %v2072
    %v2107 = vpack.c.b16 %v2075, %v2073
    %v2108 = vpack.c.b16 %v2078, %v2076
    %v2109 = vpack.c.b16 %v2079, %v2077
    %v2110 = vpack.c.b16 %v2082, %v2080
    %v2111 = vpack.c.b16 %v2083, %v2081
    %v2112 = vpack.c.b16 %v2086, %v2084
    %v2113 = vpack.c.b16 %v2087, %v2085
    %v2114 = vpack.c.b16 %v2090, %v2088
    %v2115 = vpack.c.b16 %v2091, %v2089
    %v2116 = vpack.c.b16 %v2094, %v2092
    %v2117 = vpack.c.b16 %v2095, %v2093
    %v2118 = vpack.c.b16 %v2098, %v2096
    %v2119 = vpack.c.b16 %v2099, %v2097
    %v2141 = vsel %vm166, %v2038, 0
    %2143 = vmatpush.bf16.msra.mxu0 %v2114
    %2144 = vmatpush.bf16.msra.mxu0 %v2112
    %2145 = vmatpush.bf16.msra.mxu0 %v2110
    %2146 = vmatpush.bf16.msra.mxu0 %v2108
    %2147 = vmatpush.bf16.msra.mxu0 %v2106
    %2148 = vmatpush.bf16.msra.mxu0 %v2104
    %2149 = vmatpush.bf16.msra.mxu0 %v2102
    %2150 = vmatpush.bf16.msra.mxu0 %v2100
    %2151 = vmatmul.bf16.gmra.mxu0 %v2037
    %v2152 = vpop.f32.mrf.mxu0
    %v2153 = vadd.f32 0.0, %v2152
    %v2154 = vpop.f32.mrf.mxu0
    %2155 = vdwg.mxu0
    %2156 = vmatpush.bf16.msra.mxu0 0
    %2157 = vmatpush.bf16.msra.mxu0 0
    %2158 = vmatpush.bf16.msra.mxu0 0
    %2159 = vmatpush.bf16.msra.mxu0 0
    %2160 = vmatpush.bf16.msra.mxu0 0
    %2161 = vmatpush.bf16.msra.mxu0 0
    %2162 = vmatpush.bf16.msra.mxu0 %v2118
    %2163 = vmatpush.bf16.msra.mxu0 %v2116
    %2164 = vmatmul.bf16.gmra.mxu0 %v2141
    %v2165 = vpop.f32.mrf.mxu0
    %v2166 = vadd.f32 %v2153, %v2165
    %v2167 = vpop.f32.mrf.mxu0
    %2168 = vdwg.mxu0
    %2169 = vmatpush.bf16.msra.mxu0 %v2115
    %2170 = vmatpush.bf16.msra.mxu0 %v2113
    %2171 = vmatpush.bf16.msra.mxu0 %v2111
    %2172 = vmatpush.bf16.msra.mxu0 %v2109
    %2173 = vmatpush.bf16.msra.mxu0 %v2107
    %2174 = vmatpush.bf16.msra.mxu0 %v2105
    %2175 = vmatpush.bf16.msra.mxu0 %v2103
    %2176 = vmatpush.bf16.msra.mxu0 %v2101
    %2177 = vmatmul.bf16.gmra.mxu0 %v2037
    %v2178 = vpop.f32.mrf.mxu0
    %v2179 = vadd.f32 0.0, %v2178
    %v2180 = vpop.f32.mrf.mxu0
    %2181 = vdwg.mxu0
    %2182 = vmatpush.bf16.msra.mxu0 0
    %2183 = vmatpush.bf16.msra.mxu0 0
    %2184 = vmatpush.bf16.msra.mxu0 0
    %2185 = vmatpush.bf16.msra.mxu0 0
    %2186 = vmatpush.bf16.msra.mxu0 0
    %2187 = vmatpush.bf16.msra.mxu0 0
    %2188 = vmatpush.bf16.msra.mxu0 %v2119
    %2189 = vmatpush.bf16.msra.mxu0 %v2117
    %2190 = vmatmul.bf16.gmra.mxu0 %v2141
    %v2191 = vpop.f32.mrf.mxu0
    %v2192 = vadd.f32 %v2179, %v2191
    %v2193 = vpop.f32.mrf.mxu0
    %2194 = vdwg.mxu0
    %v2195 = vadd.f32 %v1979, %v2166
    %v2196 = vadd.f32 %v2005, %v2192
    %v2197 = vmax.f32 %v2195, %v2196
    %v2198 = vld [vmem:[%s14] sm:$0xff]
    %v2200 = vsel %vm1006, %v2198, 0
    %2202 = vmatpush.msra.mxu0 0.0
    %2203 = vmatpush.msra.mxu0 0.0
    %2204 = vmatpush.msra.mxu0 0.0
    %2205 = vmatpush.msra.mxu0 0.0
    %2206 = vmatpush.msra.mxu0 0.0
    %2207 = vmatpush.msra.mxu0 0.0
    %2208 = vmatpush.msra.mxu0 0.0
    %2209 = vmatpush.msra.mxu0 0.0
    %2210 = vmatpush.msra.mxu0 0.0
    %2211 = vmatpush.msra.mxu0 0.0
    %2212 = vmatpush.msra.mxu0 0.0
    %2213 = vmatpush.msra.mxu0 0.0
    %2214 = vmatpush.msra.mxu0 0.0
    %2215 = vmatpush.msra.mxu0 0.0
    %2216 = vmatpush.msra.mxu0 0.0
    %2217 = vmatpush.msra.mxu0 %v2197
    %2218 = vmatmul.f32.gmra.mxu0 %v2200
    %v2219 = vpop.f32.mrf.mxu0
    %v2220 = vadd.f32 0.0, %v2219
    %2221 = vdwg.mxu0
    %v2223 = vrot.slane %v2220, 4
    %v2225 = vmax.f32 %v2220, %v2223
    %v2226 = vld [vmem:[%s9] sm:$0x1]
    %v2228 = vperm.slane %v2226, 0
    %v2230 = vadd.f32 %v2225, %v2228
    %v2231 = vmax.f32 %v2230, 0.0
    %v2233 = vrot.slane %v2231, 7
    %2234 = vrot.lane.b32.xlu0 %v2233, 32
    %v2235 = vpop.permute.xlu0 %2234
    %vm2237 = vcmask 1044737
    %2238 = vst.msk [vmem:[#allocation5] sm:$0x1e] %vm2237, %v2235
    %vm2239 = vcmask 258049
    %2240 = vst.msk [vmem:[#allocation5 + $0x8] sm:$0x1e] %vm2239, %v2235
    %v2241 = vld [vmem:[#allocation5] sm:$0xf]
    %v2242 = vld [vmem:[#allocation5 + $0x8] sm:$0xf]
    %v2243 = vpack.c.bf16 %v2241, %v2241
    %v2244 = vpack.c.bf16 %v2242, %v2242
    %v2245 = vld [vmem:[#allocation14] sm:$0xff]
    %v2246 = vld [vmem:[#allocation14 + $0x8] sm:$0xff]
    %v2247 = vld [vmem:[#allocation14 + $0x10] sm:$0xff]
    %v2248 = vld [vmem:[#allocation14 + $0x18] sm:$0xff]
    %v2249 = vld [vmem:[#allocation14 + $0x20] sm:$0xff]
    %v2250 = vld [vmem:[#allocation14 + $0x28] sm:$0xff]
    %v2251 = vld [vmem:[#allocation14 + $0x30] sm:$0xff]
    %v2252 = vld [vmem:[#allocation14 + $0x38] sm:$0xff]
    %v2253 = vld [vmem:[#allocation14 + $0x40] sm:$0xff]
    %v2254 = vld [vmem:[#allocation14 + $0x48] sm:$0xff]
    %v2255 = vld [vmem:[#allocation14 + $0x50] sm:$0xff]
    %v2256 = vld [vmem:[#allocation14 + $0x58] sm:$0xff]
    %v2257 = vld [vmem:[#allocation14 + $0x60] sm:$0xff]
    %v2258 = vld [vmem:[#allocation14 + $0x68] sm:$0xff]
    %v2259 = vld [vmem:[#allocation14 + $0x70] sm:$0xff]
    %v2260 = vld [vmem:[#allocation14 + $0x78] sm:$0xff]
    %v2261 = vld [vmem:[#allocation14 + $0x80] sm:$0xff]
    %v2262 = vld [vmem:[#allocation14 + $0x88] sm:$0xff]
    %v2263 = vld [vmem:[#allocation14 + $0x90] sm:$0xff]
    %v2264 = vld [vmem:[#allocation14 + $0x98] sm:$0xff]
    %v2265 = vld [vmem:[#allocation14 + $0xa0] sm:$0xff]
    %v2266 = vld [vmem:[#allocation14 + $0xa8] sm:$0xff]
    %v2267 = vld [vmem:[#allocation14 + $0xb0] sm:$0xff]
    %v2268 = vld [vmem:[#allocation14 + $0xb8] sm:$0xff]
    %v2269 = vld [vmem:[#allocation5] sm:$0x1e]
    %v2270 = vld [vmem:[#allocation5 + $0x8] sm:$0x1e]
    %v2271 = vpack.c.bf16 %v2269, %v2269
    %v2272 = vpack.c.bf16 %v2270, %v2270
    %s2273 = scalar_lea.vmem [#allocation14], 192
    %v2274 = vld [vmem:[%s2273] sm:$0xff]
    %v2275 = vld [vmem:[%s2273 + $0x8] sm:$0xff]
    %v2276 = vld [vmem:[%s2273 + $0x10] sm:$0xff]
    %v2277 = vld [vmem:[%s2273 + $0x18] sm:$0xff]
    %v2278 = vld [vmem:[%s2273 + $0x20] sm:$0xff]
    %v2279 = vld [vmem:[%s2273 + $0x28] sm:$0xff]
    %v2280 = vld [vmem:[%s2273 + $0x30] sm:$0xff]
    %v2281 = vld [vmem:[%s2273 + $0x38] sm:$0xff]
    %v2282 = vld [vmem:[%s2273 + $0x40] sm:$0xff]
    %v2283 = vld [vmem:[%s2273 + $0x48] sm:$0xff]
    %v2284 = vld [vmem:[%s2273 + $0x50] sm:$0xff]
    %v2285 = vld [vmem:[%s2273 + $0x58] sm:$0xff]
    %v2286 = vld [vmem:[%s2273 + $0x60] sm:$0xff]
    %v2287 = vld [vmem:[%s2273 + $0x68] sm:$0xff]
    %v2288 = vld [vmem:[%s2273 + $0x70] sm:$0xff]
    %v2289 = vld [vmem:[%s2273 + $0x78] sm:$0xff]
    %v2290 = vld [vmem:[%s2273 + $0x80] sm:$0xff]
    %v2291 = vld [vmem:[%s2273 + $0x88] sm:$0xff]
    %v2292 = vld [vmem:[%s2273 + $0x90] sm:$0xff]
    %v2293 = vld [vmem:[%s2273 + $0x98] sm:$0xff]
    %v2294 = vld [vmem:[%s2273 + $0xa0] sm:$0xff]
    %v2295 = vld [vmem:[%s2273 + $0xa8] sm:$0xff]
    %v2296 = vld [vmem:[%s2273 + $0xb0] sm:$0xff]
    %v2297 = vld [vmem:[%s2273 + $0xb8] sm:$0xff]
    %v2299 = vshrl.u32 %v2271, 16
    %v2301 = vshll.u32 %v2271, 16
    %v2303 = vrot.slane %v2301, 1
    %v2304 = vor.u32 %v2299, %v2303
    %v2306 = vshrl.u32 %v2272, 16
    %v2308 = vshll.u32 %v2272, 16
    %v2310 = vrot.slane %v2308, 1
    %v2311 = vor.u32 %v2306, %v2310
    %v2337 = vunpack.c.l.b16 %v2274
    %v2338 = vunpack.c.h.b16 %v2274
    %v2339 = vunpack.c.l.b16 %v2275
    %v2340 = vunpack.c.h.b16 %v2275
    %v2341 = vunpack.c.l.b16 %v2276
    %v2342 = vunpack.c.h.b16 %v2276
    %v2343 = vunpack.c.l.b16 %v2277
    %v2344 = vunpack.c.h.b16 %v2277
    %v2345 = vunpack.c.l.b16 %v2278
    %v2346 = vunpack.c.h.b16 %v2278
    %v2347 = vunpack.c.l.b16 %v2279
    %v2348 = vunpack.c.h.b16 %v2279
    %v2349 = vunpack.c.l.b16 %v2280
    %v2350 = vunpack.c.h.b16 %v2280
    %v2351 = vunpack.c.l.b16 %v2281
    %v2352 = vunpack.c.h.b16 %v2281
    %v2353 = vunpack.c.l.b16 %v2282
    %v2354 = vunpack.c.h.b16 %v2282
    %v2355 = vunpack.c.l.b16 %v2283
    %v2356 = vunpack.c.h.b16 %v2283
    %v2357 = vunpack.c.l.b16 %v2284
    %v2358 = vunpack.c.h.b16 %v2284
    %v2359 = vunpack.c.l.b16 %v2285
    %v2360 = vunpack.c.h.b16 %v2285
    %v2361 = vunpack.c.l.b16 %v2286
    %v2362 = vunpack.c.h.b16 %v2286
    %v2363 = vunpack.c.l.b16 %v2287
    %v2364 = vunpack.c.h.b16 %v2287
    %v2365 = vunpack.c.l.b16 %v2288
    %v2366 = vunpack.c.h.b16 %v2288
    %v2367 = vunpack.c.l.b16 %v2289
    %v2368 = vunpack.c.h.b16 %v2289
    %v2369 = vunpack.c.l.b16 %v2290
    %v2370 = vunpack.c.h.b16 %v2290
    %v2371 = vunpack.c.l.b16 %v2291
    %v2372 = vunpack.c.h.b16 %v2291
    %v2373 = vunpack.c.l.b16 %v2292
    %v2374 = vunpack.c.h.b16 %v2292
    %v2375 = vunpack.c.l.b16 %v2293
    %v2376 = vunpack.c.h.b16 %v2293
    %v2377 = vunpack.c.l.b16 %v2294
    %v2378 = vunpack.c.h.b16 %v2294
    %v2379 = vunpack.c.l.b16 %v2295
    %v2380 = vunpack.c.h.b16 %v2295
    %v2381 = vunpack.c.l.b16 %v2296
    %v2382 = vunpack.c.h.b16 %v2296
    %v2383 = vunpack.c.l.b16 %v2297
    %v2384 = vunpack.c.h.b16 %v2297
    %v2385 = vpack.c.b16 %v2339, %v2337
    %v2386 = vpack.c.b16 %v2340, %v2338
    %v2387 = vpack.c.b16 %v2343, %v2341
    %v2388 = vpack.c.b16 %v2344, %v2342
    %v2389 = vpack.c.b16 %v2347, %v2345
    %v2390 = vpack.c.b16 %v2348, %v2346
    %v2391 = vpack.c.b16 %v2351, %v2349
    %v2392 = vpack.c.b16 %v2352, %v2350
    %v2393 = vpack.c.b16 %v2355, %v2353
    %v2394 = vpack.c.b16 %v2356, %v2354
    %v2395 = vpack.c.b16 %v2359, %v2357
    %v2396 = vpack.c.b16 %v2360, %v2358
    %v2397 = vpack.c.b16 %v2363, %v2361
    %v2398 = vpack.c.b16 %v2364, %v2362
    %v2399 = vpack.c.b16 %v2367, %v2365
    %v2400 = vpack.c.b16 %v2368, %v2366
    %v2401 = vpack.c.b16 %v2371, %v2369
    %v2402 = vpack.c.b16 %v2372, %v2370
    %v2403 = vpack.c.b16 %v2375, %v2373
    %v2404 = vpack.c.b16 %v2376, %v2374
    %v2405 = vpack.c.b16 %v2379, %v2377
    %v2406 = vpack.c.b16 %v2380, %v2378
    %v2407 = vpack.c.b16 %v2383, %v2381
    %v2408 = vpack.c.b16 %v2384, %v2382
    %vm2433 = vcmask 523264
    %v2435 = vsel %vm2433, %v2311, 0
    %2437 = vmatpush.bf16.msra.mxu0 %v2399
    %2438 = vmatpush.bf16.msra.mxu0 %v2397
    %2439 = vmatpush.bf16.msra.mxu0 %v2395
    %2440 = vmatpush.bf16.msra.mxu0 %v2393
    %2441 = vmatpush.bf16.msra.mxu0 %v2391
    %2442 = vmatpush.bf16.msra.mxu0 %v2389
    %2443 = vmatpush.bf16.msra.mxu0 %v2387
    %2444 = vmatpush.bf16.msra.mxu0 %v2385
    %2445 = vmatmul.bf16.gmra.mxu0 %v2304
    %v2446 = vpop.f32.mrf.mxu0
    %v2447 = vadd.f32 0.0, %v2446
    %v2448 = vpop.f32.mrf.mxu0
    %2449 = vdwg.mxu0
    %2450 = vmatpush.bf16.msra.mxu0 0
    %2451 = vmatpush.bf16.msra.mxu0 0
    %2452 = vmatpush.bf16.msra.mxu0 0
    %2453 = vmatpush.bf16.msra.mxu0 0
    %2454 = vmatpush.bf16.msra.mxu0 %v2407
    %2455 = vmatpush.bf16.msra.mxu0 %v2405
    %2456 = vmatpush.bf16.msra.mxu0 %v2403
    %2457 = vmatpush.bf16.msra.mxu0 %v2401
    %2458 = vmatmul.bf16.gmra.mxu0 %v2435
    %v2459 = vpop.f32.mrf.mxu0
    %v2460 = vadd.f32 %v2447, %v2459
    %v2461 = vpop.f32.mrf.mxu0
    %2462 = vdwg.mxu0
    %2463 = vmatpush.bf16.msra.mxu0 %v2400
    %2464 = vmatpush.bf16.msra.mxu0 %v2398
    %2465 = vmatpush.bf16.msra.mxu0 %v2396
    %2466 = vmatpush.bf16.msra.mxu0 %v2394
    %2467 = vmatpush.bf16.msra.mxu0 %v2392
    %2468 = vmatpush.bf16.msra.mxu0 %v2390
    %2469 = vmatpush.bf16.msra.mxu0 %v2388
    %2470 = vmatpush.bf16.msra.mxu0 %v2386
    %2471 = vmatmul.bf16.gmra.mxu0 %v2304
    %v2472 = vpop.f32.mrf.mxu0
    %v2473 = vadd.f32 0.0, %v2472
    %v2474 = vpop.f32.mrf.mxu0
    %2475 = vdwg.mxu0
    %2476 = vmatpush.bf16.msra.mxu0 0
    %2477 = vmatpush.bf16.msra.mxu0 0
    %2478 = vmatpush.bf16.msra.mxu0 0
    %2479 = vmatpush.bf16.msra.mxu0 0
    %2480 = vmatpush.bf16.msra.mxu0 %v2408
    %2481 = vmatpush.bf16.msra.mxu0 %v2406
    %2482 = vmatpush.bf16.msra.mxu0 %v2404
    %2483 = vmatpush.bf16.msra.mxu0 %v2402
    %2484 = vmatmul.bf16.gmra.mxu0 %v2435
    %v2485 = vpop.f32.mrf.mxu0
    %v2486 = vadd.f32 %v2473, %v2485
    %v2487 = vpop.f32.mrf.mxu0
    %2488 = vdwg.mxu0
    %v2513 = vunpack.c.l.b16 %v2245
    %v2514 = vunpack.c.h.b16 %v2245
    %v2515 = vunpack.c.l.b16 %v2246
    %v2516 = vunpack.c.h.b16 %v2246
    %v2517 = vunpack.c.l.b16 %v2247
    %v2518 = vunpack.c.h.b16 %v2247
    %v2519 = vunpack.c.l.b16 %v2248
    %v2520 = vunpack.c.h.b16 %v2248
    %v2521 = vunpack.c.l.b16 %v2249
    %v2522 = vunpack.c.h.b16 %v2249
    %v2523 = vunpack.c.l.b16 %v2250
    %v2524 = vunpack.c.h.b16 %v2250
    %v2525 = vunpack.c.l.b16 %v2251
    %v2526 = vunpack.c.h.b16 %v2251
    %v2527 = vunpack.c.l.b16 %v2252
    %v2528 = vunpack.c.h.b16 %v2252
    %v2529 = vunpack.c.l.b16 %v2253
    %v2530 = vunpack.c.h.b16 %v2253
    %v2531 = vunpack.c.l.b16 %v2254
    %v2532 = vunpack.c.h.b16 %v2254
    %v2533 = vunpack.c.l.b16 %v2255
    %v2534 = vunpack.c.h.b16 %v2255
    %v2535 = vunpack.c.l.b16 %v2256
    %v2536 = vunpack.c.h.b16 %v2256
    %v2537 = vunpack.c.l.b16 %v2257
    %v2538 = vunpack.c.h.b16 %v2257
    %v2539 = vunpack.c.l.b16 %v2258
    %v2540 = vunpack.c.h.b16 %v2258
    %v2541 = vunpack.c.l.b16 %v2259
    %v2542 = vunpack.c.h.b16 %v2259
    %v2543 = vunpack.c.l.b16 %v2260
    %v2544 = vunpack.c.h.b16 %v2260
    %v2545 = vunpack.c.l.b16 %v2261
    %v2546 = vunpack.c.h.b16 %v2261
    %v2547 = vunpack.c.l.b16 %v2262
    %v2548 = vunpack.c.h.b16 %v2262
    %v2549 = vunpack.c.l.b16 %v2263
    %v2550 = vunpack.c.h.b16 %v2263
    %v2551 = vunpack.c.l.b16 %v2264
    %v2552 = vunpack.c.h.b16 %v2264
    %v2553 = vunpack.c.l.b16 %v2265
    %v2554 = vunpack.c.h.b16 %v2265
    %v2555 = vunpack.c.l.b16 %v2266
    %v2556 = vunpack.c.h.b16 %v2266
    %v2557 = vunpack.c.l.b16 %v2267
    %v2558 = vunpack.c.h.b16 %v2267
    %v2559 = vunpack.c.l.b16 %v2268
    %v2560 = vunpack.c.h.b16 %v2268
    %v2561 = vpack.c.b16 %v2515, %v2513
    %v2562 = vpack.c.b16 %v2516, %v2514
    %v2563 = vpack.c.b16 %v2519, %v2517
    %v2564 = vpack.c.b16 %v2520, %v2518
    %v2565 = vpack.c.b16 %v2523, %v2521
    %v2566 = vpack.c.b16 %v2524, %v2522
    %v2567 = vpack.c.b16 %v2527, %v2525
    %v2568 = vpack.c.b16 %v2528, %v2526
    %v2569 = vpack.c.b16 %v2531, %v2529
    %v2570 = vpack.c.b16 %v2532, %v2530
    %v2571 = vpack.c.b16 %v2535, %v2533
    %v2572 = vpack.c.b16 %v2536, %v2534
    %v2573 = vpack.c.b16 %v2539, %v2537
    %v2574 = vpack.c.b16 %v2540, %v2538
    %v2575 = vpack.c.b16 %v2543, %v2541
    %v2576 = vpack.c.b16 %v2544, %v2542
    %v2577 = vpack.c.b16 %v2547, %v2545
    %v2578 = vpack.c.b16 %v2548, %v2546
    %v2579 = vpack.c.b16 %v2551, %v2549
    %v2580 = vpack.c.b16 %v2552, %v2550
    %v2581 = vpack.c.b16 %v2555, %v2553
    %v2582 = vpack.c.b16 %v2556, %v2554
    %v2583 = vpack.c.b16 %v2559, %v2557
    %v2584 = vpack.c.b16 %v2560, %v2558
    %v2610 = vsel %vm2433, %v2244, 0
    %2612 = vmatpush.bf16.msra.mxu0 %v2575
    %2613 = vmatpush.bf16.msra.mxu0 %v2573
    %2614 = vmatpush.bf16.msra.mxu0 %v2571
    %2615 = vmatpush.bf16.msra.mxu0 %v2569
    %2616 = vmatpush.bf16.msra.mxu0 %v2567
    %2617 = vmatpush.bf16.msra.mxu0 %v2565
    %2618 = vmatpush.bf16.msra.mxu0 %v2563
    %2619 = vmatpush.bf16.msra.mxu0 %v2561
    %2620 = vmatmul.bf16.gmra.mxu0 %v2243
    %v2621 = vpop.f32.mrf.mxu0
    %v2622 = vadd.f32 %v2460, %v2621
    %v2623 = vpop.f32.mrf.mxu0
    %2624 = vdwg.mxu0
    %2625 = vmatpush.bf16.msra.mxu0 0
    %2626 = vmatpush.bf16.msra.mxu0 0
    %2627 = vmatpush.bf16.msra.mxu0 0
    %2628 = vmatpush.bf16.msra.mxu0 0
    %2629 = vmatpush.bf16.msra.mxu0 %v2583
    %2630 = vmatpush.bf16.msra.mxu0 %v2581
    %2631 = vmatpush.bf16.msra.mxu0 %v2579
    %2632 = vmatpush.bf16.msra.mxu0 %v2577
    %2633 = vmatmul.bf16.gmra.mxu0 %v2610
    %v2634 = vpop.f32.mrf.mxu0
    %v2635 = vadd.f32 %v2622, %v2634
    %v2636 = vpop.f32.mrf.mxu0
    %2637 = vdwg.mxu0
    %2638 = vmatpush.bf16.msra.mxu0 %v2576
    %2639 = vmatpush.bf16.msra.mxu0 %v2574
    %2640 = vmatpush.bf16.msra.mxu0 %v2572
    %2641 = vmatpush.bf16.msra.mxu0 %v2570
    %2642 = vmatpush.bf16.msra.mxu0 %v2568
    %2643 = vmatpush.bf16.msra.mxu0 %v2566
    %2644 = vmatpush.bf16.msra.mxu0 %v2564
    %2645 = vmatpush.bf16.msra.mxu0 %v2562
    %2646 = vmatmul.bf16.gmra.mxu0 %v2243
    %v2647 = vpop.f32.mrf.mxu0
    %v2648 = vadd.f32 %v2486, %v2647
    %v2649 = vpop.f32.mrf.mxu0
    %2650 = vdwg.mxu0
    %2651 = vmatpush.bf16.msra.mxu0 0
    %2652 = vmatpush.bf16.msra.mxu0 0
    %2653 = vmatpush.bf16.msra.mxu0 0
    %2654 = vmatpush.bf16.msra.mxu0 0
    %2655 = vmatpush.bf16.msra.mxu0 %v2584
    %2656 = vmatpush.bf16.msra.mxu0 %v2582
    %2657 = vmatpush.bf16.msra.mxu0 %v2580
    %2658 = vmatpush.bf16.msra.mxu0 %v2578
    %2659 = vmatmul.bf16.gmra.mxu0 %v2610
    %v2660 = vpop.f32.mrf.mxu0
    %v2661 = vadd.f32 %v2648, %v2660
    %v2662 = vpop.f32.mrf.mxu0
    %2663 = vdwg.mxu0
    %v2664 = vld [vmem:[#allocation5] sm:$0x3c]
    %v2665 = vld [vmem:[#allocation5 + $0x8] sm:$0x3c]
    %v2666 = vpack.c.bf16 %v2664, %v2664
    %v2667 = vpack.c.bf16 %v2665, %v2665
    %s2668 = scalar_lea.vmem [#allocation14], 384
    %v2669 = vld [vmem:[%s2668] sm:$0xff]
    %v2670 = vld [vmem:[%s2668 + $0x8] sm:$0xff]
    %v2671 = vld [vmem:[%s2668 + $0x10] sm:$0xff]
    %v2672 = vld [vmem:[%s2668 + $0x18] sm:$0xff]
    %v2673 = vld [vmem:[%s2668 + $0x20] sm:$0xff]
    %v2674 = vld [vmem:[%s2668 + $0x28] sm:$0xff]
    %v2675 = vld [vmem:[%s2668 + $0x30] sm:$0xff]
    %v2676 = vld [vmem:[%s2668 + $0x38] sm:$0xff]
    %v2677 = vld [vmem:[%s2668 + $0x40] sm:$0xff]
    %v2678 = vld [vmem:[%s2668 + $0x48] sm:$0xff]
    %v2679 = vld [vmem:[%s2668 + $0x50] sm:$0xff]
    %v2680 = vld [vmem:[%s2668 + $0x58] sm:$0xff]
    %v2681 = vld [vmem:[%s2668 + $0x60] sm:$0xff]
    %v2682 = vld [vmem:[%s2668 + $0x68] sm:$0xff]
    %v2683 = vld [vmem:[%s2668 + $0x70] sm:$0xff]
    %v2684 = vld [vmem:[%s2668 + $0x78] sm:$0xff]
    %v2685 = vld [vmem:[%s2668 + $0x80] sm:$0xff]
    %v2686 = vld [vmem:[%s2668 + $0x88] sm:$0xff]
    %v2687 = vld [vmem:[%s2668 + $0x90] sm:$0xff]
    %v2688 = vld [vmem:[%s2668 + $0x98] sm:$0xff]
    %v2689 = vld [vmem:[%s2668 + $0xa0] sm:$0xff]
    %v2690 = vld [vmem:[%s2668 + $0xa8] sm:$0xff]
    %v2691 = vld [vmem:[%s2668 + $0xb0] sm:$0xff]
    %v2692 = vld [vmem:[%s2668 + $0xb8] sm:$0xff]
    %v2695 = vrot.slane %v2666, 1
    %v2696 = vrot.slane %v2667, 1
    %v2722 = vunpack.c.l.b16 %v2669
    %v2723 = vunpack.c.h.b16 %v2669
    %v2724 = vunpack.c.l.b16 %v2670
    %v2725 = vunpack.c.h.b16 %v2670
    %v2726 = vunpack.c.l.b16 %v2671
    %v2727 = vunpack.c.h.b16 %v2671
    %v2728 = vunpack.c.l.b16 %v2672
    %v2729 = vunpack.c.h.b16 %v2672
    %v2730 = vunpack.c.l.b16 %v2673
    %v2731 = vunpack.c.h.b16 %v2673
    %v2732 = vunpack.c.l.b16 %v2674
    %v2733 = vunpack.c.h.b16 %v2674
    %v2734 = vunpack.c.l.b16 %v2675
    %v2735 = vunpack.c.h.b16 %v2675
    %v2736 = vunpack.c.l.b16 %v2676
    %v2737 = vunpack.c.h.b16 %v2676
    %v2738 = vunpack.c.l.b16 %v2677
    %v2739 = vunpack.c.h.b16 %v2677
    %v2740 = vunpack.c.l.b16 %v2678
    %v2741 = vunpack.c.h.b16 %v2678
    %v2742 = vunpack.c.l.b16 %v2679
    %v2743 = vunpack.c.h.b16 %v2679
    %v2744 = vunpack.c.l.b16 %v2680
    %v2745 = vunpack.c.h.b16 %v2680
    %v2746 = vunpack.c.l.b16 %v2681
    %v2747 = vunpack.c.h.b16 %v2681
    %v2748 = vunpack.c.l.b16 %v2682
    %v2749 = vunpack.c.h.b16 %v2682
    %v2750 = vunpack.c.l.b16 %v2683
    %v2751 = vunpack.c.h.b16 %v2683
    %v2752 = vunpack.c.l.b16 %v2684
    %v2753 = vunpack.c.h.b16 %v2684
    %v2754 = vunpack.c.l.b16 %v2685
    %v2755 = vunpack.c.h.b16 %v2685
    %v2756 = vunpack.c.l.b16 %v2686
    %v2757 = vunpack.c.h.b16 %v2686
    %v2758 = vunpack.c.l.b16 %v2687
    %v2759 = vunpack.c.h.b16 %v2687
    %v2760 = vunpack.c.l.b16 %v2688
    %v2761 = vunpack.c.h.b16 %v2688
    %v2762 = vunpack.c.l.b16 %v2689
    %v2763 = vunpack.c.h.b16 %v2689
    %v2764 = vunpack.c.l.b16 %v2690
    %v2765 = vunpack.c.h.b16 %v2690
    %v2766 = vunpack.c.l.b16 %v2691
    %v2767 = vunpack.c.h.b16 %v2691
    %v2768 = vunpack.c.l.b16 %v2692
    %v2769 = vunpack.c.h.b16 %v2692
    %v2770 = vpack.c.b16 %v2724, %v2722
    %v2771 = vpack.c.b16 %v2725, %v2723
    %v2772 = vpack.c.b16 %v2728, %v2726
    %v2773 = vpack.c.b16 %v2729, %v2727
    %v2774 = vpack.c.b16 %v2732, %v2730
    %v2775 = vpack.c.b16 %v2733, %v2731
    %v2776 = vpack.c.b16 %v2736, %v2734
    %v2777 = vpack.c.b16 %v2737, %v2735
    %v2778 = vpack.c.b16 %v2740, %v2738
    %v2779 = vpack.c.b16 %v2741, %v2739
    %v2780 = vpack.c.b16 %v2744, %v2742
    %v2781 = vpack.c.b16 %v2745, %v2743
    %v2782 = vpack.c.b16 %v2748, %v2746
    %v2783 = vpack.c.b16 %v2749, %v2747
    %v2784 = vpack.c.b16 %v2752, %v2750
    %v2785 = vpack.c.b16 %v2753, %v2751
    %v2786 = vpack.c.b16 %v2756, %v2754
    %v2787 = vpack.c.b16 %v2757, %v2755
    %v2788 = vpack.c.b16 %v2760, %v2758
    %v2789 = vpack.c.b16 %v2761, %v2759
    %v2790 = vpack.c.b16 %v2764, %v2762
    %v2791 = vpack.c.b16 %v2765, %v2763
    %v2792 = vpack.c.b16 %v2768, %v2766
    %v2793 = vpack.c.b16 %v2769, %v2767
    %v2819 = vsel %vm2433, %v2696, 0
    %2821 = vmatpush.bf16.msra.mxu0 %v2784
    %2822 = vmatpush.bf16.msra.mxu0 %v2782
    %2823 = vmatpush.bf16.msra.mxu0 %v2780
    %2824 = vmatpush.bf16.msra.mxu0 %v2778
    %2825 = vmatpush.bf16.msra.mxu0 %v2776
    %2826 = vmatpush.bf16.msra.mxu0 %v2774
    %2827 = vmatpush.bf16.msra.mxu0 %v2772
    %2828 = vmatpush.bf16.msra.mxu0 %v2770
    %2829 = vmatmul.bf16.gmra.mxu0 %v2695
    %v2830 = vpop.f32.mrf.mxu0
    %v2831 = vadd.f32 0.0, %v2830
    %v2832 = vpop.f32.mrf.mxu0
    %2833 = vdwg.mxu0
    %2834 = vmatpush.bf16.msra.mxu0 0
    %2835 = vmatpush.bf16.msra.mxu0 0
    %2836 = vmatpush.bf16.msra.mxu0 0
    %2837 = vmatpush.bf16.msra.mxu0 0
    %2838 = vmatpush.bf16.msra.mxu0 %v2792
    %2839 = vmatpush.bf16.msra.mxu0 %v2790
    %2840 = vmatpush.bf16.msra.mxu0 %v2788
    %2841 = vmatpush.bf16.msra.mxu0 %v2786
    %2842 = vmatmul.bf16.gmra.mxu0 %v2819
    %v2843 = vpop.f32.mrf.mxu0
    %v2844 = vadd.f32 %v2831, %v2843
    %v2845 = vpop.f32.mrf.mxu0
    %2846 = vdwg.mxu0
    %2847 = vmatpush.bf16.msra.mxu0 %v2785
    %2848 = vmatpush.bf16.msra.mxu0 %v2783
    %2849 = vmatpush.bf16.msra.mxu0 %v2781
    %2850 = vmatpush.bf16.msra.mxu0 %v2779
    %2851 = vmatpush.bf16.msra.mxu0 %v2777
    %2852 = vmatpush.bf16.msra.mxu0 %v2775
    %2853 = vmatpush.bf16.msra.mxu0 %v2773
    %2854 = vmatpush.bf16.msra.mxu0 %v2771
    %2855 = vmatmul.bf16.gmra.mxu0 %v2695
    %v2856 = vpop.f32.mrf.mxu0
    %v2857 = vadd.f32 0.0, %v2856
    %v2858 = vpop.f32.mrf.mxu0
    %2859 = vdwg.mxu0
    %2860 = vmatpush.bf16.msra.mxu0 0
    %2861 = vmatpush.bf16.msra.mxu0 0
    %2862 = vmatpush.bf16.msra.mxu0 0
    %2863 = vmatpush.bf16.msra.mxu0 0
    %2864 = vmatpush.bf16.msra.mxu0 %v2793
    %2865 = vmatpush.bf16.msra.mxu0 %v2791
    %2866 = vmatpush.bf16.msra.mxu0 %v2789
    %2867 = vmatpush.bf16.msra.mxu0 %v2787
    %2868 = vmatmul.bf16.gmra.mxu0 %v2819
    %v2869 = vpop.f32.mrf.mxu0
    %v2870 = vadd.f32 %v2857, %v2869
    %v2871 = vpop.f32.mrf.mxu0
    %2872 = vdwg.mxu0
    %v2873 = vadd.f32 %v2635, %v2844
    %v2874 = vadd.f32 %v2661, %v2870
    %v2875 = vmax.f32 %v2873, %v2874
    %v2876 = vld [vmem:[%s15] sm:$0xf]
    %vm2877 = vcmask 31744
    %v2879 = vsel %vm2877, %v2876, 0
    %vm2881 = vcmask 1043456
    %v2883 = vsel %vm2881, %v2875, 0
    %2885 = vmatpush.msra.mxu0 0.0
    %2886 = vmatpush.msra.mxu0 0.0
    %2887 = vmatpush.msra.mxu0 0.0
    %2888 = vmatpush.msra.mxu0 0.0
    %2889 = vmatpush.msra.mxu0 0.0
    %2890 = vmatpush.msra.mxu0 0.0
    %2891 = vmatpush.msra.mxu0 0.0
    %2892 = vmatpush.msra.mxu0 0.0
    %2893 = vmatpush.msra.mxu0 0.0
    %2894 = vmatpush.msra.mxu0 0.0
    %2895 = vmatpush.msra.mxu0 0.0
    %2896 = vmatpush.msra.mxu0 0.0
    %2897 = vmatpush.msra.mxu0 0.0
    %2898 = vmatpush.msra.mxu0 0.0
    %2899 = vmatpush.msra.mxu0 0.0
    %2900 = vmatpush.msra.mxu0 %v2883
    %2901 = vmatmul.f32.gmra.mxu0 %v2879
    %v2902 = vpop.f32.mrf.mxu0
    %v2903 = vadd.f32 0.0, %v2902
    %2904 = vdwg.mxu0
    %v2906 = vrot.slane %v2903, 2
    %v2908 = vmax.f32 %v2903, %v2906
    %v2909 = vld [vmem:[%s10] sm:$0x1]
    %v2911 = vperm.slane %v2909, 0
    %v2913 = vadd.f32 %v2908, %v2911
    %v2914 = vmax.f32 %v2913, 0.0
    %v2916 = vrot.slane %v2914, 7
    %2917 = vrot.lane.b32.xlu0 %v2916, 64
    %v2918 = vpop.permute.xlu0 %2917
    %v2919 = vrot.slane %v2918, 4
    %v2920 = vsel %vm2433, %v2919, %v2918
    %vm2922 = vcmask 1042945
    %vm2923 = vcmask 522245
    %vm2924 = vmor %vm2923, %vm2922
    %2925 = vst.msk [vmem:[#allocation6] sm:$0x66] %vm2924, %v2920
    %v2926 = vld [vmem:[#allocation6] sm:$0x33]
    %2928 = vst [vmem:[#allocation1] ss:$2 sm:$0xff] %v2926
    %v2929 = vld.sshfl [vmem:[#allocation1] sm:$0xff pattern:$0x75316420]
    %v2930 = vld.sshfl [vmem:[#allocation1 + $0x8] sm:$0xff pattern:$0x75316420]
    %v2933 = vpack.c.bf16 %v2929, %v2929
    %v2934 = vpack.c.bf16 %v2930, %v2930
    %v2935 = vld [vmem:[%s6] sm:$0xff]
    %v2936 = vld [vmem:[%s6 + $0x8] sm:$0xff]
    %v2937 = vld [vmem:[%s6 + $0x10] sm:$0xff]
    %v2938 = vld [vmem:[%s6 + $0x18] sm:$0xff]
    %v2939 = vld [vmem:[%s6 + $0x20] sm:$0xff]
    %v2940 = vld [vmem:[%s6 + $0x28] sm:$0xff]
    %v2941 = vld [vmem:[%s6 + $0x30] sm:$0xff]
    %v2942 = vld [vmem:[%s6 + $0x38] sm:$0xff]
    %v2943 = vld [vmem:[%s6 + $0x40] sm:$0xff]
    %v2944 = vld [vmem:[%s6 + $0x48] sm:$0xff]
    %v2945 = vld [vmem:[%s6 + $0x50] sm:$0xff]
    %v2946 = vld [vmem:[%s6 + $0x58] sm:$0xff]
    %v2947 = vld [vmem:[%s6 + $0x60] sm:$0xff]
    %v2948 = vld [vmem:[%s6 + $0x68] sm:$0xff]
    %v2949 = vld [vmem:[%s6 + $0x70] sm:$0xff]
    %v2950 = vld [vmem:[%s6 + $0x78] sm:$0xff]
    %v2951 = vld [vmem:[%s6 + $0x80] sm:$0xff]
    %v2952 = vld [vmem:[%s6 + $0x88] sm:$0xff]
    %v2953 = vld [vmem:[%s6 + $0x90] sm:$0xff]
    %v2954 = vld [vmem:[%s6 + $0x98] sm:$0xff]
    %v2955 = vld [vmem:[%s6 + $0xa0] sm:$0xff]
    %v2956 = vld [vmem:[%s6 + $0xa8] sm:$0xff]
    %v2957 = vld [vmem:[%s6 + $0xb0] sm:$0xff]
    %v2958 = vld [vmem:[%s6 + $0xb8] sm:$0xff]
    %v2959 = vld [vmem:[%s6 + $0xc0] sm:$0xff]
    %v2960 = vld [vmem:[%s6 + $0xc8] sm:$0xff]
    %v2961 = vld [vmem:[%s6 + $0xd0] sm:$0xff]
    %v2962 = vld [vmem:[%s6 + $0xd8] sm:$0xff]
    %v2963 = vld [vmem:[%s6 + $0xe0] sm:$0xff]
    %v2964 = vld [vmem:[%s6 + $0xe8] sm:$0xff]
    %v2965 = vld [vmem:[%s6 + $0xf0] sm:$0xff]
    %v2966 = vld [vmem:[%s6 + $0xf8] sm:$0xff]
    %v2967 = vld [vmem:[#allocation6] sm:$0x66]
    %2969 = vst [vmem:[#allocation1] ss:$2 sm:$0xff] %v2967
    %v2970 = vld.sshfl [vmem:[#allocation1] sm:$0xff pattern:$0x75316420]
    %v2971 = vld.sshfl [vmem:[#allocation1 + $0x8] sm:$0xff pattern:$0x75316420]
    %v2974 = vpack.c.bf16 %v2970, %v2970
    %v2975 = vpack.c.bf16 %v2971, %v2971
    %s2976 = scalar_lea.vmem %s6, 256
    %v2977 = vld [vmem:[%s2976] sm:$0xff]
    %v2978 = vld [vmem:[%s2976 + $0x8] sm:$0xff]
    %v2979 = vld [vmem:[%s2976 + $0x10] sm:$0xff]
    %v2980 = vld [vmem:[%s2976 + $0x18] sm:$0xff]
    %v2981 = vld [vmem:[%s2976 + $0x20] sm:$0xff]
    %v2982 = vld [vmem:[%s2976 + $0x28] sm:$0xff]
    %v2983 = vld [vmem:[%s2976 + $0x30] sm:$0xff]
    %v2984 = vld [vmem:[%s2976 + $0x38] sm:$0xff]
    %v2985 = vld [vmem:[%s2976 + $0x40] sm:$0xff]
    %v2986 = vld [vmem:[%s2976 + $0x48] sm:$0xff]
    %v2987 = vld [vmem:[%s2976 + $0x50] sm:$0xff]
    %v2988 = vld [vmem:[%s2976 + $0x58] sm:$0xff]
    %v2989 = vld [vmem:[%s2976 + $0x60] sm:$0xff]
    %v2990 = vld [vmem:[%s2976 + $0x68] sm:$0xff]
    %v2991 = vld [vmem:[%s2976 + $0x70] sm:$0xff]
    %v2992 = vld [vmem:[%s2976 + $0x78] sm:$0xff]
    %v2993 = vld [vmem:[%s2976 + $0x80] sm:$0xff]
    %v2994 = vld [vmem:[%s2976 + $0x88] sm:$0xff]
    %v2995 = vld [vmem:[%s2976 + $0x90] sm:$0xff]
    %v2996 = vld [vmem:[%s2976 + $0x98] sm:$0xff]
    %v2997 = vld [vmem:[%s2976 + $0xa0] sm:$0xff]
    %v2998 = vld [vmem:[%s2976 + $0xa8] sm:$0xff]
    %v2999 = vld [vmem:[%s2976 + $0xb0] sm:$0xff]
    %v3000 = vld [vmem:[%s2976 + $0xb8] sm:$0xff]
    %v3001 = vld [vmem:[%s2976 + $0xc0] sm:$0xff]
    %v3002 = vld [vmem:[%s2976 + $0xc8] sm:$0xff]
    %v3003 = vld [vmem:[%s2976 + $0xd0] sm:$0xff]
    %v3004 = vld [vmem:[%s2976 + $0xd8] sm:$0xff]
    %v3005 = vld [vmem:[%s2976 + $0xe0] sm:$0xff]
    %v3006 = vld [vmem:[%s2976 + $0xe8] sm:$0xff]
    %v3007 = vld [vmem:[%s2976 + $0xf0] sm:$0xff]
    %v3008 = vld [vmem:[%s2976 + $0xf8] sm:$0xff]
    %v3010 = vshrl.u32 %v2974, 16
    %v3012 = vshll.u32 %v2974, 16
    %v3014 = vrot.slane %v3012, 1
    %v3015 = vor.u32 %v3010, %v3014
    %v3017 = vshrl.u32 %v2975, 16
    %v3019 = vshll.u32 %v2975, 16
    %v3021 = vrot.slane %v3019, 1
    %v3022 = vor.u32 %v3017, %v3021
    %v3057 = vunpack.c.l.b16 %v2977
    %v3058 = vunpack.c.h.b16 %v2977
    %v3059 = vunpack.c.l.b16 %v2978
    %v3060 = vunpack.c.h.b16 %v2978
    %v3061 = vunpack.c.l.b16 %v2979
    %v3062 = vunpack.c.h.b16 %v2979
    %v3063 = vunpack.c.l.b16 %v2980
    %v3064 = vunpack.c.h.b16 %v2980
    %v3065 = vunpack.c.l.b16 %v2981
    %v3066 = vunpack.c.h.b16 %v2981
    %v3067 = vunpack.c.l.b16 %v2982
    %v3068 = vunpack.c.h.b16 %v2982
    %v3069 = vunpack.c.l.b16 %v2983
    %v3070 = vunpack.c.h.b16 %v2983
    %v3071 = vunpack.c.l.b16 %v2984
    %v3072 = vunpack.c.h.b16 %v2984
    %v3073 = vunpack.c.l.b16 %v2985
    %v3074 = vunpack.c.h.b16 %v2985
    %v3075 = vunpack.c.l.b16 %v2986
    %v3076 = vunpack.c.h.b16 %v2986
    %v3077 = vunpack.c.l.b16 %v2987
    %v3078 = vunpack.c.h.b16 %v2987
    %v3079 = vunpack.c.l.b16 %v2988
    %v3080 = vunpack.c.h.b16 %v2988
    %v3081 = vunpack.c.l.b16 %v2989
    %v3082 = vunpack.c.h.b16 %v2989
    %v3083 = vunpack.c.l.b16 %v2990
    %v3084 = vunpack.c.h.b16 %v2990
    %v3085 = vunpack.c.l.b16 %v2991
    %v3086 = vunpack.c.h.b16 %v2991
    %v3087 = vunpack.c.l.b16 %v2992
    %v3088 = vunpack.c.h.b16 %v2992
    %v3089 = vunpack.c.l.b16 %v2993
    %v3090 = vunpack.c.h.b16 %v2993
    %v3091 = vunpack.c.l.b16 %v2994
    %v3092 = vunpack.c.h.b16 %v2994
    %v3093 = vunpack.c.l.b16 %v2995
    %v3094 = vunpack.c.h.b16 %v2995
    %v3095 = vunpack.c.l.b16 %v2996
    %v3096 = vunpack.c.h.b16 %v2996
    %v3097 = vunpack.c.l.b16 %v2997
    %v3098 = vunpack.c.h.b16 %v2997
    %v3099 = vunpack.c.l.b16 %v2998
    %v3100 = vunpack.c.h.b16 %v2998
    %v3101 = vunpack.c.l.b16 %v2999
    %v3102 = vunpack.c.h.b16 %v2999
    %v3103 = vunpack.c.l.b16 %v3000
    %v3104 = vunpack.c.h.b16 %v3000
    %v3105 = vunpack.c.l.b16 %v3001
    %v3106 = vunpack.c.h.b16 %v3001
    %v3107 = vunpack.c.l.b16 %v3002
    %v3108 = vunpack.c.h.b16 %v3002
    %v3109 = vunpack.c.l.b16 %v3003
    %v3110 = vunpack.c.h.b16 %v3003
    %v3111 = vunpack.c.l.b16 %v3004
    %v3112 = vunpack.c.h.b16 %v3004
    %v3113 = vunpack.c.l.b16 %v3005
    %v3114 = vunpack.c.h.b16 %v3005
    %v3115 = vunpack.c.l.b16 %v3006
    %v3116 = vunpack.c.h.b16 %v3006
    %v3117 = vunpack.c.l.b16 %v3007
    %v3118 = vunpack.c.h.b16 %v3007
    %v3119 = vunpack.c.l.b16 %v3008
    %v3120 = vunpack.c.h.b16 %v3008
    %v3121 = vpack.c.b16 %v3059, %v3057
    %v3122 = vpack.c.b16 %v3060, %v3058
    %v3123 = vpack.c.b16 %v3063, %v3061
    %v3124 = vpack.c.b16 %v3064, %v3062
    %v3125 = vpack.c.b16 %v3067, %v3065
    %v3126 = vpack.c.b16 %v3068, %v3066
    %v3127 = vpack.c.b16 %v3071, %v3069
    %v3128 = vpack.c.b16 %v3072, %v3070
    %v3129 = vpack.c.b16 %v3075, %v3073
    %v3130 = vpack.c.b16 %v3076, %v3074
    %v3131 = vpack.c.b16 %v3079, %v3077
    %v3132 = vpack.c.b16 %v3080, %v3078
    %v3133 = vpack.c.b16 %v3083, %v3081
    %v3134 = vpack.c.b16 %v3084, %v3082
    %v3135 = vpack.c.b16 %v3087, %v3085
    %v3136 = vpack.c.b16 %v3088, %v3086
    %v3137 = vpack.c.b16 %v3091, %v3089
    %v3138 = vpack.c.b16 %v3092, %v3090
    %v3139 = vpack.c.b16 %v3095, %v3093
    %v3140 = vpack.c.b16 %v3096, %v3094
    %v3141 = vpack.c.b16 %v3099, %v3097
    %v3142 = vpack.c.b16 %v3100, %v3098
    %v3143 = vpack.c.b16 %v3103, %v3101
    %v3144 = vpack.c.b16 %v3104, %v3102
    %v3145 = vpack.c.b16 %v3107, %v3105
    %v3146 = vpack.c.b16 %v3108, %v3106
    %v3147 = vpack.c.b16 %v3111, %v3109
    %v3148 = vpack.c.b16 %v3112, %v3110
    %v3149 = vpack.c.b16 %v3115, %v3113
    %v3150 = vpack.c.b16 %v3116, %v3114
    %v3151 = vpack.c.b16 %v3119, %v3117
    %v3152 = vpack.c.b16 %v3120, %v3118
    %3185 = vmatpush.bf16.msra.mxu0 %v3135
    %3186 = vmatpush.bf16.msra.mxu0 %v3133
    %3187 = vmatpush.bf16.msra.mxu0 %v3131
    %3188 = vmatpush.bf16.msra.mxu0 %v3129
    %3189 = vmatpush.bf16.msra.mxu0 %v3127
    %3190 = vmatpush.bf16.msra.mxu0 %v3125
    %3191 = vmatpush.bf16.msra.mxu0 %v3123
    %3192 = vmatpush.bf16.msra.mxu0 %v3121
    %3193 = vmatmul.bf16.gmra.mxu0 %v3015
    %v3194 = vpop.f32.mrf.mxu0
    %v3195 = vadd.f32 0.0, %v3194
    %v3196 = vpop.f32.mrf.mxu0
    %3197 = vdwg.mxu0
    %3198 = vmatpush.bf16.msra.mxu0 %v3151
    %3199 = vmatpush.bf16.msra.mxu0 %v3149
    %3200 = vmatpush.bf16.msra.mxu0 %v3147
    %3201 = vmatpush.bf16.msra.mxu0 %v3145
    %3202 = vmatpush.bf16.msra.mxu0 %v3143
    %3203 = vmatpush.bf16.msra.mxu0 %v3141
    %3204 = vmatpush.bf16.msra.mxu0 %v3139
    %3205 = vmatpush.bf16.msra.mxu0 %v3137
    %3206 = vmatmul.bf16.gmra.mxu0 %v3022
    %v3207 = vpop.f32.mrf.mxu0
    %v3208 = vadd.f32 %v3195, %v3207
    %v3209 = vpop.f32.mrf.mxu0
    %3210 = vdwg.mxu0
    %3211 = vmatpush.bf16.msra.mxu0 %v3136
    %3212 = vmatpush.bf16.msra.mxu0 %v3134
    %3213 = vmatpush.bf16.msra.mxu0 %v3132
    %3214 = vmatpush.bf16.msra.mxu0 %v3130
    %3215 = vmatpush.bf16.msra.mxu0 %v3128
    %3216 = vmatpush.bf16.msra.mxu0 %v3126
    %3217 = vmatpush.bf16.msra.mxu0 %v3124
    %3218 = vmatpush.bf16.msra.mxu0 %v3122
    %3219 = vmatmul.bf16.gmra.mxu0 %v3015
    %v3220 = vpop.f32.mrf.mxu0
    %v3221 = vadd.f32 0.0, %v3220
    %v3222 = vpop.f32.mrf.mxu0
    %3223 = vdwg.mxu0
    %3224 = vmatpush.bf16.msra.mxu0 %v3152
    %3225 = vmatpush.bf16.msra.mxu0 %v3150
    %3226 = vmatpush.bf16.msra.mxu0 %v3148
    %3227 = vmatpush.bf16.msra.mxu0 %v3146
    %3228 = vmatpush.bf16.msra.mxu0 %v3144
    %3229 = vmatpush.bf16.msra.mxu0 %v3142
    %3230 = vmatpush.bf16.msra.mxu0 %v3140
    %3231 = vmatpush.bf16.msra.mxu0 %v3138
    %3232 = vmatmul.bf16.gmra.mxu0 %v3022
    %v3233 = vpop.f32.mrf.mxu0
    %v3234 = vadd.f32 %v3221, %v3233
    %v3235 = vpop.f32.mrf.mxu0
    %3236 = vdwg.mxu0
    %v3269 = vunpack.c.l.b16 %v2935
    %v3270 = vunpack.c.h.b16 %v2935
    %v3271 = vunpack.c.l.b16 %v2936
    %v3272 = vunpack.c.h.b16 %v2936
    %v3273 = vunpack.c.l.b16 %v2937
    %v3274 = vunpack.c.h.b16 %v2937
    %v3275 = vunpack.c.l.b16 %v2938
    %v3276 = vunpack.c.h.b16 %v2938
    %v3277 = vunpack.c.l.b16 %v2939
    %v3278 = vunpack.c.h.b16 %v2939
    %v3279 = vunpack.c.l.b16 %v2940
    %v3280 = vunpack.c.h.b16 %v2940
    %v3281 = vunpack.c.l.b16 %v2941
    %v3282 = vunpack.c.h.b16 %v2941
    %v3283 = vunpack.c.l.b16 %v2942
    %v3284 = vunpack.c.h.b16 %v2942
    %v3285 = vunpack.c.l.b16 %v2943
    %v3286 = vunpack.c.h.b16 %v2943
    %v3287 = vunpack.c.l.b16 %v2944
    %v3288 = vunpack.c.h.b16 %v2944
    %v3289 = vunpack.c.l.b16 %v2945
    %v3290 = vunpack.c.h.b16 %v2945
    %v3291 = vunpack.c.l.b16 %v2946
    %v3292 = vunpack.c.h.b16 %v2946
    %v3293 = vunpack.c.l.b16 %v2947
    %v3294 = vunpack.c.h.b16 %v2947
    %v3295 = vunpack.c.l.b16 %v2948
    %v3296 = vunpack.c.h.b16 %v2948
    %v3297 = vunpack.c.l.b16 %v2949
    %v3298 = vunpack.c.h.b16 %v2949
    %v3299 = vunpack.c.l.b16 %v2950
    %v3300 = vunpack.c.h.b16 %v2950
    %v3301 = vunpack.c.l.b16 %v2951
    %v3302 = vunpack.c.h.b16 %v2951
    %v3303 = vunpack.c.l.b16 %v2952
    %v3304 = vunpack.c.h.b16 %v2952
    %v3305 = vunpack.c.l.b16 %v2953
    %v3306 = vunpack.c.h.b16 %v2953
    %v3307 = vunpack.c.l.b16 %v2954
    %v3308 = vunpack.c.h.b16 %v2954
    %v3309 = vunpack.c.l.b16 %v2955
    %v3310 = vunpack.c.h.b16 %v2955
    %v3311 = vunpack.c.l.b16 %v2956
    %v3312 = vunpack.c.h.b16 %v2956
    %v3313 = vunpack.c.l.b16 %v2957
    %v3314 = vunpack.c.h.b16 %v2957
    %v3315 = vunpack.c.l.b16 %v2958
    %v3316 = vunpack.c.h.b16 %v2958
    %v3317 = vunpack.c.l.b16 %v2959
    %v3318 = vunpack.c.h.b16 %v2959
    %v3319 = vunpack.c.l.b16 %v2960
    %v3320 = vunpack.c.h.b16 %v2960
    %v3321 = vunpack.c.l.b16 %v2961
    %v3322 = vunpack.c.h.b16 %v2961
    %v3323 = vunpack.c.l.b16 %v2962
    %v3324 = vunpack.c.h.b16 %v2962
    %v3325 = vunpack.c.l.b16 %v2963
    %v3326 = vunpack.c.h.b16 %v2963
    %v3327 = vunpack.c.l.b16 %v2964
    %v3328 = vunpack.c.h.b16 %v2964
    %v3329 = vunpack.c.l.b16 %v2965
    %v3330 = vunpack.c.h.b16 %v2965
    %v3331 = vunpack.c.l.b16 %v2966
    %v3332 = vunpack.c.h.b16 %v2966
    %v3333 = vpack.c.b16 %v3271, %v3269
    %v3334 = vpack.c.b16 %v3272, %v3270
    %v3335 = vpack.c.b16 %v3275, %v3273
    %v3336 = vpack.c.b16 %v3276, %v3274
    %v3337 = vpack.c.b16 %v3279, %v3277
    %v3338 = vpack.c.b16 %v3280, %v3278
    %v3339 = vpack.c.b16 %v3283, %v3281
    %v3340 = vpack.c.b16 %v3284, %v3282
    %v3341 = vpack.c.b16 %v3287, %v3285
    %v3342 = vpack.c.b16 %v3288, %v3286
    %v3343 = vpack.c.b16 %v3291, %v3289
    %v3344 = vpack.c.b16 %v3292, %v3290
    %v3345 = vpack.c.b16 %v3295, %v3293
    %v3346 = vpack.c.b16 %v3296, %v3294
    %v3347 = vpack.c.b16 %v3299, %v3297
    %v3348 = vpack.c.b16 %v3300, %v3298
    %v3349 = vpack.c.b16 %v3303, %v3301
    %v3350 = vpack.c.b16 %v3304, %v3302
    %v3351 = vpack.c.b16 %v3307, %v3305
    %v3352 = vpack.c.b16 %v3308, %v3306
    %v3353 = vpack.c.b16 %v3311, %v3309
    %v3354 = vpack.c.b16 %v3312, %v3310
    %v3355 = vpack.c.b16 %v3315, %v3313
    %v3356 = vpack.c.b16 %v3316, %v3314
    %v3357 = vpack.c.b16 %v3319, %v3317
    %v3358 = vpack.c.b16 %v3320, %v3318
    %v3359 = vpack.c.b16 %v3323, %v3321
    %v3360 = vpack.c.b16 %v3324, %v3322
    %v3361 = vpack.c.b16 %v3327, %v3325
    %v3362 = vpack.c.b16 %v3328, %v3326
    %v3363 = vpack.c.b16 %v3331, %v3329
    %v3364 = vpack.c.b16 %v3332, %v3330
    %3397 = vmatpush.bf16.msra.mxu0 %v3347
    %3398 = vmatpush.bf16.msra.mxu0 %v3345
    %3399 = vmatpush.bf16.msra.mxu0 %v3343
    %3400 = vmatpush.bf16.msra.mxu0 %v3341
    %3401 = vmatpush.bf16.msra.mxu0 %v3339
    %3402 = vmatpush.bf16.msra.mxu0 %v3337
    %3403 = vmatpush.bf16.msra.mxu0 %v3335
    %3404 = vmatpush.bf16.msra.mxu0 %v3333
    %3405 = vmatmul.bf16.gmra.mxu0 %v2933
    %v3406 = vpop.f32.mrf.mxu0
    %v3407 = vadd.f32 %v3208, %v3406
    %v3408 = vpop.f32.mrf.mxu0
    %3409 = vdwg.mxu0
    %3410 = vmatpush.bf16.msra.mxu0 %v3363
    %3411 = vmatpush.bf16.msra.mxu0 %v3361
    %3412 = vmatpush.bf16.msra.mxu0 %v3359
    %3413 = vmatpush.bf16.msra.mxu0 %v3357
    %3414 = vmatpush.bf16.msra.mxu0 %v3355
    %3415 = vmatpush.bf16.msra.mxu0 %v3353
    %3416 = vmatpush.bf16.msra.mxu0 %v3351
    %3417 = vmatpush.bf16.msra.mxu0 %v3349
    %3418 = vmatmul.bf16.gmra.mxu0 %v2934
    %v3419 = vpop.f32.mrf.mxu0
    %v3420 = vadd.f32 %v3407, %v3419
    %v3421 = vpop.f32.mrf.mxu0
    %3422 = vdwg.mxu0
    %3423 = vmatpush.bf16.msra.mxu0 %v3348
    %3424 = vmatpush.bf16.msra.mxu0 %v3346
    %3425 = vmatpush.bf16.msra.mxu0 %v3344
    %3426 = vmatpush.bf16.msra.mxu0 %v3342
    %3427 = vmatpush.bf16.msra.mxu0 %v3340
    %3428 = vmatpush.bf16.msra.mxu0 %v3338
    %3429 = vmatpush.bf16.msra.mxu0 %v3336
    %3430 = vmatpush.bf16.msra.mxu0 %v3334
    %3431 = vmatmul.bf16.gmra.mxu0 %v2933
    %v3432 = vpop.f32.mrf.mxu0
    %v3433 = vadd.f32 %v3234, %v3432
    %v3434 = vpop.f32.mrf.mxu0
    %3435 = vdwg.mxu0
    %3436 = vmatpush.bf16.msra.mxu0 %v3364
    %3437 = vmatpush.bf16.msra.mxu0 %v3362
    %3438 = vmatpush.bf16.msra.mxu0 %v3360
    %3439 = vmatpush.bf16.msra.mxu0 %v3358
    %3440 = vmatpush.bf16.msra.mxu0 %v3356
    %3441 = vmatpush.bf16.msra.mxu0 %v3354
    %3442 = vmatpush.bf16.msra.mxu0 %v3352
    %3443 = vmatpush.bf16.msra.mxu0 %v3350
    %3444 = vmatmul.bf16.gmra.mxu0 %v2934
    %v3445 = vpop.f32.mrf.mxu0
    %v3446 = vadd.f32 %v3433, %v3445
    %v3447 = vpop.f32.mrf.mxu0
    %3448 = vdwg.mxu0
    %v3449 = vld [vmem:[#allocation6] sm:$0xcc]
    %3451 = vst [vmem:[#allocation1] ss:$2 sm:$0xff] %v3449
    %v3452 = vld.sshfl [vmem:[#allocation1] sm:$0xff pattern:$0x75316420]
    %v3453 = vld.sshfl [vmem:[#allocation1 + $0x8] sm:$0xff pattern:$0x75316420]
    %v3456 = vpack.c.bf16 %v3452, %v3452
    %v3457 = vpack.c.bf16 %v3453, %v3453
    %s3458 = scalar_lea.vmem %s6, 512
    %v3459 = vld [vmem:[%s3458] sm:$0xff]
    %v3460 = vld [vmem:[%s3458 + $0x8] sm:$0xff]
    %v3461 = vld [vmem:[%s3458 + $0x10] sm:$0xff]
    %v3462 = vld [vmem:[%s3458 + $0x18] sm:$0xff]
    %v3463 = vld [vmem:[%s3458 + $0x20] sm:$0xff]
    %v3464 = vld [vmem:[%s3458 + $0x28] sm:$0xff]
    %v3465 = vld [vmem:[%s3458 + $0x30] sm:$0xff]
    %v3466 = vld [vmem:[%s3458 + $0x38] sm:$0xff]
    %v3467 = vld [vmem:[%s3458 + $0x40] sm:$0xff]
    %v3468 = vld [vmem:[%s3458 + $0x48] sm:$0xff]
    %v3469 = vld [vmem:[%s3458 + $0x50] sm:$0xff]
    %v3470 = vld [vmem:[%s3458 + $0x58] sm:$0xff]
    %v3471 = vld [vmem:[%s3458 + $0x60] sm:$0xff]
    %v3472 = vld [vmem:[%s3458 + $0x68] sm:$0xff]
    %v3473 = vld [vmem:[%s3458 + $0x70] sm:$0xff]
    %v3474 = vld [vmem:[%s3458 + $0x78] sm:$0xff]
    %v3475 = vld [vmem:[%s3458 + $0x80] sm:$0xff]
    %v3476 = vld [vmem:[%s3458 + $0x88] sm:$0xff]
    %v3477 = vld [vmem:[%s3458 + $0x90] sm:$0xff]
    %v3478 = vld [vmem:[%s3458 + $0x98] sm:$0xff]
    %v3479 = vld [vmem:[%s3458 + $0xa0] sm:$0xff]
    %v3480 = vld [vmem:[%s3458 + $0xa8] sm:$0xff]
    %v3481 = vld [vmem:[%s3458 + $0xb0] sm:$0xff]
    %v3482 = vld [vmem:[%s3458 + $0xb8] sm:$0xff]
    %v3483 = vld [vmem:[%s3458 + $0xc0] sm:$0xff]
    %v3484 = vld [vmem:[%s3458 + $0xc8] sm:$0xff]
    %v3485 = vld [vmem:[%s3458 + $0xd0] sm:$0xff]
    %v3486 = vld [vmem:[%s3458 + $0xd8] sm:$0xff]
    %v3487 = vld [vmem:[%s3458 + $0xe0] sm:$0xff]
    %v3488 = vld [vmem:[%s3458 + $0xe8] sm:$0xff]
    %v3489 = vld [vmem:[%s3458 + $0xf0] sm:$0xff]
    %v3490 = vld [vmem:[%s3458 + $0xf8] sm:$0xff]
    %v3493 = vrot.slane %v3456, 1
    %v3494 = vrot.slane %v3457, 1
    %v3529 = vunpack.c.l.b16 %v3459
    %v3530 = vunpack.c.h.b16 %v3459
    %v3531 = vunpack.c.l.b16 %v3460
    %v3532 = vunpack.c.h.b16 %v3460
    %v3533 = vunpack.c.l.b16 %v3461
    %v3534 = vunpack.c.h.b16 %v3461
    %v3535 = vunpack.c.l.b16 %v3462
    %v3536 = vunpack.c.h.b16 %v3462
    %v3537 = vunpack.c.l.b16 %v3463
    %v3538 = vunpack.c.h.b16 %v3463
    %v3539 = vunpack.c.l.b16 %v3464
    %v3540 = vunpack.c.h.b16 %v3464
    %v3541 = vunpack.c.l.b16 %v3465
    %v3542 = vunpack.c.h.b16 %v3465
    %v3543 = vunpack.c.l.b16 %v3466
    %v3544 = vunpack.c.h.b16 %v3466
    %v3545 = vunpack.c.l.b16 %v3467
    %v3546 = vunpack.c.h.b16 %v3467
    %v3547 = vunpack.c.l.b16 %v3468
    %v3548 = vunpack.c.h.b16 %v3468
    %v3549 = vunpack.c.l.b16 %v3469
    %v3550 = vunpack.c.h.b16 %v3469
    %v3551 = vunpack.c.l.b16 %v3470
    %v3552 = vunpack.c.h.b16 %v3470
    %v3553 = vunpack.c.l.b16 %v3471
    %v3554 = vunpack.c.h.b16 %v3471
    %v3555 = vunpack.c.l.b16 %v3472
    %v3556 = vunpack.c.h.b16 %v3472
    %v3557 = vunpack.c.l.b16 %v3473
    %v3558 = vunpack.c.h.b16 %v3473
    %v3559 = vunpack.c.l.b16 %v3474
    %v3560 = vunpack.c.h.b16 %v3474
    %v3561 = vunpack.c.l.b16 %v3475
    %v3562 = vunpack.c.h.b16 %v3475
    %v3563 = vunpack.c.l.b16 %v3476
    %v3564 = vunpack.c.h.b16 %v3476
    %v3565 = vunpack.c.l.b16 %v3477
    %v3566 = vunpack.c.h.b16 %v3477
    %v3567 = vunpack.c.l.b16 %v3478
    %v3568 = vunpack.c.h.b16 %v3478
    %v3569 = vunpack.c.l.b16 %v3479
    %v3570 = vunpack.c.h.b16 %v3479
    %v3571 = vunpack.c.l.b16 %v3480
    %v3572 = vunpack.c.h.b16 %v3480
    %v3573 = vunpack.c.l.b16 %v3481
    %v3574 = vunpack.c.h.b16 %v3481
    %v3575 = vunpack.c.l.b16 %v3482
    %v3576 = vunpack.c.h.b16 %v3482
    %v3577 = vunpack.c.l.b16 %v3483
    %v3578 = vunpack.c.h.b16 %v3483
    %v3579 = vunpack.c.l.b16 %v3484
    %v3580 = vunpack.c.h.b16 %v3484
    %v3581 = vunpack.c.l.b16 %v3485
    %v3582 = vunpack.c.h.b16 %v3485
    %v3583 = vunpack.c.l.b16 %v3486
    %v3584 = vunpack.c.h.b16 %v3486
    %v3585 = vunpack.c.l.b16 %v3487
    %v3586 = vunpack.c.h.b16 %v3487
    %v3587 = vunpack.c.l.b16 %v3488
    %v3588 = vunpack.c.h.b16 %v3488
    %v3589 = vunpack.c.l.b16 %v3489
    %v3590 = vunpack.c.h.b16 %v3489
    %v3591 = vunpack.c.l.b16 %v3490
    %v3592 = vunpack.c.h.b16 %v3490
    %v3593 = vpack.c.b16 %v3531, %v3529
    %v3594 = vpack.c.b16 %v3532, %v3530
    %v3595 = vpack.c.b16 %v3535, %v3533
    %v3596 = vpack.c.b16 %v3536, %v3534
    %v3597 = vpack.c.b16 %v3539, %v3537
    %v3598 = vpack.c.b16 %v3540, %v3538
    %v3599 = vpack.c.b16 %v3543, %v3541
    %v3600 = vpack.c.b16 %v3544, %v3542
    %v3601 = vpack.c.b16 %v3547, %v3545
    %v3602 = vpack.c.b16 %v3548, %v3546
    %v3603 = vpack.c.b16 %v3551, %v3549
    %v3604 = vpack.c.b16 %v3552, %v3550
    %v3605 = vpack.c.b16 %v3555, %v3553
    %v3606 = vpack.c.b16 %v3556, %v3554
    %v3607 = vpack.c.b16 %v3559, %v3557
    %v3608 = vpack.c.b16 %v3560, %v3558
    %v3609 = vpack.c.b16 %v3563, %v3561
    %v3610 = vpack.c.b16 %v3564, %v3562
    %v3611 = vpack.c.b16 %v3567, %v3565
    %v3612 = vpack.c.b16 %v3568, %v3566
    %v3613 = vpack.c.b16 %v3571, %v3569
    %v3614 = vpack.c.b16 %v3572, %v3570
    %v3615 = vpack.c.b16 %v3575, %v3573
    %v3616 = vpack.c.b16 %v3576, %v3574
    %v3617 = vpack.c.b16 %v3579, %v3577
    %v3618 = vpack.c.b16 %v3580, %v3578
    %v3619 = vpack.c.b16 %v3583, %v3581
    %v3620 = vpack.c.b16 %v3584, %v3582
    %v3621 = vpack.c.b16 %v3587, %v3585
    %v3622 = vpack.c.b16 %v3588, %v3586
    %v3623 = vpack.c.b16 %v3591, %v3589
    %v3624 = vpack.c.b16 %v3592, %v3590
    %3657 = vmatpush.bf16.msra.mxu0 %v3607
    %3658 = vmatpush.bf16.msra.mxu0 %v3605
    %3659 = vmatpush.bf16.msra.mxu0 %v3603
    %3660 = vmatpush.bf16.msra.mxu0 %v3601
    %3661 = vmatpush.bf16.msra.mxu0 %v3599
    %3662 = vmatpush.bf16.msra.mxu0 %v3597
    %3663 = vmatpush.bf16.msra.mxu0 %v3595
    %3664 = vmatpush.bf16.msra.mxu0 %v3593
    %3665 = vmatmul.bf16.gmra.mxu0 %v3493
    %v3666 = vpop.f32.mrf.mxu0
    %v3667 = vadd.f32 0.0, %v3666
    %v3668 = vpop.f32.mrf.mxu0
    %3669 = vdwg.mxu0
    %3670 = vmatpush.bf16.msra.mxu0 %v3623
    %3671 = vmatpush.bf16.msra.mxu0 %v3621
    %3672 = vmatpush.bf16.msra.mxu0 %v3619
    %3673 = vmatpush.bf16.msra.mxu0 %v3617
    %3674 = vmatpush.bf16.msra.mxu0 %v3615
    %3675 = vmatpush.bf16.msra.mxu0 %v3613
    %3676 = vmatpush.bf16.msra.mxu0 %v3611
    %3677 = vmatpush.bf16.msra.mxu0 %v3609
    %3678 = vmatmul.bf16.gmra.mxu0 %v3494
    %v3679 = vpop.f32.mrf.mxu0
    %v3680 = vadd.f32 %v3667, %v3679
    %v3681 = vpop.f32.mrf.mxu0
    %3682 = vdwg.mxu0
    %3683 = vmatpush.bf16.msra.mxu0 %v3608
    %3684 = vmatpush.bf16.msra.mxu0 %v3606
    %3685 = vmatpush.bf16.msra.mxu0 %v3604
    %3686 = vmatpush.bf16.msra.mxu0 %v3602
    %3687 = vmatpush.bf16.msra.mxu0 %v3600
    %3688 = vmatpush.bf16.msra.mxu0 %v3598
    %3689 = vmatpush.bf16.msra.mxu0 %v3596
    %3690 = vmatpush.bf16.msra.mxu0 %v3594
    %3691 = vmatmul.bf16.gmra.mxu0 %v3493
    %v3692 = vpop.f32.mrf.mxu0
    %v3693 = vadd.f32 0.0, %v3692
    %v3694 = vpop.f32.mrf.mxu0
    %3695 = vdwg.mxu0
    %3696 = vmatpush.bf16.msra.mxu0 %v3624
    %3697 = vmatpush.bf16.msra.mxu0 %v3622
    %3698 = vmatpush.bf16.msra.mxu0 %v3620
    %3699 = vmatpush.bf16.msra.mxu0 %v3618
    %3700 = vmatpush.bf16.msra.mxu0 %v3616
    %3701 = vmatpush.bf16.msra.mxu0 %v3614
    %3702 = vmatpush.bf16.msra.mxu0 %v3612
    %3703 = vmatpush.bf16.msra.mxu0 %v3610
    %3704 = vmatmul.bf16.gmra.mxu0 %v3494
    %v3705 = vpop.f32.mrf.mxu0
    %v3706 = vadd.f32 %v3693, %v3705
    %v3707 = vpop.f32.mrf.mxu0
    %3708 = vdwg.mxu0
    %v3709 = vadd.f32 %v3420, %v3680
    %v3710 = vadd.f32 %v3446, %v3706
    %v3711 = vld [vmem:[%s11] sm:$0x3]
    %v3713 = vperm.slane %v3711, 0
    %v3714 = vperm.slane %v3711, 1
    %v3717 = vadd.f32 %v3709, %v3713
    %v3718 = vadd.f32 %v3710, %v3714
    %v3719 = vmax.f32 %v3717, 0.0
    %v3720 = vmax.f32 %v3718, 0.0
    %v3721 = vadd.f32 %v3719, %v3720
    %v3723 = vrot.slane %v3719, 1
    %v3725 = vadd.f32 %v3721, %v3723
    %v3727 = vrot.slane %v3720, 1
    %v3729 = vadd.f32 %v3725, %v3727
    %v3730 = vmul.f32 %v3729, 0.25
    %3731 = vst [vmem:[#allocation7] sm:$0x1] %v3730
    %s3732 = scalar_lea.vmem %s1, 32
    %v3733 = vld [vmem:[%s3732] sm:$0xff]
    %v3734 = vld [vmem:[%s3732 + $0x8] sm:$0xff]
    %v3735 = vld [vmem:[%s3732 + $0x10] sm:$0xff]
    %v3736 = vld [vmem:[%s3732 + $0x18] sm:$0xff]
    %3741 = vrot.lane.b32.xlu0 %v3733, 6
    %v3742 = vpop.permute.xlu0 %3741
    %3743 = vrot.lane.b32.xlu0 %v3734, 6
    %v3744 = vpop.permute.xlu0 %3743
    %3745 = vrot.lane.b32.xlu0 %v3735, 6
    %v3746 = vpop.permute.xlu0 %3745
    %3747 = vrot.lane.b32.xlu0 %v3736, 6
    %v3748 = vpop.permute.xlu0 %3747
    %s3753 = scalar_lea.vmem [#allocation2], 40
    %3754 = vst.msk [vmem:[%s3753 + $0x2] sm:$0xff] %vm202, %v3742
    %3755 = vst.msk [vmem:[%s3753 + $0xa] sm:$0xff] %vm202, %v3744
    %3756 = vst.msk [vmem:[%s3753 + $0x12] sm:$0xff] %vm202, %v3746
    %3757 = vst.msk [vmem:[%s3753 + $0x1a] sm:$0xff] %vm202, %v3748
    %v3758 = vld [vmem:[%s3753] sm:$0xff]
    %v3759 = vld [vmem:[%s3753 + $0x8] sm:$0xff]
    %v3760 = vld [vmem:[%s3753 + $0x10] sm:$0xff]
    %v3761 = vld [vmem:[%s3753 + $0x18] sm:$0xff]
    %v3762 = vpack.c.bf16 %v3759, %v3758
    %v3763 = vpack.c.bf16 %v3761, %v3760
    %v3764 = vld [vmem:[#allocation8] sm:$0xff]
    %v3765 = vld [vmem:[#allocation8 + $0x8] sm:$0xff]
    %v3766 = vld [vmem:[#allocation8 + $0x10] sm:$0xff]
    %v3767 = vld [vmem:[#allocation8 + $0x18] sm:$0xff]
    %v3768 = vld [vmem:[#allocation8 + $0x20] sm:$0xff]
    %v3769 = vld [vmem:[#allocation8 + $0x28] sm:$0xff]
    %v3770 = vld [vmem:[#allocation8 + $0x30] sm:$0xff]
    %v3771 = vld [vmem:[#allocation8 + $0x38] sm:$0xff]
    %v3772 = vld [vmem:[#allocation8 + $0x40] sm:$0xff]
    %v3773 = vld [vmem:[#allocation8 + $0x48] sm:$0xff]
    %v3774 = vld [vmem:[#allocation8 + $0x50] sm:$0xff]
    %v3775 = vld [vmem:[#allocation8 + $0x58] sm:$0xff]
    %v3776 = vld [vmem:[#allocation8 + $0x60] sm:$0xff]
    %v3777 = vld [vmem:[#allocation8 + $0x68] sm:$0x33]
    %v3778 = vld [vmem:[%s3753 + $0x1] sm:$0xff]
    %v3779 = vld [vmem:[%s3753 + $0x9] sm:$0xff]
    %v3780 = vld [vmem:[%s3753 + $0x11] sm:$0xff]
    %v3781 = vld [vmem:[%s3753 + $0x19] sm:$0xff]
    %v3782 = vpack.c.bf16 %v3779, %v3778
    %v3783 = vpack.c.bf16 %v3781, %v3780
    %v3784 = vld [vmem:[%s233] sm:$0xff]
    %v3785 = vld [vmem:[%s233 + $0x8] sm:$0xff]
    %v3786 = vld [vmem:[%s233 + $0x10] sm:$0xff]
    %v3787 = vld [vmem:[%s233 + $0x18] sm:$0xff]
    %v3788 = vld [vmem:[%s233 + $0x20] sm:$0xff]
    %v3789 = vld [vmem:[%s233 + $0x28] sm:$0xff]
    %v3790 = vld [vmem:[%s233 + $0x30] sm:$0xff]
    %v3791 = vld [vmem:[%s233 + $0x38] sm:$0xff]
    %v3792 = vld [vmem:[%s233 + $0x40] sm:$0xff]
    %v3793 = vld [vmem:[%s233 + $0x48] sm:$0xff]
    %v3794 = vld [vmem:[%s233 + $0x50] sm:$0xff]
    %v3795 = vld [vmem:[%s233 + $0x58] sm:$0xff]
    %v3796 = vld [vmem:[%s233 + $0x60] sm:$0xff]
    %v3797 = vld [vmem:[%s233 + $0x68] sm:$0x33]
    %v3812 = vunpack.c.l.b16 %v3784
    %v3813 = vunpack.c.h.b16 %v3784
    %v3814 = vunpack.c.l.b16 %v3785
    %v3815 = vunpack.c.h.b16 %v3785
    %v3816 = vunpack.c.l.b16 %v3786
    %v3817 = vunpack.c.h.b16 %v3786
    %v3818 = vunpack.c.l.b16 %v3787
    %v3819 = vunpack.c.h.b16 %v3787
    %v3820 = vunpack.c.l.b16 %v3788
    %v3821 = vunpack.c.h.b16 %v3788
    %v3822 = vunpack.c.l.b16 %v3789
    %v3823 = vunpack.c.h.b16 %v3789
    %v3824 = vunpack.c.l.b16 %v3790
    %v3825 = vunpack.c.h.b16 %v3790
    %v3826 = vunpack.c.l.b16 %v3791
    %v3827 = vunpack.c.h.b16 %v3791
    %v3828 = vunpack.c.l.b16 %v3792
    %v3829 = vunpack.c.h.b16 %v3792
    %v3830 = vunpack.c.l.b16 %v3793
    %v3831 = vunpack.c.h.b16 %v3793
    %v3832 = vunpack.c.l.b16 %v3794
    %v3833 = vunpack.c.h.b16 %v3794
    %v3834 = vunpack.c.l.b16 %v3795
    %v3835 = vunpack.c.h.b16 %v3795
    %v3836 = vunpack.c.l.b16 %v3796
    %v3837 = vunpack.c.h.b16 %v3796
    %v3838 = vunpack.c.l.b16 %v3797
    %v3839 = vunpack.c.h.b16 %v3797
    %v3840 = vpack.c.b16 %v3814, %v3812
    %v3841 = vpack.c.b16 %v3815, %v3813
    %v3842 = vpack.c.b16 %v3818, %v3816
    %v3843 = vpack.c.b16 %v3819, %v3817
    %v3844 = vpack.c.b16 %v3822, %v3820
    %v3845 = vpack.c.b16 %v3823, %v3821
    %v3846 = vpack.c.b16 %v3826, %v3824
    %v3847 = vpack.c.b16 %v3827, %v3825
    %v3848 = vpack.c.b16 %v3830, %v3828
    %v3849 = vpack.c.b16 %v3831, %v3829
    %v3850 = vpack.c.b16 %v3834, %v3832
    %v3851 = vpack.c.b16 %v3835, %v3833
    %v3852 = vpack.c.b16 %v3838, %v3836
    %v3853 = vpack.c.b16 %v3839, %v3837
    %v3867 = vsel %vm139, %v3782, 0
    %v3870 = vsel %vm139, %v3783, 0
    %v3873 = vsel %vm322, %v3852, 0
    %v3876 = vsel %vm322, %v3853, 0
    %3878 = vmatpush.bf16.msra.mxu0 0
    %3879 = vmatpush.bf16.msra.mxu0 %v3873
    %3880 = vmatpush.bf16.msra.mxu0 %v3850
    %3881 = vmatpush.bf16.msra.mxu0 %v3848
    %3882 = vmatpush.bf16.msra.mxu0 %v3846
    %3883 = vmatpush.bf16.msra.mxu0 %v3844
    %3884 = vmatpush.bf16.msra.mxu0 %v3842
    %3885 = vmatpush.bf16.msra.mxu0 %v3840
    %3886 = vmatmul.bf16.gmra.mxu0 %v3867
    %v3887 = vpop.f32.mrf.mxu0
    %v3888 = vadd.f32 0.0, %v3887
    %v3889 = vpop.f32.mrf.mxu0
    %v3890 = vadd.f32 0.0, %v3889
    %3891 = vmatmul.bf16.gmra.mxu0 %v3870
    %v3892 = vpop.f32.mrf.mxu0
    %v3893 = vadd.f32 0.0, %v3892
    %v3894 = vpop.f32.mrf.mxu0
    %v3895 = vadd.f32 0.0, %v3894
    %3896 = vdwg.mxu0
    %3897 = vmatpush.bf16.msra.mxu0 0
    %3898 = vmatpush.bf16.msra.mxu0 %v3876
    %3899 = vmatpush.bf16.msra.mxu0 %v3851
    %3900 = vmatpush.bf16.msra.mxu0 %v3849
    %3901 = vmatpush.bf16.msra.mxu0 %v3847
    %3902 = vmatpush.bf16.msra.mxu0 %v3845
    %3903 = vmatpush.bf16.msra.mxu0 %v3843
    %3904 = vmatpush.bf16.msra.mxu0 %v3841
    %3905 = vmatmul.bf16.gmra.mxu0 %v3867
    %v3906 = vpop.f32.mrf.mxu0
    %v3907 = vadd.f32 0.0, %v3906
    %v3908 = vpop.f32.mrf.mxu0
    %v3909 = vadd.f32 0.0, %v3908
    %3910 = vmatmul.bf16.gmra.mxu0 %v3870
    %v3911 = vpop.f32.mrf.mxu0
    %v3912 = vadd.f32 0.0, %v3911
    %v3913 = vpop.f32.mrf.mxu0
    %v3914 = vadd.f32 0.0, %v3913
    %3915 = vdwg.mxu0
    %v3930 = vunpack.c.l.b16 %v3764
    %v3931 = vunpack.c.h.b16 %v3764
    %v3932 = vunpack.c.l.b16 %v3765
    %v3933 = vunpack.c.h.b16 %v3765
    %v3934 = vunpack.c.l.b16 %v3766
    %v3935 = vunpack.c.h.b16 %v3766
    %v3936 = vunpack.c.l.b16 %v3767
    %v3937 = vunpack.c.h.b16 %v3767
    %v3938 = vunpack.c.l.b16 %v3768
    %v3939 = vunpack.c.h.b16 %v3768
    %v3940 = vunpack.c.l.b16 %v3769
    %v3941 = vunpack.c.h.b16 %v3769
    %v3942 = vunpack.c.l.b16 %v3770
    %v3943 = vunpack.c.h.b16 %v3770
    %v3944 = vunpack.c.l.b16 %v3771
    %v3945 = vunpack.c.h.b16 %v3771
    %v3946 = vunpack.c.l.b16 %v3772
    %v3947 = vunpack.c.h.b16 %v3772
    %v3948 = vunpack.c.l.b16 %v3773
    %v3949 = vunpack.c.h.b16 %v3773
    %v3950 = vunpack.c.l.b16 %v3774
    %v3951 = vunpack.c.h.b16 %v3774
    %v3952 = vunpack.c.l.b16 %v3775
    %v3953 = vunpack.c.h.b16 %v3775
    %v3954 = vunpack.c.l.b16 %v3776
    %v3955 = vunpack.c.h.b16 %v3776
    %v3956 = vunpack.c.l.b16 %v3777
    %v3957 = vunpack.c.h.b16 %v3777
    %v3958 = vpack.c.b16 %v3932, %v3930
    %v3959 = vpack.c.b16 %v3933, %v3931
    %v3960 = vpack.c.b16 %v3936, %v3934
    %v3961 = vpack.c.b16 %v3937, %v3935
    %v3962 = vpack.c.b16 %v3940, %v3938
    %v3963 = vpack.c.b16 %v3941, %v3939
    %v3964 = vpack.c.b16 %v3944, %v3942
    %v3965 = vpack.c.b16 %v3945, %v3943
    %v3966 = vpack.c.b16 %v3948, %v3946
    %v3967 = vpack.c.b16 %v3949, %v3947
    %v3968 = vpack.c.b16 %v3952, %v3950
    %v3969 = vpack.c.b16 %v3953, %v3951
    %v3970 = vpack.c.b16 %v3956, %v3954
    %v3971 = vpack.c.b16 %v3957, %v3955
    %v3985 = vsel %vm139, %v3762, 0
    %v3988 = vsel %vm139, %v3763, 0
    %v3991 = vsel %vm322, %v3970, 0
    %v3994 = vsel %vm322, %v3971, 0
    %3996 = vmatpush.bf16.msra.mxu0 0
    %3997 = vmatpush.bf16.msra.mxu0 %v3991
    %3998 = vmatpush.bf16.msra.mxu0 %v3968
    %3999 = vmatpush.bf16.msra.mxu0 %v3966
    %4000 = vmatpush.bf16.msra.mxu0 %v3964
    %4001 = vmatpush.bf16.msra.mxu0 %v3962
    %4002 = vmatpush.bf16.msra.mxu0 %v3960
    %4003 = vmatpush.bf16.msra.mxu0 %v3958
    %4004 = vmatmul.bf16.gmra.mxu0 %v3985
    %v4005 = vpop.f32.mrf.mxu0
    %v4006 = vadd.f32 %v3888, %v4005
    %v4007 = vpop.f32.mrf.mxu0
    %v4008 = vadd.f32 %v3890, %v4007
    %4009 = vmatmul.bf16.gmra.mxu0 %v3988
    %v4010 = vpop.f32.mrf.mxu0
    %v4011 = vadd.f32 %v3893, %v4010
    %v4012 = vpop.f32.mrf.mxu0
    %v4013 = vadd.f32 %v3895, %v4012
    %4014 = vdwg.mxu0
    %4015 = vmatpush.bf16.msra.mxu0 0
    %4016 = vmatpush.bf16.msra.mxu0 %v3994
    %4017 = vmatpush.bf16.msra.mxu0 %v3969
    %4018 = vmatpush.bf16.msra.mxu0 %v3967
    %4019 = vmatpush.bf16.msra.mxu0 %v3965
    %4020 = vmatpush.bf16.msra.mxu0 %v3963
    %4021 = vmatpush.bf16.msra.mxu0 %v3961
    %4022 = vmatpush.bf16.msra.mxu0 %v3959
    %4023 = vmatmul.bf16.gmra.mxu0 %v3985
    %v4024 = vpop.f32.mrf.mxu0
    %v4025 = vadd.f32 %v3907, %v4024
    %v4026 = vpop.f32.mrf.mxu0
    %v4027 = vadd.f32 %v3909, %v4026
    %4028 = vmatmul.bf16.gmra.mxu0 %v3988
    %v4029 = vpop.f32.mrf.mxu0
    %v4030 = vadd.f32 %v3912, %v4029
    %v4031 = vpop.f32.mrf.mxu0
    %v4032 = vadd.f32 %v3914, %v4031
    %4033 = vdwg.mxu0
    %v4034 = vld [vmem:[%s3753 + $0x2] sm:$0xff]
    %v4035 = vld [vmem:[%s3753 + $0xa] sm:$0xff]
    %v4036 = vld [vmem:[%s3753 + $0x12] sm:$0xff]
    %v4037 = vld [vmem:[%s3753 + $0x1a] sm:$0xff]
    %v4038 = vpack.c.bf16 %v4035, %v4034
    %v4039 = vpack.c.bf16 %v4037, %v4036
    %v4040 = vld [vmem:[%s491] sm:$0xff]
    %v4041 = vld [vmem:[%s491 + $0x8] sm:$0xff]
    %v4042 = vld [vmem:[%s491 + $0x10] sm:$0xff]
    %v4043 = vld [vmem:[%s491 + $0x18] sm:$0xff]
    %v4044 = vld [vmem:[%s491 + $0x20] sm:$0xff]
    %v4045 = vld [vmem:[%s491 + $0x28] sm:$0xff]
    %v4046 = vld [vmem:[%s491 + $0x30] sm:$0xff]
    %v4047 = vld [vmem:[%s491 + $0x38] sm:$0xff]
    %v4048 = vld [vmem:[%s491 + $0x40] sm:$0xff]
    %v4049 = vld [vmem:[%s491 + $0x48] sm:$0xff]
    %v4050 = vld [vmem:[%s491 + $0x50] sm:$0xff]
    %v4051 = vld [vmem:[%s491 + $0x58] sm:$0xff]
    %v4052 = vld [vmem:[%s491 + $0x60] sm:$0xff]
    %v4053 = vld [vmem:[%s491 + $0x68] sm:$0x33]
    %v4068 = vunpack.c.l.b16 %v4040
    %v4069 = vunpack.c.h.b16 %v4040
    %v4070 = vunpack.c.l.b16 %v4041
    %v4071 = vunpack.c.h.b16 %v4041
    %v4072 = vunpack.c.l.b16 %v4042
    %v4073 = vunpack.c.h.b16 %v4042
    %v4074 = vunpack.c.l.b16 %v4043
    %v4075 = vunpack.c.h.b16 %v4043
    %v4076 = vunpack.c.l.b16 %v4044
    %v4077 = vunpack.c.h.b16 %v4044
    %v4078 = vunpack.c.l.b16 %v4045
    %v4079 = vunpack.c.h.b16 %v4045
    %v4080 = vunpack.c.l.b16 %v4046
    %v4081 = vunpack.c.h.b16 %v4046
    %v4082 = vunpack.c.l.b16 %v4047
    %v4083 = vunpack.c.h.b16 %v4047
    %v4084 = vunpack.c.l.b16 %v4048
    %v4085 = vunpack.c.h.b16 %v4048
    %v4086 = vunpack.c.l.b16 %v4049
    %v4087 = vunpack.c.h.b16 %v4049
    %v4088 = vunpack.c.l.b16 %v4050
    %v4089 = vunpack.c.h.b16 %v4050
    %v4090 = vunpack.c.l.b16 %v4051
    %v4091 = vunpack.c.h.b16 %v4051
    %v4092 = vunpack.c.l.b16 %v4052
    %v4093 = vunpack.c.h.b16 %v4052
    %v4094 = vunpack.c.l.b16 %v4053
    %v4095 = vunpack.c.h.b16 %v4053
    %v4096 = vpack.c.b16 %v4070, %v4068
    %v4097 = vpack.c.b16 %v4071, %v4069
    %v4098 = vpack.c.b16 %v4074, %v4072
    %v4099 = vpack.c.b16 %v4075, %v4073
    %v4100 = vpack.c.b16 %v4078, %v4076
    %v4101 = vpack.c.b16 %v4079, %v4077
    %v4102 = vpack.c.b16 %v4082, %v4080
    %v4103 = vpack.c.b16 %v4083, %v4081
    %v4104 = vpack.c.b16 %v4086, %v4084
    %v4105 = vpack.c.b16 %v4087, %v4085
    %v4106 = vpack.c.b16 %v4090, %v4088
    %v4107 = vpack.c.b16 %v4091, %v4089
    %v4108 = vpack.c.b16 %v4094, %v4092
    %v4109 = vpack.c.b16 %v4095, %v4093
    %v4123 = vsel %vm139, %v4038, 0
    %v4126 = vsel %vm139, %v4039, 0
    %v4129 = vsel %vm322, %v4108, 0
    %v4132 = vsel %vm322, %v4109, 0
    %4134 = vmatpush.bf16.msra.mxu0 0
    %4135 = vmatpush.bf16.msra.mxu0 %v4129
    %4136 = vmatpush.bf16.msra.mxu0 %v4106
    %4137 = vmatpush.bf16.msra.mxu0 %v4104
    %4138 = vmatpush.bf16.msra.mxu0 %v4102
    %4139 = vmatpush.bf16.msra.mxu0 %v4100
    %4140 = vmatpush.bf16.msra.mxu0 %v4098
    %4141 = vmatpush.bf16.msra.mxu0 %v4096
    %4142 = vmatmul.bf16.gmra.mxu0 %v4123
    %v4143 = vpop.f32.mrf.mxu0
    %v4144 = vadd.f32 0.0, %v4143
    %v4145 = vpop.f32.mrf.mxu0
    %v4146 = vadd.f32 0.0, %v4145
    %4147 = vmatmul.bf16.gmra.mxu0 %v4126
    %v4148 = vpop.f32.mrf.mxu0
    %v4149 = vadd.f32 0.0, %v4148
    %v4150 = vpop.f32.mrf.mxu0
    %v4151 = vadd.f32 0.0, %v4150
    %4152 = vdwg.mxu0
    %4153 = vmatpush.bf16.msra.mxu0 0
    %4154 = vmatpush.bf16.msra.mxu0 %v4132
    %4155 = vmatpush.bf16.msra.mxu0 %v4107
    %4156 = vmatpush.bf16.msra.mxu0 %v4105
    %4157 = vmatpush.bf16.msra.mxu0 %v4103
    %4158 = vmatpush.bf16.msra.mxu0 %v4101
    %4159 = vmatpush.bf16.msra.mxu0 %v4099
    %4160 = vmatpush.bf16.msra.mxu0 %v4097
    %4161 = vmatmul.bf16.gmra.mxu0 %v4123
    %v4162 = vpop.f32.mrf.mxu0
    %v4163 = vadd.f32 0.0, %v4162
    %v4164 = vpop.f32.mrf.mxu0
    %v4165 = vadd.f32 0.0, %v4164
    %4166 = vmatmul.bf16.gmra.mxu0 %v4126
    %v4167 = vpop.f32.mrf.mxu0
    %v4168 = vadd.f32 0.0, %v4167
    %v4169 = vpop.f32.mrf.mxu0
    %v4170 = vadd.f32 0.0, %v4169
    %4171 = vdwg.mxu0
    %v4172 = vadd.f32 %v4006, %v4144
    %v4173 = vadd.f32 %v4025, %v4163
    %v4174 = vadd.f32 %v4008, %v4146
    %v4175 = vadd.f32 %v4027, %v4165
    %v4176 = vadd.f32 %v4011, %v4149
    %v4177 = vadd.f32 %v4030, %v4168
    %v4178 = vadd.f32 %v4013, %v4151
    %v4179 = vadd.f32 %v4032, %v4170
    %v4180 = vld [vmem:[%s3753 + $0x3] sm:$0xff]
    %v4181 = vld [vmem:[%s3753 + $0xb] sm:$0xff]
    %v4182 = vld [vmem:[%s3753 + $0x13] sm:$0xff]
    %v4183 = vld [vmem:[%s3753 + $0x1b] sm:$0xff]
    %v4184 = vpack.c.bf16 %v4181, %v4180
    %v4185 = vpack.c.bf16 %v4183, %v4182
    %v4186 = vld [vmem:[%s638] sm:$0xff]
    %v4187 = vld [vmem:[%s638 + $0x8] sm:$0xff]
    %v4188 = vld [vmem:[%s638 + $0x10] sm:$0xff]
    %v4189 = vld [vmem:[%s638 + $0x18] sm:$0xff]
    %v4190 = vld [vmem:[%s638 + $0x20] sm:$0xff]
    %v4191 = vld [vmem:[%s638 + $0x28] sm:$0xff]
    %v4192 = vld [vmem:[%s638 + $0x30] sm:$0xff]
    %v4193 = vld [vmem:[%s638 + $0x38] sm:$0xff]
    %v4194 = vld [vmem:[%s638 + $0x40] sm:$0xff]
    %v4195 = vld [vmem:[%s638 + $0x48] sm:$0xff]
    %v4196 = vld [vmem:[%s638 + $0x50] sm:$0xff]
    %v4197 = vld [vmem:[%s638 + $0x58] sm:$0xff]
    %v4198 = vld [vmem:[%s638 + $0x60] sm:$0xff]
    %v4199 = vld [vmem:[%s638 + $0x68] sm:$0x33]
    %v4214 = vunpack.c.l.b16 %v4186
    %v4215 = vunpack.c.h.b16 %v4186
    %v4216 = vunpack.c.l.b16 %v4187
    %v4217 = vunpack.c.h.b16 %v4187
    %v4218 = vunpack.c.l.b16 %v4188
    %v4219 = vunpack.c.h.b16 %v4188
    %v4220 = vunpack.c.l.b16 %v4189
    %v4221 = vunpack.c.h.b16 %v4189
    %v4222 = vunpack.c.l.b16 %v4190
    %v4223 = vunpack.c.h.b16 %v4190
    %v4224 = vunpack.c.l.b16 %v4191
    %v4225 = vunpack.c.h.b16 %v4191
    %v4226 = vunpack.c.l.b16 %v4192
    %v4227 = vunpack.c.h.b16 %v4192
    %v4228 = vunpack.c.l.b16 %v4193
    %v4229 = vunpack.c.h.b16 %v4193
    %v4230 = vunpack.c.l.b16 %v4194
    %v4231 = vunpack.c.h.b16 %v4194
    %v4232 = vunpack.c.l.b16 %v4195
    %v4233 = vunpack.c.h.b16 %v4195
    %v4234 = vunpack.c.l.b16 %v4196
    %v4235 = vunpack.c.h.b16 %v4196
    %v4236 = vunpack.c.l.b16 %v4197
    %v4237 = vunpack.c.h.b16 %v4197
    %v4238 = vunpack.c.l.b16 %v4198
    %v4239 = vunpack.c.h.b16 %v4198
    %v4240 = vunpack.c.l.b16 %v4199
    %v4241 = vunpack.c.h.b16 %v4199
    %v4242 = vpack.c.b16 %v4216, %v4214
    %v4243 = vpack.c.b16 %v4217, %v4215
    %v4244 = vpack.c.b16 %v4220, %v4218
    %v4245 = vpack.c.b16 %v4221, %v4219
    %v4246 = vpack.c.b16 %v4224, %v4222
    %v4247 = vpack.c.b16 %v4225, %v4223
    %v4248 = vpack.c.b16 %v4228, %v4226
    %v4249 = vpack.c.b16 %v4229, %v4227
    %v4250 = vpack.c.b16 %v4232, %v4230
    %v4251 = vpack.c.b16 %v4233, %v4231
    %v4252 = vpack.c.b16 %v4236, %v4234
    %v4253 = vpack.c.b16 %v4237, %v4235
    %v4254 = vpack.c.b16 %v4240, %v4238
    %v4255 = vpack.c.b16 %v4241, %v4239
    %v4269 = vsel %vm139, %v4184, 0
    %v4272 = vsel %vm139, %v4185, 0
    %v4275 = vsel %vm322, %v4254, 0
    %v4278 = vsel %vm322, %v4255, 0
    %4280 = vmatpush.bf16.msra.mxu0 0
    %4281 = vmatpush.bf16.msra.mxu0 %v4275
    %4282 = vmatpush.bf16.msra.mxu0 %v4252
    %4283 = vmatpush.bf16.msra.mxu0 %v4250
    %4284 = vmatpush.bf16.msra.mxu0 %v4248
    %4285 = vmatpush.bf16.msra.mxu0 %v4246
    %4286 = vmatpush.bf16.msra.mxu0 %v4244
    %4287 = vmatpush.bf16.msra.mxu0 %v4242
    %4288 = vmatmul.bf16.gmra.mxu0 %v4269
    %v4289 = vpop.f32.mrf.mxu0
    %v4290 = vadd.f32 0.0, %v4289
    %v4291 = vpop.f32.mrf.mxu0
    %v4292 = vadd.f32 0.0, %v4291
    %4293 = vmatmul.bf16.gmra.mxu0 %v4272
    %v4294 = vpop.f32.mrf.mxu0
    %v4295 = vadd.f32 0.0, %v4294
    %v4296 = vpop.f32.mrf.mxu0
    %v4297 = vadd.f32 0.0, %v4296
    %4298 = vdwg.mxu0
    %4299 = vmatpush.bf16.msra.mxu0 0
    %4300 = vmatpush.bf16.msra.mxu0 %v4278
    %4301 = vmatpush.bf16.msra.mxu0 %v4253
    %4302 = vmatpush.bf16.msra.mxu0 %v4251
    %4303 = vmatpush.bf16.msra.mxu0 %v4249
    %4304 = vmatpush.bf16.msra.mxu0 %v4247
    %4305 = vmatpush.bf16.msra.mxu0 %v4245
    %4306 = vmatpush.bf16.msra.mxu0 %v4243
    %4307 = vmatmul.bf16.gmra.mxu0 %v4269
    %v4308 = vpop.f32.mrf.mxu0
    %v4309 = vadd.f32 0.0, %v4308
    %v4310 = vpop.f32.mrf.mxu0
    %v4311 = vadd.f32 0.0, %v4310
    %4312 = vmatmul.bf16.gmra.mxu0 %v4272
    %v4313 = vpop.f32.mrf.mxu0
    %v4314 = vadd.f32 0.0, %v4313
    %v4315 = vpop.f32.mrf.mxu0
    %v4316 = vadd.f32 0.0, %v4315
    %4317 = vdwg.mxu0
    %v4318 = vadd.f32 %v4172, %v4290
    %v4319 = vadd.f32 %v4173, %v4309
    %v4320 = vadd.f32 %v4174, %v4292
    %v4321 = vadd.f32 %v4175, %v4311
    %v4322 = vadd.f32 %v4176, %v4295
    %v4323 = vadd.f32 %v4177, %v4314
    %v4324 = vadd.f32 %v4178, %v4297
    %v4325 = vadd.f32 %v4179, %v4316
    %v4326 = vld [vmem:[%s3753 + $0x4] sm:$0xff]
    %v4327 = vld [vmem:[%s3753 + $0xc] sm:$0xff]
    %v4328 = vld [vmem:[%s3753 + $0x14] sm:$0xff]
    %v4329 = vld [vmem:[%s3753 + $0x1c] sm:$0xff]
    %v4330 = vpack.c.bf16 %v4327, %v4326
    %v4331 = vpack.c.bf16 %v4329, %v4328
    %v4332 = vld [vmem:[%s785] sm:$0xff]
    %v4333 = vld [vmem:[%s785 + $0x8] sm:$0xff]
    %v4334 = vld [vmem:[%s785 + $0x10] sm:$0xff]
    %v4335 = vld [vmem:[%s785 + $0x18] sm:$0xff]
    %v4336 = vld [vmem:[%s785 + $0x20] sm:$0xff]
    %v4337 = vld [vmem:[%s785 + $0x28] sm:$0xff]
    %v4338 = vld [vmem:[%s785 + $0x30] sm:$0xff]
    %v4339 = vld [vmem:[%s785 + $0x38] sm:$0xff]
    %v4340 = vld [vmem:[%s785 + $0x40] sm:$0xff]
    %v4341 = vld [vmem:[%s785 + $0x48] sm:$0xff]
    %v4342 = vld [vmem:[%s785 + $0x50] sm:$0xff]
    %v4343 = vld [vmem:[%s785 + $0x58] sm:$0xff]
    %v4344 = vld [vmem:[%s785 + $0x60] sm:$0xff]
    %v4345 = vld [vmem:[%s785 + $0x68] sm:$0x33]
    %v4360 = vunpack.c.l.b16 %v4332
    %v4361 = vunpack.c.h.b16 %v4332
    %v4362 = vunpack.c.l.b16 %v4333
    %v4363 = vunpack.c.h.b16 %v4333
    %v4364 = vunpack.c.l.b16 %v4334
    %v4365 = vunpack.c.h.b16 %v4334
    %v4366 = vunpack.c.l.b16 %v4335
    %v4367 = vunpack.c.h.b16 %v4335
    %v4368 = vunpack.c.l.b16 %v4336
    %v4369 = vunpack.c.h.b16 %v4336
    %v4370 = vunpack.c.l.b16 %v4337
    %v4371 = vunpack.c.h.b16 %v4337
    %v4372 = vunpack.c.l.b16 %v4338
    %v4373 = vunpack.c.h.b16 %v4338
    %v4374 = vunpack.c.l.b16 %v4339
    %v4375 = vunpack.c.h.b16 %v4339
    %v4376 = vunpack.c.l.b16 %v4340
    %v4377 = vunpack.c.h.b16 %v4340
    %v4378 = vunpack.c.l.b16 %v4341
    %v4379 = vunpack.c.h.b16 %v4341
    %v4380 = vunpack.c.l.b16 %v4342
    %v4381 = vunpack.c.h.b16 %v4342
    %v4382 = vunpack.c.l.b16 %v4343
    %v4383 = vunpack.c.h.b16 %v4343
    %v4384 = vunpack.c.l.b16 %v4344
    %v4385 = vunpack.c.h.b16 %v4344
    %v4386 = vunpack.c.l.b16 %v4345
    %v4387 = vunpack.c.h.b16 %v4345
    %v4388 = vpack.c.b16 %v4362, %v4360
    %v4389 = vpack.c.b16 %v4363, %v4361
    %v4390 = vpack.c.b16 %v4366, %v4364
    %v4391 = vpack.c.b16 %v4367, %v4365
    %v4392 = vpack.c.b16 %v4370, %v4368
    %v4393 = vpack.c.b16 %v4371, %v4369
    %v4394 = vpack.c.b16 %v4374, %v4372
    %v4395 = vpack.c.b16 %v4375, %v4373
    %v4396 = vpack.c.b16 %v4378, %v4376
    %v4397 = vpack.c.b16 %v4379, %v4377
    %v4398 = vpack.c.b16 %v4382, %v4380
    %v4399 = vpack.c.b16 %v4383, %v4381
    %v4400 = vpack.c.b16 %v4386, %v4384
    %v4401 = vpack.c.b16 %v4387, %v4385
    %v4415 = vsel %vm139, %v4330, 0
    %v4418 = vsel %vm139, %v4331, 0
    %v4421 = vsel %vm322, %v4400, 0
    %v4424 = vsel %vm322, %v4401, 0
    %4426 = vmatpush.bf16.msra.mxu0 0
    %4427 = vmatpush.bf16.msra.mxu0 %v4421
    %4428 = vmatpush.bf16.msra.mxu0 %v4398
    %4429 = vmatpush.bf16.msra.mxu0 %v4396
    %4430 = vmatpush.bf16.msra.mxu0 %v4394
    %4431 = vmatpush.bf16.msra.mxu0 %v4392
    %4432 = vmatpush.bf16.msra.mxu0 %v4390
    %4433 = vmatpush.bf16.msra.mxu0 %v4388
    %4434 = vmatmul.bf16.gmra.mxu0 %v4415
    %v4435 = vpop.f32.mrf.mxu0
    %v4436 = vadd.f32 0.0, %v4435
    %v4437 = vpop.f32.mrf.mxu0
    %v4438 = vadd.f32 0.0, %v4437
    %4439 = vmatmul.bf16.gmra.mxu0 %v4418
    %v4440 = vpop.f32.mrf.mxu0
    %v4441 = vadd.f32 0.0, %v4440
    %v4442 = vpop.f32.mrf.mxu0
    %v4443 = vadd.f32 0.0, %v4442
    %4444 = vdwg.mxu0
    %4445 = vmatpush.bf16.msra.mxu0 0
    %4446 = vmatpush.bf16.msra.mxu0 %v4424
    %4447 = vmatpush.bf16.msra.mxu0 %v4399
    %4448 = vmatpush.bf16.msra.mxu0 %v4397
    %4449 = vmatpush.bf16.msra.mxu0 %v4395
    %4450 = vmatpush.bf16.msra.mxu0 %v4393
    %4451 = vmatpush.bf16.msra.mxu0 %v4391
    %4452 = vmatpush.bf16.msra.mxu0 %v4389
    %4453 = vmatmul.bf16.gmra.mxu0 %v4415
    %v4454 = vpop.f32.mrf.mxu0
    %v4455 = vadd.f32 0.0, %v4454
    %v4456 = vpop.f32.mrf.mxu0
    %v4457 = vadd.f32 0.0, %v4456
    %4458 = vmatmul.bf16.gmra.mxu0 %v4418
    %v4459 = vpop.f32.mrf.mxu0
    %v4460 = vadd.f32 0.0, %v4459
    %v4461 = vpop.f32.mrf.mxu0
    %v4462 = vadd.f32 0.0, %v4461
    %4463 = vdwg.mxu0
    %v4464 = vadd.f32 %v4318, %v4436
    %v4465 = vadd.f32 %v4319, %v4455
    %v4466 = vadd.f32 %v4320, %v4438
    %v4467 = vadd.f32 %v4321, %v4457
    %v4468 = vadd.f32 %v4322, %v4441
    %v4469 = vadd.f32 %v4323, %v4460
    %v4470 = vadd.f32 %v4324, %v4443
    %v4471 = vadd.f32 %v4325, %v4462
    %v4472 = vmax.f32 %v4464, %v4465
    %v4473 = vmax.f32 %v4466, %v4467
    %v4474 = vmax.f32 %v4468, %v4469
    %v4475 = vmax.f32 %v4470, %v4471
    %v4476 = vld [vmem:[%s12] sm:$0xff]
    %v4477 = vld [vmem:[%s12 + $0x8] sm:$0xff]
    %v4478 = vld [vmem:[%s12 + $0x10] sm:$0xff]
    %v4479 = vld [vmem:[%s12 + $0x18] sm:$0xff]
    %v4481 = vsel %vm166, %v4476, 0
    %v4484 = vsel %vm166, %v4477, 0
    %v4487 = vsel %vm166, %v4478, 0
    %v4490 = vsel %vm166, %v4479, 0
    %4492 = vmatpush.msra.mxu0 0.0
    %4493 = vmatpush.msra.mxu0 0.0
    %4494 = vmatpush.msra.mxu0 0.0
    %4495 = vmatpush.msra.mxu0 0.0
    %4496 = vmatpush.msra.mxu0 0.0
    %4497 = vmatpush.msra.mxu0 0.0
    %4498 = vmatpush.msra.mxu0 0.0
    %4499 = vmatpush.msra.mxu0 0.0
    %4500 = vmatpush.msra.mxu0 0.0
    %4501 = vmatpush.msra.mxu0 0.0
    %4502 = vmatpush.msra.mxu0 0.0
    %4503 = vmatpush.msra.mxu0 0.0
    %4504 = vmatpush.msra.mxu0 %v4475
    %4505 = vmatpush.msra.mxu0 %v4474
    %4506 = vmatpush.msra.mxu0 %v4473
    %4507 = vmatpush.msra.mxu0 %v4472
    %4508 = vmatmul.f32.gmra.mxu0 %v4481
    %v4509 = vpop.f32.mrf.mxu0
    %v4510 = vadd.f32 0.0, %v4509
    %4511 = vmatmul.f32.gmra.mxu0 %v4484
    %v4512 = vpop.f32.mrf.mxu0
    %v4513 = vadd.f32 0.0, %v4512
    %4514 = vmatmul.f32.gmra.mxu0 %v4487
    %v4515 = vpop.f32.mrf.mxu0
    %v4516 = vadd.f32 0.0, %v4515
    %4517 = vmatmul.f32.gmra.mxu0 %v4490
    %v4518 = vpop.f32.mrf.mxu0
    %v4519 = vadd.f32 0.0, %v4518
    %4520 = vdwg.mxu0
    %v4521 = vmax.f32 %v4510, %v4516
    %v4522 = vmax.f32 %v4513, %v4519
    %v4523 = vld [vmem:[%s7] sm:$0x1]
    %v4525 = vperm.slane %v4523, 0
    %v4527 = vadd.f32 %v4521, %v4525
    %v4528 = vadd.f32 %v4522, %v4525
    %v4529 = vmax.f32 %v4527, 0.0
    %v4530 = vmax.f32 %v4528, 0.0
    %v4533 = vrot.slane %v4529, 7
    %v4534 = vrot.slane %v4530, 7
    %v4535 = vsel %vm987, %v4533, %v4534
    %4536 = vrot.lane.b32.xlu0 %v4533, 8
    %v4537 = vpop.permute.xlu0 %4536
    %4538 = vrot.lane.b32.xlu0 %v4535, 8
    %v4539 = vpop.permute.xlu0 %4538
    %4540 = vrot.lane.b32.xlu0 %v4534, 8
    %v4541 = vpop.permute.xlu0 %4540
    %s4545 = scalar_lea.vmem [#allocation3], 48
    %4546 = vst.msk [vmem:[%s4545] sm:$0xfe] %vm1000, %v4537
    %4547 = vst.msk [vmem:[%s4545 + $0x8] sm:$0xfe] %vm1002, %v4537
    %4548 = vst.msk [vmem:[%s4545 + $0x10] sm:$0xff] %vm1004, %v4539
    %4549 = vst.msk [vmem:[%s4545 + $0x18] sm:$0xff] %vm1006, %v4539
    %4550 = vst.msk [vmem:[%s4545 + $0x20] sm:$0x1] %vm1008, %v4541
    %4551 = vst.msk [vmem:[%s4545 + $0x28] sm:$0x1] %vm1010, %v4541
    %v4552 = vld [vmem:[%s4545] sm:$0xff]
    %v4553 = vld [vmem:[%s4545 + $0x8] sm:$0xff]
    %v4554 = vld [vmem:[%s4545 + $0x10] sm:$0xff]
    %v4555 = vld [vmem:[%s4545 + $0x18] sm:$0xff]
    %v4556 = vpack.c.bf16 %v4554, %v4552
    %v4557 = vpack.c.bf16 %v4555, %v4553
    %v4558 = vld [vmem:[#allocation11] sm:$0xff]
    %v4559 = vld [vmem:[#allocation11 + $0x8] sm:$0xff]
    %v4560 = vld [vmem:[#allocation11 + $0x10] sm:$0xff]
    %v4561 = vld [vmem:[#allocation11 + $0x18] sm:$0xff]
    %v4562 = vld [vmem:[#allocation11 + $0x20] sm:$0xff]
    %v4563 = vld [vmem:[#allocation11 + $0x28] sm:$0xff]
    %v4564 = vld [vmem:[#allocation11 + $0x30] sm:$0xff]
    %v4565 = vld [vmem:[#allocation11 + $0x38] sm:$0xff]
    %v4566 = vld [vmem:[#allocation11 + $0x40] sm:$0xff]
    %v4567 = vld [vmem:[#allocation11 + $0x48] sm:$0xff]
    %v4568 = vld [vmem:[#allocation11 + $0x50] sm:$0xff]
    %v4569 = vld [vmem:[#allocation11 + $0x58] sm:$0xff]
    %v4570 = vld [vmem:[#allocation11 + $0x60] sm:$0xff]
    %v4571 = vld [vmem:[#allocation11 + $0x68] sm:$0xff]
    %v4572 = vld [vmem:[#allocation11 + $0x70] sm:$0xff]
    %v4573 = vld [vmem:[#allocation11 + $0x78] sm:$0xff]
    %v4574 = vld [vmem:[#allocation11 + $0x80] sm:$0xff]
    %v4575 = vld [vmem:[#allocation11 + $0x88] sm:$0xff]
    %v4576 = vld [vmem:[%s4545] sm:$0xfe]
    %v4577 = vld [vmem:[%s4545 + $0x8] sm:$0xfe]
    %v4578 = vld [vmem:[%s4545 + $0x20] sm:$0x1]
    %v4579 = vld [vmem:[%s4545 + $0x28] sm:$0x1]
    %v4580 = vpack.c.bf16 %v4554, %v4576
    %v4581 = vpack.c.bf16 %v4555, %v4577
    %v4582 = vpack.c.bf16 %v4578, %v4578
    %v4583 = vpack.c.bf16 %v4579, %v4579
    %v4584 = vld [vmem:[%s1044] sm:$0xff]
    %v4585 = vld [vmem:[%s1044 + $0x8] sm:$0xff]
    %v4586 = vld [vmem:[%s1044 + $0x10] sm:$0xff]
    %v4587 = vld [vmem:[%s1044 + $0x18] sm:$0xff]
    %v4588 = vld [vmem:[%s1044 + $0x20] sm:$0xff]
    %v4589 = vld [vmem:[%s1044 + $0x28] sm:$0xff]
    %v4590 = vld [vmem:[%s1044 + $0x30] sm:$0xff]
    %v4591 = vld [vmem:[%s1044 + $0x38] sm:$0xff]
    %v4592 = vld [vmem:[%s1044 + $0x40] sm:$0xff]
    %v4593 = vld [vmem:[%s1044 + $0x48] sm:$0xff]
    %v4594 = vld [vmem:[%s1044 + $0x50] sm:$0xff]
    %v4595 = vld [vmem:[%s1044 + $0x58] sm:$0xff]
    %v4596 = vld [vmem:[%s1044 + $0x60] sm:$0xff]
    %v4597 = vld [vmem:[%s1044 + $0x68] sm:$0xff]
    %v4598 = vld [vmem:[%s1044 + $0x70] sm:$0xff]
    %v4599 = vld [vmem:[%s1044 + $0x78] sm:$0xff]
    %v4600 = vld [vmem:[%s1044 + $0x80] sm:$0xff]
    %v4601 = vld [vmem:[%s1044 + $0x88] sm:$0xff]
    %v4603 = vshrl.u32 %v4580, 16
    %v4605 = vshll.u32 %v4580, 16
    %v4607 = vrot.slane %v4605, 1
    %v4608 = vor.u32 %v4603, %v4607
    %v4610 = vshll.u32 %v4582, 16
    %v4612 = vrot.slane %v4610, 1
    %v4613 = vsel %vm1063, %v4608, %v4612
    %v4615 = vshrl.u32 %v4581, 16
    %v4617 = vshll.u32 %v4581, 16
    %v4619 = vrot.slane %v4617, 1
    %v4620 = vor.u32 %v4615, %v4619
    %v4622 = vshll.u32 %v4583, 16
    %v4624 = vrot.slane %v4622, 1
    %v4625 = vsel %vm1063, %v4620, %v4624
    %v4645 = vunpack.c.l.b16 %v4584
    %v4646 = vunpack.c.h.b16 %v4584
    %v4647 = vunpack.c.l.b16 %v4585
    %v4648 = vunpack.c.h.b16 %v4585
    %v4649 = vunpack.c.l.b16 %v4586
    %v4650 = vunpack.c.h.b16 %v4586
    %v4651 = vunpack.c.l.b16 %v4587
    %v4652 = vunpack.c.h.b16 %v4587
    %v4653 = vunpack.c.l.b16 %v4588
    %v4654 = vunpack.c.h.b16 %v4588
    %v4655 = vunpack.c.l.b16 %v4589
    %v4656 = vunpack.c.h.b16 %v4589
    %v4657 = vunpack.c.l.b16 %v4590
    %v4658 = vunpack.c.h.b16 %v4590
    %v4659 = vunpack.c.l.b16 %v4591
    %v4660 = vunpack.c.h.b16 %v4591
    %v4661 = vunpack.c.l.b16 %v4592
    %v4662 = vunpack.c.h.b16 %v4592
    %v4663 = vunpack.c.l.b16 %v4593
    %v4664 = vunpack.c.h.b16 %v4593
    %v4665 = vunpack.c.l.b16 %v4594
    %v4666 = vunpack.c.h.b16 %v4594
    %v4667 = vunpack.c.l.b16 %v4595
    %v4668 = vunpack.c.h.b16 %v4595
    %v4669 = vunpack.c.l.b16 %v4596
    %v4670 = vunpack.c.h.b16 %v4596
    %v4671 = vunpack.c.l.b16 %v4597
    %v4672 = vunpack.c.h.b16 %v4597
    %v4673 = vunpack.c.l.b16 %v4598
    %v4674 = vunpack.c.h.b16 %v4598
    %v4675 = vunpack.c.l.b16 %v4599
    %v4676 = vunpack.c.h.b16 %v4599
    %v4677 = vunpack.c.l.b16 %v4600
    %v4678 = vunpack.c.h.b16 %v4600
    %v4679 = vunpack.c.l.b16 %v4601
    %v4680 = vunpack.c.h.b16 %v4601
    %v4681 = vpack.c.b16 %v4647, %v4645
    %v4682 = vpack.c.b16 %v4648, %v4646
    %v4683 = vpack.c.b16 %v4651, %v4649
    %v4684 = vpack.c.b16 %v4652, %v4650
    %v4685 = vpack.c.b16 %v4655, %v4653
    %v4686 = vpack.c.b16 %v4656, %v4654
    %v4687 = vpack.c.b16 %v4659, %v4657
    %v4688 = vpack.c.b16 %v4660, %v4658
    %v4689 = vpack.c.b16 %v4663, %v4661
    %v4690 = vpack.c.b16 %v4664, %v4662
    %v4691 = vpack.c.b16 %v4667, %v4665
    %v4692 = vpack.c.b16 %v4668, %v4666
    %v4693 = vpack.c.b16 %v4671, %v4669
    %v4694 = vpack.c.b16 %v4672, %v4670
    %v4695 = vpack.c.b16 %v4675, %v4673
    %v4696 = vpack.c.b16 %v4676, %v4674
    %v4697 = vpack.c.b16 %v4679, %v4677
    %v4698 = vpack.c.b16 %v4680, %v4678
    %v4718 = vsel %vm152, %v4625, 0
    %4720 = vmatpush.bf16.msra.mxu0 %v4695
    %4721 = vmatpush.bf16.msra.mxu0 %v4693
    %4722 = vmatpush.bf16.msra.mxu0 %v4691
    %4723 = vmatpush.bf16.msra.mxu0 %v4689
    %4724 = vmatpush.bf16.msra.mxu0 %v4687
    %4725 = vmatpush.bf16.msra.mxu0 %v4685
    %4726 = vmatpush.bf16.msra.mxu0 %v4683
    %4727 = vmatpush.bf16.msra.mxu0 %v4681
    %4728 = vmatmul.bf16.gmra.mxu0 %v4613
    %v4729 = vpop.f32.mrf.mxu0
    %v4730 = vadd.f32 0.0, %v4729
    %v4731 = vpop.f32.mrf.mxu0
    %v4732 = vadd.f32 0.0, %v4731
    %4733 = vdwg.mxu0
    %4734 = vmatpush.bf16.msra.mxu0 0
    %4735 = vmatpush.bf16.msra.mxu0 0
    %4736 = vmatpush.bf16.msra.mxu0 0
    %4737 = vmatpush.bf16.msra.mxu0 0
    %4738 = vmatpush.bf16.msra.mxu0 0
    %4739 = vmatpush.bf16.msra.mxu0 0
    %4740 = vmatpush.bf16.msra.mxu0 0
    %4741 = vmatpush.bf16.msra.mxu0 %v4697
    %4742 = vmatmul.bf16.gmra.mxu0 %v4718
    %v4743 = vpop.f32.mrf.mxu0
    %v4744 = vadd.f32 %v4730, %v4743
    %v4745 = vpop.f32.mrf.mxu0
    %v4746 = vadd.f32 %v4732, %v4745
    %4747 = vdwg.mxu0
    %4748 = vmatpush.bf16.msra.mxu0 %v4696
    %4749 = vmatpush.bf16.msra.mxu0 %v4694
    %4750 = vmatpush.bf16.msra.mxu0 %v4692
    %4751 = vmatpush.bf16.msra.mxu0 %v4690
    %4752 = vmatpush.bf16.msra.mxu0 %v4688
    %4753 = vmatpush.bf16.msra.mxu0 %v4686
    %4754 = vmatpush.bf16.msra.mxu0 %v4684
    %4755 = vmatpush.bf16.msra.mxu0 %v4682
    %4756 = vmatmul.bf16.gmra.mxu0 %v4613
    %v4757 = vpop.f32.mrf.mxu0
    %v4758 = vadd.f32 0.0, %v4757
    %v4759 = vpop.f32.mrf.mxu0
    %v4760 = vadd.f32 0.0, %v4759
    %4761 = vdwg.mxu0
    %4762 = vmatpush.bf16.msra.mxu0 0
    %4763 = vmatpush.bf16.msra.mxu0 0
    %4764 = vmatpush.bf16.msra.mxu0 0
    %4765 = vmatpush.bf16.msra.mxu0 0
    %4766 = vmatpush.bf16.msra.mxu0 0
    %4767 = vmatpush.bf16.msra.mxu0 0
    %4768 = vmatpush.bf16.msra.mxu0 0
    %4769 = vmatpush.bf16.msra.mxu0 %v4698
    %4770 = vmatmul.bf16.gmra.mxu0 %v4718
    %v4771 = vpop.f32.mrf.mxu0
    %v4772 = vadd.f32 %v4758, %v4771
    %v4773 = vpop.f32.mrf.mxu0
    %v4774 = vadd.f32 %v4760, %v4773
    %4775 = vdwg.mxu0
    %v4794 = vunpack.c.l.b16 %v4558
    %v4795 = vunpack.c.h.b16 %v4558
    %v4796 = vunpack.c.l.b16 %v4559
    %v4797 = vunpack.c.h.b16 %v4559
    %v4798 = vunpack.c.l.b16 %v4560
    %v4799 = vunpack.c.h.b16 %v4560
    %v4800 = vunpack.c.l.b16 %v4561
    %v4801 = vunpack.c.h.b16 %v4561
    %v4802 = vunpack.c.l.b16 %v4562
    %v4803 = vunpack.c.h.b16 %v4562
    %v4804 = vunpack.c.l.b16 %v4563
    %v4805 = vunpack.c.h.b16 %v4563
    %v4806 = vunpack.c.l.b16 %v4564
    %v4807 = vunpack.c.h.b16 %v4564
    %v4808 = vunpack.c.l.b16 %v4565
    %v4809 = vunpack.c.h.b16 %v4565
    %v4810 = vunpack.c.l.b16 %v4566
    %v4811 = vunpack.c.h.b16 %v4566
    %v4812 = vunpack.c.l.b16 %v4567
    %v4813 = vunpack.c.h.b16 %v4567
    %v4814 = vunpack.c.l.b16 %v4568
    %v4815 = vunpack.c.h.b16 %v4568
    %v4816 = vunpack.c.l.b16 %v4569
    %v4817 = vunpack.c.h.b16 %v4569
    %v4818 = vunpack.c.l.b16 %v4570
    %v4819 = vunpack.c.h.b16 %v4570
    %v4820 = vunpack.c.l.b16 %v4571
    %v4821 = vunpack.c.h.b16 %v4571
    %v4822 = vunpack.c.l.b16 %v4572
    %v4823 = vunpack.c.h.b16 %v4572
    %v4824 = vunpack.c.l.b16 %v4573
    %v4825 = vunpack.c.h.b16 %v4573
    %v4826 = vunpack.c.l.b16 %v4574
    %v4827 = vunpack.c.h.b16 %v4574
    %v4828 = vunpack.c.l.b16 %v4575
    %v4829 = vunpack.c.h.b16 %v4575
    %v4830 = vpack.c.b16 %v4796, %v4794
    %v4831 = vpack.c.b16 %v4797, %v4795
    %v4832 = vpack.c.b16 %v4800, %v4798
    %v4833 = vpack.c.b16 %v4801, %v4799
    %v4834 = vpack.c.b16 %v4804, %v4802
    %v4835 = vpack.c.b16 %v4805, %v4803
    %v4836 = vpack.c.b16 %v4808, %v4806
    %v4837 = vpack.c.b16 %v4809, %v4807
    %v4838 = vpack.c.b16 %v4812, %v4810
    %v4839 = vpack.c.b16 %v4813, %v4811
    %v4840 = vpack.c.b16 %v4816, %v4814
    %v4841 = vpack.c.b16 %v4817, %v4815
    %v4842 = vpack.c.b16 %v4820, %v4818
    %v4843 = vpack.c.b16 %v4821, %v4819
    %v4844 = vpack.c.b16 %v4824, %v4822
    %v4845 = vpack.c.b16 %v4825, %v4823
    %v4846 = vpack.c.b16 %v4828, %v4826
    %v4847 = vpack.c.b16 %v4829, %v4827
    %v4867 = vsel %vm152, %v4557, 0
    %4869 = vmatpush.bf16.msra.mxu0 %v4844
    %4870 = vmatpush.bf16.msra.mxu0 %v4842
    %4871 = vmatpush.bf16.msra.mxu0 %v4840
    %4872 = vmatpush.bf16.msra.mxu0 %v4838
    %4873 = vmatpush.bf16.msra.mxu0 %v4836
    %4874 = vmatpush.bf16.msra.mxu0 %v4834
    %4875 = vmatpush.bf16.msra.mxu0 %v4832
    %4876 = vmatpush.bf16.msra.mxu0 %v4830
    %4877 = vmatmul.bf16.gmra.mxu0 %v4556
    %v4878 = vpop.f32.mrf.mxu0
    %v4879 = vadd.f32 %v4744, %v4878
    %v4880 = vpop.f32.mrf.mxu0
    %v4881 = vadd.f32 %v4746, %v4880
    %4882 = vdwg.mxu0
    %4883 = vmatpush.bf16.msra.mxu0 0
    %4884 = vmatpush.bf16.msra.mxu0 0
    %4885 = vmatpush.bf16.msra.mxu0 0
    %4886 = vmatpush.bf16.msra.mxu0 0
    %4887 = vmatpush.bf16.msra.mxu0 0
    %4888 = vmatpush.bf16.msra.mxu0 0
    %4889 = vmatpush.bf16.msra.mxu0 0
    %4890 = vmatpush.bf16.msra.mxu0 %v4846
    %4891 = vmatmul.bf16.gmra.mxu0 %v4867
    %v4892 = vpop.f32.mrf.mxu0
    %v4893 = vadd.f32 %v4879, %v4892
    %v4894 = vpop.f32.mrf.mxu0
    %v4895 = vadd.f32 %v4881, %v4894
    %4896 = vdwg.mxu0
    %4897 = vmatpush.bf16.msra.mxu0 %v4845
    %4898 = vmatpush.bf16.msra.mxu0 %v4843
    %4899 = vmatpush.bf16.msra.mxu0 %v4841
    %4900 = vmatpush.bf16.msra.mxu0 %v4839
    %4901 = vmatpush.bf16.msra.mxu0 %v4837
    %4902 = vmatpush.bf16.msra.mxu0 %v4835
    %4903 = vmatpush.bf16.msra.mxu0 %v4833
    %4904 = vmatpush.bf16.msra.mxu0 %v4831
    %4905 = vmatmul.bf16.gmra.mxu0 %v4556
    %v4906 = vpop.f32.mrf.mxu0
    %v4907 = vadd.f32 %v4772, %v4906
    %v4908 = vpop.f32.mrf.mxu0
    %v4909 = vadd.f32 %v4774, %v4908
    %4910 = vdwg.mxu0
    %4911 = vmatpush.bf16.msra.mxu0 0
    %4912 = vmatpush.bf16.msra.mxu0 0
    %4913 = vmatpush.bf16.msra.mxu0 0
    %4914 = vmatpush.bf16.msra.mxu0 0
    %4915 = vmatpush.bf16.msra.mxu0 0
    %4916 = vmatpush.bf16.msra.mxu0 0
    %4917 = vmatpush.bf16.msra.mxu0 0
    %4918 = vmatpush.bf16.msra.mxu0 %v4847
    %4919 = vmatmul.bf16.gmra.mxu0 %v4867
    %v4920 = vpop.f32.mrf.mxu0
    %v4921 = vadd.f32 %v4907, %v4920
    %v4922 = vpop.f32.mrf.mxu0
    %v4923 = vadd.f32 %v4909, %v4922
    %4924 = vdwg.mxu0
    %v4925 = vld [vmem:[%s4545] sm:$0xfc]
    %v4926 = vld [vmem:[%s4545 + $0x8] sm:$0xfc]
    %v4927 = vld [vmem:[%s4545 + $0x20] sm:$0x3]
    %v4928 = vld [vmem:[%s4545 + $0x28] sm:$0x3]
    %v4929 = vpack.c.bf16 %v4554, %v4925
    %v4930 = vpack.c.bf16 %v4555, %v4926
    %v4931 = vpack.c.bf16 %v4927, %v4927
    %v4932 = vpack.c.bf16 %v4928, %v4928
    %v4933 = vld [vmem:[%s1395] sm:$0xff]
    %v4934 = vld [vmem:[%s1395 + $0x8] sm:$0xff]
    %v4935 = vld [vmem:[%s1395 + $0x10] sm:$0xff]
    %v4936 = vld [vmem:[%s1395 + $0x18] sm:$0xff]
    %v4937 = vld [vmem:[%s1395 + $0x20] sm:$0xff]
    %v4938 = vld [vmem:[%s1395 + $0x28] sm:$0xff]
    %v4939 = vld [vmem:[%s1395 + $0x30] sm:$0xff]
    %v4940 = vld [vmem:[%s1395 + $0x38] sm:$0xff]
    %v4941 = vld [vmem:[%s1395 + $0x40] sm:$0xff]
    %v4942 = vld [vmem:[%s1395 + $0x48] sm:$0xff]
    %v4943 = vld [vmem:[%s1395 + $0x50] sm:$0xff]
    %v4944 = vld [vmem:[%s1395 + $0x58] sm:$0xff]
    %v4945 = vld [vmem:[%s1395 + $0x60] sm:$0xff]
    %v4946 = vld [vmem:[%s1395 + $0x68] sm:$0xff]
    %v4947 = vld [vmem:[%s1395 + $0x70] sm:$0xff]
    %v4948 = vld [vmem:[%s1395 + $0x78] sm:$0xff]
    %v4949 = vld [vmem:[%s1395 + $0x80] sm:$0xff]
    %v4950 = vld [vmem:[%s1395 + $0x88] sm:$0xff]
    %v4955 = vrot.slane %v4929, 1
    %v4956 = vrot.slane %v4931, 1
    %v4957 = vsel %vm1418, %v4955, %v4956
    %v4958 = vrot.slane %v4930, 1
    %v4959 = vrot.slane %v4932, 1
    %v4960 = vsel %vm1418, %v4958, %v4959
    %v4980 = vunpack.c.l.b16 %v4933
    %v4981 = vunpack.c.h.b16 %v4933
    %v4982 = vunpack.c.l.b16 %v4934
    %v4983 = vunpack.c.h.b16 %v4934
    %v4984 = vunpack.c.l.b16 %v4935
    %v4985 = vunpack.c.h.b16 %v4935
    %v4986 = vunpack.c.l.b16 %v4936
    %v4987 = vunpack.c.h.b16 %v4936
    %v4988 = vunpack.c.l.b16 %v4937
    %v4989 = vunpack.c.h.b16 %v4937
    %v4990 = vunpack.c.l.b16 %v4938
    %v4991 = vunpack.c.h.b16 %v4938
    %v4992 = vunpack.c.l.b16 %v4939
    %v4993 = vunpack.c.h.b16 %v4939
    %v4994 = vunpack.c.l.b16 %v4940
    %v4995 = vunpack.c.h.b16 %v4940
    %v4996 = vunpack.c.l.b16 %v4941
    %v4997 = vunpack.c.h.b16 %v4941
    %v4998 = vunpack.c.l.b16 %v4942
    %v4999 = vunpack.c.h.b16 %v4942
    %v5000 = vunpack.c.l.b16 %v4943
    %v5001 = vunpack.c.h.b16 %v4943
    %v5002 = vunpack.c.l.b16 %v4944
    %v5003 = vunpack.c.h.b16 %v4944
    %v5004 = vunpack.c.l.b16 %v4945
    %v5005 = vunpack.c.h.b16 %v4945
    %v5006 = vunpack.c.l.b16 %v4946
    %v5007 = vunpack.c.h.b16 %v4946
    %v5008 = vunpack.c.l.b16 %v4947
    %v5009 = vunpack.c.h.b16 %v4947
    %v5010 = vunpack.c.l.b16 %v4948
    %v5011 = vunpack.c.h.b16 %v4948
    %v5012 = vunpack.c.l.b16 %v4949
    %v5013 = vunpack.c.h.b16 %v4949
    %v5014 = vunpack.c.l.b16 %v4950
    %v5015 = vunpack.c.h.b16 %v4950
    %v5016 = vpack.c.b16 %v4982, %v4980
    %v5017 = vpack.c.b16 %v4983, %v4981
    %v5018 = vpack.c.b16 %v4986, %v4984
    %v5019 = vpack.c.b16 %v4987, %v4985
    %v5020 = vpack.c.b16 %v4990, %v4988
    %v5021 = vpack.c.b16 %v4991, %v4989
    %v5022 = vpack.c.b16 %v4994, %v4992
    %v5023 = vpack.c.b16 %v4995, %v4993
    %v5024 = vpack.c.b16 %v4998, %v4996
    %v5025 = vpack.c.b16 %v4999, %v4997
    %v5026 = vpack.c.b16 %v5002, %v5000
    %v5027 = vpack.c.b16 %v5003, %v5001
    %v5028 = vpack.c.b16 %v5006, %v5004
    %v5029 = vpack.c.b16 %v5007, %v5005
    %v5030 = vpack.c.b16 %v5010, %v5008
    %v5031 = vpack.c.b16 %v5011, %v5009
    %v5032 = vpack.c.b16 %v5014, %v5012
    %v5033 = vpack.c.b16 %v5015, %v5013
    %v5053 = vsel %vm152, %v4960, 0
    %5055 = vmatpush.bf16.msra.mxu0 %v5030
    %5056 = vmatpush.bf16.msra.mxu0 %v5028
    %5057 = vmatpush.bf16.msra.mxu0 %v5026
    %5058 = vmatpush.bf16.msra.mxu0 %v5024
    %5059 = vmatpush.bf16.msra.mxu0 %v5022
    %5060 = vmatpush.bf16.msra.mxu0 %v5020
    %5061 = vmatpush.bf16.msra.mxu0 %v5018
    %5062 = vmatpush.bf16.msra.mxu0 %v5016
    %5063 = vmatmul.bf16.gmra.mxu0 %v4957
    %v5064 = vpop.f32.mrf.mxu0
    %v5065 = vadd.f32 0.0, %v5064
    %v5066 = vpop.f32.mrf.mxu0
    %v5067 = vadd.f32 0.0, %v5066
    %5068 = vdwg.mxu0
    %5069 = vmatpush.bf16.msra.mxu0 0
    %5070 = vmatpush.bf16.msra.mxu0 0
    %5071 = vmatpush.bf16.msra.mxu0 0
    %5072 = vmatpush.bf16.msra.mxu0 0
    %5073 = vmatpush.bf16.msra.mxu0 0
    %5074 = vmatpush.bf16.msra.mxu0 0
    %5075 = vmatpush.bf16.msra.mxu0 0
    %5076 = vmatpush.bf16.msra.mxu0 %v5032
    %5077 = vmatmul.bf16.gmra.mxu0 %v5053
    %v5078 = vpop.f32.mrf.mxu0
    %v5079 = vadd.f32 %v5065, %v5078
    %v5080 = vpop.f32.mrf.mxu0
    %v5081 = vadd.f32 %v5067, %v5080
    %5082 = vdwg.mxu0
    %5083 = vmatpush.bf16.msra.mxu0 %v5031
    %5084 = vmatpush.bf16.msra.mxu0 %v5029
    %5085 = vmatpush.bf16.msra.mxu0 %v5027
    %5086 = vmatpush.bf16.msra.mxu0 %v5025
    %5087 = vmatpush.bf16.msra.mxu0 %v5023
    %5088 = vmatpush.bf16.msra.mxu0 %v5021
    %5089 = vmatpush.bf16.msra.mxu0 %v5019
    %5090 = vmatpush.bf16.msra.mxu0 %v5017
    %5091 = vmatmul.bf16.gmra.mxu0 %v4957
    %v5092 = vpop.f32.mrf.mxu0
    %v5093 = vadd.f32 0.0, %v5092
    %v5094 = vpop.f32.mrf.mxu0
    %v5095 = vadd.f32 0.0, %v5094
    %5096 = vdwg.mxu0
    %5097 = vmatpush.bf16.msra.mxu0 0
    %5098 = vmatpush.bf16.msra.mxu0 0
    %5099 = vmatpush.bf16.msra.mxu0 0
    %5100 = vmatpush.bf16.msra.mxu0 0
    %5101 = vmatpush.bf16.msra.mxu0 0
    %5102 = vmatpush.bf16.msra.mxu0 0
    %5103 = vmatpush.bf16.msra.mxu0 0
    %5104 = vmatpush.bf16.msra.mxu0 %v5033
    %5105 = vmatmul.bf16.gmra.mxu0 %v5053
    %v5106 = vpop.f32.mrf.mxu0
    %v5107 = vadd.f32 %v5093, %v5106
    %v5108 = vpop.f32.mrf.mxu0
    %v5109 = vadd.f32 %v5095, %v5108
    %5110 = vdwg.mxu0
    %v5111 = vadd.f32 %v4893, %v5079
    %v5112 = vadd.f32 %v4921, %v5107
    %v5113 = vadd.f32 %v4895, %v5081
    %v5114 = vadd.f32 %v4923, %v5109
    %v5115 = vmax.f32 %v5111, %v5112
    %v5116 = vmax.f32 %v5113, %v5114
    %v5117 = vld [vmem:[%s13] sm:$0xff]
    %v5118 = vld [vmem:[%s13 + $0x8] sm:$0xff]
    %v5120 = vsel %vm152, %v5117, 0
    %v5123 = vsel %vm152, %v5118, 0
    %5125 = vmatpush.msra.mxu0 0.0
    %5126 = vmatpush.msra.mxu0 0.0
    %5127 = vmatpush.msra.mxu0 0.0
    %5128 = vmatpush.msra.mxu0 0.0
    %5129 = vmatpush.msra.mxu0 0.0
    %5130 = vmatpush.msra.mxu0 0.0
    %5131 = vmatpush.msra.mxu0 0.0
    %5132 = vmatpush.msra.mxu0 0.0
    %5133 = vmatpush.msra.mxu0 0.0
    %5134 = vmatpush.msra.mxu0 0.0
    %5135 = vmatpush.msra.mxu0 0.0
    %5136 = vmatpush.msra.mxu0 0.0
    %5137 = vmatpush.msra.mxu0 0.0
    %5138 = vmatpush.msra.mxu0 0.0
    %5139 = vmatpush.msra.mxu0 %v5116
    %5140 = vmatpush.msra.mxu0 %v5115
    %5141 = vmatmul.f32.gmra.mxu0 %v5120
    %v5142 = vpop.f32.mrf.mxu0
    %v5143 = vadd.f32 0.0, %v5142
    %5144 = vmatmul.f32.gmra.mxu0 %v5123
    %v5145 = vpop.f32.mrf.mxu0
    %v5146 = vadd.f32 0.0, %v5145
    %5147 = vdwg.mxu0
    %v5148 = vmax.f32 %v5143, %v5146
    %v5149 = vld [vmem:[%s8] sm:$0x1]
    %v5151 = vperm.slane %v5149, 0
    %v5153 = vadd.f32 %v5148, %v5151
    %v5154 = vmax.f32 %v5153, 0.0
    %v5156 = vrot.slane %v5154, 7
    %5157 = vrot.lane.b32.xlu0 %v5156, 16
    %v5158 = vpop.permute.xlu0 %5157
    %s5160 = scalar_lea.vmem [#allocation4], 32
    %5161 = vst.msk [vmem:[%s5160] sm:$0xfe] %vm1624, %v5158
    %5162 = vst.msk [vmem:[%s5160 + $0x8] sm:$0xfe] %vm1626, %v5158
    %5163 = vst.msk [vmem:[%s5160 + $0x10] sm:$0x1] %vm1628, %v5158
    %5164 = vst.msk [vmem:[%s5160 + $0x18] sm:$0x1] %vm1630, %v5158
    %v5165 = vld [vmem:[%s5160] sm:$0xff]
    %v5166 = vld [vmem:[%s5160 + $0x8] sm:$0xff]
    %v5167 = vpack.c.bf16 %v5165, %v5165
    %v5168 = vpack.c.bf16 %v5166, %v5166
    %v5169 = vld [vmem:[#allocation13] sm:$0xff]
    %v5170 = vld [vmem:[#allocation13 + $0x8] sm:$0xff]
    %v5171 = vld [vmem:[#allocation13 + $0x10] sm:$0xff]
    %v5172 = vld [vmem:[#allocation13 + $0x18] sm:$0xff]
    %v5173 = vld [vmem:[#allocation13 + $0x20] sm:$0xff]
    %v5174 = vld [vmem:[#allocation13 + $0x28] sm:$0xff]
    %v5175 = vld [vmem:[#allocation13 + $0x30] sm:$0xff]
    %v5176 = vld [vmem:[#allocation13 + $0x38] sm:$0xff]
    %v5177 = vld [vmem:[#allocation13 + $0x40] sm:$0xff]
    %v5178 = vld [vmem:[#allocation13 + $0x48] sm:$0xff]
    %v5179 = vld [vmem:[#allocation13 + $0x50] sm:$0xff]
    %v5180 = vld [vmem:[#allocation13 + $0x58] sm:$0xff]
    %v5181 = vld [vmem:[#allocation13 + $0x60] sm:$0xff]
    %v5182 = vld [vmem:[#allocation13 + $0x68] sm:$0xff]
    %v5183 = vld [vmem:[#allocation13 + $0x70] sm:$0xff]
    %v5184 = vld [vmem:[#allocation13 + $0x78] sm:$0xff]
    %v5185 = vld [vmem:[#allocation13 + $0x80] sm:$0xff]
    %v5186 = vld [vmem:[#allocation13 + $0x88] sm:$0xff]
    %v5187 = vld [vmem:[#allocation13 + $0x90] sm:$0xff]
    %v5188 = vld [vmem:[#allocation13 + $0x98] sm:$0xff]
    %v5189 = vld [vmem:[%s5160] sm:$0xfe]
    %v5190 = vld [vmem:[%s5160 + $0x8] sm:$0xfe]
    %v5191 = vld [vmem:[%s5160 + $0x10] sm:$0x1]
    %v5192 = vld [vmem:[%s5160 + $0x18] sm:$0x1]
    %v5193 = vpack.c.bf16 %v5191, %v5189
    %v5194 = vpack.c.bf16 %v5192, %v5190
    %v5195 = vld [vmem:[%s1662] sm:$0xff]
    %v5196 = vld [vmem:[%s1662 + $0x8] sm:$0xff]
    %v5197 = vld [vmem:[%s1662 + $0x10] sm:$0xff]
    %v5198 = vld [vmem:[%s1662 + $0x18] sm:$0xff]
    %v5199 = vld [vmem:[%s1662 + $0x20] sm:$0xff]
    %v5200 = vld [vmem:[%s1662 + $0x28] sm:$0xff]
    %v5201 = vld [vmem:[%s1662 + $0x30] sm:$0xff]
    %v5202 = vld [vmem:[%s1662 + $0x38] sm:$0xff]
    %v5203 = vld [vmem:[%s1662 + $0x40] sm:$0xff]
    %v5204 = vld [vmem:[%s1662 + $0x48] sm:$0xff]
    %v5205 = vld [vmem:[%s1662 + $0x50] sm:$0xff]
    %v5206 = vld [vmem:[%s1662 + $0x58] sm:$0xff]
    %v5207 = vld [vmem:[%s1662 + $0x60] sm:$0xff]
    %v5208 = vld [vmem:[%s1662 + $0x68] sm:$0xff]
    %v5209 = vld [vmem:[%s1662 + $0x70] sm:$0xff]
    %v5210 = vld [vmem:[%s1662 + $0x78] sm:$0xff]
    %v5211 = vld [vmem:[%s1662 + $0x80] sm:$0xff]
    %v5212 = vld [vmem:[%s1662 + $0x88] sm:$0xff]
    %v5213 = vld [vmem:[%s1662 + $0x90] sm:$0xff]
    %v5214 = vld [vmem:[%s1662 + $0x98] sm:$0xff]
    %v5216 = vshrl.u32 %v5193, 16
    %v5218 = vshll.u32 %v5193, 16
    %v5220 = vrot.slane %v5218, 1
    %v5221 = vor.u32 %v5216, %v5220
    %v5223 = vshrl.u32 %v5194, 16
    %v5225 = vshll.u32 %v5194, 16
    %v5227 = vrot.slane %v5225, 1
    %v5228 = vor.u32 %v5223, %v5227
    %v5250 = vunpack.c.l.b16 %v5195
    %v5251 = vunpack.c.h.b16 %v5195
    %v5252 = vunpack.c.l.b16 %v5196
    %v5253 = vunpack.c.h.b16 %v5196
    %v5254 = vunpack.c.l.b16 %v5197
    %v5255 = vunpack.c.h.b16 %v5197
    %v5256 = vunpack.c.l.b16 %v5198
    %v5257 = vunpack.c.h.b16 %v5198
    %v5258 = vunpack.c.l.b16 %v5199
    %v5259 = vunpack.c.h.b16 %v5199
    %v5260 = vunpack.c.l.b16 %v5200
    %v5261 = vunpack.c.h.b16 %v5200
    %v5262 = vunpack.c.l.b16 %v5201
    %v5263 = vunpack.c.h.b16 %v5201
    %v5264 = vunpack.c.l.b16 %v5202
    %v5265 = vunpack.c.h.b16 %v5202
    %v5266 = vunpack.c.l.b16 %v5203
    %v5267 = vunpack.c.h.b16 %v5203
    %v5268 = vunpack.c.l.b16 %v5204
    %v5269 = vunpack.c.h.b16 %v5204
    %v5270 = vunpack.c.l.b16 %v5205
    %v5271 = vunpack.c.h.b16 %v5205
    %v5272 = vunpack.c.l.b16 %v5206
    %v5273 = vunpack.c.h.b16 %v5206
    %v5274 = vunpack.c.l.b16 %v5207
    %v5275 = vunpack.c.h.b16 %v5207
    %v5276 = vunpack.c.l.b16 %v5208
    %v5277 = vunpack.c.h.b16 %v5208
    %v5278 = vunpack.c.l.b16 %v5209
    %v5279 = vunpack.c.h.b16 %v5209
    %v5280 = vunpack.c.l.b16 %v5210
    %v5281 = vunpack.c.h.b16 %v5210
    %v5282 = vunpack.c.l.b16 %v5211
    %v5283 = vunpack.c.h.b16 %v5211
    %v5284 = vunpack.c.l.b16 %v5212
    %v5285 = vunpack.c.h.b16 %v5212
    %v5286 = vunpack.c.l.b16 %v5213
    %v5287 = vunpack.c.h.b16 %v5213
    %v5288 = vunpack.c.l.b16 %v5214
    %v5289 = vunpack.c.h.b16 %v5214
    %v5290 = vpack.c.b16 %v5252, %v5250
    %v5291 = vpack.c.b16 %v5253, %v5251
    %v5292 = vpack.c.b16 %v5256, %v5254
    %v5293 = vpack.c.b16 %v5257, %v5255
    %v5294 = vpack.c.b16 %v5260, %v5258
    %v5295 = vpack.c.b16 %v5261, %v5259
    %v5296 = vpack.c.b16 %v5264, %v5262
    %v5297 = vpack.c.b16 %v5265, %v5263
    %v5298 = vpack.c.b16 %v5268, %v5266
    %v5299 = vpack.c.b16 %v5269, %v5267
    %v5300 = vpack.c.b16 %v5272, %v5270
    %v5301 = vpack.c.b16 %v5273, %v5271
    %v5302 = vpack.c.b16 %v5276, %v5274
    %v5303 = vpack.c.b16 %v5277, %v5275
    %v5304 = vpack.c.b16 %v5280, %v5278
    %v5305 = vpack.c.b16 %v5281, %v5279
    %v5306 = vpack.c.b16 %v5284, %v5282
    %v5307 = vpack.c.b16 %v5285, %v5283
    %v5308 = vpack.c.b16 %v5288, %v5286
    %v5309 = vpack.c.b16 %v5289, %v5287
    %v5331 = vsel %vm166, %v5228, 0
    %5333 = vmatpush.bf16.msra.mxu0 %v5304
    %5334 = vmatpush.bf16.msra.mxu0 %v5302
    %5335 = vmatpush.bf16.msra.mxu0 %v5300
    %5336 = vmatpush.bf16.msra.mxu0 %v5298
    %5337 = vmatpush.bf16.msra.mxu0 %v5296
    %5338 = vmatpush.bf16.msra.mxu0 %v5294
    %5339 = vmatpush.bf16.msra.mxu0 %v5292
    %5340 = vmatpush.bf16.msra.mxu0 %v5290
    %5341 = vmatmul.bf16.gmra.mxu0 %v5221
    %v5342 = vpop.f32.mrf.mxu0
    %v5343 = vadd.f32 0.0, %v5342
    %v5344 = vpop.f32.mrf.mxu0
    %5345 = vdwg.mxu0
    %5346 = vmatpush.bf16.msra.mxu0 0
    %5347 = vmatpush.bf16.msra.mxu0 0
    %5348 = vmatpush.bf16.msra.mxu0 0
    %5349 = vmatpush.bf16.msra.mxu0 0
    %5350 = vmatpush.bf16.msra.mxu0 0
    %5351 = vmatpush.bf16.msra.mxu0 0
    %5352 = vmatpush.bf16.msra.mxu0 %v5308
    %5353 = vmatpush.bf16.msra.mxu0 %v5306
    %5354 = vmatmul.bf16.gmra.mxu0 %v5331
    %v5355 = vpop.f32.mrf.mxu0
    %v5356 = vadd.f32 %v5343, %v5355
    %v5357 = vpop.f32.mrf.mxu0
    %5358 = vdwg.mxu0
    %5359 = vmatpush.bf16.msra.mxu0 %v5305
    %5360 = vmatpush.bf16.msra.mxu0 %v5303
    %5361 = vmatpush.bf16.msra.mxu0 %v5301
    %5362 = vmatpush.bf16.msra.mxu0 %v5299
    %5363 = vmatpush.bf16.msra.mxu0 %v5297
    %5364 = vmatpush.bf16.msra.mxu0 %v5295
    %5365 = vmatpush.bf16.msra.mxu0 %v5293
    %5366 = vmatpush.bf16.msra.mxu0 %v5291
    %5367 = vmatmul.bf16.gmra.mxu0 %v5221
    %v5368 = vpop.f32.mrf.mxu0
    %v5369 = vadd.f32 0.0, %v5368
    %v5370 = vpop.f32.mrf.mxu0
    %5371 = vdwg.mxu0
    %5372 = vmatpush.bf16.msra.mxu0 0
    %5373 = vmatpush.bf16.msra.mxu0 0
    %5374 = vmatpush.bf16.msra.mxu0 0
    %5375 = vmatpush.bf16.msra.mxu0 0
    %5376 = vmatpush.bf16.msra.mxu0 0
    %5377 = vmatpush.bf16.msra.mxu0 0
    %5378 = vmatpush.bf16.msra.mxu0 %v5309
    %5379 = vmatpush.bf16.msra.mxu0 %v5307
    %5380 = vmatmul.bf16.gmra.mxu0 %v5331
    %v5381 = vpop.f32.mrf.mxu0
    %v5382 = vadd.f32 %v5369, %v5381
    %v5383 = vpop.f32.mrf.mxu0
    %5384 = vdwg.mxu0
    %v5405 = vunpack.c.l.b16 %v5169
    %v5406 = vunpack.c.h.b16 %v5169
    %v5407 = vunpack.c.l.b16 %v5170
    %v5408 = vunpack.c.h.b16 %v5170
    %v5409 = vunpack.c.l.b16 %v5171
    %v5410 = vunpack.c.h.b16 %v5171
    %v5411 = vunpack.c.l.b16 %v5172
    %v5412 = vunpack.c.h.b16 %v5172
    %v5413 = vunpack.c.l.b16 %v5173
    %v5414 = vunpack.c.h.b16 %v5173
    %v5415 = vunpack.c.l.b16 %v5174
    %v5416 = vunpack.c.h.b16 %v5174
    %v5417 = vunpack.c.l.b16 %v5175
    %v5418 = vunpack.c.h.b16 %v5175
    %v5419 = vunpack.c.l.b16 %v5176
    %v5420 = vunpack.c.h.b16 %v5176
    %v5421 = vunpack.c.l.b16 %v5177
    %v5422 = vunpack.c.h.b16 %v5177
    %v5423 = vunpack.c.l.b16 %v5178
    %v5424 = vunpack.c.h.b16 %v5178
    %v5425 = vunpack.c.l.b16 %v5179
    %v5426 = vunpack.c.h.b16 %v5179
    %v5427 = vunpack.c.l.b16 %v5180
    %v5428 = vunpack.c.h.b16 %v5180
    %v5429 = vunpack.c.l.b16 %v5181
    %v5430 = vunpack.c.h.b16 %v5181
    %v5431 = vunpack.c.l.b16 %v5182
    %v5432 = vunpack.c.h.b16 %v5182
    %v5433 = vunpack.c.l.b16 %v5183
    %v5434 = vunpack.c.h.b16 %v5183
    %v5435 = vunpack.c.l.b16 %v5184
    %v5436 = vunpack.c.h.b16 %v5184
    %v5437 = vunpack.c.l.b16 %v5185
    %v5438 = vunpack.c.h.b16 %v5185
    %v5439 = vunpack.c.l.b16 %v5186
    %v5440 = vunpack.c.h.b16 %v5186
    %v5441 = vunpack.c.l.b16 %v5187
    %v5442 = vunpack.c.h.b16 %v5187
    %v5443 = vunpack.c.l.b16 %v5188
    %v5444 = vunpack.c.h.b16 %v5188
    %v5445 = vpack.c.b16 %v5407, %v5405
    %v5446 = vpack.c.b16 %v5408, %v5406
    %v5447 = vpack.c.b16 %v5411, %v5409
    %v5448 = vpack.c.b16 %v5412, %v5410
    %v5449 = vpack.c.b16 %v5415, %v5413
    %v5450 = vpack.c.b16 %v5416, %v5414
    %v5451 = vpack.c.b16 %v5419, %v5417
    %v5452 = vpack.c.b16 %v5420, %v5418
    %v5453 = vpack.c.b16 %v5423, %v5421
    %v5454 = vpack.c.b16 %v5424, %v5422
    %v5455 = vpack.c.b16 %v5427, %v5425
    %v5456 = vpack.c.b16 %v5428, %v5426
    %v5457 = vpack.c.b16 %v5431, %v5429
    %v5458 = vpack.c.b16 %v5432, %v5430
    %v5459 = vpack.c.b16 %v5435, %v5433
    %v5460 = vpack.c.b16 %v5436, %v5434
    %v5461 = vpack.c.b16 %v5439, %v5437
    %v5462 = vpack.c.b16 %v5440, %v5438
    %v5463 = vpack.c.b16 %v5443, %v5441
    %v5464 = vpack.c.b16 %v5444, %v5442
    %v5486 = vsel %vm166, %v5168, 0
    %5488 = vmatpush.bf16.msra.mxu0 %v5459
    %5489 = vmatpush.bf16.msra.mxu0 %v5457
    %5490 = vmatpush.bf16.msra.mxu0 %v5455
    %5491 = vmatpush.bf16.msra.mxu0 %v5453
    %5492 = vmatpush.bf16.msra.mxu0 %v5451
    %5493 = vmatpush.bf16.msra.mxu0 %v5449
    %5494 = vmatpush.bf16.msra.mxu0 %v5447
    %5495 = vmatpush.bf16.msra.mxu0 %v5445
    %5496 = vmatmul.bf16.gmra.mxu0 %v5167
    %v5497 = vpop.f32.mrf.mxu0
    %v5498 = vadd.f32 %v5356, %v5497
    %v5499 = vpop.f32.mrf.mxu0
    %5500 = vdwg.mxu0
    %5501 = vmatpush.bf16.msra.mxu0 0
    %5502 = vmatpush.bf16.msra.mxu0 0
    %5503 = vmatpush.bf16.msra.mxu0 0
    %5504 = vmatpush.bf16.msra.mxu0 0
    %5505 = vmatpush.bf16.msra.mxu0 0
    %5506 = vmatpush.bf16.msra.mxu0 0
    %5507 = vmatpush.bf16.msra.mxu0 %v5463
    %5508 = vmatpush.bf16.msra.mxu0 %v5461
    %5509 = vmatmul.bf16.gmra.mxu0 %v5486
    %v5510 = vpop.f32.mrf.mxu0
    %v5511 = vadd.f32 %v5498, %v5510
    %v5512 = vpop.f32.mrf.mxu0
    %5513 = vdwg.mxu0
    %5514 = vmatpush.bf16.msra.mxu0 %v5460
    %5515 = vmatpush.bf16.msra.mxu0 %v5458
    %5516 = vmatpush.bf16.msra.mxu0 %v5456
    %5517 = vmatpush.bf16.msra.mxu0 %v5454
    %5518 = vmatpush.bf16.msra.mxu0 %v5452
    %5519 = vmatpush.bf16.msra.mxu0 %v5450
    %5520 = vmatpush.bf16.msra.mxu0 %v5448
    %5521 = vmatpush.bf16.msra.mxu0 %v5446
    %5522 = vmatmul.bf16.gmra.mxu0 %v5167
    %v5523 = vpop.f32.mrf.mxu0
    %v5524 = vadd.f32 %v5382, %v5523
    %v5525 = vpop.f32.mrf.mxu0
    %5526 = vdwg.mxu0
    %5527 = vmatpush.bf16.msra.mxu0 0
    %5528 = vmatpush.bf16.msra.mxu0 0
    %5529 = vmatpush.bf16.msra.mxu0 0
    %5530 = vmatpush.bf16.msra.mxu0 0
    %5531 = vmatpush.bf16.msra.mxu0 0
    %5532 = vmatpush.bf16.msra.mxu0 0
    %5533 = vmatpush.bf16.msra.mxu0 %v5464
    %5534 = vmatpush.bf16.msra.mxu0 %v5462
    %5535 = vmatmul.bf16.gmra.mxu0 %v5486
    %v5536 = vpop.f32.mrf.mxu0
    %v5537 = vadd.f32 %v5524, %v5536
    %v5538 = vpop.f32.mrf.mxu0
    %5539 = vdwg.mxu0
    %v5540 = vld [vmem:[%s5160] sm:$0xfc]
    %v5541 = vld [vmem:[%s5160 + $0x8] sm:$0xfc]
    %v5542 = vld [vmem:[%s5160 + $0x10] sm:$0x3]
    %v5543 = vld [vmem:[%s5160 + $0x18] sm:$0x3]
    %v5544 = vpack.c.bf16 %v5542, %v5540
    %v5545 = vpack.c.bf16 %v5543, %v5541
    %v5546 = vld [vmem:[%s2014] sm:$0xff]
    %v5547 = vld [vmem:[%s2014 + $0x8] sm:$0xff]
    %v5548 = vld [vmem:[%s2014 + $0x10] sm:$0xff]
    %v5549 = vld [vmem:[%s2014 + $0x18] sm:$0xff]
    %v5550 = vld [vmem:[%s2014 + $0x20] sm:$0xff]
    %v5551 = vld [vmem:[%s2014 + $0x28] sm:$0xff]
    %v5552 = vld [vmem:[%s2014 + $0x30] sm:$0xff]
    %v5553 = vld [vmem:[%s2014 + $0x38] sm:$0xff]
    %v5554 = vld [vmem:[%s2014 + $0x40] sm:$0xff]
    %v5555 = vld [vmem:[%s2014 + $0x48] sm:$0xff]
    %v5556 = vld [vmem:[%s2014 + $0x50] sm:$0xff]
    %v5557 = vld [vmem:[%s2014 + $0x58] sm:$0xff]
    %v5558 = vld [vmem:[%s2014 + $0x60] sm:$0xff]
    %v5559 = vld [vmem:[%s2014 + $0x68] sm:$0xff]
    %v5560 = vld [vmem:[%s2014 + $0x70] sm:$0xff]
    %v5561 = vld [vmem:[%s2014 + $0x78] sm:$0xff]
    %v5562 = vld [vmem:[%s2014 + $0x80] sm:$0xff]
    %v5563 = vld [vmem:[%s2014 + $0x88] sm:$0xff]
    %v5564 = vld [vmem:[%s2014 + $0x90] sm:$0xff]
    %v5565 = vld [vmem:[%s2014 + $0x98] sm:$0xff]
    %v5568 = vrot.slane %v5544, 1
    %v5569 = vrot.slane %v5545, 1
    %v5591 = vunpack.c.l.b16 %v5546
    %v5592 = vunpack.c.h.b16 %v5546
    %v5593 = vunpack.c.l.b16 %v5547
    %v5594 = vunpack.c.h.b16 %v5547
    %v5595 = vunpack.c.l.b16 %v5548
    %v5596 = vunpack.c.h.b16 %v5548
    %v5597 = vunpack.c.l.b16 %v5549
    %v5598 = vunpack.c.h.b16 %v5549
    %v5599 = vunpack.c.l.b16 %v5550
    %v5600 = vunpack.c.h.b16 %v5550
    %v5601 = vunpack.c.l.b16 %v5551
    %v5602 = vunpack.c.h.b16 %v5551
    %v5603 = vunpack.c.l.b16 %v5552
    %v5604 = vunpack.c.h.b16 %v5552
    %v5605 = vunpack.c.l.b16 %v5553
    %v5606 = vunpack.c.h.b16 %v5553
    %v5607 = vunpack.c.l.b16 %v5554
    %v5608 = vunpack.c.h.b16 %v5554
    %v5609 = vunpack.c.l.b16 %v5555
    %v5610 = vunpack.c.h.b16 %v5555
    %v5611 = vunpack.c.l.b16 %v5556
    %v5612 = vunpack.c.h.b16 %v5556
    %v5613 = vunpack.c.l.b16 %v5557
    %v5614 = vunpack.c.h.b16 %v5557
    %v5615 = vunpack.c.l.b16 %v5558
    %v5616 = vunpack.c.h.b16 %v5558
    %v5617 = vunpack.c.l.b16 %v5559
    %v5618 = vunpack.c.h.b16 %v5559
    %v5619 = vunpack.c.l.b16 %v5560
    %v5620 = vunpack.c.h.b16 %v5560
    %v5621 = vunpack.c.l.b16 %v5561
    %v5622 = vunpack.c.h.b16 %v5561
    %v5623 = vunpack.c.l.b16 %v5562
    %v5624 = vunpack.c.h.b16 %v5562
    %v5625 = vunpack.c.l.b16 %v5563
    %v5626 = vunpack.c.h.b16 %v5563
    %v5627 = vunpack.c.l.b16 %v5564
    %v5628 = vunpack.c.h.b16 %v5564
    %v5629 = vunpack.c.l.b16 %v5565
    %v5630 = vunpack.c.h.b16 %v5565
    %v5631 = vpack.c.b16 %v5593, %v5591
    %v5632 = vpack.c.b16 %v5594, %v5592
    %v5633 = vpack.c.b16 %v5597, %v5595
    %v5634 = vpack.c.b16 %v5598, %v5596
    %v5635 = vpack.c.b16 %v5601, %v5599
    %v5636 = vpack.c.b16 %v5602, %v5600
    %v5637 = vpack.c.b16 %v5605, %v5603
    %v5638 = vpack.c.b16 %v5606, %v5604
    %v5639 = vpack.c.b16 %v5609, %v5607
    %v5640 = vpack.c.b16 %v5610, %v5608
    %v5641 = vpack.c.b16 %v5613, %v5611
    %v5642 = vpack.c.b16 %v5614, %v5612
    %v5643 = vpack.c.b16 %v5617, %v5615
    %v5644 = vpack.c.b16 %v5618, %v5616
    %v5645 = vpack.c.b16 %v5621, %v5619
    %v5646 = vpack.c.b16 %v5622, %v5620
    %v5647 = vpack.c.b16 %v5625, %v5623
    %v5648 = vpack.c.b16 %v5626, %v5624
    %v5649 = vpack.c.b16 %v5629, %v5627
    %v5650 = vpack.c.b16 %v5630, %v5628
    %v5672 = vsel %vm166, %v5569, 0
    %5674 = vmatpush.bf16.msra.mxu0 %v5645
    %5675 = vmatpush.bf16.msra.mxu0 %v5643
    %5676 = vmatpush.bf16.msra.mxu0 %v5641
    %5677 = vmatpush.bf16.msra.mxu0 %v5639
    %5678 = vmatpush.bf16.msra.mxu0 %v5637
    %5679 = vmatpush.bf16.msra.mxu0 %v5635
    %5680 = vmatpush.bf16.msra.mxu0 %v5633
    %5681 = vmatpush.bf16.msra.mxu0 %v5631
    %5682 = vmatmul.bf16.gmra.mxu0 %v5568
    %v5683 = vpop.f32.mrf.mxu0
    %v5684 = vadd.f32 0.0, %v5683
    %v5685 = vpop.f32.mrf.mxu0
    %5686 = vdwg.mxu0
    %5687 = vmatpush.bf16.msra.mxu0 0
    %5688 = vmatpush.bf16.msra.mxu0 0
    %5689 = vmatpush.bf16.msra.mxu0 0
    %5690 = vmatpush.bf16.msra.mxu0 0
    %5691 = vmatpush.bf16.msra.mxu0 0
    %5692 = vmatpush.bf16.msra.mxu0 0
    %5693 = vmatpush.bf16.msra.mxu0 %v5649
    %5694 = vmatpush.bf16.msra.mxu0 %v5647
    %5695 = vmatmul.bf16.gmra.mxu0 %v5672
    %v5696 = vpop.f32.mrf.mxu0
    %v5697 = vadd.f32 %v5684, %v5696
    %v5698 = vpop.f32.mrf.mxu0
    %5699 = vdwg.mxu0
    %5700 = vmatpush.bf16.msra.mxu0 %v5646
    %5701 = vmatpush.bf16.msra.mxu0 %v5644
    %5702 = vmatpush.bf16.msra.mxu0 %v5642
    %5703 = vmatpush.bf16.msra.mxu0 %v5640
    %5704 = vmatpush.bf16.msra.mxu0 %v5638
    %5705 = vmatpush.bf16.msra.mxu0 %v5636
    %5706 = vmatpush.bf16.msra.mxu0 %v5634
    %5707 = vmatpush.bf16.msra.mxu0 %v5632
    %5708 = vmatmul.bf16.gmra.mxu0 %v5568
    %v5709 = vpop.f32.mrf.mxu0
    %v5710 = vadd.f32 0.0, %v5709
    %v5711 = vpop.f32.mrf.mxu0
    %5712 = vdwg.mxu0
    %5713 = vmatpush.bf16.msra.mxu0 0
    %5714 = vmatpush.bf16.msra.mxu0 0
    %5715 = vmatpush.bf16.msra.mxu0 0
    %5716 = vmatpush.bf16.msra.mxu0 0
    %5717 = vmatpush.bf16.msra.mxu0 0
    %5718 = vmatpush.bf16.msra.mxu0 0
    %5719 = vmatpush.bf16.msra.mxu0 %v5650
    %5720 = vmatpush.bf16.msra.mxu0 %v5648
    %5721 = vmatmul.bf16.gmra.mxu0 %v5672
    %v5722 = vpop.f32.mrf.mxu0
    %v5723 = vadd.f32 %v5710, %v5722
    %v5724 = vpop.f32.mrf.mxu0
    %5725 = vdwg.mxu0
    %v5726 = vadd.f32 %v5511, %v5697
    %v5727 = vadd.f32 %v5537, %v5723
    %v5728 = vmax.f32 %v5726, %v5727
    %v5729 = vld [vmem:[%s14] sm:$0xff]
    %v5731 = vsel %vm1006, %v5729, 0
    %5733 = vmatpush.msra.mxu0 0.0
    %5734 = vmatpush.msra.mxu0 0.0
    %5735 = vmatpush.msra.mxu0 0.0
    %5736 = vmatpush.msra.mxu0 0.0
    %5737 = vmatpush.msra.mxu0 0.0
    %5738 = vmatpush.msra.mxu0 0.0
    %5739 = vmatpush.msra.mxu0 0.0
    %5740 = vmatpush.msra.mxu0 0.0
    %5741 = vmatpush.msra.mxu0 0.0
    %5742 = vmatpush.msra.mxu0 0.0
    %5743 = vmatpush.msra.mxu0 0.0
    %5744 = vmatpush.msra.mxu0 0.0
    %5745 = vmatpush.msra.mxu0 0.0
    %5746 = vmatpush.msra.mxu0 0.0
    %5747 = vmatpush.msra.mxu0 0.0
    %5748 = vmatpush.msra.mxu0 %v5728
    %5749 = vmatmul.f32.gmra.mxu0 %v5731
    %v5750 = vpop.f32.mrf.mxu0
    %v5751 = vadd.f32 0.0, %v5750
    %5752 = vdwg.mxu0
    %v5754 = vrot.slane %v5751, 4
    %v5756 = vmax.f32 %v5751, %v5754
    %v5757 = vld [vmem:[%s9] sm:$0x1]
    %v5759 = vperm.slane %v5757, 0
    %v5761 = vadd.f32 %v5756, %v5759
    %v5762 = vmax.f32 %v5761, 0.0
    %v5764 = vrot.slane %v5762, 7
    %5765 = vrot.lane.b32.xlu0 %v5764, 32
    %v5766 = vpop.permute.xlu0 %5765
    %s5768 = scalar_lea.vmem [#allocation5], 16
    %5769 = vst.msk [vmem:[%s5768] sm:$0x1e] %vm2237, %v5766
    %5770 = vst.msk [vmem:[%s5768 + $0x8] sm:$0x1e] %vm2239, %v5766
    %v5771 = vld [vmem:[%s5768] sm:$0xf]
    %v5772 = vld [vmem:[%s5768 + $0x8] sm:$0xf]
    %v5773 = vpack.c.bf16 %v5771, %v5771
    %v5774 = vpack.c.bf16 %v5772, %v5772
    %v5775 = vld [vmem:[#allocation14] sm:$0xff]
    %v5776 = vld [vmem:[#allocation14 + $0x8] sm:$0xff]
    %v5777 = vld [vmem:[#allocation14 + $0x10] sm:$0xff]
    %v5778 = vld [vmem:[#allocation14 + $0x18] sm:$0xff]
    %v5779 = vld [vmem:[#allocation14 + $0x20] sm:$0xff]
    %v5780 = vld [vmem:[#allocation14 + $0x28] sm:$0xff]
    %v5781 = vld [vmem:[#allocation14 + $0x30] sm:$0xff]
    %v5782 = vld [vmem:[#allocation14 + $0x38] sm:$0xff]
    %v5783 = vld [vmem:[#allocation14 + $0x40] sm:$0xff]
    %v5784 = vld [vmem:[#allocation14 + $0x48] sm:$0xff]
    %v5785 = vld [vmem:[#allocation14 + $0x50] sm:$0xff]
    %v5786 = vld [vmem:[#allocation14 + $0x58] sm:$0xff]
    %v5787 = vld [vmem:[#allocation14 + $0x60] sm:$0xff]
    %v5788 = vld [vmem:[#allocation14 + $0x68] sm:$0xff]
    %v5789 = vld [vmem:[#allocation14 + $0x70] sm:$0xff]
    %v5790 = vld [vmem:[#allocation14 + $0x78] sm:$0xff]
    %v5791 = vld [vmem:[#allocation14 + $0x80] sm:$0xff]
    %v5792 = vld [vmem:[#allocation14 + $0x88] sm:$0xff]
    %v5793 = vld [vmem:[#allocation14 + $0x90] sm:$0xff]
    %v5794 = vld [vmem:[#allocation14 + $0x98] sm:$0xff]
    %v5795 = vld [vmem:[#allocation14 + $0xa0] sm:$0xff]
    %v5796 = vld [vmem:[#allocation14 + $0xa8] sm:$0xff]
    %v5797 = vld [vmem:[#allocation14 + $0xb0] sm:$0xff]
    %v5798 = vld [vmem:[#allocation14 + $0xb8] sm:$0xff]
    %v5799 = vld [vmem:[%s5768] sm:$0x1e]
    %v5800 = vld [vmem:[%s5768 + $0x8] sm:$0x1e]
    %v5801 = vpack.c.bf16 %v5799, %v5799
    %v5802 = vpack.c.bf16 %v5800, %v5800
    %v5803 = vld [vmem:[%s2273] sm:$0xff]
    %v5804 = vld [vmem:[%s2273 + $0x8] sm:$0xff]
    %v5805 = vld [vmem:[%s2273 + $0x10] sm:$0xff]
    %v5806 = vld [vmem:[%s2273 + $0x18] sm:$0xff]
    %v5807 = vld [vmem:[%s2273 + $0x20] sm:$0xff]
    %v5808 = vld [vmem:[%s2273 + $0x28] sm:$0xff]
    %v5809 = vld [vmem:[%s2273 + $0x30] sm:$0xff]
    %v5810 = vld [vmem:[%s2273 + $0x38] sm:$0xff]
    %v5811 = vld [vmem:[%s2273 + $0x40] sm:$0xff]
    %v5812 = vld [vmem:[%s2273 + $0x48] sm:$0xff]
    %v5813 = vld [vmem:[%s2273 + $0x50] sm:$0xff]
    %v5814 = vld [vmem:[%s2273 + $0x58] sm:$0xff]
    %v5815 = vld [vmem:[%s2273 + $0x60] sm:$0xff]
    %v5816 = vld [vmem:[%s2273 + $0x68] sm:$0xff]
    %v5817 = vld [vmem:[%s2273 + $0x70] sm:$0xff]
    %v5818 = vld [vmem:[%s2273 + $0x78] sm:$0xff]
    %v5819 = vld [vmem:[%s2273 + $0x80] sm:$0xff]
    %v5820 = vld [vmem:[%s2273 + $0x88] sm:$0xff]
    %v5821 = vld [vmem:[%s2273 + $0x90] sm:$0xff]
    %v5822 = vld [vmem:[%s2273 + $0x98] sm:$0xff]
    %v5823 = vld [vmem:[%s2273 + $0xa0] sm:$0xff]
    %v5824 = vld [vmem:[%s2273 + $0xa8] sm:$0xff]
    %v5825 = vld [vmem:[%s2273 + $0xb0] sm:$0xff]
    %v5826 = vld [vmem:[%s2273 + $0xb8] sm:$0xff]
    %v5828 = vshrl.u32 %v5801, 16
    %v5830 = vshll.u32 %v5801, 16
    %v5832 = vrot.slane %v5830, 1
    %v5833 = vor.u32 %v5828, %v5832
    %v5835 = vshrl.u32 %v5802, 16
    %v5837 = vshll.u32 %v5802, 16
    %v5839 = vrot.slane %v5837, 1
    %v5840 = vor.u32 %v5835, %v5839
    %v5866 = vunpack.c.l.b16 %v5803
    %v5867 = vunpack.c.h.b16 %v5803
    %v5868 = vunpack.c.l.b16 %v5804
    %v5869 = vunpack.c.h.b16 %v5804
    %v5870 = vunpack.c.l.b16 %v5805
    %v5871 = vunpack.c.h.b16 %v5805
    %v5872 = vunpack.c.l.b16 %v5806
    %v5873 = vunpack.c.h.b16 %v5806
    %v5874 = vunpack.c.l.b16 %v5807
    %v5875 = vunpack.c.h.b16 %v5807
    %v5876 = vunpack.c.l.b16 %v5808
    %v5877 = vunpack.c.h.b16 %v5808
    %v5878 = vunpack.c.l.b16 %v5809
    %v5879 = vunpack.c.h.b16 %v5809
    %v5880 = vunpack.c.l.b16 %v5810
    %v5881 = vunpack.c.h.b16 %v5810
    %v5882 = vunpack.c.l.b16 %v5811
    %v5883 = vunpack.c.h.b16 %v5811
    %v5884 = vunpack.c.l.b16 %v5812
    %v5885 = vunpack.c.h.b16 %v5812
    %v5886 = vunpack.c.l.b16 %v5813
    %v5887 = vunpack.c.h.b16 %v5813
    %v5888 = vunpack.c.l.b16 %v5814
    %v5889 = vunpack.c.h.b16 %v5814
    %v5890 = vunpack.c.l.b16 %v5815
    %v5891 = vunpack.c.h.b16 %v5815
    %v5892 = vunpack.c.l.b16 %v5816
    %v5893 = vunpack.c.h.b16 %v5816
    %v5894 = vunpack.c.l.b16 %v5817
    %v5895 = vunpack.c.h.b16 %v5817
    %v5896 = vunpack.c.l.b16 %v5818
    %v5897 = vunpack.c.h.b16 %v5818
    %v5898 = vunpack.c.l.b16 %v5819
    %v5899 = vunpack.c.h.b16 %v5819
    %v5900 = vunpack.c.l.b16 %v5820
    %v5901 = vunpack.c.h.b16 %v5820
    %v5902 = vunpack.c.l.b16 %v5821
    %v5903 = vunpack.c.h.b16 %v5821
    %v5904 = vunpack.c.l.b16 %v5822
    %v5905 = vunpack.c.h.b16 %v5822
    %v5906 = vunpack.c.l.b16 %v5823
    %v5907 = vunpack.c.h.b16 %v5823
    %v5908 = vunpack.c.l.b16 %v5824
    %v5909 = vunpack.c.h.b16 %v5824
    %v5910 = vunpack.c.l.b16 %v5825
    %v5911 = vunpack.c.h.b16 %v5825
    %v5912 = vunpack.c.l.b16 %v5826
    %v5913 = vunpack.c.h.b16 %v5826
    %v5914 = vpack.c.b16 %v5868, %v5866
    %v5915 = vpack.c.b16 %v5869, %v5867
    %v5916 = vpack.c.b16 %v5872, %v5870
    %v5917 = vpack.c.b16 %v5873, %v5871
    %v5918 = vpack.c.b16 %v5876, %v5874
    %v5919 = vpack.c.b16 %v5877, %v5875
    %v5920 = vpack.c.b16 %v5880, %v5878
    %v5921 = vpack.c.b16 %v5881, %v5879
    %v5922 = vpack.c.b16 %v5884, %v5882
    %v5923 = vpack.c.b16 %v5885, %v5883
    %v5924 = vpack.c.b16 %v5888, %v5886
    %v5925 = vpack.c.b16 %v5889, %v5887
    %v5926 = vpack.c.b16 %v5892, %v5890
    %v5927 = vpack.c.b16 %v5893, %v5891
    %v5928 = vpack.c.b16 %v5896, %v5894
    %v5929 = vpack.c.b16 %v5897, %v5895
    %v5930 = vpack.c.b16 %v5900, %v5898
    %v5931 = vpack.c.b16 %v5901, %v5899
    %v5932 = vpack.c.b16 %v5904, %v5902
    %v5933 = vpack.c.b16 %v5905, %v5903
    %v5934 = vpack.c.b16 %v5908, %v5906
    %v5935 = vpack.c.b16 %v5909, %v5907
    %v5936 = vpack.c.b16 %v5912, %v5910
    %v5937 = vpack.c.b16 %v5913, %v5911
    %v5963 = vsel %vm2433, %v5840, 0
    %5965 = vmatpush.bf16.msra.mxu0 %v5928
    %5966 = vmatpush.bf16.msra.mxu0 %v5926
    %5967 = vmatpush.bf16.msra.mxu0 %v5924
    %5968 = vmatpush.bf16.msra.mxu0 %v5922
    %5969 = vmatpush.bf16.msra.mxu0 %v5920
    %5970 = vmatpush.bf16.msra.mxu0 %v5918
    %5971 = vmatpush.bf16.msra.mxu0 %v5916
    %5972 = vmatpush.bf16.msra.mxu0 %v5914
    %5973 = vmatmul.bf16.gmra.mxu0 %v5833
    %v5974 = vpop.f32.mrf.mxu0
    %v5975 = vadd.f32 0.0, %v5974
    %v5976 = vpop.f32.mrf.mxu0
    %5977 = vdwg.mxu0
    %5978 = vmatpush.bf16.msra.mxu0 0
    %5979 = vmatpush.bf16.msra.mxu0 0
    %5980 = vmatpush.bf16.msra.mxu0 0
    %5981 = vmatpush.bf16.msra.mxu0 0
    %5982 = vmatpush.bf16.msra.mxu0 %v5936
    %5983 = vmatpush.bf16.msra.mxu0 %v5934
    %5984 = vmatpush.bf16.msra.mxu0 %v5932
    %5985 = vmatpush.bf16.msra.mxu0 %v5930
    %5986 = vmatmul.bf16.gmra.mxu0 %v5963
    %v5987 = vpop.f32.mrf.mxu0
    %v5988 = vadd.f32 %v5975, %v5987
    %v5989 = vpop.f32.mrf.mxu0
    %5990 = vdwg.mxu0
    %5991 = vmatpush.bf16.msra.mxu0 %v5929
    %5992 = vmatpush.bf16.msra.mxu0 %v5927
    %5993 = vmatpush.bf16.msra.mxu0 %v5925
    %5994 = vmatpush.bf16.msra.mxu0 %v5923
    %5995 = vmatpush.bf16.msra.mxu0 %v5921
    %5996 = vmatpush.bf16.msra.mxu0 %v5919
    %5997 = vmatpush.bf16.msra.mxu0 %v5917
    %5998 = vmatpush.bf16.msra.mxu0 %v5915
    %5999 = vmatmul.bf16.gmra.mxu0 %v5833
    %v6000 = vpop.f32.mrf.mxu0
    %v6001 = vadd.f32 0.0, %v6000
    %v6002 = vpop.f32.mrf.mxu0
    %6003 = vdwg.mxu0
    %6004 = vmatpush.bf16.msra.mxu0 0
    %6005 = vmatpush.bf16.msra.mxu0 0
    %6006 = vmatpush.bf16.msra.mxu0 0
    %6007 = vmatpush.bf16.msra.mxu0 0
    %6008 = vmatpush.bf16.msra.mxu0 %v5937
    %6009 = vmatpush.bf16.msra.mxu0 %v5935
    %6010 = vmatpush.bf16.msra.mxu0 %v5933
    %6011 = vmatpush.bf16.msra.mxu0 %v5931
    %6012 = vmatmul.bf16.gmra.mxu0 %v5963
    %v6013 = vpop.f32.mrf.mxu0
    %v6014 = vadd.f32 %v6001, %v6013
    %v6015 = vpop.f32.mrf.mxu0
    %6016 = vdwg.mxu0
    %v6041 = vunpack.c.l.b16 %v5775
    %v6042 = vunpack.c.h.b16 %v5775
    %v6043 = vunpack.c.l.b16 %v5776
    %v6044 = vunpack.c.h.b16 %v5776
    %v6045 = vunpack.c.l.b16 %v5777
    %v6046 = vunpack.c.h.b16 %v5777
    %v6047 = vunpack.c.l.b16 %v5778
    %v6048 = vunpack.c.h.b16 %v5778
    %v6049 = vunpack.c.l.b16 %v5779
    %v6050 = vunpack.c.h.b16 %v5779
    %v6051 = vunpack.c.l.b16 %v5780
    %v6052 = vunpack.c.h.b16 %v5780
    %v6053 = vunpack.c.l.b16 %v5781
    %v6054 = vunpack.c.h.b16 %v5781
    %v6055 = vunpack.c.l.b16 %v5782
    %v6056 = vunpack.c.h.b16 %v5782
    %v6057 = vunpack.c.l.b16 %v5783
    %v6058 = vunpack.c.h.b16 %v5783
    %v6059 = vunpack.c.l.b16 %v5784
    %v6060 = vunpack.c.h.b16 %v5784
    %v6061 = vunpack.c.l.b16 %v5785
    %v6062 = vunpack.c.h.b16 %v5785
    %v6063 = vunpack.c.l.b16 %v5786
    %v6064 = vunpack.c.h.b16 %v5786
    %v6065 = vunpack.c.l.b16 %v5787
    %v6066 = vunpack.c.h.b16 %v5787
    %v6067 = vunpack.c.l.b16 %v5788
    %v6068 = vunpack.c.h.b16 %v5788
    %v6069 = vunpack.c.l.b16 %v5789
    %v6070 = vunpack.c.h.b16 %v5789
    %v6071 = vunpack.c.l.b16 %v5790
    %v6072 = vunpack.c.h.b16 %v5790
    %v6073 = vunpack.c.l.b16 %v5791
    %v6074 = vunpack.c.h.b16 %v5791
    %v6075 = vunpack.c.l.b16 %v5792
    %v6076 = vunpack.c.h.b16 %v5792
    %v6077 = vunpack.c.l.b16 %v5793
    %v6078 = vunpack.c.h.b16 %v5793
    %v6079 = vunpack.c.l.b16 %v5794
    %v6080 = vunpack.c.h.b16 %v5794
    %v6081 = vunpack.c.l.b16 %v5795
    %v6082 = vunpack.c.h.b16 %v5795
    %v6083 = vunpack.c.l.b16 %v5796
    %v6084 = vunpack.c.h.b16 %v5796
    %v6085 = vunpack.c.l.b16 %v5797
    %v6086 = vunpack.c.h.b16 %v5797
    %v6087 = vunpack.c.l.b16 %v5798
    %v6088 = vunpack.c.h.b16 %v5798
    %v6089 = vpack.c.b16 %v6043, %v6041
    %v6090 = vpack.c.b16 %v6044, %v6042
    %v6091 = vpack.c.b16 %v6047, %v6045
    %v6092 = vpack.c.b16 %v6048, %v6046
    %v6093 = vpack.c.b16 %v6051, %v6049
    %v6094 = vpack.c.b16 %v6052, %v6050
    %v6095 = vpack.c.b16 %v6055, %v6053
    %v6096 = vpack.c.b16 %v6056, %v6054
    %v6097 = vpack.c.b16 %v6059, %v6057
    %v6098 = vpack.c.b16 %v6060, %v6058
    %v6099 = vpack.c.b16 %v6063, %v6061
    %v6100 = vpack.c.b16 %v6064, %v6062
    %v6101 = vpack.c.b16 %v6067, %v6065
    %v6102 = vpack.c.b16 %v6068, %v6066
    %v6103 = vpack.c.b16 %v6071, %v6069
    %v6104 = vpack.c.b16 %v6072, %v6070
    %v6105 = vpack.c.b16 %v6075, %v6073
    %v6106 = vpack.c.b16 %v6076, %v6074
    %v6107 = vpack.c.b16 %v6079, %v6077
    %v6108 = vpack.c.b16 %v6080, %v6078
    %v6109 = vpack.c.b16 %v6083, %v6081
    %v6110 = vpack.c.b16 %v6084, %v6082
    %v6111 = vpack.c.b16 %v6087, %v6085
    %v6112 = vpack.c.b16 %v6088, %v6086
    %v6138 = vsel %vm2433, %v5774, 0
    %6140 = vmatpush.bf16.msra.mxu0 %v6103
    %6141 = vmatpush.bf16.msra.mxu0 %v6101
    %6142 = vmatpush.bf16.msra.mxu0 %v6099
    %6143 = vmatpush.bf16.msra.mxu0 %v6097
    %6144 = vmatpush.bf16.msra.mxu0 %v6095
    %6145 = vmatpush.bf16.msra.mxu0 %v6093
    %6146 = vmatpush.bf16.msra.mxu0 %v6091
    %6147 = vmatpush.bf16.msra.mxu0 %v6089
    %6148 = vmatmul.bf16.gmra.mxu0 %v5773
    %v6149 = vpop.f32.mrf.mxu0
    %v6150 = vadd.f32 %v5988, %v6149
    %v6151 = vpop.f32.mrf.mxu0
    %6152 = vdwg.mxu0
    %6153 = vmatpush.bf16.msra.mxu0 0
    %6154 = vmatpush.bf16.msra.mxu0 0
    %6155 = vmatpush.bf16.msra.mxu0 0
    %6156 = vmatpush.bf16.msra.mxu0 0
    %6157 = vmatpush.bf16.msra.mxu0 %v6111
    %6158 = vmatpush.bf16.msra.mxu0 %v6109
    %6159 = vmatpush.bf16.msra.mxu0 %v6107
    %6160 = vmatpush.bf16.msra.mxu0 %v6105
    %6161 = vmatmul.bf16.gmra.mxu0 %v6138
    %v6162 = vpop.f32.mrf.mxu0
    %v6163 = vadd.f32 %v6150, %v6162
    %v6164 = vpop.f32.mrf.mxu0
    %6165 = vdwg.mxu0
    %6166 = vmatpush.bf16.msra.mxu0 %v6104
    %6167 = vmatpush.bf16.msra.mxu0 %v6102
    %6168 = vmatpush.bf16.msra.mxu0 %v6100
    %6169 = vmatpush.bf16.msra.mxu0 %v6098
    %6170 = vmatpush.bf16.msra.mxu0 %v6096
    %6171 = vmatpush.bf16.msra.mxu0 %v6094
    %6172 = vmatpush.bf16.msra.mxu0 %v6092
    %6173 = vmatpush.bf16.msra.mxu0 %v6090
    %6174 = vmatmul.bf16.gmra.mxu0 %v5773
    %v6175 = vpop.f32.mrf.mxu0
    %v6176 = vadd.f32 %v6014, %v6175
    %v6177 = vpop.f32.mrf.mxu0
    %6178 = vdwg.mxu0
    %6179 = vmatpush.bf16.msra.mxu0 0
    %6180 = vmatpush.bf16.msra.mxu0 0
    %6181 = vmatpush.bf16.msra.mxu0 0
    %6182 = vmatpush.bf16.msra.mxu0 0
    %6183 = vmatpush.bf16.msra.mxu0 %v6112
    %6184 = vmatpush.bf16.msra.mxu0 %v6110
    %6185 = vmatpush.bf16.msra.mxu0 %v6108
    %6186 = vmatpush.bf16.msra.mxu0 %v6106
    %6187 = vmatmul.bf16.gmra.mxu0 %v6138
    %v6188 = vpop.f32.mrf.mxu0
    %v6189 = vadd.f32 %v6176, %v6188
    %v6190 = vpop.f32.mrf.mxu0
    %6191 = vdwg.mxu0
    %v6192 = vld [vmem:[%s5768] sm:$0x3c]
    %v6193 = vld [vmem:[%s5768 + $0x8] sm:$0x3c]
    %v6194 = vpack.c.bf16 %v6192, %v6192
    %v6195 = vpack.c.bf16 %v6193, %v6193
    %v6196 = vld [vmem:[%s2668] sm:$0xff]
    %v6197 = vld [vmem:[%s2668 + $0x8] sm:$0xff]
    %v6198 = vld [vmem:[%s2668 + $0x10] sm:$0xff]
    %v6199 = vld [vmem:[%s2668 + $0x18] sm:$0xff]
    %v6200 = vld [vmem:[%s2668 + $0x20] sm:$0xff]
    %v6201 = vld [vmem:[%s2668 + $0x28] sm:$0xff]
    %v6202 = vld [vmem:[%s2668 + $0x30] sm:$0xff]
    %v6203 = vld [vmem:[%s2668 + $0x38] sm:$0xff]
    %v6204 = vld [vmem:[%s2668 + $0x40] sm:$0xff]
    %v6205 = vld [vmem:[%s2668 + $0x48] sm:$0xff]
    %v6206 = vld [vmem:[%s2668 + $0x50] sm:$0xff]
    %v6207 = vld [vmem:[%s2668 + $0x58] sm:$0xff]
    %v6208 = vld [vmem:[%s2668 + $0x60] sm:$0xff]
    %v6209 = vld [vmem:[%s2668 + $0x68] sm:$0xff]
    %v6210 = vld [vmem:[%s2668 + $0x70] sm:$0xff]
    %v6211 = vld [vmem:[%s2668 + $0x78] sm:$0xff]
    %v6212 = vld [vmem:[%s2668 + $0x80] sm:$0xff]
    %v6213 = vld [vmem:[%s2668 + $0x88] sm:$0xff]
    %v6214 = vld [vmem:[%s2668 + $0x90] sm:$0xff]
    %v6215 = vld [vmem:[%s2668 + $0x98] sm:$0xff]
    %v6216 = vld [vmem:[%s2668 + $0xa0] sm:$0xff]
    %v6217 = vld [vmem:[%s2668 + $0xa8] sm:$0xff]
    %v6218 = vld [vmem:[%s2668 + $0xb0] sm:$0xff]
    %v6219 = vld [vmem:[%s2668 + $0xb8] sm:$0xff]
    %v6222 = vrot.slane %v6194, 1
    %v6223 = vrot.slane %v6195, 1
    %v6249 = vunpack.c.l.b16 %v6196
    %v6250 = vunpack.c.h.b16 %v6196
    %v6251 = vunpack.c.l.b16 %v6197
    %v6252 = vunpack.c.h.b16 %v6197
    %v6253 = vunpack.c.l.b16 %v6198
    %v6254 = vunpack.c.h.b16 %v6198
    %v6255 = vunpack.c.l.b16 %v6199
    %v6256 = vunpack.c.h.b16 %v6199
    %v6257 = vunpack.c.l.b16 %v6200
    %v6258 = vunpack.c.h.b16 %v6200
    %v6259 = vunpack.c.l.b16 %v6201
    %v6260 = vunpack.c.h.b16 %v6201
    %v6261 = vunpack.c.l.b16 %v6202
    %v6262 = vunpack.c.h.b16 %v6202
    %v6263 = vunpack.c.l.b16 %v6203
    %v6264 = vunpack.c.h.b16 %v6203
    %v6265 = vunpack.c.l.b16 %v6204
    %v6266 = vunpack.c.h.b16 %v6204
    %v6267 = vunpack.c.l.b16 %v6205
    %v6268 = vunpack.c.h.b16 %v6205
    %v6269 = vunpack.c.l.b16 %v6206
    %v6270 = vunpack.c.h.b16 %v6206
    %v6271 = vunpack.c.l.b16 %v6207
    %v6272 = vunpack.c.h.b16 %v6207
    %v6273 = vunpack.c.l.b16 %v6208
    %v6274 = vunpack.c.h.b16 %v6208
    %v6275 = vunpack.c.l.b16 %v6209
    %v6276 = vunpack.c.h.b16 %v6209
    %v6277 = vunpack.c.l.b16 %v6210
    %v6278 = vunpack.c.h.b16 %v6210
    %v6279 = vunpack.c.l.b16 %v6211
    %v6280 = vunpack.c.h.b16 %v6211
    %v6281 = vunpack.c.l.b16 %v6212
    %v6282 = vunpack.c.h.b16 %v6212
    %v6283 = vunpack.c.l.b16 %v6213
    %v6284 = vunpack.c.h.b16 %v6213
    %v6285 = vunpack.c.l.b16 %v6214
    %v6286 = vunpack.c.h.b16 %v6214
    %v6287 = vunpack.c.l.b16 %v6215
    %v6288 = vunpack.c.h.b16 %v6215
    %v6289 = vunpack.c.l.b16 %v6216
    %v6290 = vunpack.c.h.b16 %v6216
    %v6291 = vunpack.c.l.b16 %v6217
    %v6292 = vunpack.c.h.b16 %v6217
    %v6293 = vunpack.c.l.b16 %v6218
    %v6294 = vunpack.c.h.b16 %v6218
    %v6295 = vunpack.c.l.b16 %v6219
    %v6296 = vunpack.c.h.b16 %v6219
    %v6297 = vpack.c.b16 %v6251, %v6249
    %v6298 = vpack.c.b16 %v6252, %v6250
    %v6299 = vpack.c.b16 %v6255, %v6253
    %v6300 = vpack.c.b16 %v6256, %v6254
    %v6301 = vpack.c.b16 %v6259, %v6257
    %v6302 = vpack.c.b16 %v6260, %v6258
    %v6303 = vpack.c.b16 %v6263, %v6261
    %v6304 = vpack.c.b16 %v6264, %v6262
    %v6305 = vpack.c.b16 %v6267, %v6265
    %v6306 = vpack.c.b16 %v6268, %v6266
    %v6307 = vpack.c.b16 %v6271, %v6269
    %v6308 = vpack.c.b16 %v6272, %v6270
    %v6309 = vpack.c.b16 %v6275, %v6273
    %v6310 = vpack.c.b16 %v6276, %v6274
    %v6311 = vpack.c.b16 %v6279, %v6277
    %v6312 = vpack.c.b16 %v6280, %v6278
    %v6313 = vpack.c.b16 %v6283, %v6281
    %v6314 = vpack.c.b16 %v6284, %v6282
    %v6315 = vpack.c.b16 %v6287, %v6285
    %v6316 = vpack.c.b16 %v6288, %v6286
    %v6317 = vpack.c.b16 %v6291, %v6289
    %v6318 = vpack.c.b16 %v6292, %v6290
    %v6319 = vpack.c.b16 %v6295, %v6293
    %v6320 = vpack.c.b16 %v6296, %v6294
    %v6346 = vsel %vm2433, %v6223, 0
    %6348 = vmatpush.bf16.msra.mxu0 %v6311
    %6349 = vmatpush.bf16.msra.mxu0 %v6309
    %6350 = vmatpush.bf16.msra.mxu0 %v6307
    %6351 = vmatpush.bf16.msra.mxu0 %v6305
    %6352 = vmatpush.bf16.msra.mxu0 %v6303
    %6353 = vmatpush.bf16.msra.mxu0 %v6301
    %6354 = vmatpush.bf16.msra.mxu0 %v6299
    %6355 = vmatpush.bf16.msra.mxu0 %v6297
    %6356 = vmatmul.bf16.gmra.mxu0 %v6222
    %v6357 = vpop.f32.mrf.mxu0
    %v6358 = vadd.f32 0.0, %v6357
    %v6359 = vpop.f32.mrf.mxu0
    %6360 = vdwg.mxu0
    %6361 = vmatpush.bf16.msra.mxu0 0
    %6362 = vmatpush.bf16.msra.mxu0 0
    %6363 = vmatpush.bf16.msra.mxu0 0
    %6364 = vmatpush.bf16.msra.mxu0 0
    %6365 = vmatpush.bf16.msra.mxu0 %v6319
    %6366 = vmatpush.bf16.msra.mxu0 %v6317
    %6367 = vmatpush.bf16.msra.mxu0 %v6315
    %6368 = vmatpush.bf16.msra.mxu0 %v6313
    %6369 = vmatmul.bf16.gmra.mxu0 %v6346
    %v6370 = vpop.f32.mrf.mxu0
    %v6371 = vadd.f32 %v6358, %v6370
    %v6372 = vpop.f32.mrf.mxu0
    %6373 = vdwg.mxu0
    %6374 = vmatpush.bf16.msra.mxu0 %v6312
    %6375 = vmatpush.bf16.msra.mxu0 %v6310
    %6376 = vmatpush.bf16.msra.mxu0 %v6308
    %6377 = vmatpush.bf16.msra.mxu0 %v6306
    %6378 = vmatpush.bf16.msra.mxu0 %v6304
    %6379 = vmatpush.bf16.msra.mxu0 %v6302
    %6380 = vmatpush.bf16.msra.mxu0 %v6300
    %6381 = vmatpush.bf16.msra.mxu0 %v6298
    %6382 = vmatmul.bf16.gmra.mxu0 %v6222
    %v6383 = vpop.f32.mrf.mxu0
    %v6384 = vadd.f32 0.0, %v6383
    %v6385 = vpop.f32.mrf.mxu0
    %6386 = vdwg.mxu0
    %6387 = vmatpush.bf16.msra.mxu0 0
    %6388 = vmatpush.bf16.msra.mxu0 0
    %6389 = vmatpush.bf16.msra.mxu0 0
    %6390 = vmatpush.bf16.msra.mxu0 0
    %6391 = vmatpush.bf16.msra.mxu0 %v6320
    %6392 = vmatpush.bf16.msra.mxu0 %v6318
    %6393 = vmatpush.bf16.msra.mxu0 %v6316
    %6394 = vmatpush.bf16.msra.mxu0 %v6314
    %6395 = vmatmul.bf16.gmra.mxu0 %v6346
    %v6396 = vpop.f32.mrf.mxu0
    %v6397 = vadd.f32 %v6384, %v6396
    %v6398 = vpop.f32.mrf.mxu0
    %6399 = vdwg.mxu0
    %v6400 = vadd.f32 %v6163, %v6371
    %v6401 = vadd.f32 %v6189, %v6397
    %v6402 = vmax.f32 %v6400, %v6401
    %v6403 = vld [vmem:[%s15] sm:$0xf]
    %v6405 = vsel %vm2877, %v6403, 0
    %v6408 = vsel %vm2881, %v6402, 0
    %6410 = vmatpush.msra.mxu0 0.0
    %6411 = vmatpush.msra.mxu0 0.0
    %6412 = vmatpush.msra.mxu0 0.0
    %6413 = vmatpush.msra.mxu0 0.0
    %6414 = vmatpush.msra.mxu0 0.0
    %6415 = vmatpush.msra.mxu0 0.0
    %6416 = vmatpush.msra.mxu0 0.0
    %6417 = vmatpush.msra.mxu0 0.0
    %6418 = vmatpush.msra.mxu0 0.0
    %6419 = vmatpush.msra.mxu0 0.0
    %6420 = vmatpush.msra.mxu0 0.0
    %6421 = vmatpush.msra.mxu0 0.0
    %6422 = vmatpush.msra.mxu0 0.0
    %6423 = vmatpush.msra.mxu0 0.0
    %6424 = vmatpush.msra.mxu0 0.0
    %6425 = vmatpush.msra.mxu0 %v6408
    %6426 = vmatmul.f32.gmra.mxu0 %v6405
    %v6427 = vpop.f32.mrf.mxu0
    %v6428 = vadd.f32 0.0, %v6427
    %6429 = vdwg.mxu0
    %v6431 = vrot.slane %v6428, 2
    %v6433 = vmax.f32 %v6428, %v6431
    %v6434 = vld [vmem:[%s10] sm:$0x1]
    %v6436 = vperm.slane %v6434, 0
    %v6438 = vadd.f32 %v6433, %v6436
    %v6439 = vmax.f32 %v6438, 0.0
    %v6441 = vrot.slane %v6439, 7
    %6442 = vrot.lane.b32.xlu0 %v6441, 64
    %v6443 = vpop.permute.xlu0 %6442
    %v6444 = vrot.slane %v6443, 4
    %v6445 = vsel %vm2433, %v6444, %v6443
    %s6447 = scalar_lea.vmem [#allocation6], 8
    %6448 = vst.msk [vmem:[%s6447] sm:$0x66] %vm2924, %v6445
    %v6449 = vld [vmem:[%s6447] sm:$0x33]
    %6451 = vst [vmem:[#allocation1] ss:$2 sm:$0xff] %v6449
    %v6452 = vld.sshfl [vmem:[#allocation1] sm:$0xff pattern:$0x75316420]
    %v6453 = vld.sshfl [vmem:[#allocation1 + $0x8] sm:$0xff pattern:$0x75316420]
    %v6456 = vpack.c.bf16 %v6452, %v6452
    %v6457 = vpack.c.bf16 %v6453, %v6453
    %v6458 = vld [vmem:[%s6] sm:$0xff]
    %v6459 = vld [vmem:[%s6 + $0x8] sm:$0xff]
    %v6460 = vld [vmem:[%s6 + $0x10] sm:$0xff]
    %v6461 = vld [vmem:[%s6 + $0x18] sm:$0xff]
    %v6462 = vld [vmem:[%s6 + $0x20] sm:$0xff]
    %v6463 = vld [vmem:[%s6 + $0x28] sm:$0xff]
    %v6464 = vld [vmem:[%s6 + $0x30] sm:$0xff]
    %v6465 = vld [vmem:[%s6 + $0x38] sm:$0xff]
    %v6466 = vld [vmem:[%s6 + $0x40] sm:$0xff]
    %v6467 = vld [vmem:[%s6 + $0x48] sm:$0xff]
    %v6468 = vld [vmem:[%s6 + $0x50] sm:$0xff]
    %v6469 = vld [vmem:[%s6 + $0x58] sm:$0xff]
    %v6470 = vld [vmem:[%s6 + $0x60] sm:$0xff]
    %v6471 = vld [vmem:[%s6 + $0x68] sm:$0xff]
    %v6472 = vld [vmem:[%s6 + $0x70] sm:$0xff]
    %v6473 = vld [vmem:[%s6 + $0x78] sm:$0xff]
    %v6474 = vld [vmem:[%s6 + $0x80] sm:$0xff]
    %v6475 = vld [vmem:[%s6 + $0x88] sm:$0xff]
    %v6476 = vld [vmem:[%s6 + $0x90] sm:$0xff]
    %v6477 = vld [vmem:[%s6 + $0x98] sm:$0xff]
    %v6478 = vld [vmem:[%s6 + $0xa0] sm:$0xff]
    %v6479 = vld [vmem:[%s6 + $0xa8] sm:$0xff]
    %v6480 = vld [vmem:[%s6 + $0xb0] sm:$0xff]
    %v6481 = vld [vmem:[%s6 + $0xb8] sm:$0xff]
    %v6482 = vld [vmem:[%s6 + $0xc0] sm:$0xff]
    %v6483 = vld [vmem:[%s6 + $0xc8] sm:$0xff]
    %v6484 = vld [vmem:[%s6 + $0xd0] sm:$0xff]
    %v6485 = vld [vmem:[%s6 + $0xd8] sm:$0xff]
    %v6486 = vld [vmem:[%s6 + $0xe0] sm:$0xff]
    %v6487 = vld [vmem:[%s6 + $0xe8] sm:$0xff]
    %v6488 = vld [vmem:[%s6 + $0xf0] sm:$0xff]
    %v6489 = vld [vmem:[%s6 + $0xf8] sm:$0xff]
    %v6490 = vld [vmem:[%s6447] sm:$0x66]
    %6492 = vst [vmem:[#allocation1] ss:$2 sm:$0xff] %v6490
    %v6493 = vld.sshfl [vmem:[#allocation1] sm:$0xff pattern:$0x75316420]
    %v6494 = vld.sshfl [vmem:[#allocation1 + $0x8] sm:$0xff pattern:$0x75316420]
    %v6497 = vpack.c.bf16 %v6493, %v6493
    %v6498 = vpack.c.bf16 %v6494, %v6494
    %v6499 = vld [vmem:[%s2976] sm:$0xff]
    %v6500 = vld [vmem:[%s2976 + $0x8] sm:$0xff]
    %v6501 = vld [vmem:[%s2976 + $0x10] sm:$0xff]
    %v6502 = vld [vmem:[%s2976 + $0x18] sm:$0xff]
    %v6503 = vld [vmem:[%s2976 + $0x20] sm:$0xff]
    %v6504 = vld [vmem:[%s2976 + $0x28] sm:$0xff]
    %v6505 = vld [vmem:[%s2976 + $0x30] sm:$0xff]
    %v6506 = vld [vmem:[%s2976 + $0x38] sm:$0xff]
    %v6507 = vld [vmem:[%s2976 + $0x40] sm:$0xff]
    %v6508 = vld [vmem:[%s2976 + $0x48] sm:$0xff]
    %v6509 = vld [vmem:[%s2976 + $0x50] sm:$0xff]
    %v6510 = vld [vmem:[%s2976 + $0x58] sm:$0xff]
    %v6511 = vld [vmem:[%s2976 + $0x60] sm:$0xff]
    %v6512 = vld [vmem:[%s2976 + $0x68] sm:$0xff]
    %v6513 = vld [vmem:[%s2976 + $0x70] sm:$0xff]
    %v6514 = vld [vmem:[%s2976 + $0x78] sm:$0xff]
    %v6515 = vld [vmem:[%s2976 + $0x80] sm:$0xff]
    %v6516 = vld [vmem:[%s2976 + $0x88] sm:$0xff]
    %v6517 = vld [vmem:[%s2976 + $0x90] sm:$0xff]
    %v6518 = vld [vmem:[%s2976 + $0x98] sm:$0xff]
    %v6519 = vld [vmem:[%s2976 + $0xa0] sm:$0xff]
    %v6520 = vld [vmem:[%s2976 + $0xa8] sm:$0xff]
    %v6521 = vld [vmem:[%s2976 + $0xb0] sm:$0xff]
    %v6522 = vld [vmem:[%s2976 + $0xb8] sm:$0xff]
    %v6523 = vld [vmem:[%s2976 + $0xc0] sm:$0xff]
    %v6524 = vld [vmem:[%s2976 + $0xc8] sm:$0xff]
    %v6525 = vld [vmem:[%s2976 + $0xd0] sm:$0xff]
    %v6526 = vld [vmem:[%s2976 + $0xd8] sm:$0xff]
    %v6527 = vld [vmem:[%s2976 + $0xe0] sm:$0xff]
    %v6528 = vld [vmem:[%s2976 + $0xe8] sm:$0xff]
    %v6529 = vld [vmem:[%s2976 + $0xf0] sm:$0xff]
    %v6530 = vld [vmem:[%s2976 + $0xf8] sm:$0xff]
    %v6532 = vshrl.u32 %v6497, 16
    %v6534 = vshll.u32 %v6497, 16
    %v6536 = vrot.slane %v6534, 1
    %v6537 = vor.u32 %v6532, %v6536
    %v6539 = vshrl.u32 %v6498, 16
    %v6541 = vshll.u32 %v6498, 16
    %v6543 = vrot.slane %v6541, 1
    %v6544 = vor.u32 %v6539, %v6543
    %v6579 = vunpack.c.l.b16 %v6499
    %v6580 = vunpack.c.h.b16 %v6499
    %v6581 = vunpack.c.l.b16 %v6500
    %v6582 = vunpack.c.h.b16 %v6500
    %v6583 = vunpack.c.l.b16 %v6501
    %v6584 = vunpack.c.h.b16 %v6501
    %v6585 = vunpack.c.l.b16 %v6502
    %v6586 = vunpack.c.h.b16 %v6502
    %v6587 = vunpack.c.l.b16 %v6503
    %v6588 = vunpack.c.h.b16 %v6503
    %v6589 = vunpack.c.l.b16 %v6504
    %v6590 = vunpack.c.h.b16 %v6504
    %v6591 = vunpack.c.l.b16 %v6505
    %v6592 = vunpack.c.h.b16 %v6505
    %v6593 = vunpack.c.l.b16 %v6506
    %v6594 = vunpack.c.h.b16 %v6506
    %v6595 = vunpack.c.l.b16 %v6507
    %v6596 = vunpack.c.h.b16 %v6507
    %v6597 = vunpack.c.l.b16 %v6508
    %v6598 = vunpack.c.h.b16 %v6508
    %v6599 = vunpack.c.l.b16 %v6509
    %v6600 = vunpack.c.h.b16 %v6509
    %v6601 = vunpack.c.l.b16 %v6510
    %v6602 = vunpack.c.h.b16 %v6510
    %v6603 = vunpack.c.l.b16 %v6511
    %v6604 = vunpack.c.h.b16 %v6511
    %v6605 = vunpack.c.l.b16 %v6512
    %v6606 = vunpack.c.h.b16 %v6512
    %v6607 = vunpack.c.l.b16 %v6513
    %v6608 = vunpack.c.h.b16 %v6513
    %v6609 = vunpack.c.l.b16 %v6514
    %v6610 = vunpack.c.h.b16 %v6514
    %v6611 = vunpack.c.l.b16 %v6515
    %v6612 = vunpack.c.h.b16 %v6515
    %v6613 = vunpack.c.l.b16 %v6516
    %v6614 = vunpack.c.h.b16 %v6516
    %v6615 = vunpack.c.l.b16 %v6517
    %v6616 = vunpack.c.h.b16 %v6517
    %v6617 = vunpack.c.l.b16 %v6518
    %v6618 = vunpack.c.h.b16 %v6518
    %v6619 = vunpack.c.l.b16 %v6519
    %v6620 = vunpack.c.h.b16 %v6519
    %v6621 = vunpack.c.l.b16 %v6520
    %v6622 = vunpack.c.h.b16 %v6520
    %v6623 = vunpack.c.l.b16 %v6521
    %v6624 = vunpack.c.h.b16 %v6521
    %v6625 = vunpack.c.l.b16 %v6522
    %v6626 = vunpack.c.h.b16 %v6522
    %v6627 = vunpack.c.l.b16 %v6523
    %v6628 = vunpack.c.h.b16 %v6523
    %v6629 = vunpack.c.l.b16 %v6524
    %v6630 = vunpack.c.h.b16 %v6524
    %v6631 = vunpack.c.l.b16 %v6525
    %v6632 = vunpack.c.h.b16 %v6525
    %v6633 = vunpack.c.l.b16 %v6526
    %v6634 = vunpack.c.h.b16 %v6526
    %v6635 = vunpack.c.l.b16 %v6527
    %v6636 = vunpack.c.h.b16 %v6527
    %v6637 = vunpack.c.l.b16 %v6528
    %v6638 = vunpack.c.h.b16 %v6528
    %v6639 = vunpack.c.l.b16 %v6529
    %v6640 = vunpack.c.h.b16 %v6529
    %v6641 = vunpack.c.l.b16 %v6530
    %v6642 = vunpack.c.h.b16 %v6530
    %v6643 = vpack.c.b16 %v6581, %v6579
    %v6644 = vpack.c.b16 %v6582, %v6580
    %v6645 = vpack.c.b16 %v6585, %v6583
    %v6646 = vpack.c.b16 %v6586, %v6584
    %v6647 = vpack.c.b16 %v6589, %v6587
    %v6648 = vpack.c.b16 %v6590, %v6588
    %v6649 = vpack.c.b16 %v6593, %v6591
    %v6650 = vpack.c.b16 %v6594, %v6592
    %v6651 = vpack.c.b16 %v6597, %v6595
    %v6652 = vpack.c.b16 %v6598, %v6596
    %v6653 = vpack.c.b16 %v6601, %v6599
    %v6654 = vpack.c.b16 %v6602, %v6600
    %v6655 = vpack.c.b16 %v6605, %v6603
    %v6656 = vpack.c.b16 %v6606, %v6604
    %v6657 = vpack.c.b16 %v6609, %v6607
    %v6658 = vpack.c.b16 %v6610, %v6608
    %v6659 = vpack.c.b16 %v6613, %v6611
    %v6660 = vpack.c.b16 %v6614, %v6612
    %v6661 = vpack.c.b16 %v6617, %v6615
    %v6662 = vpack.c.b16 %v6618, %v6616
    %v6663 = vpack.c.b16 %v6621, %v6619
    %v6664 = vpack.c.b16 %v6622, %v6620
    %v6665 = vpack.c.b16 %v6625, %v6623
    %v6666 = vpack.c.b16 %v6626, %v6624
    %v6667 = vpack.c.b16 %v6629, %v6627
    %v6668 = vpack.c.b16 %v6630, %v6628
    %v6669 = vpack.c.b16 %v6633, %v6631
    %v6670 = vpack.c.b16 %v6634, %v6632
    %v6671 = vpack.c.b16 %v6637, %v6635
    %v6672 = vpack.c.b16 %v6638, %v6636
    %v6673 = vpack.c.b16 %v6641, %v6639
    %v6674 = vpack.c.b16 %v6642, %v6640
    %6707 = vmatpush.bf16.msra.mxu0 %v6657
    %6708 = vmatpush.bf16.msra.mxu0 %v6655
    %6709 = vmatpush.bf16.msra.mxu0 %v6653
    %6710 = vmatpush.bf16.msra.mxu0 %v6651
    %6711 = vmatpush.bf16.msra.mxu0 %v6649
    %6712 = vmatpush.bf16.msra.mxu0 %v6647
    %6713 = vmatpush.bf16.msra.mxu0 %v6645
    %6714 = vmatpush.bf16.msra.mxu0 %v6643
    %6715 = vmatmul.bf16.gmra.mxu0 %v6537
    %v6716 = vpop.f32.mrf.mxu0
    %v6717 = vadd.f32 0.0, %v6716
    %v6718 = vpop.f32.mrf.mxu0
    %6719 = vdwg.mxu0
    %6720 = vmatpush.bf16.msra.mxu0 %v6673
    %6721 = vmatpush.bf16.msra.mxu0 %v6671
    %6722 = vmatpush.bf16.msra.mxu0 %v6669
    %6723 = vmatpush.bf16.msra.mxu0 %v6667
    %6724 = vmatpush.bf16.msra.mxu0 %v6665
    %6725 = vmatpush.bf16.msra.mxu0 %v6663
    %6726 = vmatpush.bf16.msra.mxu0 %v6661
    %6727 = vmatpush.bf16.msra.mxu0 %v6659
    %6728 = vmatmul.bf16.gmra.mxu0 %v6544
    %v6729 = vpop.f32.mrf.mxu0
    %v6730 = vadd.f32 %v6717, %v6729
    %v6731 = vpop.f32.mrf.mxu0
    %6732 = vdwg.mxu0
    %6733 = vmatpush.bf16.msra.mxu0 %v6658
    %6734 = vmatpush.bf16.msra.mxu0 %v6656
    %6735 = vmatpush.bf16.msra.mxu0 %v6654
    %6736 = vmatpush.bf16.msra.mxu0 %v6652
    %6737 = vmatpush.bf16.msra.mxu0 %v6650
    %6738 = vmatpush.bf16.msra.mxu0 %v6648
    %6739 = vmatpush.bf16.msra.mxu0 %v6646
    %6740 = vmatpush.bf16.msra.mxu0 %v6644
    %6741 = vmatmul.bf16.gmra.mxu0 %v6537
    %v6742 = vpop.f32.mrf.mxu0
    %v6743 = vadd.f32 0.0, %v6742
    %v6744 = vpop.f32.mrf.mxu0
    %6745 = vdwg.mxu0
    %6746 = vmatpush.bf16.msra.mxu0 %v6674
    %6747 = vmatpush.bf16.msra.mxu0 %v6672
    %6748 = vmatpush.bf16.msra.mxu0 %v6670
    %6749 = vmatpush.bf16.msra.mxu0 %v6668
    %6750 = vmatpush.bf16.msra.mxu0 %v6666
    %6751 = vmatpush.bf16.msra.mxu0 %v6664
    %6752 = vmatpush.bf16.msra.mxu0 %v6662
    %6753 = vmatpush.bf16.msra.mxu0 %v6660
    %6754 = vmatmul.bf16.gmra.mxu0 %v6544
    %v6755 = vpop.f32.mrf.mxu0
    %v6756 = vadd.f32 %v6743, %v6755
    %v6757 = vpop.f32.mrf.mxu0
    %6758 = vdwg.mxu0
    %v6791 = vunpack.c.l.b16 %v6458
    %v6792 = vunpack.c.h.b16 %v6458
    %v6793 = vunpack.c.l.b16 %v6459
    %v6794 = vunpack.c.h.b16 %v6459
    %v6795 = vunpack.c.l.b16 %v6460
    %v6796 = vunpack.c.h.b16 %v6460
    %v6797 = vunpack.c.l.b16 %v6461
    %v6798 = vunpack.c.h.b16 %v6461
    %v6799 = vunpack.c.l.b16 %v6462
    %v6800 = vunpack.c.h.b16 %v6462
    %v6801 = vunpack.c.l.b16 %v6463
    %v6802 = vunpack.c.h.b16 %v6463
    %v6803 = vunpack.c.l.b16 %v6464
    %v6804 = vunpack.c.h.b16 %v6464
    %v6805 = vunpack.c.l.b16 %v6465
    %v6806 = vunpack.c.h.b16 %v6465
    %v6807 = vunpack.c.l.b16 %v6466
    %v6808 = vunpack.c.h.b16 %v6466
    %v6809 = vunpack.c.l.b16 %v6467
    %v6810 = vunpack.c.h.b16 %v6467
    %v6811 = vunpack.c.l.b16 %v6468
    %v6812 = vunpack.c.h.b16 %v6468
    %v6813 = vunpack.c.l.b16 %v6469
    %v6814 = vunpack.c.h.b16 %v6469
    %v6815 = vunpack.c.l.b16 %v6470
    %v6816 = vunpack.c.h.b16 %v6470
    %v6817 = vunpack.c.l.b16 %v6471
    %v6818 = vunpack.c.h.b16 %v6471
    %v6819 = vunpack.c.l.b16 %v6472
    %v6820 = vunpack.c.h.b16 %v6472
    %v6821 = vunpack.c.l.b16 %v6473
    %v6822 = vunpack.c.h.b16 %v6473
    %v6823 = vunpack.c.l.b16 %v6474
    %v6824 = vunpack.c.h.b16 %v6474
    %v6825 = vunpack.c.l.b16 %v6475
    %v6826 = vunpack.c.h.b16 %v6475
    %v6827 = vunpack.c.l.b16 %v6476
    %v6828 = vunpack.c.h.b16 %v6476
    %v6829 = vunpack.c.l.b16 %v6477
    %v6830 = vunpack.c.h.b16 %v6477
    %v6831 = vunpack.c.l.b16 %v6478
    %v6832 = vunpack.c.h.b16 %v6478
    %v6833 = vunpack.c.l.b16 %v6479
    %v6834 = vunpack.c.h.b16 %v6479
    %v6835 = vunpack.c.l.b16 %v6480
    %v6836 = vunpack.c.h.b16 %v6480
    %v6837 = vunpack.c.l.b16 %v6481
    %v6838 = vunpack.c.h.b16 %v6481
    %v6839 = vunpack.c.l.b16 %v6482
    %v6840 = vunpack.c.h.b16 %v6482
    %v6841 = vunpack.c.l.b16 %v6483
    %v6842 = vunpack.c.h.b16 %v6483
    %v6843 = vunpack.c.l.b16 %v6484
    %v6844 = vunpack.c.h.b16 %v6484
    %v6845 = vunpack.c.l.b16 %v6485
    %v6846 = vunpack.c.h.b16 %v6485
    %v6847 = vunpack.c.l.b16 %v6486
    %v6848 = vunpack.c.h.b16 %v6486
    %v6849 = vunpack.c.l.b16 %v6487
    %v6850 = vunpack.c.h.b16 %v6487
    %v6851 = vunpack.c.l.b16 %v6488
    %v6852 = vunpack.c.h.b16 %v6488
    %v6853 = vunpack.c.l.b16 %v6489
    %v6854 = vunpack.c.h.b16 %v6489
    %v6855 = vpack.c.b16 %v6793, %v6791
    %v6856 = vpack.c.b16 %v6794, %v6792
    %v6857 = vpack.c.b16 %v6797, %v6795
    %v6858 = vpack.c.b16 %v6798, %v6796
    %v6859 = vpack.c.b16 %v6801, %v6799
    %v6860 = vpack.c.b16 %v6802, %v6800
    %v6861 = vpack.c.b16 %v6805, %v6803
    %v6862 = vpack.c.b16 %v6806, %v6804
    %v6863 = vpack.c.b16 %v6809, %v6807
    %v6864 = vpack.c.b16 %v6810, %v6808
    %v6865 = vpack.c.b16 %v6813, %v6811
    %v6866 = vpack.c.b16 %v6814, %v6812
    %v6867 = vpack.c.b16 %v6817, %v6815
    %v6868 = vpack.c.b16 %v6818, %v6816
    %v6869 = vpack.c.b16 %v6821, %v6819
    %v6870 = vpack.c.b16 %v6822, %v6820
    %v6871 = vpack.c.b16 %v6825, %v6823
    %v6872 = vpack.c.b16 %v6826, %v6824
    %v6873 = vpack.c.b16 %v6829, %v6827
    %v6874 = vpack.c.b16 %v6830, %v6828
    %v6875 = vpack.c.b16 %v6833, %v6831
    %v6876 = vpack.c.b16 %v6834, %v6832
    %v6877 = vpack.c.b16 %v6837, %v6835
    %v6878 = vpack.c.b16 %v6838, %v6836
    %v6879 = vpack.c.b16 %v6841, %v6839
    %v6880 = vpack.c.b16 %v6842, %v6840
    %v6881 = vpack.c.b16 %v6845, %v6843
    %v6882 = vpack.c.b16 %v6846, %v6844
    %v6883 = vpack.c.b16 %v6849, %v6847
    %v6884 = vpack.c.b16 %v6850, %v6848
    %v6885 = vpack.c.b16 %v6853, %v6851
    %v6886 = vpack.c.b16 %v6854, %v6852
    %6919 = vmatpush.bf16.msra.mxu0 %v6869
    %6920 = vmatpush.bf16.msra.mxu0 %v6867
    %6921 = vmatpush.bf16.msra.mxu0 %v6865
    %6922 = vmatpush.bf16.msra.mxu0 %v6863
    %6923 = vmatpush.bf16.msra.mxu0 %v6861
    %6924 = vmatpush.bf16.msra.mxu0 %v6859
    %6925 = vmatpush.bf16.msra.mxu0 %v6857
    %6926 = vmatpush.bf16.msra.mxu0 %v6855
    %6927 = vmatmul.bf16.gmra.mxu0 %v6456
    %v6928 = vpop.f32.mrf.mxu0
    %v6929 = vadd.f32 %v6730, %v6928
    %v6930 = vpop.f32.mrf.mxu0
    %6931 = vdwg.mxu0
    %6932 = vmatpush.bf16.msra.mxu0 %v6885
    %6933 = vmatpush.bf16.msra.mxu0 %v6883
    %6934 = vmatpush.bf16.msra.mxu0 %v6881
    %6935 = vmatpush.bf16.msra.mxu0 %v6879
    %6936 = vmatpush.bf16.msra.mxu0 %v6877
    %6937 = vmatpush.bf16.msra.mxu0 %v6875
    %6938 = vmatpush.bf16.msra.mxu0 %v6873
    %6939 = vmatpush.bf16.msra.mxu0 %v6871
    %6940 = vmatmul.bf16.gmra.mxu0 %v6457
    %v6941 = vpop.f32.mrf.mxu0
    %v6942 = vadd.f32 %v6929, %v6941
    %v6943 = vpop.f32.mrf.mxu0
    %6944 = vdwg.mxu0
    %6945 = vmatpush.bf16.msra.mxu0 %v6870
    %6946 = vmatpush.bf16.msra.mxu0 %v6868
    %6947 = vmatpush.bf16.msra.mxu0 %v6866
    %6948 = vmatpush.bf16.msra.mxu0 %v6864
    %6949 = vmatpush.bf16.msra.mxu0 %v6862
    %6950 = vmatpush.bf16.msra.mxu0 %v6860
    %6951 = vmatpush.bf16.msra.mxu0 %v6858
    %6952 = vmatpush.bf16.msra.mxu0 %v6856
    %6953 = vmatmul.bf16.gmra.mxu0 %v6456
    %v6954 = vpop.f32.mrf.mxu0
    %v6955 = vadd.f32 %v6756, %v6954
    %v6956 = vpop.f32.mrf.mxu0
    %6957 = vdwg.mxu0
    %6958 = vmatpush.bf16.msra.mxu0 %v6886
    %6959 = vmatpush.bf16.msra.mxu0 %v6884
    %6960 = vmatpush.bf16.msra.mxu0 %v6882
    %6961 = vmatpush.bf16.msra.mxu0 %v6880
    %6962 = vmatpush.bf16.msra.mxu0 %v6878
    %6963 = vmatpush.bf16.msra.mxu0 %v6876
    %6964 = vmatpush.bf16.msra.mxu0 %v6874
    %6965 = vmatpush.bf16.msra.mxu0 %v6872
    %6966 = vmatmul.bf16.gmra.mxu0 %v6457
    %v6967 = vpop.f32.mrf.mxu0
    %v6968 = vadd.f32 %v6955, %v6967
    %v6969 = vpop.f32.mrf.mxu0
    %6970 = vdwg.mxu0
    %v6971 = vld [vmem:[%s6447] sm:$0xcc]
    %6973 = vst [vmem:[#allocation1] ss:$2 sm:$0xff] %v6971
    %v6974 = vld.sshfl [vmem:[#allocation1] sm:$0xff pattern:$0x75316420]
    %v6975 = vld.sshfl [vmem:[#allocation1 + $0x8] sm:$0xff pattern:$0x75316420]
    %v6978 = vpack.c.bf16 %v6974, %v6974
    %v6979 = vpack.c.bf16 %v6975, %v6975
    %v6980 = vld [vmem:[%s3458] sm:$0xff]
    %v6981 = vld [vmem:[%s3458 + $0x8] sm:$0xff]
    %v6982 = vld [vmem:[%s3458 + $0x10] sm:$0xff]
    %v6983 = vld [vmem:[%s3458 + $0x18] sm:$0xff]
    %v6984 = vld [vmem:[%s3458 + $0x20] sm:$0xff]
    %v6985 = vld [vmem:[%s3458 + $0x28] sm:$0xff]
    %v6986 = vld [vmem:[%s3458 + $0x30] sm:$0xff]
    %v6987 = vld [vmem:[%s3458 + $0x38] sm:$0xff]
    %v6988 = vld [vmem:[%s3458 + $0x40] sm:$0xff]
    %v6989 = vld [vmem:[%s3458 + $0x48] sm:$0xff]
    %v6990 = vld [vmem:[%s3458 + $0x50] sm:$0xff]
    %v6991 = vld [vmem:[%s3458 + $0x58] sm:$0xff]
    %v6992 = vld [vmem:[%s3458 + $0x60] sm:$0xff]
    %v6993 = vld [vmem:[%s3458 + $0x68] sm:$0xff]
    %v6994 = vld [vmem:[%s3458 + $0x70] sm:$0xff]
    %v6995 = vld [vmem:[%s3458 + $0x78] sm:$0xff]
    %v6996 = vld [vmem:[%s3458 + $0x80] sm:$0xff]
    %v6997 = vld [vmem:[%s3458 + $0x88] sm:$0xff]
    %v6998 = vld [vmem:[%s3458 + $0x90] sm:$0xff]
    %v6999 = vld [vmem:[%s3458 + $0x98] sm:$0xff]
    %v7000 = vld [vmem:[%s3458 + $0xa0] sm:$0xff]
    %v7001 = vld [vmem:[%s3458 + $0xa8] sm:$0xff]
    %v7002 = vld [vmem:[%s3458 + $0xb0] sm:$0xff]
    %v7003 = vld [vmem:[%s3458 + $0xb8] sm:$0xff]
    %v7004 = vld [vmem:[%s3458 + $0xc0] sm:$0xff]
    %v7005 = vld [vmem:[%s3458 + $0xc8] sm:$0xff]
    %v7006 = vld [vmem:[%s3458 + $0xd0] sm:$0xff]
    %v7007 = vld [vmem:[%s3458 + $0xd8] sm:$0xff]
    %v7008 = vld [vmem:[%s3458 + $0xe0] sm:$0xff]
    %v7009 = vld [vmem:[%s3458 + $0xe8] sm:$0xff]
    %v7010 = vld [vmem:[%s3458 + $0xf0] sm:$0xff]
    %v7011 = vld [vmem:[%s3458 + $0xf8] sm:$0xff]
    %v7014 = vrot.slane %v6978, 1
    %v7015 = vrot.slane %v6979, 1
    %v7050 = vunpack.c.l.b16 %v6980
    %v7051 = vunpack.c.h.b16 %v6980
    %v7052 = vunpack.c.l.b16 %v6981
    %v7053 = vunpack.c.h.b16 %v6981
    %v7054 = vunpack.c.l.b16 %v6982
    %v7055 = vunpack.c.h.b16 %v6982
    %v7056 = vunpack.c.l.b16 %v6983
    %v7057 = vunpack.c.h.b16 %v6983
    %v7058 = vunpack.c.l.b16 %v6984
    %v7059 = vunpack.c.h.b16 %v6984
    %v7060 = vunpack.c.l.b16 %v6985
    %v7061 = vunpack.c.h.b16 %v6985
    %v7062 = vunpack.c.l.b16 %v6986
    %v7063 = vunpack.c.h.b16 %v6986
    %v7064 = vunpack.c.l.b16 %v6987
    %v7065 = vunpack.c.h.b16 %v6987
    %v7066 = vunpack.c.l.b16 %v6988
    %v7067 = vunpack.c.h.b16 %v6988
    %v7068 = vunpack.c.l.b16 %v6989
    %v7069 = vunpack.c.h.b16 %v6989
    %v7070 = vunpack.c.l.b16 %v6990
    %v7071 = vunpack.c.h.b16 %v6990
    %v7072 = vunpack.c.l.b16 %v6991
    %v7073 = vunpack.c.h.b16 %v6991
    %v7074 = vunpack.c.l.b16 %v6992
    %v7075 = vunpack.c.h.b16 %v6992
    %v7076 = vunpack.c.l.b16 %v6993
    %v7077 = vunpack.c.h.b16 %v6993
    %v7078 = vunpack.c.l.b16 %v6994
    %v7079 = vunpack.c.h.b16 %v6994
    %v7080 = vunpack.c.l.b16 %v6995
    %v7081 = vunpack.c.h.b16 %v6995
    %v7082 = vunpack.c.l.b16 %v6996
    %v7083 = vunpack.c.h.b16 %v6996
    %v7084 = vunpack.c.l.b16 %v6997
    %v7085 = vunpack.c.h.b16 %v6997
    %v7086 = vunpack.c.l.b16 %v6998
    %v7087 = vunpack.c.h.b16 %v6998
    %v7088 = vunpack.c.l.b16 %v6999
    %v7089 = vunpack.c.h.b16 %v6999
    %v7090 = vunpack.c.l.b16 %v7000
    %v7091 = vunpack.c.h.b16 %v7000
    %v7092 = vunpack.c.l.b16 %v7001
    %v7093 = vunpack.c.h.b16 %v7001
    %v7094 = vunpack.c.l.b16 %v7002
    %v7095 = vunpack.c.h.b16 %v7002
    %v7096 = vunpack.c.l.b16 %v7003
    %v7097 = vunpack.c.h.b16 %v7003
    %v7098 = vunpack.c.l.b16 %v7004
    %v7099 = vunpack.c.h.b16 %v7004
    %v7100 = vunpack.c.l.b16 %v7005
    %v7101 = vunpack.c.h.b16 %v7005
    %v7102 = vunpack.c.l.b16 %v7006
    %v7103 = vunpack.c.h.b16 %v7006
    %v7104 = vunpack.c.l.b16 %v7007
    %v7105 = vunpack.c.h.b16 %v7007
    %v7106 = vunpack.c.l.b16 %v7008
    %v7107 = vunpack.c.h.b16 %v7008
    %v7108 = vunpack.c.l.b16 %v7009
    %v7109 = vunpack.c.h.b16 %v7009
    %v7110 = vunpack.c.l.b16 %v7010
    %v7111 = vunpack.c.h.b16 %v7010
    %v7112 = vunpack.c.l.b16 %v7011
    %v7113 = vunpack.c.h.b16 %v7011
    %v7114 = vpack.c.b16 %v7052, %v7050
    %v7115 = vpack.c.b16 %v7053, %v7051
    %v7116 = vpack.c.b16 %v7056, %v7054
    %v7117 = vpack.c.b16 %v7057, %v7055
    %v7118 = vpack.c.b16 %v7060, %v7058
    %v7119 = vpack.c.b16 %v7061, %v7059
    %v7120 = vpack.c.b16 %v7064, %v7062
    %v7121 = vpack.c.b16 %v7065, %v7063
    %v7122 = vpack.c.b16 %v7068, %v7066
    %v7123 = vpack.c.b16 %v7069, %v7067
    %v7124 = vpack.c.b16 %v7072, %v7070
    %v7125 = vpack.c.b16 %v7073, %v7071
    %v7126 = vpack.c.b16 %v7076, %v7074
    %v7127 = vpack.c.b16 %v7077, %v7075
    %v7128 = vpack.c.b16 %v7080, %v7078
    %v7129 = vpack.c.b16 %v7081, %v7079
    %v7130 = vpack.c.b16 %v7084, %v7082
    %v7131 = vpack.c.b16 %v7085, %v7083
    %v7132 = vpack.c.b16 %v7088, %v7086
    %v7133 = vpack.c.b16 %v7089, %v7087
    %v7134 = vpack.c.b16 %v7092, %v7090
    %v7135 = vpack.c.b16 %v7093, %v7091
    %v7136 = vpack.c.b16 %v7096, %v7094
    %v7137 = vpack.c.b16 %v7097, %v7095
    %v7138 = vpack.c.b16 %v7100, %v7098
    %v7139 = vpack.c.b16 %v7101, %v7099
    %v7140 = vpack.c.b16 %v7104, %v7102
    %v7141 = vpack.c.b16 %v7105, %v7103
    %v7142 = vpack.c.b16 %v7108, %v7106
    %v7143 = vpack.c.b16 %v7109, %v7107
    %v7144 = vpack.c.b16 %v7112, %v7110
    %v7145 = vpack.c.b16 %v7113, %v7111
    %7178 = vmatpush.bf16.msra.mxu0 %v7128
    %7179 = vmatpush.bf16.msra.mxu0 %v7126
    %7180 = vmatpush.bf16.msra.mxu0 %v7124
    %7181 = vmatpush.bf16.msra.mxu0 %v7122
    %7182 = vmatpush.bf16.msra.mxu0 %v7120
    %7183 = vmatpush.bf16.msra.mxu0 %v7118
    %7184 = vmatpush.bf16.msra.mxu0 %v7116
    %7185 = vmatpush.bf16.msra.mxu0 %v7114
    %7186 = vmatmul.bf16.gmra.mxu0 %v7014
    %v7187 = vpop.f32.mrf.mxu0
    %v7188 = vadd.f32 0.0, %v7187
    %v7189 = vpop.f32.mrf.mxu0
    %7190 = vdwg.mxu0
    %7191 = vmatpush.bf16.msra.mxu0 %v7144
    %7192 = vmatpush.bf16.msra.mxu0 %v7142
    %7193 = vmatpush.bf16.msra.mxu0 %v7140
    %7194 = vmatpush.bf16.msra.mxu0 %v7138
    %7195 = vmatpush.bf16.msra.mxu0 %v7136
    %7196 = vmatpush.bf16.msra.mxu0 %v7134
    %7197 = vmatpush.bf16.msra.mxu0 %v7132
    %7198 = vmatpush.bf16.msra.mxu0 %v7130
    %7199 = vmatmul.bf16.gmra.mxu0 %v7015
    %v7200 = vpop.f32.mrf.mxu0
    %v7201 = vadd.f32 %v7188, %v7200
    %v7202 = vpop.f32.mrf.mxu0
    %7203 = vdwg.mxu0
    %7204 = vmatpush.bf16.msra.mxu0 %v7129
    %7205 = vmatpush.bf16.msra.mxu0 %v7127
    %7206 = vmatpush.bf16.msra.mxu0 %v7125
    %7207 = vmatpush.bf16.msra.mxu0 %v7123
    %7208 = vmatpush.bf16.msra.mxu0 %v7121
    %7209 = vmatpush.bf16.msra.mxu0 %v7119
    %7210 = vmatpush.bf16.msra.mxu0 %v7117
    %7211 = vmatpush.bf16.msra.mxu0 %v7115
    %7212 = vmatmul.bf16.gmra.mxu0 %v7014
    %v7213 = vpop.f32.mrf.mxu0
    %v7214 = vadd.f32 0.0, %v7213
    %v7215 = vpop.f32.mrf.mxu0
    %7216 = vdwg.mxu0
    %7217 = vmatpush.bf16.msra.mxu0 %v7145
    %7218 = vmatpush.bf16.msra.mxu0 %v7143
    %7219 = vmatpush.bf16.msra.mxu0 %v7141
    %7220 = vmatpush.bf16.msra.mxu0 %v7139
    %7221 = vmatpush.bf16.msra.mxu0 %v7137
    %7222 = vmatpush.bf16.msra.mxu0 %v7135
    %7223 = vmatpush.bf16.msra.mxu0 %v7133
    %7224 = vmatpush.bf16.msra.mxu0 %v7131
    %7225 = vmatmul.bf16.gmra.mxu0 %v7015
    %v7226 = vpop.f32.mrf.mxu0
    %v7227 = vadd.f32 %v7214, %v7226
    %v7228 = vpop.f32.mrf.mxu0
    %7229 = vdwg.mxu0
    %v7230 = vadd.f32 %v6942, %v7201
    %v7231 = vadd.f32 %v6968, %v7227
    %v7232 = vld [vmem:[%s11] sm:$0x3]
    %v7234 = vperm.slane %v7232, 0
    %v7235 = vperm.slane %v7232, 1
    %v7238 = vadd.f32 %v7230, %v7234
    %v7239 = vadd.f32 %v7231, %v7235
    %v7240 = vmax.f32 %v7238, 0.0
    %v7241 = vmax.f32 %v7239, 0.0
    %v7242 = vadd.f32 %v7240, %v7241
    %v7244 = vrot.slane %v7240, 1
    %v7246 = vadd.f32 %v7242, %v7244
    %v7248 = vrot.slane %v7241, 1
    %v7250 = vadd.f32 %v7246, %v7248
    %v7251 = vmul.f32 %v7250, 0.25
    %7252 = vst [vmem:[#allocation7 + $0x1] sm:$0x1] %v7251
    %v7253 = vld [vmem:[%s0] sm:$0x3f]
    %7255 = vst [vmem:[#allocation1] ss:$4 sm:$0xff] %v7253
    %v7256 = vld.sshfl [vmem:[#allocation1] sm:$0xff pattern:$0x73625140]
    %v7257 = vld.sshfl [vmem:[#allocation1 + $0x8] sm:$0xff pattern:$0x73625140]
    %v7258 = vld.sshfl [vmem:[#allocation1 + $0x10] sm:$0xff pattern:$0x73625140]
    %v7262 = vpack.c.bf16 %v7256, %v7256
    %v7263 = vpack.c.bf16 %v7257, %v7257
    %v7264 = vpack.c.bf16 %v7258, %v7258
    %v7265 = vld [vmem:[%s16] sm:$0xff]
    %v7266 = vld [vmem:[%s16 + $0x8] sm:$0xff]
    %v7267 = vld [vmem:[%s16 + $0x10] sm:$0xff]
    %v7268 = vld [vmem:[%s16 + $0x18] sm:$0xff]
    %v7269 = vld [vmem:[%s16 + $0x20] sm:$0xff]
    %v7270 = vld [vmem:[%s16 + $0x28] sm:$0xff]
    %v7271 = vld [vmem:[%s16 + $0x30] sm:$0xff]
    %v7272 = vld [vmem:[%s16 + $0x38] sm:$0xff]
    %v7273 = vld [vmem:[%s16 + $0x40] sm:$0xff]
    %v7274 = vld [vmem:[%s16 + $0x48] sm:$0xff]
    %v7275 = vld [vmem:[%s16 + $0x50] sm:$0xff]
    %v7276 = vld [vmem:[%s16 + $0x58] sm:$0xff]
    %v7277 = vld [vmem:[%s16 + $0x60] sm:$0xff]
    %v7278 = vld [vmem:[%s16 + $0x68] sm:$0xff]
    %v7279 = vld [vmem:[%s16 + $0x70] sm:$0xff]
    %v7280 = vld [vmem:[%s16 + $0x78] sm:$0xff]
    %v7281 = vld [vmem:[%s16 + $0x80] sm:$0xff]
    %v7282 = vld [vmem:[%s16 + $0x88] sm:$0xff]
    %v7283 = vld [vmem:[%s16 + $0x90] sm:$0xff]
    %v7284 = vld [vmem:[%s16 + $0x98] sm:$0xff]
    %v7285 = vld [vmem:[%s16 + $0xa0] sm:$0xff]
    %v7286 = vld [vmem:[%s16 + $0xa8] sm:$0xff]
    %v7287 = vld [vmem:[%s16 + $0xb0] sm:$0xff]
    %v7288 = vld [vmem:[%s16 + $0xb8] sm:$0xff]
    %v7289 = vld [vmem:[%s16 + $0xc0] sm:$0xff]
    %v7290 = vld [vmem:[%s16 + $0xc8] sm:$0xff]
    %v7291 = vld [vmem:[%s16 + $0xd0] sm:$0xff]
    %v7292 = vld [vmem:[%s16 + $0xd8] sm:$0xff]
    %v7293 = vld [vmem:[%s16 + $0xe0] sm:$0xff]
    %v7294 = vld [vmem:[%s16 + $0xe8] sm:$0xff]
    %v7295 = vld [vmem:[%s16 + $0xf0] sm:$0xff]
    %v7296 = vld [vmem:[%s16 + $0xf8] sm:$0xff]
    %v7297 = vld [vmem:[%s16 + $0x100] sm:$0xff]
    %v7298 = vld [vmem:[%s16 + $0x108] sm:$0xff]
    %v7299 = vld [vmem:[%s16 + $0x110] sm:$0xff]
    %v7300 = vld [vmem:[%s16 + $0x118] sm:$0xff]
    %v7301 = vld [vmem:[%s16 + $0x120] sm:$0xff]
    %v7302 = vld [vmem:[%s16 + $0x128] sm:$0x33]
    %v7303 = vld [vmem:[%s17] sm:$0x3]
    %v7305 = vperm.slane %v7303, 0
    %v7306 = vperm.slane %v7303, 1
    %v7347 = vunpack.c.l.b16 %v7265
    %v7348 = vunpack.c.h.b16 %v7265
    %v7349 = vunpack.c.l.b16 %v7266
    %v7350 = vunpack.c.h.b16 %v7266
    %v7351 = vunpack.c.l.b16 %v7267
    %v7352 = vunpack.c.h.b16 %v7267
    %v7353 = vunpack.c.l.b16 %v7268
    %v7354 = vunpack.c.h.b16 %v7268
    %v7355 = vunpack.c.l.b16 %v7269
    %v7356 = vunpack.c.h.b16 %v7269
    %v7357 = vunpack.c.l.b16 %v7270
    %v7358 = vunpack.c.h.b16 %v7270
    %v7359 = vunpack.c.l.b16 %v7271
    %v7360 = vunpack.c.h.b16 %v7271
    %v7361 = vunpack.c.l.b16 %v7272
    %v7362 = vunpack.c.h.b16 %v7272
    %v7363 = vunpack.c.l.b16 %v7273
    %v7364 = vunpack.c.h.b16 %v7273
    %v7365 = vunpack.c.l.b16 %v7274
    %v7366 = vunpack.c.h.b16 %v7274
    %v7367 = vunpack.c.l.b16 %v7275
    %v7368 = vunpack.c.h.b16 %v7275
    %v7369 = vunpack.c.l.b16 %v7276
    %v7370 = vunpack.c.h.b16 %v7276
    %v7371 = vunpack.c.l.b16 %v7277
    %v7372 = vunpack.c.h.b16 %v7277
    %v7373 = vunpack.c.l.b16 %v7278
    %v7374 = vunpack.c.h.b16 %v7278
    %v7375 = vunpack.c.l.b16 %v7279
    %v7376 = vunpack.c.h.b16 %v7279
    %v7377 = vunpack.c.l.b16 %v7280
    %v7378 = vunpack.c.h.b16 %v7280
    %v7379 = vunpack.c.l.b16 %v7281
    %v7380 = vunpack.c.h.b16 %v7281
    %v7381 = vunpack.c.l.b16 %v7282
    %v7382 = vunpack.c.h.b16 %v7282
    %v7383 = vunpack.c.l.b16 %v7283
    %v7384 = vunpack.c.h.b16 %v7283
    %v7385 = vunpack.c.l.b16 %v7284
    %v7386 = vunpack.c.h.b16 %v7284
    %v7387 = vunpack.c.l.b16 %v7285
    %v7388 = vunpack.c.h.b16 %v7285
    %v7389 = vunpack.c.l.b16 %v7286
    %v7390 = vunpack.c.h.b16 %v7286
    %v7391 = vunpack.c.l.b16 %v7287
    %v7392 = vunpack.c.h.b16 %v7287
    %v7393 = vunpack.c.l.b16 %v7288
    %v7394 = vunpack.c.h.b16 %v7288
    %v7395 = vunpack.c.l.b16 %v7289
    %v7396 = vunpack.c.h.b16 %v7289
    %v7397 = vunpack.c.l.b16 %v7290
    %v7398 = vunpack.c.h.b16 %v7290
    %v7399 = vunpack.c.l.b16 %v7291
    %v7400 = vunpack.c.h.b16 %v7291
    %v7401 = vunpack.c.l.b16 %v7292
    %v7402 = vunpack.c.h.b16 %v7292
    %v7403 = vunpack.c.l.b16 %v7293
    %v7404 = vunpack.c.h.b16 %v7293
    %v7405 = vunpack.c.l.b16 %v7294
    %v7406 = vunpack.c.h.b16 %v7294
    %v7407 = vunpack.c.l.b16 %v7295
    %v7408 = vunpack.c.h.b16 %v7295
    %v7409 = vunpack.c.l.b16 %v7296
    %v7410 = vunpack.c.h.b16 %v7296
    %v7411 = vunpack.c.l.b16 %v7297
    %v7412 = vunpack.c.h.b16 %v7297
    %v7413 = vunpack.c.l.b16 %v7298
    %v7414 = vunpack.c.h.b16 %v7298
    %v7415 = vunpack.c.l.b16 %v7299
    %v7416 = vunpack.c.h.b16 %v7299
    %v7417 = vunpack.c.l.b16 %v7300
    %v7418 = vunpack.c.h.b16 %v7300
    %v7419 = vunpack.c.l.b16 %v7301
    %v7420 = vunpack.c.h.b16 %v7301
    %v7421 = vunpack.c.l.b16 %v7302
    %v7422 = vunpack.c.h.b16 %v7302
    %v7423 = vpack.c.b16 %v7349, %v7347
    %v7424 = vpack.c.b16 %v7350, %v7348
    %v7425 = vpack.c.b16 %v7353, %v7351
    %v7426 = vpack.c.b16 %v7354, %v7352
    %v7427 = vpack.c.b16 %v7357, %v7355
    %v7428 = vpack.c.b16 %v7358, %v7356
    %v7429 = vpack.c.b16 %v7361, %v7359
    %v7430 = vpack.c.b16 %v7362, %v7360
    %v7431 = vpack.c.b16 %v7365, %v7363
    %v7432 = vpack.c.b16 %v7366, %v7364
    %v7433 = vpack.c.b16 %v7369, %v7367
    %v7434 = vpack.c.b16 %v7370, %v7368
    %v7435 = vpack.c.b16 %v7373, %v7371
    %v7436 = vpack.c.b16 %v7374, %v7372
    %v7437 = vpack.c.b16 %v7377, %v7375
    %v7438 = vpack.c.b16 %v7378, %v7376
    %v7439 = vpack.c.b16 %v7381, %v7379
    %v7440 = vpack.c.b16 %v7382, %v7380
    %v7441 = vpack.c.b16 %v7385, %v7383
    %v7442 = vpack.c.b16 %v7386, %v7384
    %v7443 = vpack.c.b16 %v7389, %v7387
    %v7444 = vpack.c.b16 %v7390, %v7388
    %v7445 = vpack.c.b16 %v7393, %v7391
    %v7446 = vpack.c.b16 %v7394, %v7392
    %v7447 = vpack.c.b16 %v7397, %v7395
    %v7448 = vpack.c.b16 %v7398, %v7396
    %v7449 = vpack.c.b16 %v7401, %v7399
    %v7450 = vpack.c.b16 %v7402, %v7400
    %v7451 = vpack.c.b16 %v7405, %v7403
    %v7452 = vpack.c.b16 %v7406, %v7404
    %v7453 = vpack.c.b16 %v7409, %v7407
    %v7454 = vpack.c.b16 %v7410, %v7408
    %v7455 = vpack.c.b16 %v7413, %v7411
    %v7456 = vpack.c.b16 %v7414, %v7412
    %v7457 = vpack.c.b16 %v7417, %v7415
    %v7458 = vpack.c.b16 %v7418, %v7416
    %v7459 = vpack.c.b16 %v7421, %v7419
    %v7460 = vpack.c.b16 %v7422, %v7420
    %vm7497 = vcmask 359424
    %v7499 = vsel %vm7497, %v7264, 0
    %v7502 = vsel %vm322, %v7459, 0
    %v7505 = vsel %vm322, %v7460, 0
    %7507 = vmatpush.bf16.msra.mxu0 %v7437
    %7508 = vmatpush.bf16.msra.mxu0 %v7435
    %7509 = vmatpush.bf16.msra.mxu0 %v7433
    %7510 = vmatpush.bf16.msra.mxu0 %v7431
    %7511 = vmatpush.bf16.msra.mxu0 %v7429
    %7512 = vmatpush.bf16.msra.mxu0 %v7427
    %7513 = vmatpush.bf16.msra.mxu0 %v7425
    %7514 = vmatpush.bf16.msra.mxu0 %v7423
    %7515 = vmatmul.bf16.gmra.mxu0 %v7262
    %v7516 = vpop.f32.mrf.mxu0
    %v7517 = vadd.f32 %v7305, %v7516
    %v7518 = vpop.f32.mrf.mxu0
    %7519 = vdwg.mxu0
    %7520 = vmatpush.bf16.msra.mxu0 %v7453
    %7521 = vmatpush.bf16.msra.mxu0 %v7451
    %7522 = vmatpush.bf16.msra.mxu0 %v7449
    %7523 = vmatpush.bf16.msra.mxu0 %v7447
    %7524 = vmatpush.bf16.msra.mxu0 %v7445
    %7525 = vmatpush.bf16.msra.mxu0 %v7443
    %7526 = vmatpush.bf16.msra.mxu0 %v7441
    %7527 = vmatpush.bf16.msra.mxu0 %v7439
    %7528 = vmatmul.bf16.gmra.mxu0 %v7263
    %v7529 = vpop.f32.mrf.mxu0
    %v7530 = vadd.f32 %v7517, %v7529
    %v7531 = vpop.f32.mrf.mxu0
    %7532 = vdwg.mxu0
    %7533 = vmatpush.bf16.msra.mxu0 0
    %7534 = vmatpush.bf16.msra.mxu0 0
    %7535 = vmatpush.bf16.msra.mxu0 0
    %7536 = vmatpush.bf16.msra.mxu0 0
    %7537 = vmatpush.bf16.msra.mxu0 0
    %7538 = vmatpush.bf16.msra.mxu0 %v7502
    %7539 = vmatpush.bf16.msra.mxu0 %v7457
    %7540 = vmatpush.bf16.msra.mxu0 %v7455
    %7541 = vmatmul.bf16.gmra.mxu0 %v7499
    %v7542 = vpop.f32.mrf.mxu0
    %v7543 = vadd.f32 %v7530, %v7542
    %v7544 = vpop.f32.mrf.mxu0
    %7545 = vdwg.mxu0
    %7546 = vmatpush.bf16.msra.mxu0 %v7438
    %7547 = vmatpush.bf16.msra.mxu0 %v7436
    %7548 = vmatpush.bf16.msra.mxu0 %v7434
    %7549 = vmatpush.bf16.msra.mxu0 %v7432
    %7550 = vmatpush.bf16.msra.mxu0 %v7430
    %7551 = vmatpush.bf16.msra.mxu0 %v7428
    %7552 = vmatpush.bf16.msra.mxu0 %v7426
    %7553 = vmatpush.bf16.msra.mxu0 %v7424
    %7554 = vmatmul.bf16.gmra.mxu0 %v7262
    %v7555 = vpop.f32.mrf.mxu0
    %v7556 = vadd.f32 %v7306, %v7555
    %v7557 = vpop.f32.mrf.mxu0
    %7558 = vdwg.mxu0
    %7559 = vmatpush.bf16.msra.mxu0 %v7454
    %7560 = vmatpush.bf16.msra.mxu0 %v7452
    %7561 = vmatpush.bf16.msra.mxu0 %v7450
    %7562 = vmatpush.bf16.msra.mxu0 %v7448
    %7563 = vmatpush.bf16.msra.mxu0 %v7446
    %7564 = vmatpush.bf16.msra.mxu0 %v7444
    %7565 = vmatpush.bf16.msra.mxu0 %v7442
    %7566 = vmatpush.bf16.msra.mxu0 %v7440
    %7567 = vmatmul.bf16.gmra.mxu0 %v7263
    %v7568 = vpop.f32.mrf.mxu0
    %v7569 = vadd.f32 %v7556, %v7568
    %v7570 = vpop.f32.mrf.mxu0
    %7571 = vdwg.mxu0
    %7572 = vmatpush.bf16.msra.mxu0 0
    %7573 = vmatpush.bf16.msra.mxu0 0
    %7574 = vmatpush.bf16.msra.mxu0 0
    %7575 = vmatpush.bf16.msra.mxu0 0
    %7576 = vmatpush.bf16.msra.mxu0 0
    %7577 = vmatpush.bf16.msra.mxu0 %v7505
    %7578 = vmatpush.bf16.msra.mxu0 %v7458
    %7579 = vmatpush.bf16.msra.mxu0 %v7456
    %7580 = vmatmul.bf16.gmra.mxu0 %v7499
    %v7581 = vpop.f32.mrf.mxu0
    %v7582 = vadd.f32 %v7569, %v7581
    %v7583 = vpop.f32.mrf.mxu0
    %7584 = vdwg.mxu0
    %7586 = vrot.lane.b32.xlu0 %v7543, 96
    %v7587 = vpop.permute.xlu0 %7586
    %v7589 = vmax.f32 %v7543, %v7587
    %7590 = vrot.lane.b32.xlu0 %v7543, 64
    %v7591 = vpop.permute.xlu0 %7590
    %v7593 = vmax.f32 %v7589, %v7591
    %7594 = vrot.lane.b32.xlu0 %v7543, 32
    %v7595 = vpop.permute.xlu0 %7594
    %v7597 = vmax.f32 %v7593, %v7595
    %v7598 = vmax.f32 %v7597, %v7582
    %v7599 = vpack.c.bf16 %v7598, %v7598
    %v7600 = vld [vmem:[%s18] sm:$0xff]
    %v7601 = vld [vmem:[%s18 + $0x8] sm:$0xf]
    %v7602 = vld [vmem:[%s18 + $0xc] sm:$0xff]
    %v7603 = vld [vmem:[%s18 + $0x14] sm:$0xf]
    %v7604 = vld [vmem:[%s18 + $0x18] sm:$0xff]
    %v7605 = vld [vmem:[%s18 + $0x20] sm:$0xf]
    %v7606 = vld [vmem:[%s18 + $0x24] sm:$0xff]
    %v7607 = vld [vmem:[%s18 + $0x2c] sm:$0xf]
    %v7608 = vld [vmem:[%s19] sm:$0x7]
    %v7610 = vperm.slane %v7608, 0
    %v7611 = vperm.slane %v7608, 1
    %v7612 = vperm.slane %v7608, 2
    %v7624 = vunpack.c.l.b16 %v7600
    %v7625 = vunpack.c.h.b16 %v7600
    %v7626 = vunpack.c.l.b16 %v7601
    %v7627 = vunpack.c.l.b16 %v7602
    %v7628 = vunpack.c.h.b16 %v7602
    %v7629 = vunpack.c.l.b16 %v7603
    %v7630 = vunpack.c.l.b16 %v7604
    %v7631 = vunpack.c.h.b16 %v7604
    %v7632 = vunpack.c.l.b16 %v7605
    %v7633 = vunpack.c.l.b16 %v7606
    %v7634 = vunpack.c.h.b16 %v7606
    %v7635 = vunpack.c.l.b16 %v7607
    %v7636 = vpack.c.b16 %v7627, %v7624
    %v7637 = vpack.c.b16 %v7628, %v7625
    %v7638 = vpack.c.b16 %v7629, %v7626
    %v7639 = vpack.c.b16 %v7633, %v7630
    %v7640 = vpack.c.b16 %v7634, %v7631
    %v7641 = vpack.c.b16 %v7635, %v7632
    %v7649 = vsel %vm166, %v7599, 0
    %7651 = vmatpush.bf16.msra.mxu0 0
    %7652 = vmatpush.bf16.msra.mxu0 0
    %7653 = vmatpush.bf16.msra.mxu0 0
    %7654 = vmatpush.bf16.msra.mxu0 0
    %7655 = vmatpush.bf16.msra.mxu0 0
    %7656 = vmatpush.bf16.msra.mxu0 0
    %7657 = vmatpush.bf16.msra.mxu0 %v7639
    %7658 = vmatpush.bf16.msra.mxu0 %v7636
    %7659 = vmatmul.bf16.gmra.mxu0 %v7649
    %v7660 = vpop.f32.mrf.mxu0
    %v7661 = vadd.f32 %v7610, %v7660
    %v7662 = vpop.f32.mrf.mxu0
    %7663 = vdwg.mxu0
    %7664 = vmatpush.bf16.msra.mxu0 0
    %7665 = vmatpush.bf16.msra.mxu0 0
    %7666 = vmatpush.bf16.msra.mxu0 0
    %7667 = vmatpush.bf16.msra.mxu0 0
    %7668 = vmatpush.bf16.msra.mxu0 0
    %7669 = vmatpush.bf16.msra.mxu0 0
    %7670 = vmatpush.bf16.msra.mxu0 %v7640
    %7671 = vmatpush.bf16.msra.mxu0 %v7637
    %7672 = vmatmul.bf16.gmra.mxu0 %v7649
    %v7673 = vpop.f32.mrf.mxu0
    %v7674 = vadd.f32 %v7611, %v7673
    %v7675 = vpop.f32.mrf.mxu0
    %7676 = vdwg.mxu0
    %7677 = vmatpush.bf16.msra.mxu0 0
    %7678 = vmatpush.bf16.msra.mxu0 0
    %7679 = vmatpush.bf16.msra.mxu0 0
    %7680 = vmatpush.bf16.msra.mxu0 0
    %7681 = vmatpush.bf16.msra.mxu0 0
    %7682 = vmatpush.bf16.msra.mxu0 0
    %7683 = vmatpush.bf16.msra.mxu0 %v7641
    %7684 = vmatpush.bf16.msra.mxu0 %v7638
    %7685 = vmatmul.bf16.gmra.mxu0 %v7649
    %v7686 = vpop.f32.mrf.mxu0
    %v7687 = vadd.f32 %v7612, %v7686
    %v7688 = vpop.f32.mrf.mxu0
    %7689 = vdwg.mxu0
    %7691 = vrot.lane.b32.xlu0 %v7661, 64
    %v7692 = vpop.permute.xlu0 %7691
    %v7694 = vmax.f32 %v7661, %v7692
    %v7695 = vmax.f32 %v7694, %v7674
    %7697 = vrot.lane.b32.xlu0 %v7674, 64
    %v7698 = vpop.permute.xlu0 %7697
    %v7700 = vmax.f32 %v7695, %v7698
    %v7701 = vmax.f32 %v7700, %v7687
    %v7702 = vld [vmem:[%s20] sm:$0xff]
    %v7703 = vld [vmem:[%s20 + $0x8] sm:$0xff]
    %v7704 = vld [vmem:[%s20 + $0x10] sm:$0xff]
    %v7705 = vld [vmem:[%s20 + $0x18] sm:$0xff]
    %v7706 = vld [vmem:[%s20 + $0x20] sm:$0xff]
    %v7707 = vld [vmem:[%s20 + $0x28] sm:$0xff]
    %v7708 = vld [vmem:[%s20 + $0x30] sm:$0xff]
    %v7709 = vld [vmem:[%s20 + $0x38] sm:$0xff]
    %v7710 = vld [vmem:[#allocation7] sm:$0x3]
    %v7711 = vld [vmem:[%s21] sm:$0xff]
    %v7712 = vld [vmem:[%s21 + $0x8] sm:$0xff]
    %v7713 = vld [vmem:[%s21 + $0x10] sm:$0xff]
    %v7714 = vld [vmem:[%s21 + $0x18] sm:$0xff]
    %v7715 = vld [vmem:[%s21 + $0x20] sm:$0xff]
    %v7716 = vld [vmem:[%s21 + $0x28] sm:$0xff]
    %v7717 = vld [vmem:[%s21 + $0x30] sm:$0xff]
    %v7718 = vld [vmem:[%s21 + $0x38] sm:$0xff]
    %v7719 = vld [vmem:[%s21 + $0x40] sm:$0xff]
    %v7720 = vld [vmem:[%s21 + $0x48] sm:$0xff]
    %v7721 = vld [vmem:[%s21 + $0x50] sm:$0xff]
    %v7722 = vld [vmem:[%s21 + $0x58] sm:$0xff]
    %v7723 = vld [vmem:[%s21 + $0x60] sm:$0xff]
    %v7724 = vld [vmem:[%s21 + $0x68] sm:$0xff]
    %v7725 = vld [vmem:[%s21 + $0x70] sm:$0xff]
    %v7726 = vld [vmem:[%s21 + $0x78] sm:$0xff]
    %7727 = vmatpush.msra.mxu0 %v7726
    %7728 = vmatpush.msra.mxu0 %v7725
    %7729 = vmatpush.msra.mxu0 %v7724
    %7730 = vmatpush.msra.mxu0 %v7723
    %7731 = vmatpush.msra.mxu0 %v7722
    %7732 = vmatpush.msra.mxu0 %v7721
    %7733 = vmatpush.msra.mxu0 %v7720
    %7734 = vmatpush.msra.mxu0 %v7719
    %7735 = vmatpush.msra.mxu0 %v7718
    %7736 = vmatpush.msra.mxu0 %v7717
    %7737 = vmatpush.msra.mxu0 %v7716
    %7738 = vmatpush.msra.mxu0 %v7715
    %7739 = vmatpush.msra.mxu0 %v7714
    %7740 = vmatpush.msra.mxu0 %v7713
    %7741 = vmatpush.msra.mxu0 %v7712
    %7742 = vmatpush.msra.mxu0 %v7711
    %7743 = vmatmul.f32.gmra.mxu0 %v7710
    %v7744 = vpop.f32.mrf.mxu0
    %v7745 = vadd.f32 0.0, %v7744
    %7746 = vdwg.mxu0
    %v7748 = vsel %vm2433, %v7701, 0
    %7750 = vmatpush.msra.mxu0 0.0
    %7751 = vmatpush.msra.mxu0 0.0
    %7752 = vmatpush.msra.mxu0 0.0
    %7753 = vmatpush.msra.mxu0 0.0
    %7754 = vmatpush.msra.mxu0 0.0
    %7755 = vmatpush.msra.mxu0 0.0
    %7756 = vmatpush.msra.mxu0 0.0
    %7757 = vmatpush.msra.mxu0 0.0
    %7758 = vmatpush.msra.mxu0 %v7709
    %7759 = vmatpush.msra.mxu0 %v7708
    %7760 = vmatpush.msra.mxu0 %v7707
    %7761 = vmatpush.msra.mxu0 %v7706
    %7762 = vmatpush.msra.mxu0 %v7705
    %7763 = vmatpush.msra.mxu0 %v7704
    %7764 = vmatpush.msra.mxu0 %v7703
    %7765 = vmatpush.msra.mxu0 %v7702
    %7766 = vmatmul.f32.gmra.mxu0 %v7748
    %v7767 = vpop.f32.mrf.mxu0
    %v7768 = vadd.f32 %v7745, %v7767
    %7769 = vdwg.mxu0
    %v7770 = vld [vmem:[%s22] sm:$0x1]
    %v7772 = vperm.slane %v7770, 0
    %v7774 = vadd.f32 %v7768, %v7772
    %7775 = vst.msk [vmem:[#allocation16] sm:$0x3] %vm157, %v7774
    // Predicated region
    $region110: #{forward.1} parent=1 // pred_check
      _
    $region111: #{forward.1} parent=1 // pred_check_branch
      %7777 = sbr.rel (0) target = $region113
    $region112: #{forward.1} parent=1 // pred_region
      %7779 = vsyncadd [#allocation10], 0
      %s7781 = sshll.u32 [#allocation16], 4
      %s7782 = int_to_ptr.vmem [resolvable:$true] %s7781
      %s7783 = sshll.u32 %s23, 4
      %s7784 = int_to_ptr.hbm [resolvable:$true] %s7783
      %7786 = dma.vmem_to_hbm [thread:$0]  %s7782, 32, %s7784, [#allocation10]
    $region113: #{forward.1} parent=1 // pred_fallthru
      _
    // Predicated region
    $region114: #{forward.1} parent=1 // pred_check
      _
    $region115: #{forward.1} parent=1 // pred_check_branch
      %7788 = sbr.rel (0) target = $region117
    $region116: #{forward.1} parent=1 // pred_region
      %7790 = dma.done [#allocation10], 32
    $region117: #{forward.1} parent=1 // pred_fallthru
      _
    %7791 = vsyncpa [#allocation9], 1
    %7792 = vsyncpa [#allocation12], 1
    %7793 = vsyncpa [#allocation15], 1
    %7794 = vsyncpa [#allocation10], 1

</llo_original>
